<compile_context>
chip_gen: v7x
topology: tpu7x:2x2x1
jax: 0.10.0
libtpu: 0.0.40
codegen_flags: <defaults>
</compile_context>

<pallas_src>
import functools

import jax
import jax.numpy as jnp
from jax.experimental import pallas as pl
from jax.experimental.pallas import tpu as pltpu

C_IN = 84         # CondMLP.l0 input channels
C_IN_PAD = 128    # lane-aligned padded input channels (zero padded)
C_HID = 256       # hidden width / z channels
N_RES = 5         # number of ResBlocks


def cond_mlp_kernel(x_ref, z_ref,
                    w0_ref, b0_ref,
                    wzf_ref, bzf_ref,
                    w1_ref, b1_ref,
                    w2_ref, b2_ref,
                    o_ref):
    # x_ref: (tm, 128) bf16, z_ref: (tm, 256) bf16.
    # Weights pre-transposed (Cin, Cout) bf16; biases f32.

    # l0: pointwise linear, no ReLU.  bf16 x bf16 -> f32 accumulate.
    x = jnp.dot(x_ref[...], w0_ref[...],
                preferred_element_type=jnp.float32) + b0_ref[...]

    # Fused z branch: one (tm,256)x(256, 5*256) matmul replaces 5 small ones.
    # Stored bf16 to halve its VMEM footprint; cast back per-slice below.
    zr_all = jnp.maximum(
        jnp.dot(z_ref[...], wzf_ref[...],
                preferred_element_type=jnp.float32) + bzf_ref[...],
        0.0).astype(jnp.bfloat16)

    # Static unroll over the 5 ResBlocks (weights stacked along leading axis).
    for r in range(N_RES):
        zr = zr_all[:, r * C_HID:(r + 1) * C_HID].astype(jnp.float32)  # 128-aligned
        res = x + zr                                                   # f32 residual
        h = jnp.maximum(
            jnp.dot(res.astype(jnp.bfloat16), w1_ref[r],
                    preferred_element_type=jnp.float32) + b1_ref[r],
            0.0)
        x = jnp.maximum(
            jnp.dot(h.astype(jnp.bfloat16), w2_ref[r],
                    preferred_element_type=jnp.float32) + b2_ref[r],
            0.0) + res

    o_ref[...] = x.astype(o_ref.dtype)


def _round_up(v, m):
    return ((v + m - 1) // m) * m


@functools.partial(jax.jit, static_argnames=("tm", "out_dtype"))
def cond_mlp_pallas(x_tok, z_tok, params, *, tm=1024, out_dtype=jnp.float32):
    """x_tok: (M, 84) f32, z_tok: (M, 256) f32.  Returns (M, 256) out_dtype."""
    M = x_tok.shape[0]
    w0, b0, wz, bz, w1, b1, w2, b2 = params

    # Effective token tile:
    #  - never larger than requested tm,
    #  - clamped so small M is not padding-dominated,
    #  - >= 2 grid steps at moderate M so both v7x TCs are fed.
    tm_eff = min(tm, max(256, _round_up(pl.cdiv(M, 2), 256)))
    Mp = pl.cdiv(M, tm_eff) * tm_eff

    # ---- wrapper-side prep: pad tokens & channels, pack/cast weights -------
    x_p = jnp.pad(x_tok, ((0, Mp - M), (0, C_IN_PAD - C_IN))).astype(jnp.bfloat16)
    z_p = jnp.pad(z_tok, ((0, Mp - M), (0, 0))).astype(jnp.bfloat16)

    w0_p = jnp.pad(w0, ((0, C_IN_PAD - C_IN), (0, 0))).astype(jnp.bfloat16)
    b0_p = b0.reshape(1, C_HID).astype(jnp.float32)
    # wz[r] stacked column-wise: wzf[:, r*256:(r+1)*256] == wz[r]
    wzf = jnp.transpose(wz, (1, 0, 2)).reshape(C_HID, N_RES * C_HID).astype(jnp.bfloat16)
    bzf = bz.reshape(1, N_RES * C_HID).astype(jnp.float32)
    w1_b = w1.astype(jnp.bfloat16)
    b1_b = b1.reshape(N_RES, 1, C_HID).astype(jnp.float32)
    w2_b = w2.astype(jnp.bfloat16)
    b2_b = b2.reshape(N_RES, 1, C_HID).astype(jnp.float32)

    const2 = lambda i: (0, 0)
    const3 = lambda i: (0, 0, 0)
    # Constant-index weight blocks: fetched once -> single-buffer them.
    wspec2 = lambda shape: pl.BlockSpec(shape, const2, pipeline_mode=pl.Buffered(1))
    wspec3 = lambda shape: pl.BlockSpec(shape, const3, pipeline_mode=pl.Buffered(1))

    out_bytes = jnp.dtype(out_dtype).itemsize
    weight_elems = C_IN_PAD * C_HID + (1 + 2 * N_RES) * C_HID * C_HID  # w0+wzf+w1+w2
    flops = 2 * Mp * (C_IN_PAD * C_HID + 3 * N_RES * C_HID * C_HID)
    bytes_accessed = (Mp * (C_IN_PAD + C_HID) * 2          # bf16 token inputs
                      + Mp * C_HID * out_bytes             # output
                      + weight_elems * 2                   # bf16 weights
                      + (2 + 2 * N_RES) * C_HID * 4        # f32 biases (b0+bzf+b1+b2)
                      + N_RES * C_HID * 4)

    # 32 MiB is v7x-safe; only tm sweeps above 1024 (v5e/v6e-only) need more.
    vmem_limit = (64 << 20) if tm_eff > 1024 else (32 << 20)

    out = pl.pallas_call(
        cond_mlp_kernel,
        out_shape=jax.ShapeDtypeStruct((Mp, C_HID), out_dtype),
        grid_spec=pltpu.PrefetchScalarGridSpec(
            num_scalar_prefetch=0,
            grid=(Mp // tm_eff,),
            in_specs=[
                pl.BlockSpec((tm_eff, C_IN_PAD), lambda i: (i, 0)),    # x tile
                pl.BlockSpec((tm_eff, C_HID), lambda i: (i, 0)),       # z tile
                wspec2((C_IN_PAD, C_HID)),                             # w0
                wspec2((1, C_HID)),                                    # b0
                wspec2((C_HID, N_RES * C_HID)),                        # wz fused
                wspec2((1, N_RES * C_HID)),                            # bz fused
                wspec3((N_RES, C_HID, C_HID)),                         # w1 stack
                wspec3((N_RES, 1, C_HID)),                             # b1 stack
                wspec3((N_RES, C_HID, C_HID)),                         # w2 stack
                wspec3((N_RES, 1, C_HID)),                             # b2 stack
            ],
            out_specs=pl.BlockSpec((tm_eff, C_HID), lambda i: (i, 0)),
        ),
        compiler_params=pltpu.CompilerParams(
            dimension_semantics=("parallel",),
            vmem_limit_bytes=vmem_limit,
        ),
        cost_estimate=pl.CostEstimate(
            flops=flops, transcendentals=0, bytes_accessed=bytes_accessed),
    )(x_p, z_p, w0_p, b0_p, wzf, bzf, w1_b, b1_b, w2_b, b2_b)

    return out[:M]


def init_params(key):
    """Deterministic synthetic weights.  Conv1d(Cout, Cin, 1) weights are stored
    pre-transposed as (Cin, Cout) so the kernel does y = x @ W + b."""
    ks = jax.random.split(key, 8)
    s = 0.05
    w0 = jax.random.normal(ks[0], (C_IN, C_HID), jnp.float32) * s
    b0 = jax.random.normal(ks[1], (1, C_HID), jnp.float32) * s
    wz = jax.random.normal(ks[2], (N_RES, C_HID, C_HID), jnp.float32) * s
    bz = jax.random.normal(ks[3], (N_RES, C_HID), jnp.float32) * s
    w1 = jax.random.normal(ks[4], (N_RES, C_HID, C_HID), jnp.float32) * s
    b1 = jax.random.normal(ks[5], (N_RES, C_HID), jnp.float32) * s
    w2 = jax.random.normal(ks[6], (N_RES, C_HID, C_HID), jnp.float32) * s
    b2 = jax.random.normal(ks[7], (N_RES, C_HID), jnp.float32) * s
    return (w0, b0, wz, bz, w1, b1, w2, b2)


def cond_mlp_reference(x_tok, z_tok, params):
    """Pure-JAX f32 reference of CondMLP.forward on (M, C) token layout."""
    w0, b0, wz, bz, w1, b1, w2, b2 = params
    x = x_tok @ w0 + b0
    for r in range(N_RES):
        zr = jax.nn.relu(z_tok @ wz[r] + bz[r])
        res = x + zr
        h = jax.nn.relu(res @ w1[r] + b1[r])
        x = jax.nn.relu(h @ w2[r] + b2[r]) + res
    return x


if __name__ == "__main__":
    key = jax.random.PRNGKey(0)
    k_x, k_z, k_p = jax.random.split(key, 3)

    # PyTorch-style NCW inputs: x (B, 84, N), z (B, 256, N)
    B, N = 2, 32
    x_ncw = jax.random.normal(k_x, (B, C_IN, N), jnp.float32)
    z_ncw = jax.random.normal(k_z, (B, C_HID, N), jnp.float32)
    params = init_params(k_p)

    # NCW -> (B*N, C) token layout
    x_tok = jnp.transpose(x_ncw, (0, 2, 1)).reshape(B * N, C_IN)
    z_tok = jnp.transpose(z_ncw, (0, 2, 1)).reshape(B * N, C_HID)

    out_tok = cond_mlp_pallas(x_tok, z_tok, params)
    out_tok = jax.block_until_ready(out_tok)

    # back to NCW: (B, 256, N), matching PyTorch output layout
    out_ncw = jnp.transpose(out_tok.reshape(B, N, C_HID), (0, 2, 1))

    ref = cond_mlp_reference(x_tok, z_tok, params)
    assert out_ncw.shape == (B, C_HID, N)
    # bf16 matmul inputs / bf16 zr_all with f32 accumulation vs. f32 reference.
    assert jnp.allclose(out_tok, ref, atol=1e-1, rtol=1e-1), "mismatch vs reference"

    print("KERNEL_OK")
</pallas_src>

<mosaic_0001>
module attributes {stable_mosaic.version = 11 : i64} {
  func.func @cond_mlp_kernel(%arg0: i32, %arg1: memref<256x128xbf16, #tpu.memory_space<vmem>>, %arg2: memref<256x256xbf16, #tpu.memory_space<vmem>>, %arg3: memref<128x256xbf16, #tpu.memory_space<vmem>>, %arg4: memref<1x256xf32, #tpu.memory_space<vmem>>, %arg5: memref<256x1280xbf16, #tpu.memory_space<vmem>>, %arg6: memref<1x1280xf32, #tpu.memory_space<vmem>>, %arg7: memref<5x256x256xbf16, #tpu.memory_space<vmem>>, %arg8: memref<5x1x256xf32, #tpu.memory_space<vmem>>, %arg9: memref<5x256x256xbf16, #tpu.memory_space<vmem>>, %arg10: memref<5x1x256xf32, #tpu.memory_space<vmem>>, %arg11: memref<256x256xf32, #tpu.memory_space<vmem>>) attributes {dimension_semantics = [#tpu.dimension_semantics<parallel>], iteration_bounds = array<i64: 1>, scalar_prefetch = 0 : i64, scratch_operands = 0 : i64, tpu.core_type = #tpu.core_type<tc>, window_params = [{transform_indices = @transform_0, window_bounds = array<i64: 256, 128>}, {transform_indices = @transform_1, window_bounds = array<i64: 256, 256>}, {pipeline_mode = #tpu.pipeline_mode<synchronous>, transform_indices = @transform_2, window_bounds = array<i64: 128, 256>}, {pipeline_mode = #tpu.pipeline_mode<synchronous>, transform_indices = @transform_3, window_bounds = array<i64: 1, 256>}, {pipeline_mode = #tpu.pipeline_mode<synchronous>, transform_indices = @transform_4, window_bounds = array<i64: 256, 1280>}, {pipeline_mode = #tpu.pipeline_mode<synchronous>, transform_indices = @transform_5, window_bounds = array<i64: 1, 1280>}, {pipeline_mode = #tpu.pipeline_mode<synchronous>, transform_indices = @transform_6, window_bounds = array<i64: 5, 256, 256>}, {pipeline_mode = #tpu.pipeline_mode<synchronous>, transform_indices = @transform_7, window_bounds = array<i64: 5, 1, 256>}, {pipeline_mode = #tpu.pipeline_mode<synchronous>, transform_indices = @transform_8, window_bounds = array<i64: 5, 256, 256>}, {pipeline_mode = #tpu.pipeline_mode<synchronous>, transform_indices = @transform_9, window_bounds = array<i64: 5, 1, 256>}, {transform_indices = @transform_10, window_bounds = array<i64: 256, 256>}]} {
    %c0 = arith.constant 0 : index
    %c0_0 = arith.constant 0 : index
    %0 = vector.load %arg1[%c0, %c0_0] : memref<256x128xbf16, #tpu.memory_space<vmem>>, vector<256x128xbf16>
    %c0_1 = arith.constant 0 : index
    %c0_2 = arith.constant 0 : index
    %1 = vector.load %arg3[%c0_1, %c0_2] : memref<128x256xbf16, #tpu.memory_space<vmem>>, vector<128x256xbf16>
    %cst = arith.constant dense<0.000000e+00> : vector<256x256xf32>
    %2 = tpu.matmul %0, %1, %cst {dimension_numbers = #tpu.dot_dimension_numbers<[1], [0], [0], [1], [0, 0, 1, 1], [], []>} : vector<256x128xbf16>, vector<128x256xbf16>, vector<256x256xf32> -> vector<256x256xf32>
    %c0_3 = arith.constant 0 : index
    %c0_4 = arith.constant 0 : index
    %3 = vector.load %arg4[%c0_3, %c0_4] : memref<1x256xf32, #tpu.memory_space<vmem>>, vector<1x256xf32>
    %4 = vector.broadcast %3 : vector<1x256xf32> to vector<256x256xf32>
    %5 = arith.addf %2, %4 : vector<256x256xf32>
    %c0_5 = arith.constant 0 : index
    %c0_6 = arith.constant 0 : index
    %6 = vector.load %arg2[%c0_5, %c0_6] : memref<256x256xbf16, #tpu.memory_space<vmem>>, vector<256x256xbf16>
    %c0_7 = arith.constant 0 : index
    %c0_8 = arith.constant 0 : index
    %7 = vector.load %arg5[%c0_7, %c0_8] : memref<256x1280xbf16, #tpu.memory_space<vmem>>, vector<256x1280xbf16>
    %cst_9 = arith.constant dense<0.000000e+00> : vector<256x1280xf32>
    %8 = tpu.matmul %6, %7, %cst_9 {dimension_numbers = #tpu.dot_dimension_numbers<[1], [0], [0], [1], [0, 0, 1, 1], [], []>} : vector<256x256xbf16>, vector<256x1280xbf16>, vector<256x1280xf32> -> vector<256x1280xf32>
    %c0_10 = arith.constant 0 : index
    %c0_11 = arith.constant 0 : index
    %9 = vector.load %arg6[%c0_10, %c0_11] : memref<1x1280xf32, #tpu.memory_space<vmem>>, vector<1x1280xf32>
    %10 = vector.broadcast %9 : vector<1x1280xf32> to vector<256x1280xf32>
    %11 = arith.addf %8, %10 : vector<256x1280xf32>
    %cst_12 = arith.constant 0.000000e+00 : f32
    %12 = vector.broadcast %cst_12 : f32 to vector<256x1280xf32>
    %13 = arith.maximumf %11, %12 : vector<256x1280xf32>
    %14 = arith.truncf %13 : vector<256x1280xf32> to vector<256x1280xbf16>
    %15 = vector.extract_strided_slice %14 {offsets = [0, 0], sizes = [256, 256], strides = [1, 1]} : vector<256x1280xbf16> to vector<256x256xbf16>
    %16 = arith.extf %15 : vector<256x256xbf16> to vector<256x256xf32>
    %17 = arith.addf %5, %16 : vector<256x256xf32>
    %18 = arith.truncf %17 : vector<256x256xf32> to vector<256x256xbf16>
    %c0_13 = arith.constant 0 : index
    %c0_14 = arith.constant 0 : index
    %c0_15 = arith.constant 0 : index
    %19 = vector.load %arg7[%c0_13, %c0_14, %c0_15] : memref<5x256x256xbf16, #tpu.memory_space<vmem>>, vector<1x256x256xbf16>
    %20 = vector.shape_cast %19 : vector<1x256x256xbf16> to vector<256x256xbf16>
    %cst_16 = arith.constant dense<0.000000e+00> : vector<256x256xf32>
    %21 = tpu.matmul %18, %20, %cst_16 {dimension_numbers = #tpu.dot_dimension_numbers<[1], [0], [0], [1], [0, 0, 1, 1], [], []>} : vector<256x256xbf16>, vector<256x256xbf16>, vector<256x256xf32> -> vector<256x256xf32>
    %c0_17 = arith.constant 0 : index
    %c0_18 = arith.constant 0 : index
    %c0_19 = arith.constant 0 : index
    %22 = vector.load %arg8[%c0_17, %c0_18, %c0_19] : memref<5x1x256xf32, #tpu.memory_space<vmem>>, vector<1x1x256xf32>
    %23 = vector.shape_cast %22 : vector<1x1x256xf32> to vector<1x256xf32>
    %24 = vector.broadcast %23 : vector<1x256xf32> to vector<256x256xf32>
    %25 = arith.addf %21, %24 : vector<256x256xf32>
    %cst_20 = arith.constant 0.000000e+00 : f32
    %26 = vector.broadcast %cst_20 : f32 to vector<256x256xf32>
    %27 = arith.maximumf %25, %26 : vector<256x256xf32>
    %28 = arith.truncf %27 : vector<256x256xf32> to vector<256x256xbf16>
    %c0_21 = arith.constant 0 : index
    %c0_22 = arith.constant 0 : index
    %c0_23 = arith.constant 0 : index
    %29 = vector.load %arg9[%c0_21, %c0_22, %c0_23] : memref<5x256x256xbf16, #tpu.memory_space<vmem>>, vector<1x256x256xbf16>
    %30 = vector.shape_cast %29 : vector<1x256x256xbf16> to vector<256x256xbf16>
    %cst_24 = arith.constant dense<0.000000e+00> : vector<256x256xf32>
    %31 = tpu.matmul %28, %30, %cst_24 {dimension_numbers = #tpu.dot_dimension_numbers<[1], [0], [0], [1], [0, 0, 1, 1], [], []>} : vector<256x256xbf16>, vector<256x256xbf16>, vector<256x256xf32> -> vector<256x256xf32>
    %c0_25 = arith.constant 0 : index
    %c0_26 = arith.constant 0 : index
    %c0_27 = arith.constant 0 : index
    %32 = vector.load %arg10[%c0_25, %c0_26, %c0_27] : memref<5x1x256xf32, #tpu.memory_space<vmem>>, vector<1x1x256xf32>
    %33 = vector.shape_cast %32 : vector<1x1x256xf32> to vector<1x256xf32>
    %34 = vector.broadcast %33 : vector<1x256xf32> to vector<256x256xf32>
    %35 = arith.addf %31, %34 : vector<256x256xf32>
    %cst_28 = arith.constant 0.000000e+00 : f32
    %36 = vector.broadcast %cst_28 : f32 to vector<256x256xf32>
    %37 = arith.maximumf %35, %36 : vector<256x256xf32>
    %38 = arith.addf %37, %17 : vector<256x256xf32>
    %39 = vector.extract_strided_slice %14 {offsets = [0, 256], sizes = [256, 256], strides = [1, 1]} : vector<256x1280xbf16> to vector<256x256xbf16>
    %40 = arith.extf %39 : vector<256x256xbf16> to vector<256x256xf32>
    %41 = arith.addf %38, %40 : vector<256x256xf32>
    %42 = arith.truncf %41 : vector<256x256xf32> to vector<256x256xbf16>
    %c1 = arith.constant 1 : index
    %c0_29 = arith.constant 0 : index
    %c0_30 = arith.constant 0 : index
    %43 = vector.load %arg7[%c1, %c0_29, %c0_30] : memref<5x256x256xbf16, #tpu.memory_space<vmem>>, vector<1x256x256xbf16>
    %44 = vector.shape_cast %43 : vector<1x256x256xbf16> to vector<256x256xbf16>
    %cst_31 = arith.constant dense<0.000000e+00> : vector<256x256xf32>
    %45 = tpu.matmul %42, %44, %cst_31 {dimension_numbers = #tpu.dot_dimension_numbers<[1], [0], [0], [1], [0, 0, 1, 1], [], []>} : vector<256x256xbf16>, vector<256x256xbf16>, vector<256x256xf32> -> vector<256x256xf32>
    %c1_32 = arith.constant 1 : index
    %c0_33 = arith.constant 0 : index
    %c0_34 = arith.constant 0 : index
    %46 = vector.load %arg8[%c1_32, %c0_33, %c0_34] : memref<5x1x256xf32, #tpu.memory_space<vmem>>, vector<1x1x256xf32>
    %47 = vector.shape_cast %46 : vector<1x1x256xf32> to vector<1x256xf32>
    %48 = vector.broadcast %47 : vector<1x256xf32> to vector<256x256xf32>
    %49 = arith.addf %45, %48 : vector<256x256xf32>
    %cst_35 = arith.constant 0.000000e+00 : f32
    %50 = vector.broadcast %cst_35 : f32 to vector<256x256xf32>
    %51 = arith.maximumf %49, %50 : vector<256x256xf32>
    %52 = arith.truncf %51 : vector<256x256xf32> to vector<256x256xbf16>
    %c1_36 = arith.constant 1 : index
    %c0_37 = arith.constant 0 : index
    %c0_38 = arith.constant 0 : index
    %53 = vector.load %arg9[%c1_36, %c0_37, %c0_38] : memref<5x256x256xbf16, #tpu.memory_space<vmem>>, vector<1x256x256xbf16>
    %54 = vector.shape_cast %53 : vector<1x256x256xbf16> to vector<256x256xbf16>
    %cst_39 = arith.constant dense<0.000000e+00> : vector<256x256xf32>
    %55 = tpu.matmul %52, %54, %cst_39 {dimension_numbers = #tpu.dot_dimension_numbers<[1], [0], [0], [1], [0, 0, 1, 1], [], []>} : vector<256x256xbf16>, vector<256x256xbf16>, vector<256x256xf32> -> vector<256x256xf32>
    %c1_40 = arith.constant 1 : index
    %c0_41 = arith.constant 0 : index
    %c0_42 = arith.constant 0 : index
    %56 = vector.load %arg10[%c1_40, %c0_41, %c0_42] : memref<5x1x256xf32, #tpu.memory_space<vmem>>, vector<1x1x256xf32>
    %57 = vector.shape_cast %56 : vector<1x1x256xf32> to vector<1x256xf32>
    %58 = vector.broadcast %57 : vector<1x256xf32> to vector<256x256xf32>
    %59 = arith.addf %55, %58 : vector<256x256xf32>
    %cst_43 = arith.constant 0.000000e+00 : f32
    %60 = vector.broadcast %cst_43 : f32 to vector<256x256xf32>
    %61 = arith.maximumf %59, %60 : vector<256x256xf32>
    %62 = arith.addf %61, %41 : vector<256x256xf32>
    %63 = vector.extract_strided_slice %14 {offsets = [0, 512], sizes = [256, 256], strides = [1, 1]} : vector<256x1280xbf16> to vector<256x256xbf16>
    %64 = arith.extf %63 : vector<256x256xbf16> to vector<256x256xf32>
    %65 = arith.addf %62, %64 : vector<256x256xf32>
    %66 = arith.truncf %65 : vector<256x256xf32> to vector<256x256xbf16>
    %c2 = arith.constant 2 : index
    %c0_44 = arith.constant 0 : index
    %c0_45 = arith.constant 0 : index
    %67 = vector.load %arg7[%c2, %c0_44, %c0_45] : memref<5x256x256xbf16, #tpu.memory_space<vmem>>, vector<1x256x256xbf16>
    %68 = vector.shape_cast %67 : vector<1x256x256xbf16> to vector<256x256xbf16>
    %cst_46 = arith.constant dense<0.000000e+00> : vector<256x256xf32>
    %69 = tpu.matmul %66, %68, %cst_46 {dimension_numbers = #tpu.dot_dimension_numbers<[1], [0], [0], [1], [0, 0, 1, 1], [], []>} : vector<256x256xbf16>, vector<256x256xbf16>, vector<256x256xf32> -> vector<256x256xf32>
    %c2_47 = arith.constant 2 : index
    %c0_48 = arith.constant 0 : index
    %c0_49 = arith.constant 0 : index
    %70 = vector.load %arg8[%c2_47, %c0_48, %c0_49] : memref<5x1x256xf32, #tpu.memory_space<vmem>>, vector<1x1x256xf32>
    %71 = vector.shape_cast %70 : vector<1x1x256xf32> to vector<1x256xf32>
    %72 = vector.broadcast %71 : vector<1x256xf32> to vector<256x256xf32>
    %73 = arith.addf %69, %72 : vector<256x256xf32>
    %cst_50 = arith.constant 0.000000e+00 : f32
    %74 = vector.broadcast %cst_50 : f32 to vector<256x256xf32>
    %75 = arith.maximumf %73, %74 : vector<256x256xf32>
    %76 = arith.truncf %75 : vector<256x256xf32> to vector<256x256xbf16>
    %c2_51 = arith.constant 2 : index
    %c0_52 = arith.constant 0 : index
    %c0_53 = arith.constant 0 : index
    %77 = vector.load %arg9[%c2_51, %c0_52, %c0_53] : memref<5x256x256xbf16, #tpu.memory_space<vmem>>, vector<1x256x256xbf16>
    %78 = vector.shape_cast %77 : vector<1x256x256xbf16> to vector<256x256xbf16>
    %cst_54 = arith.constant dense<0.000000e+00> : vector<256x256xf32>
    %79 = tpu.matmul %76, %78, %cst_54 {dimension_numbers = #tpu.dot_dimension_numbers<[1], [0], [0], [1], [0, 0, 1, 1], [], []>} : vector<256x256xbf16>, vector<256x256xbf16>, vector<256x256xf32> -> vector<256x256xf32>
    %c2_55 = arith.constant 2 : index
    %c0_56 = arith.constant 0 : index
    %c0_57 = arith.constant 0 : index
    %80 = vector.load %arg10[%c2_55, %c0_56, %c0_57] : memref<5x1x256xf32, #tpu.memory_space<vmem>>, vector<1x1x256xf32>
    %81 = vector.shape_cast %80 : vector<1x1x256xf32> to vector<1x256xf32>
    %82 = vector.broadcast %81 : vector<1x256xf32> to vector<256x256xf32>
    %83 = arith.addf %79, %82 : vector<256x256xf32>
    %cst_58 = arith.constant 0.000000e+00 : f32
    %84 = vector.broadcast %cst_58 : f32 to vector<256x256xf32>
    %85 = arith.maximumf %83, %84 : vector<256x256xf32>
    %86 = arith.addf %85, %65 : vector<256x256xf32>
    %87 = vector.extract_strided_slice %14 {offsets = [0, 768], sizes = [256, 256], strides = [1, 1]} : vector<256x1280xbf16> to vector<256x256xbf16>
    %88 = arith.extf %87 : vector<256x256xbf16> to vector<256x256xf32>
    %89 = arith.addf %86, %88 : vector<256x256xf32>
    %90 = arith.truncf %89 : vector<256x256xf32> to vector<256x256xbf16>
    %c3 = arith.constant 3 : index
    %c0_59 = arith.constant 0 : index
    %c0_60 = arith.constant 0 : index
    %91 = vector.load %arg7[%c3, %c0_59, %c0_60] : memref<5x256x256xbf16, #tpu.memory_space<vmem>>, vector<1x256x256xbf16>
    %92 = vector.shape_cast %91 : vector<1x256x256xbf16> to vector<256x256xbf16>
    %cst_61 = arith.constant dense<0.000000e+00> : vector<256x256xf32>
    %93 = tpu.matmul %90, %92, %cst_61 {dimension_numbers = #tpu.dot_dimension_numbers<[1], [0], [0], [1], [0, 0, 1, 1], [], []>} : vector<256x256xbf16>, vector<256x256xbf16>, vector<256x256xf32> -> vector<256x256xf32>
    %c3_62 = arith.constant 3 : index
    %c0_63 = arith.constant 0 : index
    %c0_64 = arith.constant 0 : index
    %94 = vector.load %arg8[%c3_62, %c0_63, %c0_64] : memref<5x1x256xf32, #tpu.memory_space<vmem>>, vector<1x1x256xf32>
    %95 = vector.shape_cast %94 : vector<1x1x256xf32> to vector<1x256xf32>
    %96 = vector.broadcast %95 : vector<1x256xf32> to vector<256x256xf32>
    %97 = arith.addf %93, %96 : vector<256x256xf32>
    %cst_65 = arith.constant 0.000000e+00 : f32
    %98 = vector.broadcast %cst_65 : f32 to vector<256x256xf32>
    %99 = arith.maximumf %97, %98 : vector<256x256xf32>
    %100 = arith.truncf %99 : vector<256x256xf32> to vector<256x256xbf16>
    %c3_66 = arith.constant 3 : index
    %c0_67 = arith.constant 0 : index
    %c0_68 = arith.constant 0 : index
    %101 = vector.load %arg9[%c3_66, %c0_67, %c0_68] : memref<5x256x256xbf16, #tpu.memory_space<vmem>>, vector<1x256x256xbf16>
    %102 = vector.shape_cast %101 : vector<1x256x256xbf16> to vector<256x256xbf16>
    %cst_69 = arith.constant dense<0.000000e+00> : vector<256x256xf32>
    %103 = tpu.matmul %100, %102, %cst_69 {dimension_numbers = #tpu.dot_dimension_numbers<[1], [0], [0], [1], [0, 0, 1, 1], [], []>} : vector<256x256xbf16>, vector<256x256xbf16>, vector<256x256xf32> -> vector<256x256xf32>
    %c3_70 = arith.constant 3 : index
    %c0_71 = arith.constant 0 : index
    %c0_72 = arith.constant 0 : index
    %104 = vector.load %arg10[%c3_70, %c0_71, %c0_72] : memref<5x1x256xf32, #tpu.memory_space<vmem>>, vector<1x1x256xf32>
    %105 = vector.shape_cast %104 : vector<1x1x256xf32> to vector<1x256xf32>
    %106 = vector.broadcast %105 : vector<1x256xf32> to vector<256x256xf32>
    %107 = arith.addf %103, %106 : vector<256x256xf32>
    %cst_73 = arith.constant 0.000000e+00 : f32
    %108 = vector.broadcast %cst_73 : f32 to vector<256x256xf32>
    %109 = arith.maximumf %107, %108 : vector<256x256xf32>
    %110 = arith.addf %109, %89 : vector<256x256xf32>
    %111 = vector.extract_strided_slice %14 {offsets = [0, 1024], sizes = [256, 256], strides = [1, 1]} : vector<256x1280xbf16> to vector<256x256xbf16>
    %112 = arith.extf %111 : vector<256x256xbf16> to vector<256x256xf32>
    %113 = arith.addf %110, %112 : vector<256x256xf32>
    %114 = arith.truncf %113 : vector<256x256xf32> to vector<256x256xbf16>
    %c4 = arith.constant 4 : index
    %c0_74 = arith.constant 0 : index
    %c0_75 = arith.constant 0 : index
    %115 = vector.load %arg7[%c4, %c0_74, %c0_75] : memref<5x256x256xbf16, #tpu.memory_space<vmem>>, vector<1x256x256xbf16>
    %116 = vector.shape_cast %115 : vector<1x256x256xbf16> to vector<256x256xbf16>
    %cst_76 = arith.constant dense<0.000000e+00> : vector<256x256xf32>
    %117 = tpu.matmul %114, %116, %cst_76 {dimension_numbers = #tpu.dot_dimension_numbers<[1], [0], [0], [1], [0, 0, 1, 1], [], []>} : vector<256x256xbf16>, vector<256x256xbf16>, vector<256x256xf32> -> vector<256x256xf32>
    %c4_77 = arith.constant 4 : index
    %c0_78 = arith.constant 0 : index
    %c0_79 = arith.constant 0 : index
    %118 = vector.load %arg8[%c4_77, %c0_78, %c0_79] : memref<5x1x256xf32, #tpu.memory_space<vmem>>, vector<1x1x256xf32>
    %119 = vector.shape_cast %118 : vector<1x1x256xf32> to vector<1x256xf32>
    %120 = vector.broadcast %119 : vector<1x256xf32> to vector<256x256xf32>
    %121 = arith.addf %117, %120 : vector<256x256xf32>
    %cst_80 = arith.constant 0.000000e+00 : f32
    %122 = vector.broadcast %cst_80 : f32 to vector<256x256xf32>
    %123 = arith.maximumf %121, %122 : vector<256x256xf32>
    %124 = arith.truncf %123 : vector<256x256xf32> to vector<256x256xbf16>
    %c4_81 = arith.constant 4 : index
    %c0_82 = arith.constant 0 : index
    %c0_83 = arith.constant 0 : index
    %125 = vector.load %arg9[%c4_81, %c0_82, %c0_83] : memref<5x256x256xbf16, #tpu.memory_space<vmem>>, vector<1x256x256xbf16>
    %126 = vector.shape_cast %125 : vector<1x256x256xbf16> to vector<256x256xbf16>
    %cst_84 = arith.constant dense<0.000000e+00> : vector<256x256xf32>
    %127 = tpu.matmul %124, %126, %cst_84 {dimension_numbers = #tpu.dot_dimension_numbers<[1], [0], [0], [1], [0, 0, 1, 1], [], []>} : vector<256x256xbf16>, vector<256x256xbf16>, vector<256x256xf32> -> vector<256x256xf32>
    %c4_85 = arith.constant 4 : index
    %c0_86 = arith.constant 0 : index
    %c0_87 = arith.constant 0 : index
    %128 = vector.load %arg10[%c4_85, %c0_86, %c0_87] : memref<5x1x256xf32, #tpu.memory_space<vmem>>, vector<1x1x256xf32>
    %129 = vector.shape_cast %128 : vector<1x1x256xf32> to vector<1x256xf32>
    %130 = vector.broadcast %129 : vector<1x256xf32> to vector<256x256xf32>
    %131 = arith.addf %127, %130 : vector<256x256xf32>
    %cst_88 = arith.constant 0.000000e+00 : f32
    %132 = vector.broadcast %cst_88 : f32 to vector<256x256xf32>
    %133 = arith.maximumf %131, %132 : vector<256x256xf32>
    %134 = arith.addf %133, %113 : vector<256x256xf32>
    %c0_89 = arith.constant 0 : index
    %c0_90 = arith.constant 0 : index
    %135 = vector.load %arg11[%c0_89, %c0_90] : memref<256x256xf32, #tpu.memory_space<vmem>>, vector<256x256xf32>
    tpu.vector_store %arg11[%c0_89, %c0_90], %134 {strides = array<i32>} : memref<256x256xf32, #tpu.memory_space<vmem>>, vector<256x256xf32>,
    return
  }
  func.func @transform_0(%arg0: i32) -> (i32, i32) {
    %c0_i32 = arith.constant 0 : i32
    %c0_i32_0 = arith.constant 0 : i32
    return %arg0, %c0_i32 : i32, i32
  }
  func.func @transform_1(%arg0: i32) -> (i32, i32) {
    %c0_i32 = arith.constant 0 : i32
    %c0_i32_0 = arith.constant 0 : i32
    return %arg0, %c0_i32 : i32, i32
  }
  func.func @transform_2(%arg0: i32) -> (i32, i32) {
    %c0_i32 = arith.constant 0 : i32
    %c0_i32_0 = arith.constant 0 : i32
    %c0_i32_1 = arith.constant 0 : i32
    return %c0_i32, %c0_i32_0 : i32, i32
  }
  func.func @transform_3(%arg0: i32) -> (i32, i32) {
    %c0_i32 = arith.constant 0 : i32
    %c0_i32_0 = arith.constant 0 : i32
    %c0_i32_1 = arith.constant 0 : i32
    return %c0_i32, %c0_i32_0 : i32, i32
  }
  func.func @transform_4(%arg0: i32) -> (i32, i32) {
    %c0_i32 = arith.constant 0 : i32
    %c0_i32_0 = arith.constant 0 : i32
    %c0_i32_1 = arith.constant 0 : i32
    return %c0_i32, %c0_i32_0 : i32, i32
  }
  func.func @transform_5(%arg0: i32) -> (i32, i32) {
    %c0_i32 = arith.constant 0 : i32
    %c0_i32_0 = arith.constant 0 : i32
    %c0_i32_1 = arith.constant 0 : i32
    return %c0_i32, %c0_i32_0 : i32, i32
  }
  func.func @transform_6(%arg0: i32) -> (i32, i32, i32) {
    %c0_i32 = arith.constant 0 : i32
    %c0_i32_0 = arith.constant 0 : i32
    %c0_i32_1 = arith.constant 0 : i32
    %c0_i32_2 = arith.constant 0 : i32
    return %c0_i32, %c0_i32_0, %c0_i32_1 : i32, i32, i32
  }
  func.func @transform_7(%arg0: i32) -> (i32, i32, i32) {
    %c0_i32 = arith.constant 0 : i32
    %c0_i32_0 = arith.constant 0 : i32
    %c0_i32_1 = arith.constant 0 : i32
    %c0_i32_2 = arith.constant 0 : i32
    return %c0_i32, %c0_i32_0, %c0_i32_1 : i32, i32, i32
  }
  func.func @transform_8(%arg0: i32) -> (i32, i32, i32) {
    %c0_i32 = arith.constant 0 : i32
    %c0_i32_0 = arith.constant 0 : i32
    %c0_i32_1 = arith.constant 0 : i32
    %c0_i32_2 = arith.constant 0 : i32
    return %c0_i32, %c0_i32_0, %c0_i32_1 : i32, i32, i32
  }
  func.func @transform_9(%arg0: i32) -> (i32, i32, i32) {
    %c0_i32 = arith.constant 0 : i32
    %c0_i32_0 = arith.constant 0 : i32
    %c0_i32_1 = arith.constant 0 : i32
    %c0_i32_2 = arith.constant 0 : i32
    return %c0_i32, %c0_i32_0, %c0_i32_1 : i32, i32, i32
  }
  func.func @transform_10(%arg0: i32) -> (i32, i32) {
    %c0_i32 = arith.constant 0 : i32
    %c0_i32_0 = arith.constant 0 : i32
    return %arg0, %c0_i32 : i32, i32
  }
}

</mosaic_0001>

<llo_original>
// kernel: cond_mlp_pallas.1
$region0: #{cond_mlp_pallas.1}
  #allocation0 [shape = 'u32[]', space=smem, size = 0x4, offset = 0x4, fixed_abs, tag = 'smem constant byte address 0x4 - core index']
  #allocation1 [shape = 'u32[144,128]{1,0:T(1,128)}', space=vmem, size = 0x12000, scoped, tag = 'internal scratch']
  %s0 = inlined_call_operand.vmem [shape: bf16[256,128], index: 0, kind: input, shape index: {}]
  %s1 = inlined_call_operand.vmem [shape: bf16[256,256], index: 1, kind: input, shape index: {}]
  %s2 = inlined_call_operand.vmem [shape: bf16[128,256], index: 2, kind: input, shape index: {}]
  %s3 = inlined_call_operand.vmem [shape: f32[1,256], index: 3, kind: input, shape index: {}]
  %s4 = inlined_call_operand.vmem [shape: bf16[256,1280], index: 4, kind: input, shape index: {}]
  %s5 = inlined_call_operand.vmem [shape: f32[1,1280], index: 5, kind: input, shape index: {}]
  %s6 = inlined_call_operand.vmem [shape: bf16[5,256,256], index: 6, kind: input, shape index: {}]
  %s7 = inlined_call_operand.vmem [shape: f32[5,1,256], index: 7, kind: input, shape index: {}]
  %s8 = inlined_call_operand.vmem [shape: bf16[5,256,256], index: 8, kind: input, shape index: {}]
  %s9 = inlined_call_operand.vmem [shape: f32[5,1,256], index: 9, kind: input, shape index: {}]
  %s10 = inlined_call_operand.vmem [shape: f32[256,256], index: 10, kind: output, shape index: {}]
  %s11 = sld [smem:[#allocation0]]
  $region50: #{cond_mlp_pallas.1} parent=0
    _
  %s13 = ssub.s32 1, %s11
  %s14 = scalar_select 0, %s13, %s11
  // Predicated region
  $region2: #{cond_mlp_pallas.1} parent=0 // pred_check
    _
  $region3: #{cond_mlp_pallas.1} parent=0 // pred_check_branch
    %16 = sbr.rel (0) target = $region5
  $region4: #{cond_mlp_pallas.1} parent=0 // pred_region
    _
  $region5: #{cond_mlp_pallas.1} parent=0 // pred_fallthru
    _
  // Predicated region
  $region6: #{cond_mlp_pallas.1} parent=0 // pred_check
    _
  $region7: #{cond_mlp_pallas.1} parent=0 // pred_check_branch
    %18 = sbr.rel (0) target = $region9
  $region8: #{cond_mlp_pallas.1} parent=0 // pred_region
    _
  $region9: #{cond_mlp_pallas.1} parent=0 // pred_fallthru
    _
  // Predicated region
  $region10: #{cond_mlp_pallas.1} parent=0 // pred_check
    _
  $region11: #{cond_mlp_pallas.1} parent=0 // pred_check_branch
    %20 = sbr.rel (0) target = $region13
  $region12: #{cond_mlp_pallas.1} parent=0 // pred_region
    _
  $region13: #{cond_mlp_pallas.1} parent=0 // pred_fallthru
    _
  // Predicated region
  $region14: #{cond_mlp_pallas.1} parent=0 // pred_check
    _
  $region15: #{cond_mlp_pallas.1} parent=0 // pred_check_branch
    %22 = sbr.rel (0) target = $region17
  $region16: #{cond_mlp_pallas.1} parent=0 // pred_region
    _
  $region17: #{cond_mlp_pallas.1} parent=0 // pred_fallthru
    _
  // Predicated region
  $region18: #{cond_mlp_pallas.1} parent=0 // pred_check
    _
  $region19: #{cond_mlp_pallas.1} parent=0 // pred_check_branch
    %24 = sbr.rel (0) target = $region21
  $region20: #{cond_mlp_pallas.1} parent=0 // pred_region
    _
  $region21: #{cond_mlp_pallas.1} parent=0 // pred_fallthru
    _
  // Predicated region
  $region22: #{cond_mlp_pallas.1} parent=0 // pred_check
    _
  $region23: #{cond_mlp_pallas.1} parent=0 // pred_check_branch
    %26 = sbr.rel (0) target = $region25
  $region24: #{cond_mlp_pallas.1} parent=0 // pred_region
    _
  $region25: #{cond_mlp_pallas.1} parent=0 // pred_fallthru
    _
  // Predicated region
  $region26: #{cond_mlp_pallas.1} parent=0 // pred_check
    _
  $region27: #{cond_mlp_pallas.1} parent=0 // pred_check_branch
    %28 = sbr.rel (0) target = $region29
  $region28: #{cond_mlp_pallas.1} parent=0 // pred_region
    _
  $region29: #{cond_mlp_pallas.1} parent=0 // pred_fallthru
    _
  // Predicated region
  $region30: #{cond_mlp_pallas.1} parent=0 // pred_check
    _
  $region31: #{cond_mlp_pallas.1} parent=0 // pred_check_branch
    %30 = sbr.rel (0) target = $region33
  $region32: #{cond_mlp_pallas.1} parent=0 // pred_region
    _
  $region33: #{cond_mlp_pallas.1} parent=0 // pred_fallthru
    _
  // Predicated region
  $region34: #{cond_mlp_pallas.1} parent=0 // pred_check
    _
  $region35: #{cond_mlp_pallas.1} parent=0 // pred_check_branch
    %32 = sbr.rel (0) target = $region37
  $region36: #{cond_mlp_pallas.1} parent=0 // pred_region
    _
  $region37: #{cond_mlp_pallas.1} parent=0 // pred_fallthru
    _
  // Predicated region
  $region38: #{cond_mlp_pallas.1} parent=0 // pred_check
    _
  $region39: #{cond_mlp_pallas.1} parent=0 // pred_check_branch
    %34 = sbr.rel (0) target = $region41
  $region40: #{cond_mlp_pallas.1} parent=0 // pred_region
    _
  $region41: #{cond_mlp_pallas.1} parent=0 // pred_fallthru
    _
  %v36 = vld [vmem:[%s0] sm:$0xf]
  %v37 = vld [vmem:[%s0 + $0x4] sm:$0xf]
  %v38 = vld [vmem:[%s0 + $0x8] sm:$0xf]
  %v39 = vld [vmem:[%s0 + $0xc] sm:$0xf]
  %v40 = vld [vmem:[%s0 + $0x10] sm:$0xf]
  %v41 = vld [vmem:[%s0 + $0x14] sm:$0xf]
  %v42 = vld [vmem:[%s0 + $0x18] sm:$0xf]
  %v43 = vld [vmem:[%s0 + $0x1c] sm:$0xf]
  %v44 = vld [vmem:[%s0 + $0x20] sm:$0xf]
  %v45 = vld [vmem:[%s0 + $0x24] sm:$0xf]
  %v46 = vld [vmem:[%s0 + $0x28] sm:$0xf]
  %v47 = vld [vmem:[%s0 + $0x2c] sm:$0xf]
  %v48 = vld [vmem:[%s0 + $0x30] sm:$0xf]
  %v49 = vld [vmem:[%s0 + $0x34] sm:$0xf]
  %v50 = vld [vmem:[%s0 + $0x38] sm:$0xf]
  %v51 = vld [vmem:[%s0 + $0x3c] sm:$0xf]
  %v52 = vld [vmem:[%s0 + $0x40] sm:$0xf]
  %v53 = vld [vmem:[%s0 + $0x44] sm:$0xf]
  %v54 = vld [vmem:[%s0 + $0x48] sm:$0xf]
  %v55 = vld [vmem:[%s0 + $0x4c] sm:$0xf]
  %v56 = vld [vmem:[%s0 + $0x50] sm:$0xf]
  %v57 = vld [vmem:[%s0 + $0x54] sm:$0xf]
  %v58 = vld [vmem:[%s0 + $0x58] sm:$0xf]
  %v59 = vld [vmem:[%s0 + $0x5c] sm:$0xf]
  %v60 = vld [vmem:[%s0 + $0x60] sm:$0xf]
  %v61 = vld [vmem:[%s0 + $0x64] sm:$0xf]
  %v62 = vld [vmem:[%s0 + $0x68] sm:$0xf]
  %v63 = vld [vmem:[%s0 + $0x6c] sm:$0xf]
  %v64 = vld [vmem:[%s0 + $0x70] sm:$0xf]
  %v65 = vld [vmem:[%s0 + $0x74] sm:$0xf]
  %v66 = vld [vmem:[%s0 + $0x78] sm:$0xf]
  %v67 = vld [vmem:[%s0 + $0x7c] sm:$0xf]
  %v68 = vld [vmem:[%s2] sm:$0xff]
  %v69 = vld [vmem:[%s2 + $0x8] sm:$0xff]
  %v70 = vld [vmem:[%s2 + $0x10] sm:$0xff]
  %v71 = vld [vmem:[%s2 + $0x18] sm:$0xff]
  %v72 = vld [vmem:[%s2 + $0x20] sm:$0xff]
  %v73 = vld [vmem:[%s2 + $0x28] sm:$0xff]
  %v74 = vld [vmem:[%s2 + $0x30] sm:$0xff]
  %v75 = vld [vmem:[%s2 + $0x38] sm:$0xff]
  %v76 = vld [vmem:[%s2 + $0x40] sm:$0xff]
  %v77 = vld [vmem:[%s2 + $0x48] sm:$0xff]
  %v78 = vld [vmem:[%s2 + $0x50] sm:$0xff]
  %v79 = vld [vmem:[%s2 + $0x58] sm:$0xff]
  %v80 = vld [vmem:[%s2 + $0x60] sm:$0xff]
  %v81 = vld [vmem:[%s2 + $0x68] sm:$0xff]
  %v82 = vld [vmem:[%s2 + $0x70] sm:$0xff]
  %v83 = vld [vmem:[%s2 + $0x78] sm:$0xff]
  %v84 = vld [vmem:[%s3] sm:$0x3]
  %v86 = vlaneseq
  %v87 = vshrl.u32 %v86, 7
  %v88 = vsub.s32 0, %v87
  %v89 = vrot.slane %v84, %v88
  %v90 = vlaneseq
  %v91 = vshrl.u32 %v90, 7
  %v92 = vsub.s32 1, %v91
  %v93 = vrot.slane %v84, %v92
  %v128 = vunpack.c.l.b16 %v36
  %v129 = vunpack.c.l.b16 %v37
  %v130 = vunpack.c.l.b16 %v38
  %v131 = vunpack.c.l.b16 %v39
  %v132 = vunpack.c.l.b16 %v40
  %v133 = vunpack.c.l.b16 %v41
  %v134 = vunpack.c.l.b16 %v42
  %v135 = vunpack.c.l.b16 %v43
  %v136 = vunpack.c.l.b16 %v44
  %v137 = vunpack.c.l.b16 %v45
  %v138 = vunpack.c.l.b16 %v46
  %v139 = vunpack.c.l.b16 %v47
  %v140 = vunpack.c.l.b16 %v48
  %v141 = vunpack.c.l.b16 %v49
  %v142 = vunpack.c.l.b16 %v50
  %v143 = vunpack.c.l.b16 %v51
  %v144 = vunpack.c.l.b16 %v52
  %v145 = vunpack.c.l.b16 %v53
  %v146 = vunpack.c.l.b16 %v54
  %v147 = vunpack.c.l.b16 %v55
  %v148 = vunpack.c.l.b16 %v56
  %v149 = vunpack.c.l.b16 %v57
  %v150 = vunpack.c.l.b16 %v58
  %v151 = vunpack.c.l.b16 %v59
  %v152 = vunpack.c.l.b16 %v60
  %v153 = vunpack.c.l.b16 %v61
  %v154 = vunpack.c.l.b16 %v62
  %v155 = vunpack.c.l.b16 %v63
  %v156 = vunpack.c.l.b16 %v64
  %v157 = vunpack.c.l.b16 %v65
  %v158 = vunpack.c.l.b16 %v66
  %v159 = vunpack.c.l.b16 %v67
  %v160 = vpack.c.b16 %v129, %v128
  %v161 = vpack.c.b16 %v131, %v130
  %v162 = vpack.c.b16 %v133, %v132
  %v163 = vpack.c.b16 %v135, %v134
  %v164 = vpack.c.b16 %v137, %v136
  %v165 = vpack.c.b16 %v139, %v138
  %v166 = vpack.c.b16 %v141, %v140
  %v167 = vpack.c.b16 %v143, %v142
  %v168 = vpack.c.b16 %v145, %v144
  %v169 = vpack.c.b16 %v147, %v146
  %v170 = vpack.c.b16 %v149, %v148
  %v171 = vpack.c.b16 %v151, %v150
  %v172 = vpack.c.b16 %v153, %v152
  %v173 = vpack.c.b16 %v155, %v154
  %v174 = vpack.c.b16 %v157, %v156
  %v175 = vpack.c.b16 %v159, %v158
  %v208 = vunpack.c.l.b16 %v68
  %v209 = vunpack.c.h.b16 %v68
  %v210 = vunpack.c.l.b16 %v69
  %v211 = vunpack.c.h.b16 %v69
  %v212 = vunpack.c.l.b16 %v70
  %v213 = vunpack.c.h.b16 %v70
  %v214 = vunpack.c.l.b16 %v71
  %v215 = vunpack.c.h.b16 %v71
  %v216 = vunpack.c.l.b16 %v72
  %v217 = vunpack.c.h.b16 %v72
  %v218 = vunpack.c.l.b16 %v73
  %v219 = vunpack.c.h.b16 %v73
  %v220 = vunpack.c.l.b16 %v74
  %v221 = vunpack.c.h.b16 %v74
  %v222 = vunpack.c.l.b16 %v75
  %v223 = vunpack.c.h.b16 %v75
  %v224 = vunpack.c.l.b16 %v76
  %v225 = vunpack.c.h.b16 %v76
  %v226 = vunpack.c.l.b16 %v77
  %v227 = vunpack.c.h.b16 %v77
  %v228 = vunpack.c.l.b16 %v78
  %v229 = vunpack.c.h.b16 %v78
  %v230 = vunpack.c.l.b16 %v79
  %v231 = vunpack.c.h.b16 %v79
  %v232 = vunpack.c.l.b16 %v80
  %v233 = vunpack.c.h.b16 %v80
  %v234 = vunpack.c.l.b16 %v81
  %v235 = vunpack.c.h.b16 %v81
  %v236 = vunpack.c.l.b16 %v82
  %v237 = vunpack.c.h.b16 %v82
  %v238 = vunpack.c.l.b16 %v83
  %v239 = vunpack.c.h.b16 %v83
  %v240 = vpack.c.b16 %v210, %v208
  %v241 = vpack.c.b16 %v211, %v209
  %v242 = vpack.c.b16 %v214, %v212
  %v243 = vpack.c.b16 %v215, %v213
  %v244 = vpack.c.b16 %v218, %v216
  %v245 = vpack.c.b16 %v219, %v217
  %v246 = vpack.c.b16 %v222, %v220
  %v247 = vpack.c.b16 %v223, %v221
  %v248 = vpack.c.b16 %v226, %v224
  %v249 = vpack.c.b16 %v227, %v225
  %v250 = vpack.c.b16 %v230, %v228
  %v251 = vpack.c.b16 %v231, %v229
  %v252 = vpack.c.b16 %v234, %v232
  %v253 = vpack.c.b16 %v235, %v233
  %v254 = vpack.c.b16 %v238, %v236
  %v255 = vpack.c.b16 %v239, %v237
  %272 = vmatprep.subr.bf16.mxu0 %v241
  %273 = vmatpush1.bf16.msra.mxu0 %v240
  %274 = vmatprep.subr.bf16.mxu0 %v243
  %275 = vmatpush1.bf16.msra.mxu0 %v242
  %276 = vmatprep.subr.bf16.mxu0 %v245
  %277 = vmatpush1.bf16.msra.mxu0 %v244
  %278 = vmatprep.subr.bf16.mxu0 %v247
  %279 = vmatpush1.bf16.msra.mxu0 %v246
  %280 = vmatprep.subr.bf16.mxu0 %v249
  %281 = vmatpush1.bf16.msra.mxu0 %v248
  %282 = vmatprep.subr.bf16.mxu0 %v251
  %283 = vmatpush1.bf16.msra.mxu0 %v250
  %284 = vmatprep.subr.bf16.mxu0 %v253
  %285 = vmatpush1.bf16.msra.mxu0 %v252
  %286 = vmatprep.subr.bf16.mxu0 %v255
  %287 = vmatpush1.bf16.msra.mxu0 %v254
  %288 = vmatprep.subr.bf16.mxu0 0
  %289 = vmatpush1.bf16.msra.mxu0 0
  %290 = vmatprep.subr.bf16.mxu0 0
  %291 = vmatpush1.bf16.msra.mxu0 0
  %292 = vmatprep.subr.bf16.mxu0 0
  %293 = vmatpush1.bf16.msra.mxu0 0
  %294 = vmatprep.subr.bf16.mxu0 0
  %295 = vmatpush1.bf16.msra.mxu0 0
  %296 = vmatprep.subr.bf16.mxu0 0
  %297 = vmatpush1.bf16.msra.mxu0 0
  %298 = vmatprep.subr.bf16.mxu0 0
  %299 = vmatpush1.bf16.msra.mxu0 0
  %300 = vmatprep.subr.bf16.mxu0 0
  %301 = vmatpush1.bf16.msra.mxu0 0
  %302 = vmatprep.subr.bf16.mxu0 0
  %303 = vmatpush1.bf16.msra.mxu0 0
  %304 = vmatprep.mubr.bf16.mxu0 0
  %305 = vmatmul.mubr.bf16.gmra.mrb[0].mxu0 %v160
  %v306 = vpop.f32.mrb[0].mxu0
  %v307 = vadd.f32 %v89, %v306
  %v308 = vpop.f32.mrb[0].mxu0
  %v309 = vadd.f32 %v93, %v308
  %v310 = vpop.f32.mrb[0].mxu0
  %v311 = vadd.f32 %v89, %v310
  %v312 = vpop.f32.mrb[0].mxu0
  %v313 = vadd.f32 %v93, %v312
  %314 = vmatprep.mubr.bf16.mxu0 0
  %315 = vmatmul.mubr.bf16.gmra.mrb[0].mxu0 %v161
  %v316 = vpop.f32.mrb[0].mxu0
  %v317 = vadd.f32 %v89, %v316
  %v318 = vpop.f32.mrb[0].mxu0
  %v319 = vadd.f32 %v93, %v318
  %v320 = vpop.f32.mrb[0].mxu0
  %v321 = vadd.f32 %v89, %v320
  %v322 = vpop.f32.mrb[0].mxu0
  %v323 = vadd.f32 %v93, %v322
  %324 = vmatprep.mubr.bf16.mxu0 0
  %325 = vmatmul.mubr.bf16.gmra.mrb[0].mxu0 %v162
  %v326 = vpop.f32.mrb[0].mxu0
  %v327 = vadd.f32 %v89, %v326
  %v328 = vpop.f32.mrb[0].mxu0
  %v329 = vadd.f32 %v93, %v328
  %v330 = vpop.f32.mrb[0].mxu0
  %v331 = vadd.f32 %v89, %v330
  %v332 = vpop.f32.mrb[0].mxu0
  %v333 = vadd.f32 %v93, %v332
  %334 = vmatprep.mubr.bf16.mxu0 0
  %335 = vmatmul.mubr.bf16.gmra.mrb[0].mxu0 %v163
  %v336 = vpop.f32.mrb[0].mxu0
  %v337 = vadd.f32 %v89, %v336
  %v338 = vpop.f32.mrb[0].mxu0
  %v339 = vadd.f32 %v93, %v338
  %v340 = vpop.f32.mrb[0].mxu0
  %v341 = vadd.f32 %v89, %v340
  %v342 = vpop.f32.mrb[0].mxu0
  %v343 = vadd.f32 %v93, %v342
  %344 = vmatprep.mubr.bf16.mxu0 0
  %345 = vmatmul.mubr.bf16.gmra.mrb[0].mxu0 %v164
  %v346 = vpop.f32.mrb[0].mxu0
  %v347 = vadd.f32 %v89, %v346
  %v348 = vpop.f32.mrb[0].mxu0
  %v349 = vadd.f32 %v93, %v348
  %v350 = vpop.f32.mrb[0].mxu0
  %v351 = vadd.f32 %v89, %v350
  %v352 = vpop.f32.mrb[0].mxu0
  %v353 = vadd.f32 %v93, %v352
  %354 = vmatprep.mubr.bf16.mxu0 0
  %355 = vmatmul.mubr.bf16.gmra.mrb[0].mxu0 %v165
  %v356 = vpop.f32.mrb[0].mxu0
  %v357 = vadd.f32 %v89, %v356
  %v358 = vpop.f32.mrb[0].mxu0
  %v359 = vadd.f32 %v93, %v358
  %v360 = vpop.f32.mrb[0].mxu0
  %v361 = vadd.f32 %v89, %v360
  %v362 = vpop.f32.mrb[0].mxu0
  %v363 = vadd.f32 %v93, %v362
  %364 = vmatprep.mubr.bf16.mxu0 0
  %365 = vmatmul.mubr.bf16.gmra.mrb[0].mxu0 %v166
  %v366 = vpop.f32.mrb[0].mxu0
  %v367 = vadd.f32 %v89, %v366
  %v368 = vpop.f32.mrb[0].mxu0
  %v369 = vadd.f32 %v93, %v368
  %v370 = vpop.f32.mrb[0].mxu0
  %v371 = vadd.f32 %v89, %v370
  %v372 = vpop.f32.mrb[0].mxu0
  %v373 = vadd.f32 %v93, %v372
  %374 = vmatprep.mubr.bf16.mxu0 0
  %375 = vmatmul.mubr.bf16.gmra.mrb[0].mxu0 %v167
  %v376 = vpop.f32.mrb[0].mxu0
  %v377 = vadd.f32 %v89, %v376
  %v378 = vpop.f32.mrb[0].mxu0
  %v379 = vadd.f32 %v93, %v378
  %v380 = vpop.f32.mrb[0].mxu0
  %v381 = vadd.f32 %v89, %v380
  %v382 = vpop.f32.mrb[0].mxu0
  %v383 = vadd.f32 %v93, %v382
  %384 = vmatprep.mubr.bf16.mxu0 0
  %385 = vmatmul.mubr.bf16.gmra.mrb[0].mxu0 %v168
  %v386 = vpop.f32.mrb[0].mxu0
  %v387 = vadd.f32 %v89, %v386
  %v388 = vpop.f32.mrb[0].mxu0
  %v389 = vadd.f32 %v93, %v388
  %v390 = vpop.f32.mrb[0].mxu0
  %v391 = vadd.f32 %v89, %v390
  %v392 = vpop.f32.mrb[0].mxu0
  %v393 = vadd.f32 %v93, %v392
  %394 = vmatprep.mubr.bf16.mxu0 0
  %395 = vmatmul.mubr.bf16.gmra.mrb[0].mxu0 %v169
  %v396 = vpop.f32.mrb[0].mxu0
  %v397 = vadd.f32 %v89, %v396
  %v398 = vpop.f32.mrb[0].mxu0
  %v399 = vadd.f32 %v93, %v398
  %v400 = vpop.f32.mrb[0].mxu0
  %v401 = vadd.f32 %v89, %v400
  %v402 = vpop.f32.mrb[0].mxu0
  %v403 = vadd.f32 %v93, %v402
  %404 = vmatprep.mubr.bf16.mxu0 0
  %405 = vmatmul.mubr.bf16.gmra.mrb[0].mxu0 %v170
  %v406 = vpop.f32.mrb[0].mxu0
  %v407 = vadd.f32 %v89, %v406
  %v408 = vpop.f32.mrb[0].mxu0
  %v409 = vadd.f32 %v93, %v408
  %v410 = vpop.f32.mrb[0].mxu0
  %v411 = vadd.f32 %v89, %v410
  %v412 = vpop.f32.mrb[0].mxu0
  %v413 = vadd.f32 %v93, %v412
  %414 = vmatprep.mubr.bf16.mxu0 0
  %415 = vmatmul.mubr.bf16.gmra.mrb[0].mxu0 %v171
  %v416 = vpop.f32.mrb[0].mxu0
  %v417 = vadd.f32 %v89, %v416
  %v418 = vpop.f32.mrb[0].mxu0
  %v419 = vadd.f32 %v93, %v418
  %v420 = vpop.f32.mrb[0].mxu0
  %v421 = vadd.f32 %v89, %v420
  %v422 = vpop.f32.mrb[0].mxu0
  %v423 = vadd.f32 %v93, %v422
  %424 = vmatprep.mubr.bf16.mxu0 0
  %425 = vmatmul.mubr.bf16.gmra.mrb[0].mxu0 %v172
  %v426 = vpop.f32.mrb[0].mxu0
  %v427 = vadd.f32 %v89, %v426
  %v428 = vpop.f32.mrb[0].mxu0
  %v429 = vadd.f32 %v93, %v428
  %v430 = vpop.f32.mrb[0].mxu0
  %v431 = vadd.f32 %v89, %v430
  %v432 = vpop.f32.mrb[0].mxu0
  %v433 = vadd.f32 %v93, %v432
  %434 = vmatprep.mubr.bf16.mxu0 0
  %435 = vmatmul.mubr.bf16.gmra.mrb[0].mxu0 %v173
  %v436 = vpop.f32.mrb[0].mxu0
  %v437 = vadd.f32 %v89, %v436
  %v438 = vpop.f32.mrb[0].mxu0
  %v439 = vadd.f32 %v93, %v438
  %v440 = vpop.f32.mrb[0].mxu0
  %v441 = vadd.f32 %v89, %v440
  %v442 = vpop.f32.mrb[0].mxu0
  %v443 = vadd.f32 %v93, %v442
  %444 = vmatprep.mubr.bf16.mxu0 0
  %445 = vmatmul.mubr.bf16.gmra.mrb[0].mxu0 %v174
  %v446 = vpop.f32.mrb[0].mxu0
  %v447 = vadd.f32 %v89, %v446
  %v448 = vpop.f32.mrb[0].mxu0
  %v449 = vadd.f32 %v93, %v448
  %v450 = vpop.f32.mrb[0].mxu0
  %v451 = vadd.f32 %v89, %v450
  %v452 = vpop.f32.mrb[0].mxu0
  %v453 = vadd.f32 %v93, %v452
  %454 = vmatprep.mubr.bf16.mxu0 0
  %455 = vmatmul.mubr.bf16.gmra.mrb[0].mxu0 %v175
  %v456 = vpop.f32.mrb[0].mxu0
  %v457 = vadd.f32 %v89, %v456
  %v458 = vpop.f32.mrb[0].mxu0
  %v459 = vadd.f32 %v93, %v458
  %v460 = vpop.f32.mrb[0].mxu0
  %v461 = vadd.f32 %v89, %v460
  %v462 = vpop.f32.mrb[0].mxu0
  %v463 = vadd.f32 %v93, %v462
  %464 = vdwg.mxu0
  %v465 = vld [vmem:[%s1] sm:$0xff]
  %v466 = vld [vmem:[%s1 + $0x8] sm:$0xff]
  %v467 = vld [vmem:[%s1 + $0x10] sm:$0xff]
  %v468 = vld [vmem:[%s1 + $0x18] sm:$0xff]
  %v469 = vld [vmem:[%s1 + $0x20] sm:$0xff]
  %v470 = vld [vmem:[%s1 + $0x28] sm:$0xff]
  %v471 = vld [vmem:[%s1 + $0x30] sm:$0xff]
  %v472 = vld [vmem:[%s1 + $0x38] sm:$0xff]
  %v473 = vld [vmem:[%s1 + $0x40] sm:$0xff]
  %v474 = vld [vmem:[%s1 + $0x48] sm:$0xff]
  %v475 = vld [vmem:[%s1 + $0x50] sm:$0xff]
  %v476 = vld [vmem:[%s1 + $0x58] sm:$0xff]
  %v477 = vld [vmem:[%s1 + $0x60] sm:$0xff]
  %v478 = vld [vmem:[%s1 + $0x68] sm:$0xff]
  %v479 = vld [vmem:[%s1 + $0x70] sm:$0xff]
  %v480 = vld [vmem:[%s1 + $0x78] sm:$0xff]
  %v481 = vld [vmem:[%s1 + $0x80] sm:$0xff]
  %v482 = vld [vmem:[%s1 + $0x88] sm:$0xff]
  %v483 = vld [vmem:[%s1 + $0x90] sm:$0xff]
  %v484 = vld [vmem:[%s1 + $0x98] sm:$0xff]
  %v485 = vld [vmem:[%s1 + $0xa0] sm:$0xff]
  %v486 = vld [vmem:[%s1 + $0xa8] sm:$0xff]
  %v487 = vld [vmem:[%s1 + $0xb0] sm:$0xff]
  %v488 = vld [vmem:[%s1 + $0xb8] sm:$0xff]
  %v489 = vld [vmem:[%s1 + $0xc0] sm:$0xff]
  %v490 = vld [vmem:[%s1 + $0xc8] sm:$0xff]
  %v491 = vld [vmem:[%s1 + $0xd0] sm:$0xff]
  %v492 = vld [vmem:[%s1 + $0xd8] sm:$0xff]
  %v493 = vld [vmem:[%s1 + $0xe0] sm:$0xff]
  %v494 = vld [vmem:[%s1 + $0xe8] sm:$0xff]
  %v495 = vld [vmem:[%s1 + $0xf0] sm:$0xff]
  %v496 = vld [vmem:[%s1 + $0xf8] sm:$0xff]
  %v497 = vld [vmem:[%s4] sm:$0xff]
  %v498 = vld [vmem:[%s4 + $0x8] sm:$0xff]
  %v499 = vld [vmem:[%s4 + $0x10] sm:$0xff]
  %v500 = vld [vmem:[%s4 + $0x18] sm:$0xff]
  %v501 = vld [vmem:[%s4 + $0x20] sm:$0xff]
  %v502 = vld [vmem:[%s4 + $0x28] sm:$0xff]
  %v503 = vld [vmem:[%s4 + $0x30] sm:$0xff]
  %v504 = vld [vmem:[%s4 + $0x38] sm:$0xff]
  %v505 = vld [vmem:[%s4 + $0x40] sm:$0xff]
  %v506 = vld [vmem:[%s4 + $0x48] sm:$0xff]
  %v507 = vld [vmem:[%s4 + $0x50] sm:$0xff]
  %v508 = vld [vmem:[%s4 + $0x58] sm:$0xff]
  %v509 = vld [vmem:[%s4 + $0x60] sm:$0xff]
  %v510 = vld [vmem:[%s4 + $0x68] sm:$0xff]
  %v511 = vld [vmem:[%s4 + $0x70] sm:$0xff]
  %v512 = vld [vmem:[%s4 + $0x78] sm:$0xff]
  %v513 = vld [vmem:[%s4 + $0x80] sm:$0xff]
  %v514 = vld [vmem:[%s4 + $0x88] sm:$0xff]
  %v515 = vld [vmem:[%s4 + $0x90] sm:$0xff]
  %v516 = vld [vmem:[%s4 + $0x98] sm:$0xff]
  %v517 = vld [vmem:[%s4 + $0xa0] sm:$0xff]
  %v518 = vld [vmem:[%s4 + $0xa8] sm:$0xff]
  %v519 = vld [vmem:[%s4 + $0xb0] sm:$0xff]
  %v520 = vld [vmem:[%s4 + $0xb8] sm:$0xff]
  %v521 = vld [vmem:[%s4 + $0xc0] sm:$0xff]
  %v522 = vld [vmem:[%s4 + $0xc8] sm:$0xff]
  %v523 = vld [vmem:[%s4 + $0xd0] sm:$0xff]
  %v524 = vld [vmem:[%s4 + $0xd8] sm:$0xff]
  %v525 = vld [vmem:[%s4 + $0xe0] sm:$0xff]
  %v526 = vld [vmem:[%s4 + $0xe8] sm:$0xff]
  %v527 = vld [vmem:[%s4 + $0xf0] sm:$0xff]
  %v528 = vld [vmem:[%s4 + $0xf8] sm:$0xff]
  %v529 = vld [vmem:[%s4 + $0x100] sm:$0xff]
  %v530 = vld [vmem:[%s4 + $0x108] sm:$0xff]
  %v531 = vld [vmem:[%s4 + $0x110] sm:$0xff]
  %v532 = vld [vmem:[%s4 + $0x118] sm:$0xff]
  %v533 = vld [vmem:[%s4 + $0x120] sm:$0xff]
  %v534 = vld [vmem:[%s4 + $0x128] sm:$0xff]
  %v535 = vld [vmem:[%s4 + $0x130] sm:$0xff]
  %v536 = vld [vmem:[%s4 + $0x138] sm:$0xff]
  %v537 = vld [vmem:[%s4 + $0x140] sm:$0xff]
  %v538 = vld [vmem:[%s4 + $0x148] sm:$0xff]
  %v539 = vld [vmem:[%s4 + $0x150] sm:$0xff]
  %v540 = vld [vmem:[%s4 + $0x158] sm:$0xff]
  %v541 = vld [vmem:[%s4 + $0x160] sm:$0xff]
  %v542 = vld [vmem:[%s4 + $0x168] sm:$0xff]
  %v543 = vld [vmem:[%s4 + $0x170] sm:$0xff]
  %v544 = vld [vmem:[%s4 + $0x178] sm:$0xff]
  %v545 = vld [vmem:[%s4 + $0x180] sm:$0xff]
  %v546 = vld [vmem:[%s4 + $0x188] sm:$0xff]
  %v547 = vld [vmem:[%s4 + $0x190] sm:$0xff]
  %v548 = vld [vmem:[%s4 + $0x198] sm:$0xff]
  %v549 = vld [vmem:[%s4 + $0x1a0] sm:$0xff]
  %v550 = vld [vmem:[%s4 + $0x1a8] sm:$0xff]
  %v551 = vld [vmem:[%s4 + $0x1b0] sm:$0xff]
  %v552 = vld [vmem:[%s4 + $0x1b8] sm:$0xff]
  %v553 = vld [vmem:[%s4 + $0x1c0] sm:$0xff]
  %v554 = vld [vmem:[%s4 + $0x1c8] sm:$0xff]
  %v555 = vld [vmem:[%s4 + $0x1d0] sm:$0xff]
  %v556 = vld [vmem:[%s4 + $0x1d8] sm:$0xff]
  %v557 = vld [vmem:[%s4 + $0x1e0] sm:$0xff]
  %v558 = vld [vmem:[%s4 + $0x1e8] sm:$0xff]
  %v559 = vld [vmem:[%s4 + $0x1f0] sm:$0xff]
  %v560 = vld [vmem:[%s4 + $0x1f8] sm:$0xff]
  %v561 = vld [vmem:[%s4 + $0x200] sm:$0xff]
  %v562 = vld [vmem:[%s4 + $0x208] sm:$0xff]
  %v563 = vld [vmem:[%s4 + $0x210] sm:$0xff]
  %v564 = vld [vmem:[%s4 + $0x218] sm:$0xff]
  %v565 = vld [vmem:[%s4 + $0x220] sm:$0xff]
  %v566 = vld [vmem:[%s4 + $0x228] sm:$0xff]
  %v567 = vld [vmem:[%s4 + $0x230] sm:$0xff]
  %v568 = vld [vmem:[%s4 + $0x238] sm:$0xff]
  %v569 = vld [vmem:[%s4 + $0x240] sm:$0xff]
  %v570 = vld [vmem:[%s4 + $0x248] sm:$0xff]
  %v571 = vld [vmem:[%s4 + $0x250] sm:$0xff]
  %v572 = vld [vmem:[%s4 + $0x258] sm:$0xff]
  %v573 = vld [vmem:[%s4 + $0x260] sm:$0xff]
  %v574 = vld [vmem:[%s4 + $0x268] sm:$0xff]
  %v575 = vld [vmem:[%s4 + $0x270] sm:$0xff]
  %v576 = vld [vmem:[%s4 + $0x278] sm:$0xff]
  %v577 = vld [vmem:[%s4 + $0x280] sm:$0xff]
  %v578 = vld [vmem:[%s4 + $0x288] sm:$0xff]
  %v579 = vld [vmem:[%s4 + $0x290] sm:$0xff]
  %v580 = vld [vmem:[%s4 + $0x298] sm:$0xff]
  %v581 = vld [vmem:[%s4 + $0x2a0] sm:$0xff]
  %v582 = vld [vmem:[%s4 + $0x2a8] sm:$0xff]
  %v583 = vld [vmem:[%s4 + $0x2b0] sm:$0xff]
  %v584 = vld [vmem:[%s4 + $0x2b8] sm:$0xff]
  %v585 = vld [vmem:[%s4 + $0x2c0] sm:$0xff]
  %v586 = vld [vmem:[%s4 + $0x2c8] sm:$0xff]
  %v587 = vld [vmem:[%s4 + $0x2d0] sm:$0xff]
  %v588 = vld [vmem:[%s4 + $0x2d8] sm:$0xff]
  %v589 = vld [vmem:[%s4 + $0x2e0] sm:$0xff]
  %v590 = vld [vmem:[%s4 + $0x2e8] sm:$0xff]
  %v591 = vld [vmem:[%s4 + $0x2f0] sm:$0xff]
  %v592 = vld [vmem:[%s4 + $0x2f8] sm:$0xff]
  %v593 = vld [vmem:[%s4 + $0x300] sm:$0xff]
  %v594 = vld [vmem:[%s4 + $0x308] sm:$0xff]
  %v595 = vld [vmem:[%s4 + $0x310] sm:$0xff]
  %v596 = vld [vmem:[%s4 + $0x318] sm:$0xff]
  %v597 = vld [vmem:[%s4 + $0x320] sm:$0xff]
  %v598 = vld [vmem:[%s4 + $0x328] sm:$0xff]
  %v599 = vld [vmem:[%s4 + $0x330] sm:$0xff]
  %v600 = vld [vmem:[%s4 + $0x338] sm:$0xff]
  %v601 = vld [vmem:[%s4 + $0x340] sm:$0xff]
  %v602 = vld [vmem:[%s4 + $0x348] sm:$0xff]
  %v603 = vld [vmem:[%s4 + $0x350] sm:$0xff]
  %v604 = vld [vmem:[%s4 + $0x358] sm:$0xff]
  %v605 = vld [vmem:[%s4 + $0x360] sm:$0xff]
  %v606 = vld [vmem:[%s4 + $0x368] sm:$0xff]
  %v607 = vld [vmem:[%s4 + $0x370] sm:$0xff]
  %v608 = vld [vmem:[%s4 + $0x378] sm:$0xff]
  %v609 = vld [vmem:[%s4 + $0x380] sm:$0xff]
  %v610 = vld [vmem:[%s4 + $0x388] sm:$0xff]
  %v611 = vld [vmem:[%s4 + $0x390] sm:$0xff]
  %v612 = vld [vmem:[%s4 + $0x398] sm:$0xff]
  %v613 = vld [vmem:[%s4 + $0x3a0] sm:$0xff]
  %v614 = vld [vmem:[%s4 + $0x3a8] sm:$0xff]
  %v615 = vld [vmem:[%s4 + $0x3b0] sm:$0xff]
  %v616 = vld [vmem:[%s4 + $0x3b8] sm:$0xff]
  %v617 = vld [vmem:[%s4 + $0x3c0] sm:$0xff]
  %v618 = vld [vmem:[%s4 + $0x3c8] sm:$0xff]
  %v619 = vld [vmem:[%s4 + $0x3d0] sm:$0xff]
  %v620 = vld [vmem:[%s4 + $0x3d8] sm:$0xff]
  %v621 = vld [vmem:[%s4 + $0x3e0] sm:$0xff]
  %v622 = vld [vmem:[%s4 + $0x3e8] sm:$0xff]
  %v623 = vld [vmem:[%s4 + $0x3f0] sm:$0xff]
  %v624 = vld [vmem:[%s4 + $0x3f8] sm:$0xff]
  %v625 = vld [vmem:[%s4 + $0x400] sm:$0xff]
  %v626 = vld [vmem:[%s4 + $0x408] sm:$0xff]
  %v627 = vld [vmem:[%s4 + $0x410] sm:$0xff]
  %v628 = vld [vmem:[%s4 + $0x418] sm:$0xff]
  %v629 = vld [vmem:[%s4 + $0x420] sm:$0xff]
  %v630 = vld [vmem:[%s4 + $0x428] sm:$0xff]
  %v631 = vld [vmem:[%s4 + $0x430] sm:$0xff]
  %v632 = vld [vmem:[%s4 + $0x438] sm:$0xff]
  %v633 = vld [vmem:[%s4 + $0x440] sm:$0xff]
  %v634 = vld [vmem:[%s4 + $0x448] sm:$0xff]
  %v635 = vld [vmem:[%s4 + $0x450] sm:$0xff]
  %v636 = vld [vmem:[%s4 + $0x458] sm:$0xff]
  %v637 = vld [vmem:[%s4 + $0x460] sm:$0xff]
  %v638 = vld [vmem:[%s4 + $0x468] sm:$0xff]
  %v639 = vld [vmem:[%s4 + $0x470] sm:$0xff]
  %v640 = vld [vmem:[%s4 + $0x478] sm:$0xff]
  %v641 = vld [vmem:[%s4 + $0x480] sm:$0xff]
  %v642 = vld [vmem:[%s4 + $0x488] sm:$0xff]
  %v643 = vld [vmem:[%s4 + $0x490] sm:$0xff]
  %v644 = vld [vmem:[%s4 + $0x498] sm:$0xff]
  %v645 = vld [vmem:[%s4 + $0x4a0] sm:$0xff]
  %v646 = vld [vmem:[%s4 + $0x4a8] sm:$0xff]
  %v647 = vld [vmem:[%s4 + $0x4b0] sm:$0xff]
  %v648 = vld [vmem:[%s4 + $0x4b8] sm:$0xff]
  %v649 = vld [vmem:[%s4 + $0x4c0] sm:$0xff]
  %v650 = vld [vmem:[%s4 + $0x4c8] sm:$0xff]
  %v651 = vld [vmem:[%s4 + $0x4d0] sm:$0xff]
  %v652 = vld [vmem:[%s4 + $0x4d8] sm:$0xff]
  %v653 = vld [vmem:[%s4 + $0x4e0] sm:$0xff]
  %v654 = vld [vmem:[%s4 + $0x4e8] sm:$0xff]
  %v655 = vld [vmem:[%s4 + $0x4f0] sm:$0xff]
  %v656 = vld [vmem:[%s4 + $0x4f8] sm:$0xff]
  %v657 = vld [vmem:[%s5] sm:$0xff]
  %v658 = vld [vmem:[%s5 + $0x8] sm:$0x3]
  %v661 = vlaneseq
  %v662 = vshrl.u32 %v661, 7
  %v663 = vsub.s32 0, %v662
  %v664 = vrot.slane %v657, %v663
  %v665 = vlaneseq
  %v666 = vshrl.u32 %v665, 7
  %v667 = vsub.s32 1, %v666
  %v668 = vrot.slane %v657, %v667
  %v669 = vlaneseq
  %v670 = vshrl.u32 %v669, 7
  %v671 = vsub.s32 2, %v670
  %v672 = vrot.slane %v657, %v671
  %v673 = vlaneseq
  %v674 = vshrl.u32 %v673, 7
  %v675 = vsub.s32 3, %v674
  %v676 = vrot.slane %v657, %v675
  %v677 = vlaneseq
  %v678 = vshrl.u32 %v677, 7
  %v679 = vsub.s32 4, %v678
  %v680 = vrot.slane %v657, %v679
  %v681 = vlaneseq
  %v682 = vshrl.u32 %v681, 7
  %v683 = vsub.s32 5, %v682
  %v684 = vrot.slane %v657, %v683
  %v685 = vlaneseq
  %v686 = vshrl.u32 %v685, 7
  %v687 = vsub.s32 6, %v686
  %v688 = vrot.slane %v657, %v687
  %v689 = vlaneseq
  %v690 = vshrl.u32 %v689, 7
  %v691 = vsub.s32 7, %v690
  %v692 = vrot.slane %v657, %v691
  %v693 = vlaneseq
  %v694 = vshrl.u32 %v693, 7
  %v695 = vsub.s32 0, %v694
  %v696 = vrot.slane %v658, %v695
  %v697 = vlaneseq
  %v698 = vshrl.u32 %v697, 7
  %v699 = vsub.s32 1, %v698
  %v700 = vrot.slane %v658, %v699
  %v743 = vunpack.c.l.b16 %v465
  %v744 = vunpack.c.h.b16 %v465
  %v745 = vunpack.c.l.b16 %v466
  %v746 = vunpack.c.h.b16 %v466
  %v747 = vunpack.c.l.b16 %v467
  %v748 = vunpack.c.h.b16 %v467
  %v749 = vunpack.c.l.b16 %v468
  %v750 = vunpack.c.h.b16 %v468
  %v751 = vunpack.c.l.b16 %v469
  %v752 = vunpack.c.h.b16 %v469
  %v753 = vunpack.c.l.b16 %v470
  %v754 = vunpack.c.h.b16 %v470
  %v755 = vunpack.c.l.b16 %v471
  %v756 = vunpack.c.h.b16 %v471
  %v757 = vunpack.c.l.b16 %v472
  %v758 = vunpack.c.h.b16 %v472
  %v759 = vunpack.c.l.b16 %v473
  %v760 = vunpack.c.h.b16 %v473
  %v761 = vunpack.c.l.b16 %v474
  %v762 = vunpack.c.h.b16 %v474
  %v763 = vunpack.c.l.b16 %v475
  %v764 = vunpack.c.h.b16 %v475
  %v765 = vunpack.c.l.b16 %v476
  %v766 = vunpack.c.h.b16 %v476
  %v767 = vunpack.c.l.b16 %v477
  %v768 = vunpack.c.h.b16 %v477
  %v769 = vunpack.c.l.b16 %v478
  %v770 = vunpack.c.h.b16 %v478
  %v771 = vunpack.c.l.b16 %v479
  %v772 = vunpack.c.h.b16 %v479
  %v773 = vunpack.c.l.b16 %v480
  %v774 = vunpack.c.h.b16 %v480
  %v775 = vunpack.c.l.b16 %v481
  %v776 = vunpack.c.h.b16 %v481
  %v777 = vunpack.c.l.b16 %v482
  %v778 = vunpack.c.h.b16 %v482
  %v779 = vunpack.c.l.b16 %v483
  %v780 = vunpack.c.h.b16 %v483
  %v781 = vunpack.c.l.b16 %v484
  %v782 = vunpack.c.h.b16 %v484
  %v783 = vunpack.c.l.b16 %v485
  %v784 = vunpack.c.h.b16 %v485
  %v785 = vunpack.c.l.b16 %v486
  %v786 = vunpack.c.h.b16 %v486
  %v787 = vunpack.c.l.b16 %v487
  %v788 = vunpack.c.h.b16 %v487
  %v789 = vunpack.c.l.b16 %v488
  %v790 = vunpack.c.h.b16 %v488
  %v791 = vunpack.c.l.b16 %v489
  %v792 = vunpack.c.h.b16 %v489
  %v793 = vunpack.c.l.b16 %v490
  %v794 = vunpack.c.h.b16 %v490
  %v795 = vunpack.c.l.b16 %v491
  %v796 = vunpack.c.h.b16 %v491
  %v797 = vunpack.c.l.b16 %v492
  %v798 = vunpack.c.h.b16 %v492
  %v799 = vunpack.c.l.b16 %v493
  %v800 = vunpack.c.h.b16 %v493
  %v801 = vunpack.c.l.b16 %v494
  %v802 = vunpack.c.h.b16 %v494
  %v803 = vunpack.c.l.b16 %v495
  %v804 = vunpack.c.h.b16 %v495
  %v805 = vunpack.c.l.b16 %v496
  %v806 = vunpack.c.h.b16 %v496
  %v807 = vpack.c.b16 %v745, %v743
  %v808 = vpack.c.b16 %v746, %v744
  %v809 = vpack.c.b16 %v749, %v747
  %v810 = vpack.c.b16 %v750, %v748
  %v811 = vpack.c.b16 %v753, %v751
  %v812 = vpack.c.b16 %v754, %v752
  %v813 = vpack.c.b16 %v757, %v755
  %v814 = vpack.c.b16 %v758, %v756
  %v815 = vpack.c.b16 %v761, %v759
  %v816 = vpack.c.b16 %v762, %v760
  %v817 = vpack.c.b16 %v765, %v763
  %v818 = vpack.c.b16 %v766, %v764
  %v819 = vpack.c.b16 %v769, %v767
  %v820 = vpack.c.b16 %v770, %v768
  %v821 = vpack.c.b16 %v773, %v771
  %v822 = vpack.c.b16 %v774, %v772
  %v823 = vpack.c.b16 %v777, %v775
  %v824 = vpack.c.b16 %v778, %v776
  %v825 = vpack.c.b16 %v781, %v779
  %v826 = vpack.c.b16 %v782, %v780
  %v827 = vpack.c.b16 %v785, %v783
  %v828 = vpack.c.b16 %v786, %v784
  %v829 = vpack.c.b16 %v789, %v787
  %v830 = vpack.c.b16 %v790, %v788
  %v831 = vpack.c.b16 %v793, %v791
  %v832 = vpack.c.b16 %v794, %v792
  %v833 = vpack.c.b16 %v797, %v795
  %v834 = vpack.c.b16 %v798, %v796
  %v835 = vpack.c.b16 %v801, %v799
  %v836 = vpack.c.b16 %v802, %v800
  %v837 = vpack.c.b16 %v805, %v803
  %v838 = vpack.c.b16 %v806, %v804
  %v1031 = vunpack.c.l.b16 %v497
  %v1032 = vunpack.c.h.b16 %v497
  %v1033 = vunpack.c.l.b16 %v498
  %v1034 = vunpack.c.h.b16 %v498
  %v1035 = vunpack.c.l.b16 %v499
  %v1036 = vunpack.c.h.b16 %v499
  %v1037 = vunpack.c.l.b16 %v500
  %v1038 = vunpack.c.h.b16 %v500
  %v1039 = vunpack.c.l.b16 %v501
  %v1040 = vunpack.c.h.b16 %v501
  %v1041 = vunpack.c.l.b16 %v502
  %v1042 = vunpack.c.h.b16 %v502
  %v1043 = vunpack.c.l.b16 %v503
  %v1044 = vunpack.c.h.b16 %v503
  %v1045 = vunpack.c.l.b16 %v504
  %v1046 = vunpack.c.h.b16 %v504
  %v1047 = vunpack.c.l.b16 %v505
  %v1048 = vunpack.c.h.b16 %v505
  %v1049 = vunpack.c.l.b16 %v506
  %v1050 = vunpack.c.h.b16 %v506
  %v1051 = vunpack.c.l.b16 %v507
  %v1052 = vunpack.c.h.b16 %v507
  %v1053 = vunpack.c.l.b16 %v508
  %v1054 = vunpack.c.h.b16 %v508
  %v1055 = vunpack.c.l.b16 %v509
  %v1056 = vunpack.c.h.b16 %v509
  %v1057 = vunpack.c.l.b16 %v510
  %v1058 = vunpack.c.h.b16 %v510
  %v1059 = vunpack.c.l.b16 %v511
  %v1060 = vunpack.c.h.b16 %v511
  %v1061 = vunpack.c.l.b16 %v512
  %v1062 = vunpack.c.h.b16 %v512
  %v1063 = vunpack.c.l.b16 %v513
  %v1064 = vunpack.c.h.b16 %v513
  %v1065 = vunpack.c.l.b16 %v514
  %v1066 = vunpack.c.h.b16 %v514
  %v1067 = vunpack.c.l.b16 %v515
  %v1068 = vunpack.c.h.b16 %v515
  %v1069 = vunpack.c.l.b16 %v516
  %v1070 = vunpack.c.h.b16 %v516
  %v1071 = vunpack.c.l.b16 %v517
  %v1072 = vunpack.c.h.b16 %v517
  %v1073 = vunpack.c.l.b16 %v518
  %v1074 = vunpack.c.h.b16 %v518
  %v1075 = vunpack.c.l.b16 %v519
  %v1076 = vunpack.c.h.b16 %v519
  %v1077 = vunpack.c.l.b16 %v520
  %v1078 = vunpack.c.h.b16 %v520
  %v1079 = vunpack.c.l.b16 %v521
  %v1080 = vunpack.c.h.b16 %v521
  %v1081 = vunpack.c.l.b16 %v522
  %v1082 = vunpack.c.h.b16 %v522
  %v1083 = vunpack.c.l.b16 %v523
  %v1084 = vunpack.c.h.b16 %v523
  %v1085 = vunpack.c.l.b16 %v524
  %v1086 = vunpack.c.h.b16 %v524
  %v1087 = vunpack.c.l.b16 %v525
  %v1088 = vunpack.c.h.b16 %v525
  %v1089 = vunpack.c.l.b16 %v526
  %v1090 = vunpack.c.h.b16 %v526
  %v1091 = vunpack.c.l.b16 %v527
  %v1092 = vunpack.c.h.b16 %v527
  %v1093 = vunpack.c.l.b16 %v528
  %v1094 = vunpack.c.h.b16 %v528
  %v1095 = vunpack.c.l.b16 %v529
  %v1096 = vunpack.c.h.b16 %v529
  %v1097 = vunpack.c.l.b16 %v530
  %v1098 = vunpack.c.h.b16 %v530
  %v1099 = vunpack.c.l.b16 %v531
  %v1100 = vunpack.c.h.b16 %v531
  %v1101 = vunpack.c.l.b16 %v532
  %v1102 = vunpack.c.h.b16 %v532
  %v1103 = vunpack.c.l.b16 %v533
  %v1104 = vunpack.c.h.b16 %v533
  %v1105 = vunpack.c.l.b16 %v534
  %v1106 = vunpack.c.h.b16 %v534
  %v1107 = vunpack.c.l.b16 %v535
  %v1108 = vunpack.c.h.b16 %v535
  %v1109 = vunpack.c.l.b16 %v536
  %v1110 = vunpack.c.h.b16 %v536
  %v1111 = vunpack.c.l.b16 %v537
  %v1112 = vunpack.c.h.b16 %v537
  %v1113 = vunpack.c.l.b16 %v538
  %v1114 = vunpack.c.h.b16 %v538
  %v1115 = vunpack.c.l.b16 %v539
  %v1116 = vunpack.c.h.b16 %v539
  %v1117 = vunpack.c.l.b16 %v540
  %v1118 = vunpack.c.h.b16 %v540
  %v1119 = vunpack.c.l.b16 %v541
  %v1120 = vunpack.c.h.b16 %v541
  %v1121 = vunpack.c.l.b16 %v542
  %v1122 = vunpack.c.h.b16 %v542
  %v1123 = vunpack.c.l.b16 %v543
  %v1124 = vunpack.c.h.b16 %v543
  %v1125 = vunpack.c.l.b16 %v544
  %v1126 = vunpack.c.h.b16 %v544
  %v1127 = vunpack.c.l.b16 %v545
  %v1128 = vunpack.c.h.b16 %v545
  %v1129 = vunpack.c.l.b16 %v546
  %v1130 = vunpack.c.h.b16 %v546
  %v1131 = vunpack.c.l.b16 %v547
  %v1132 = vunpack.c.h.b16 %v547
  %v1133 = vunpack.c.l.b16 %v548
  %v1134 = vunpack.c.h.b16 %v548
  %v1135 = vunpack.c.l.b16 %v549
  %v1136 = vunpack.c.h.b16 %v549
  %v1137 = vunpack.c.l.b16 %v550
  %v1138 = vunpack.c.h.b16 %v550
  %v1139 = vunpack.c.l.b16 %v551
  %v1140 = vunpack.c.h.b16 %v551
  %v1141 = vunpack.c.l.b16 %v552
  %v1142 = vunpack.c.h.b16 %v552
  %v1143 = vunpack.c.l.b16 %v553
  %v1144 = vunpack.c.h.b16 %v553
  %v1145 = vunpack.c.l.b16 %v554
  %v1146 = vunpack.c.h.b16 %v554
  %v1147 = vunpack.c.l.b16 %v555
  %v1148 = vunpack.c.h.b16 %v555
  %v1149 = vunpack.c.l.b16 %v556
  %v1150 = vunpack.c.h.b16 %v556
  %v1151 = vunpack.c.l.b16 %v557
  %v1152 = vunpack.c.h.b16 %v557
  %v1153 = vunpack.c.l.b16 %v558
  %v1154 = vunpack.c.h.b16 %v558
  %v1155 = vunpack.c.l.b16 %v559
  %v1156 = vunpack.c.h.b16 %v559
  %v1157 = vunpack.c.l.b16 %v560
  %v1158 = vunpack.c.h.b16 %v560
  %v1159 = vunpack.c.l.b16 %v561
  %v1160 = vunpack.c.h.b16 %v561
  %v1161 = vunpack.c.l.b16 %v562
  %v1162 = vunpack.c.h.b16 %v562
  %v1163 = vunpack.c.l.b16 %v563
  %v1164 = vunpack.c.h.b16 %v563
  %v1165 = vunpack.c.l.b16 %v564
  %v1166 = vunpack.c.h.b16 %v564
  %v1167 = vunpack.c.l.b16 %v565
  %v1168 = vunpack.c.h.b16 %v565
  %v1169 = vunpack.c.l.b16 %v566
  %v1170 = vunpack.c.h.b16 %v566
  %v1171 = vunpack.c.l.b16 %v567
  %v1172 = vunpack.c.h.b16 %v567
  %v1173 = vunpack.c.l.b16 %v568
  %v1174 = vunpack.c.h.b16 %v568
  %v1175 = vunpack.c.l.b16 %v569
  %v1176 = vunpack.c.h.b16 %v569
  %v1177 = vunpack.c.l.b16 %v570
  %v1178 = vunpack.c.h.b16 %v570
  %v1179 = vunpack.c.l.b16 %v571
  %v1180 = vunpack.c.h.b16 %v571
  %v1181 = vunpack.c.l.b16 %v572
  %v1182 = vunpack.c.h.b16 %v572
  %v1183 = vunpack.c.l.b16 %v573
  %v1184 = vunpack.c.h.b16 %v573
  %v1185 = vunpack.c.l.b16 %v574
  %v1186 = vunpack.c.h.b16 %v574
  %v1187 = vunpack.c.l.b16 %v575
  %v1188 = vunpack.c.h.b16 %v575
  %v1189 = vunpack.c.l.b16 %v576
  %v1190 = vunpack.c.h.b16 %v576
  %v1191 = vunpack.c.l.b16 %v577
  %v1192 = vunpack.c.h.b16 %v577
  %v1193 = vunpack.c.l.b16 %v578
  %v1194 = vunpack.c.h.b16 %v578
  %v1195 = vunpack.c.l.b16 %v579
  %v1196 = vunpack.c.h.b16 %v579
  %v1197 = vunpack.c.l.b16 %v580
  %v1198 = vunpack.c.h.b16 %v580
  %v1199 = vunpack.c.l.b16 %v581
  %v1200 = vunpack.c.h.b16 %v581
  %v1201 = vunpack.c.l.b16 %v582
  %v1202 = vunpack.c.h.b16 %v582
  %v1203 = vunpack.c.l.b16 %v583
  %v1204 = vunpack.c.h.b16 %v583
  %v1205 = vunpack.c.l.b16 %v584
  %v1206 = vunpack.c.h.b16 %v584
  %v1207 = vunpack.c.l.b16 %v585
  %v1208 = vunpack.c.h.b16 %v585
  %v1209 = vunpack.c.l.b16 %v586
  %v1210 = vunpack.c.h.b16 %v586
  %v1211 = vunpack.c.l.b16 %v587
  %v1212 = vunpack.c.h.b16 %v587
  %v1213 = vunpack.c.l.b16 %v588
  %v1214 = vunpack.c.h.b16 %v588
  %v1215 = vunpack.c.l.b16 %v589
  %v1216 = vunpack.c.h.b16 %v589
  %v1217 = vunpack.c.l.b16 %v590
  %v1218 = vunpack.c.h.b16 %v590
  %v1219 = vunpack.c.l.b16 %v591
  %v1220 = vunpack.c.h.b16 %v591
  %v1221 = vunpack.c.l.b16 %v592
  %v1222 = vunpack.c.h.b16 %v592
  %v1223 = vunpack.c.l.b16 %v593
  %v1224 = vunpack.c.h.b16 %v593
  %v1225 = vunpack.c.l.b16 %v594
  %v1226 = vunpack.c.h.b16 %v594
  %v1227 = vunpack.c.l.b16 %v595
  %v1228 = vunpack.c.h.b16 %v595
  %v1229 = vunpack.c.l.b16 %v596
  %v1230 = vunpack.c.h.b16 %v596
  %v1231 = vunpack.c.l.b16 %v597
  %v1232 = vunpack.c.h.b16 %v597
  %v1233 = vunpack.c.l.b16 %v598
  %v1234 = vunpack.c.h.b16 %v598
  %v1235 = vunpack.c.l.b16 %v599
  %v1236 = vunpack.c.h.b16 %v599
  %v1237 = vunpack.c.l.b16 %v600
  %v1238 = vunpack.c.h.b16 %v600
  %v1239 = vunpack.c.l.b16 %v601
  %v1240 = vunpack.c.h.b16 %v601
  %v1241 = vunpack.c.l.b16 %v602
  %v1242 = vunpack.c.h.b16 %v602
  %v1243 = vunpack.c.l.b16 %v603
  %v1244 = vunpack.c.h.b16 %v603
  %v1245 = vunpack.c.l.b16 %v604
  %v1246 = vunpack.c.h.b16 %v604
  %v1247 = vunpack.c.l.b16 %v605
  %v1248 = vunpack.c.h.b16 %v605
  %v1249 = vunpack.c.l.b16 %v606
  %v1250 = vunpack.c.h.b16 %v606
  %v1251 = vunpack.c.l.b16 %v607
  %v1252 = vunpack.c.h.b16 %v607
  %v1253 = vunpack.c.l.b16 %v608
  %v1254 = vunpack.c.h.b16 %v608
  %v1255 = vunpack.c.l.b16 %v609
  %v1256 = vunpack.c.h.b16 %v609
  %v1257 = vunpack.c.l.b16 %v610
  %v1258 = vunpack.c.h.b16 %v610
  %v1259 = vunpack.c.l.b16 %v611
  %v1260 = vunpack.c.h.b16 %v611
  %v1261 = vunpack.c.l.b16 %v612
  %v1262 = vunpack.c.h.b16 %v612
  %v1263 = vunpack.c.l.b16 %v613
  %v1264 = vunpack.c.h.b16 %v613
  %v1265 = vunpack.c.l.b16 %v614
  %v1266 = vunpack.c.h.b16 %v614
  %v1267 = vunpack.c.l.b16 %v615
  %v1268 = vunpack.c.h.b16 %v615
  %v1269 = vunpack.c.l.b16 %v616
  %v1270 = vunpack.c.h.b16 %v616
  %v1271 = vunpack.c.l.b16 %v617
  %v1272 = vunpack.c.h.b16 %v617
  %v1273 = vunpack.c.l.b16 %v618
  %v1274 = vunpack.c.h.b16 %v618
  %v1275 = vunpack.c.l.b16 %v619
  %v1276 = vunpack.c.h.b16 %v619
  %v1277 = vunpack.c.l.b16 %v620
  %v1278 = vunpack.c.h.b16 %v620
  %v1279 = vunpack.c.l.b16 %v621
  %v1280 = vunpack.c.h.b16 %v621
  %v1281 = vunpack.c.l.b16 %v622
  %v1282 = vunpack.c.h.b16 %v622
  %v1283 = vunpack.c.l.b16 %v623
  %v1284 = vunpack.c.h.b16 %v623
  %v1285 = vunpack.c.l.b16 %v624
  %v1286 = vunpack.c.h.b16 %v624
  %v1287 = vunpack.c.l.b16 %v625
  %v1288 = vunpack.c.h.b16 %v625
  %v1289 = vunpack.c.l.b16 %v626
  %v1290 = vunpack.c.h.b16 %v626
  %v1291 = vunpack.c.l.b16 %v627
  %v1292 = vunpack.c.h.b16 %v627
  %v1293 = vunpack.c.l.b16 %v628
  %v1294 = vunpack.c.h.b16 %v628
  %v1295 = vunpack.c.l.b16 %v629
  %v1296 = vunpack.c.h.b16 %v629
  %v1297 = vunpack.c.l.b16 %v630
  %v1298 = vunpack.c.h.b16 %v630
  %v1299 = vunpack.c.l.b16 %v631
  %v1300 = vunpack.c.h.b16 %v631
  %v1301 = vunpack.c.l.b16 %v632
  %v1302 = vunpack.c.h.b16 %v632
  %v1303 = vunpack.c.l.b16 %v633
  %v1304 = vunpack.c.h.b16 %v633
  %v1305 = vunpack.c.l.b16 %v634
  %v1306 = vunpack.c.h.b16 %v634
  %v1307 = vunpack.c.l.b16 %v635
  %v1308 = vunpack.c.h.b16 %v635
  %v1309 = vunpack.c.l.b16 %v636
  %v1310 = vunpack.c.h.b16 %v636
  %v1311 = vunpack.c.l.b16 %v637
  %v1312 = vunpack.c.h.b16 %v637
  %v1313 = vunpack.c.l.b16 %v638
  %v1314 = vunpack.c.h.b16 %v638
  %v1315 = vunpack.c.l.b16 %v639
  %v1316 = vunpack.c.h.b16 %v639
  %v1317 = vunpack.c.l.b16 %v640
  %v1318 = vunpack.c.h.b16 %v640
  %v1319 = vunpack.c.l.b16 %v641
  %v1320 = vunpack.c.h.b16 %v641
  %v1321 = vunpack.c.l.b16 %v642
  %v1322 = vunpack.c.h.b16 %v642
  %v1323 = vunpack.c.l.b16 %v643
  %v1324 = vunpack.c.h.b16 %v643
  %v1325 = vunpack.c.l.b16 %v644
  %v1326 = vunpack.c.h.b16 %v644
  %v1327 = vunpack.c.l.b16 %v645
  %v1328 = vunpack.c.h.b16 %v645
  %v1329 = vunpack.c.l.b16 %v646
  %v1330 = vunpack.c.h.b16 %v646
  %v1331 = vunpack.c.l.b16 %v647
  %v1332 = vunpack.c.h.b16 %v647
  %v1333 = vunpack.c.l.b16 %v648
  %v1334 = vunpack.c.h.b16 %v648
  %v1335 = vunpack.c.l.b16 %v649
  %v1336 = vunpack.c.h.b16 %v649
  %v1337 = vunpack.c.l.b16 %v650
  %v1338 = vunpack.c.h.b16 %v650
  %v1339 = vunpack.c.l.b16 %v651
  %v1340 = vunpack.c.h.b16 %v651
  %v1341 = vunpack.c.l.b16 %v652
  %v1342 = vunpack.c.h.b16 %v652
  %v1343 = vunpack.c.l.b16 %v653
  %v1344 = vunpack.c.h.b16 %v653
  %v1345 = vunpack.c.l.b16 %v654
  %v1346 = vunpack.c.h.b16 %v654
  %v1347 = vunpack.c.l.b16 %v655
  %v1348 = vunpack.c.h.b16 %v655
  %v1349 = vunpack.c.l.b16 %v656
  %v1350 = vunpack.c.h.b16 %v656
  %v1351 = vpack.c.b16 %v1041, %v1031
  %v1352 = vpack.c.b16 %v1042, %v1032
  %v1353 = vpack.c.b16 %v1043, %v1033
  %v1354 = vpack.c.b16 %v1044, %v1034
  %v1355 = vpack.c.b16 %v1045, %v1035
  %v1356 = vpack.c.b16 %v1046, %v1036
  %v1357 = vpack.c.b16 %v1047, %v1037
  %v1358 = vpack.c.b16 %v1048, %v1038
  %v1359 = vpack.c.b16 %v1049, %v1039
  %v1360 = vpack.c.b16 %v1050, %v1040
  %v1361 = vpack.c.b16 %v1061, %v1051
  %v1362 = vpack.c.b16 %v1062, %v1052
  %v1363 = vpack.c.b16 %v1063, %v1053
  %v1364 = vpack.c.b16 %v1064, %v1054
  %v1365 = vpack.c.b16 %v1065, %v1055
  %v1366 = vpack.c.b16 %v1066, %v1056
  %v1367 = vpack.c.b16 %v1067, %v1057
  %v1368 = vpack.c.b16 %v1068, %v1058
  %v1369 = vpack.c.b16 %v1069, %v1059
  %v1370 = vpack.c.b16 %v1070, %v1060
  %v1371 = vpack.c.b16 %v1081, %v1071
  %v1372 = vpack.c.b16 %v1082, %v1072
  %v1373 = vpack.c.b16 %v1083, %v1073
  %v1374 = vpack.c.b16 %v1084, %v1074
  %v1375 = vpack.c.b16 %v1085, %v1075
  %v1376 = vpack.c.b16 %v1086, %v1076
  %v1377 = vpack.c.b16 %v1087, %v1077
  %v1378 = vpack.c.b16 %v1088, %v1078
  %v1379 = vpack.c.b16 %v1089, %v1079
  %v1380 = vpack.c.b16 %v1090, %v1080
  %v1381 = vpack.c.b16 %v1101, %v1091
  %v1382 = vpack.c.b16 %v1102, %v1092
  %v1383 = vpack.c.b16 %v1103, %v1093
  %v1384 = vpack.c.b16 %v1104, %v1094
  %v1385 = vpack.c.b16 %v1105, %v1095
  %v1386 = vpack.c.b16 %v1106, %v1096
  %v1387 = vpack.c.b16 %v1107, %v1097
  %v1388 = vpack.c.b16 %v1108, %v1098
  %v1389 = vpack.c.b16 %v1109, %v1099
  %v1390 = vpack.c.b16 %v1110, %v1100
  %v1391 = vpack.c.b16 %v1121, %v1111
  %v1392 = vpack.c.b16 %v1122, %v1112
  %v1393 = vpack.c.b16 %v1123, %v1113
  %v1394 = vpack.c.b16 %v1124, %v1114
  %v1395 = vpack.c.b16 %v1125, %v1115
  %v1396 = vpack.c.b16 %v1126, %v1116
  %v1397 = vpack.c.b16 %v1127, %v1117
  %v1398 = vpack.c.b16 %v1128, %v1118
  %v1399 = vpack.c.b16 %v1129, %v1119
  %v1400 = vpack.c.b16 %v1130, %v1120
  %v1401 = vpack.c.b16 %v1141, %v1131
  %v1402 = vpack.c.b16 %v1142, %v1132
  %v1403 = vpack.c.b16 %v1143, %v1133
  %v1404 = vpack.c.b16 %v1144, %v1134
  %v1405 = vpack.c.b16 %v1145, %v1135
  %v1406 = vpack.c.b16 %v1146, %v1136
  %v1407 = vpack.c.b16 %v1147, %v1137
  %v1408 = vpack.c.b16 %v1148, %v1138
  %v1409 = vpack.c.b16 %v1149, %v1139
  %v1410 = vpack.c.b16 %v1150, %v1140
  %v1411 = vpack.c.b16 %v1161, %v1151
  %v1412 = vpack.c.b16 %v1162, %v1152
  %v1413 = vpack.c.b16 %v1163, %v1153
  %v1414 = vpack.c.b16 %v1164, %v1154
  %v1415 = vpack.c.b16 %v1165, %v1155
  %v1416 = vpack.c.b16 %v1166, %v1156
  %v1417 = vpack.c.b16 %v1167, %v1157
  %v1418 = vpack.c.b16 %v1168, %v1158
  %v1419 = vpack.c.b16 %v1169, %v1159
  %v1420 = vpack.c.b16 %v1170, %v1160
  %v1421 = vpack.c.b16 %v1181, %v1171
  %v1422 = vpack.c.b16 %v1182, %v1172
  %v1423 = vpack.c.b16 %v1183, %v1173
  %v1424 = vpack.c.b16 %v1184, %v1174
  %v1425 = vpack.c.b16 %v1185, %v1175
  %v1426 = vpack.c.b16 %v1186, %v1176
  %v1427 = vpack.c.b16 %v1187, %v1177
  %v1428 = vpack.c.b16 %v1188, %v1178
  %v1429 = vpack.c.b16 %v1189, %v1179
  %v1430 = vpack.c.b16 %v1190, %v1180
  %v1431 = vpack.c.b16 %v1201, %v1191
  %v1432 = vpack.c.b16 %v1202, %v1192
  %v1433 = vpack.c.b16 %v1203, %v1193
  %v1434 = vpack.c.b16 %v1204, %v1194
  %v1435 = vpack.c.b16 %v1205, %v1195
  %v1436 = vpack.c.b16 %v1206, %v1196
  %v1437 = vpack.c.b16 %v1207, %v1197
  %v1438 = vpack.c.b16 %v1208, %v1198
  %v1439 = vpack.c.b16 %v1209, %v1199
  %v1440 = vpack.c.b16 %v1210, %v1200
  %v1441 = vpack.c.b16 %v1221, %v1211
  %v1442 = vpack.c.b16 %v1222, %v1212
  %v1443 = vpack.c.b16 %v1223, %v1213
  %v1444 = vpack.c.b16 %v1224, %v1214
  %v1445 = vpack.c.b16 %v1225, %v1215
  %v1446 = vpack.c.b16 %v1226, %v1216
  %v1447 = vpack.c.b16 %v1227, %v1217
  %v1448 = vpack.c.b16 %v1228, %v1218
  %v1449 = vpack.c.b16 %v1229, %v1219
  %v1450 = vpack.c.b16 %v1230, %v1220
  %v1451 = vpack.c.b16 %v1241, %v1231
  %v1452 = vpack.c.b16 %v1242, %v1232
  %v1453 = vpack.c.b16 %v1243, %v1233
  %v1454 = vpack.c.b16 %v1244, %v1234
  %v1455 = vpack.c.b16 %v1245, %v1235
  %v1456 = vpack.c.b16 %v1246, %v1236
  %v1457 = vpack.c.b16 %v1247, %v1237
  %v1458 = vpack.c.b16 %v1248, %v1238
  %v1459 = vpack.c.b16 %v1249, %v1239
  %v1460 = vpack.c.b16 %v1250, %v1240
  %v1461 = vpack.c.b16 %v1261, %v1251
  %v1462 = vpack.c.b16 %v1262, %v1252
  %v1463 = vpack.c.b16 %v1263, %v1253
  %v1464 = vpack.c.b16 %v1264, %v1254
  %v1465 = vpack.c.b16 %v1265, %v1255
  %v1466 = vpack.c.b16 %v1266, %v1256
  %v1467 = vpack.c.b16 %v1267, %v1257
  %v1468 = vpack.c.b16 %v1268, %v1258
  %v1469 = vpack.c.b16 %v1269, %v1259
  %v1470 = vpack.c.b16 %v1270, %v1260
  %v1471 = vpack.c.b16 %v1281, %v1271
  %v1472 = vpack.c.b16 %v1282, %v1272
  %v1473 = vpack.c.b16 %v1283, %v1273
  %v1474 = vpack.c.b16 %v1284, %v1274
  %v1475 = vpack.c.b16 %v1285, %v1275
  %v1476 = vpack.c.b16 %v1286, %v1276
  %v1477 = vpack.c.b16 %v1287, %v1277
  %v1478 = vpack.c.b16 %v1288, %v1278
  %v1479 = vpack.c.b16 %v1289, %v1279
  %v1480 = vpack.c.b16 %v1290, %v1280
  %v1481 = vpack.c.b16 %v1301, %v1291
  %v1482 = vpack.c.b16 %v1302, %v1292
  %v1483 = vpack.c.b16 %v1303, %v1293
  %v1484 = vpack.c.b16 %v1304, %v1294
  %v1485 = vpack.c.b16 %v1305, %v1295
  %v1486 = vpack.c.b16 %v1306, %v1296
  %v1487 = vpack.c.b16 %v1307, %v1297
  %v1488 = vpack.c.b16 %v1308, %v1298
  %v1489 = vpack.c.b16 %v1309, %v1299
  %v1490 = vpack.c.b16 %v1310, %v1300
  %v1491 = vpack.c.b16 %v1321, %v1311
  %v1492 = vpack.c.b16 %v1322, %v1312
  %v1493 = vpack.c.b16 %v1323, %v1313
  %v1494 = vpack.c.b16 %v1324, %v1314
  %v1495 = vpack.c.b16 %v1325, %v1315
  %v1496 = vpack.c.b16 %v1326, %v1316
  %v1497 = vpack.c.b16 %v1327, %v1317
  %v1498 = vpack.c.b16 %v1328, %v1318
  %v1499 = vpack.c.b16 %v1329, %v1319
  %v1500 = vpack.c.b16 %v1330, %v1320
  %v1501 = vpack.c.b16 %v1341, %v1331
  %v1502 = vpack.c.b16 %v1342, %v1332
  %v1503 = vpack.c.b16 %v1343, %v1333
  %v1504 = vpack.c.b16 %v1344, %v1334
  %v1505 = vpack.c.b16 %v1345, %v1335
  %v1506 = vpack.c.b16 %v1346, %v1336
  %v1507 = vpack.c.b16 %v1347, %v1337
  %v1508 = vpack.c.b16 %v1348, %v1338
  %v1509 = vpack.c.b16 %v1349, %v1339
  %v1510 = vpack.c.b16 %v1350, %v1340
  %1671 = vmatprep.subr.bf16.mxu0 %v1352
  %1672 = vmatpush1.bf16.msra.mxu0 %v1351
  %1673 = vmatprep.subr.bf16.mxu0 %v1362
  %1674 = vmatpush1.bf16.msra.mxu0 %v1361
  %1675 = vmatprep.subr.bf16.mxu0 %v1372
  %1676 = vmatpush1.bf16.msra.mxu0 %v1371
  %1677 = vmatprep.subr.bf16.mxu0 %v1382
  %1678 = vmatpush1.bf16.msra.mxu0 %v1381
  %1679 = vmatprep.subr.bf16.mxu0 %v1392
  %1680 = vmatpush1.bf16.msra.mxu0 %v1391
  %1681 = vmatprep.subr.bf16.mxu0 %v1402
  %1682 = vmatpush1.bf16.msra.mxu0 %v1401
  %1683 = vmatprep.subr.bf16.mxu0 %v1412
  %1684 = vmatpush1.bf16.msra.mxu0 %v1411
  %1685 = vmatprep.subr.bf16.mxu0 %v1422
  %1686 = vmatpush1.bf16.msra.mxu0 %v1421
  %1687 = vmatprep.subr.bf16.mxu0 %v1432
  %1688 = vmatpush1.bf16.msra.mxu0 %v1431
  %1689 = vmatprep.subr.bf16.mxu0 %v1442
  %1690 = vmatpush1.bf16.msra.mxu0 %v1441
  %1691 = vmatprep.subr.bf16.mxu0 %v1452
  %1692 = vmatpush1.bf16.msra.mxu0 %v1451
  %1693 = vmatprep.subr.bf16.mxu0 %v1462
  %1694 = vmatpush1.bf16.msra.mxu0 %v1461
  %1695 = vmatprep.subr.bf16.mxu0 %v1472
  %1696 = vmatpush1.bf16.msra.mxu0 %v1471
  %1697 = vmatprep.subr.bf16.mxu0 %v1482
  %1698 = vmatpush1.bf16.msra.mxu0 %v1481
  %1699 = vmatprep.subr.bf16.mxu0 %v1492
  %1700 = vmatpush1.bf16.msra.mxu0 %v1491
  %1701 = vmatprep.subr.bf16.mxu0 %v1502
  %1702 = vmatpush1.bf16.msra.mxu0 %v1501
  %1703 = vmatprep.mubr.bf16.mxu0 %v808
  %1704 = vmatmul.mubr.bf16.gmra.mrb[0].mxu0 %v807
  %v1705 = vpop.f32.mrb[0].mxu0
  %v1706 = vadd.f32 %v664, %v1705
  %v1707 = vpop.f32.mrb[0].mxu0
  %v1708 = vadd.f32 %v668, %v1707
  %v1709 = vpop.f32.mrb[0].mxu0
  %v1710 = vadd.f32 %v664, %v1709
  %v1711 = vpop.f32.mrb[0].mxu0
  %v1712 = vadd.f32 %v668, %v1711
  %1713 = vmatprep.mubr.bf16.mxu0 %v810
  %1714 = vmatmul.mubr.bf16.gmra.mrb[0].mxu0 %v809
  %v1715 = vpop.f32.mrb[0].mxu0
  %v1716 = vadd.f32 %v664, %v1715
  %v1717 = vpop.f32.mrb[0].mxu0
  %v1718 = vadd.f32 %v668, %v1717
  %v1719 = vpop.f32.mrb[0].mxu0
  %v1720 = vadd.f32 %v664, %v1719
  %v1721 = vpop.f32.mrb[0].mxu0
  %v1722 = vadd.f32 %v668, %v1721
  %1723 = vmatprep.mubr.bf16.mxu0 %v812
  %1724 = vmatmul.mubr.bf16.gmra.mrb[0].mxu0 %v811
  %v1725 = vpop.f32.mrb[0].mxu0
  %v1726 = vadd.f32 %v664, %v1725
  %v1727 = vpop.f32.mrb[0].mxu0
  %v1728 = vadd.f32 %v668, %v1727
  %v1729 = vpop.f32.mrb[0].mxu0
  %v1730 = vadd.f32 %v664, %v1729
  %v1731 = vpop.f32.mrb[0].mxu0
  %v1732 = vadd.f32 %v668, %v1731
  %1733 = vmatprep.mubr.bf16.mxu0 %v814
  %1734 = vmatmul.mubr.bf16.gmra.mrb[0].mxu0 %v813
  %v1735 = vpop.f32.mrb[0].mxu0
  %v1736 = vadd.f32 %v664, %v1735
  %v1737 = vpop.f32.mrb[0].mxu0
  %v1738 = vadd.f32 %v668, %v1737
  %v1739 = vpop.f32.mrb[0].mxu0
  %v1740 = vadd.f32 %v664, %v1739
  %v1741 = vpop.f32.mrb[0].mxu0
  %v1742 = vadd.f32 %v668, %v1741
  %1743 = vmatprep.mubr.bf16.mxu0 %v816
  %1744 = vmatmul.mubr.bf16.gmra.mrb[0].mxu0 %v815
  %v1745 = vpop.f32.mrb[0].mxu0
  %v1746 = vadd.f32 %v664, %v1745
  %v1747 = vpop.f32.mrb[0].mxu0
  %v1748 = vadd.f32 %v668, %v1747
  %v1749 = vpop.f32.mrb[0].mxu0
  %v1750 = vadd.f32 %v664, %v1749
  %v1751 = vpop.f32.mrb[0].mxu0
  %v1752 = vadd.f32 %v668, %v1751
  %1753 = vmatprep.mubr.bf16.mxu0 %v818
  %1754 = vmatmul.mubr.bf16.gmra.mrb[0].mxu0 %v817
  %v1755 = vpop.f32.mrb[0].mxu0
  %v1756 = vadd.f32 %v664, %v1755
  %v1757 = vpop.f32.mrb[0].mxu0
  %v1758 = vadd.f32 %v668, %v1757
  %v1759 = vpop.f32.mrb[0].mxu0
  %v1760 = vadd.f32 %v664, %v1759
  %v1761 = vpop.f32.mrb[0].mxu0
  %v1762 = vadd.f32 %v668, %v1761
  %1763 = vmatprep.mubr.bf16.mxu0 %v820
  %1764 = vmatmul.mubr.bf16.gmra.mrb[0].mxu0 %v819
  %v1765 = vpop.f32.mrb[0].mxu0
  %v1766 = vadd.f32 %v664, %v1765
  %v1767 = vpop.f32.mrb[0].mxu0
  %v1768 = vadd.f32 %v668, %v1767
  %v1769 = vpop.f32.mrb[0].mxu0
  %v1770 = vadd.f32 %v664, %v1769
  %v1771 = vpop.f32.mrb[0].mxu0
  %v1772 = vadd.f32 %v668, %v1771
  %1773 = vmatprep.mubr.bf16.mxu0 %v822
  %1774 = vmatmul.mubr.bf16.gmra.mrb[0].mxu0 %v821
  %v1775 = vpop.f32.mrb[0].mxu0
  %v1776 = vadd.f32 %v664, %v1775
  %v1777 = vpop.f32.mrb[0].mxu0
  %v1778 = vadd.f32 %v668, %v1777
  %v1779 = vpop.f32.mrb[0].mxu0
  %v1780 = vadd.f32 %v664, %v1779
  %v1781 = vpop.f32.mrb[0].mxu0
  %v1782 = vadd.f32 %v668, %v1781
  %1783 = vmatprep.mubr.bf16.mxu0 %v824
  %1784 = vmatmul.mubr.bf16.gmra.mrb[0].mxu0 %v823
  %v1785 = vpop.f32.mrb[0].mxu0
  %v1786 = vadd.f32 %v664, %v1785
  %v1787 = vpop.f32.mrb[0].mxu0
  %v1788 = vadd.f32 %v668, %v1787
  %v1789 = vpop.f32.mrb[0].mxu0
  %v1790 = vadd.f32 %v664, %v1789
  %v1791 = vpop.f32.mrb[0].mxu0
  %v1792 = vadd.f32 %v668, %v1791
  %1793 = vmatprep.mubr.bf16.mxu0 %v826
  %1794 = vmatmul.mubr.bf16.gmra.mrb[0].mxu0 %v825
  %v1795 = vpop.f32.mrb[0].mxu0
  %v1796 = vadd.f32 %v664, %v1795
  %v1797 = vpop.f32.mrb[0].mxu0
  %v1798 = vadd.f32 %v668, %v1797
  %v1799 = vpop.f32.mrb[0].mxu0
  %v1800 = vadd.f32 %v664, %v1799
  %v1801 = vpop.f32.mrb[0].mxu0
  %v1802 = vadd.f32 %v668, %v1801
  %1803 = vmatprep.mubr.bf16.mxu0 %v828
  %1804 = vmatmul.mubr.bf16.gmra.mrb[0].mxu0 %v827
  %v1805 = vpop.f32.mrb[0].mxu0
  %v1806 = vadd.f32 %v664, %v1805
  %v1807 = vpop.f32.mrb[0].mxu0
  %v1808 = vadd.f32 %v668, %v1807
  %v1809 = vpop.f32.mrb[0].mxu0
  %v1810 = vadd.f32 %v664, %v1809
  %v1811 = vpop.f32.mrb[0].mxu0
  %v1812 = vadd.f32 %v668, %v1811
  %1813 = vmatprep.mubr.bf16.mxu0 %v830
  %1814 = vmatmul.mubr.bf16.gmra.mrb[0].mxu0 %v829
  %v1815 = vpop.f32.mrb[0].mxu0
  %v1816 = vadd.f32 %v664, %v1815
  %v1817 = vpop.f32.mrb[0].mxu0
  %v1818 = vadd.f32 %v668, %v1817
  %v1819 = vpop.f32.mrb[0].mxu0
  %v1820 = vadd.f32 %v664, %v1819
  %v1821 = vpop.f32.mrb[0].mxu0
  %v1822 = vadd.f32 %v668, %v1821
  %1823 = vmatprep.mubr.bf16.mxu0 %v832
  %1824 = vmatmul.mubr.bf16.gmra.mrb[0].mxu0 %v831
  %v1825 = vpop.f32.mrb[0].mxu0
  %v1826 = vadd.f32 %v664, %v1825
  %v1827 = vpop.f32.mrb[0].mxu0
  %v1828 = vadd.f32 %v668, %v1827
  %v1829 = vpop.f32.mrb[0].mxu0
  %v1830 = vadd.f32 %v664, %v1829
  %v1831 = vpop.f32.mrb[0].mxu0
  %v1832 = vadd.f32 %v668, %v1831
  %1833 = vmatprep.mubr.bf16.mxu0 %v834
  %1834 = vmatmul.mubr.bf16.gmra.mrb[0].mxu0 %v833
  %v1835 = vpop.f32.mrb[0].mxu0
  %v1836 = vadd.f32 %v664, %v1835
  %v1837 = vpop.f32.mrb[0].mxu0
  %v1838 = vadd.f32 %v668, %v1837
  %v1839 = vpop.f32.mrb[0].mxu0
  %v1840 = vadd.f32 %v664, %v1839
  %v1841 = vpop.f32.mrb[0].mxu0
  %v1842 = vadd.f32 %v668, %v1841
  %1843 = vmatprep.mubr.bf16.mxu0 %v836
  %1844 = vmatmul.mubr.bf16.gmra.mrb[0].mxu0 %v835
  %v1845 = vpop.f32.mrb[0].mxu0
  %v1846 = vadd.f32 %v664, %v1845
  %v1847 = vpop.f32.mrb[0].mxu0
  %v1848 = vadd.f32 %v668, %v1847
  %v1849 = vpop.f32.mrb[0].mxu0
  %v1850 = vadd.f32 %v664, %v1849
  %v1851 = vpop.f32.mrb[0].mxu0
  %v1852 = vadd.f32 %v668, %v1851
  %1853 = vmatprep.mubr.bf16.mxu0 %v838
  %1854 = vmatmul.mubr.bf16.gmra.mrb[0].mxu0 %v837
  %v1855 = vpop.f32.mrb[0].mxu0
  %v1856 = vadd.f32 %v664, %v1855
  %v1857 = vpop.f32.mrb[0].mxu0
  %v1858 = vadd.f32 %v668, %v1857
  %v1859 = vpop.f32.mrb[0].mxu0
  %v1860 = vadd.f32 %v664, %v1859
  %v1861 = vpop.f32.mrb[0].mxu0
  %v1862 = vadd.f32 %v668, %v1861
  %1863 = vdwg.mxu0
  %1864 = vmatprep.subr.bf16.mxu0 %v1354
  %1865 = vmatpush1.bf16.msra.mxu0 %v1353
  %1866 = vmatprep.subr.bf16.mxu0 %v1364
  %1867 = vmatpush1.bf16.msra.mxu0 %v1363
  %1868 = vmatprep.subr.bf16.mxu0 %v1374
  %1869 = vmatpush1.bf16.msra.mxu0 %v1373
  %1870 = vmatprep.subr.bf16.mxu0 %v1384
  %1871 = vmatpush1.bf16.msra.mxu0 %v1383
  %1872 = vmatprep.subr.bf16.mxu0 %v1394
  %1873 = vmatpush1.bf16.msra.mxu0 %v1393
  %1874 = vmatprep.subr.bf16.mxu0 %v1404
  %1875 = vmatpush1.bf16.msra.mxu0 %v1403
  %1876 = vmatprep.subr.bf16.mxu0 %v1414
  %1877 = vmatpush1.bf16.msra.mxu0 %v1413
  %1878 = vmatprep.subr.bf16.mxu0 %v1424
  %1879 = vmatpush1.bf16.msra.mxu0 %v1423
  %1880 = vmatprep.subr.bf16.mxu0 %v1434
  %1881 = vmatpush1.bf16.msra.mxu0 %v1433
  %1882 = vmatprep.subr.bf16.mxu0 %v1444
  %1883 = vmatpush1.bf16.msra.mxu0 %v1443
  %1884 = vmatprep.subr.bf16.mxu0 %v1454
  %1885 = vmatpush1.bf16.msra.mxu0 %v1453
  %1886 = vmatprep.subr.bf16.mxu0 %v1464
  %1887 = vmatpush1.bf16.msra.mxu0 %v1463
  %1888 = vmatprep.subr.bf16.mxu0 %v1474
  %1889 = vmatpush1.bf16.msra.mxu0 %v1473
  %1890 = vmatprep.subr.bf16.mxu0 %v1484
  %1891 = vmatpush1.bf16.msra.mxu0 %v1483
  %1892 = vmatprep.subr.bf16.mxu0 %v1494
  %1893 = vmatpush1.bf16.msra.mxu0 %v1493
  %1894 = vmatprep.subr.bf16.mxu0 %v1504
  %1895 = vmatpush1.bf16.msra.mxu0 %v1503
  %1896 = vmatprep.mubr.bf16.mxu0 %v808
  %1897 = vmatmul.mubr.bf16.gmra.mrb[0].mxu0 %v807
  %v1898 = vpop.f32.mrb[0].mxu0
  %v1899 = vadd.f32 %v672, %v1898
  %v1900 = vpop.f32.mrb[0].mxu0
  %v1901 = vadd.f32 %v676, %v1900
  %v1902 = vpop.f32.mrb[0].mxu0
  %v1903 = vadd.f32 %v672, %v1902
  %v1904 = vpop.f32.mrb[0].mxu0
  %v1905 = vadd.f32 %v676, %v1904
  %1906 = vmatprep.mubr.bf16.mxu0 %v810
  %1907 = vmatmul.mubr.bf16.gmra.mrb[0].mxu0 %v809
  %v1908 = vpop.f32.mrb[0].mxu0
  %v1909 = vadd.f32 %v672, %v1908
  %v1910 = vpop.f32.mrb[0].mxu0
  %v1911 = vadd.f32 %v676, %v1910
  %v1912 = vpop.f32.mrb[0].mxu0
  %v1913 = vadd.f32 %v672, %v1912
  %v1914 = vpop.f32.mrb[0].mxu0
  %v1915 = vadd.f32 %v676, %v1914
  %1916 = vmatprep.mubr.bf16.mxu0 %v812
  %1917 = vmatmul.mubr.bf16.gmra.mrb[0].mxu0 %v811
  %v1918 = vpop.f32.mrb[0].mxu0
  %v1919 = vadd.f32 %v672, %v1918
  %v1920 = vpop.f32.mrb[0].mxu0
  %v1921 = vadd.f32 %v676, %v1920
  %v1922 = vpop.f32.mrb[0].mxu0
  %v1923 = vadd.f32 %v672, %v1922
  %v1924 = vpop.f32.mrb[0].mxu0
  %v1925 = vadd.f32 %v676, %v1924
  %1926 = vmatprep.mubr.bf16.mxu0 %v814
  %1927 = vmatmul.mubr.bf16.gmra.mrb[0].mxu0 %v813
  %v1928 = vpop.f32.mrb[0].mxu0
  %v1929 = vadd.f32 %v672, %v1928
  %v1930 = vpop.f32.mrb[0].mxu0
  %v1931 = vadd.f32 %v676, %v1930
  %v1932 = vpop.f32.mrb[0].mxu0
  %v1933 = vadd.f32 %v672, %v1932
  %v1934 = vpop.f32.mrb[0].mxu0
  %v1935 = vadd.f32 %v676, %v1934
  %1936 = vmatprep.mubr.bf16.mxu0 %v816
  %1937 = vmatmul.mubr.bf16.gmra.mrb[0].mxu0 %v815
  %v1938 = vpop.f32.mrb[0].mxu0
  %v1939 = vadd.f32 %v672, %v1938
  %v1940 = vpop.f32.mrb[0].mxu0
  %v1941 = vadd.f32 %v676, %v1940
  %v1942 = vpop.f32.mrb[0].mxu0
  %v1943 = vadd.f32 %v672, %v1942
  %v1944 = vpop.f32.mrb[0].mxu0
  %v1945 = vadd.f32 %v676, %v1944
  %1946 = vmatprep.mubr.bf16.mxu0 %v818
  %1947 = vmatmul.mubr.bf16.gmra.mrb[0].mxu0 %v817
  %v1948 = vpop.f32.mrb[0].mxu0
  %v1949 = vadd.f32 %v672, %v1948
  %v1950 = vpop.f32.mrb[0].mxu0
  %v1951 = vadd.f32 %v676, %v1950
  %v1952 = vpop.f32.mrb[0].mxu0
  %v1953 = vadd.f32 %v672, %v1952
  %v1954 = vpop.f32.mrb[0].mxu0
  %v1955 = vadd.f32 %v676, %v1954
  %1956 = vmatprep.mubr.bf16.mxu0 %v820
  %1957 = vmatmul.mubr.bf16.gmra.mrb[0].mxu0 %v819
  %v1958 = vpop.f32.mrb[0].mxu0
  %v1959 = vadd.f32 %v672, %v1958
  %v1960 = vpop.f32.mrb[0].mxu0
  %v1961 = vadd.f32 %v676, %v1960
  %v1962 = vpop.f32.mrb[0].mxu0
  %v1963 = vadd.f32 %v672, %v1962
  %v1964 = vpop.f32.mrb[0].mxu0
  %v1965 = vadd.f32 %v676, %v1964
  %1966 = vmatprep.mubr.bf16.mxu0 %v822
  %1967 = vmatmul.mubr.bf16.gmra.mrb[0].mxu0 %v821
  %v1968 = vpop.f32.mrb[0].mxu0
  %v1969 = vadd.f32 %v672, %v1968
  %v1970 = vpop.f32.mrb[0].mxu0
  %v1971 = vadd.f32 %v676, %v1970
  %v1972 = vpop.f32.mrb[0].mxu0
  %v1973 = vadd.f32 %v672, %v1972
  %v1974 = vpop.f32.mrb[0].mxu0
  %v1975 = vadd.f32 %v676, %v1974
  %1976 = vmatprep.mubr.bf16.mxu0 %v824
  %1977 = vmatmul.mubr.bf16.gmra.mrb[0].mxu0 %v823
  %v1978 = vpop.f32.mrb[0].mxu0
  %v1979 = vadd.f32 %v672, %v1978
  %v1980 = vpop.f32.mrb[0].mxu0
  %v1981 = vadd.f32 %v676, %v1980
  %v1982 = vpop.f32.mrb[0].mxu0
  %v1983 = vadd.f32 %v672, %v1982
  %v1984 = vpop.f32.mrb[0].mxu0
  %v1985 = vadd.f32 %v676, %v1984
  %1986 = vmatprep.mubr.bf16.mxu0 %v826
  %1987 = vmatmul.mubr.bf16.gmra.mrb[0].mxu0 %v825
  %v1988 = vpop.f32.mrb[0].mxu0
  %v1989 = vadd.f32 %v672, %v1988
  %v1990 = vpop.f32.mrb[0].mxu0
  %v1991 = vadd.f32 %v676, %v1990
  %v1992 = vpop.f32.mrb[0].mxu0
  %v1993 = vadd.f32 %v672, %v1992
  %v1994 = vpop.f32.mrb[0].mxu0
  %v1995 = vadd.f32 %v676, %v1994
  %1996 = vmatprep.mubr.bf16.mxu0 %v828
  %1997 = vmatmul.mubr.bf16.gmra.mrb[0].mxu0 %v827
  %v1998 = vpop.f32.mrb[0].mxu0
  %v1999 = vadd.f32 %v672, %v1998
  %v2000 = vpop.f32.mrb[0].mxu0
  %v2001 = vadd.f32 %v676, %v2000
  %v2002 = vpop.f32.mrb[0].mxu0
  %v2003 = vadd.f32 %v672, %v2002
  %v2004 = vpop.f32.mrb[0].mxu0
  %v2005 = vadd.f32 %v676, %v2004
  %2006 = vmatprep.mubr.bf16.mxu0 %v830
  %2007 = vmatmul.mubr.bf16.gmra.mrb[0].mxu0 %v829
  %v2008 = vpop.f32.mrb[0].mxu0
  %v2009 = vadd.f32 %v672, %v2008
  %v2010 = vpop.f32.mrb[0].mxu0
  %v2011 = vadd.f32 %v676, %v2010
  %v2012 = vpop.f32.mrb[0].mxu0
  %v2013 = vadd.f32 %v672, %v2012
  %v2014 = vpop.f32.mrb[0].mxu0
  %v2015 = vadd.f32 %v676, %v2014
  %2016 = vmatprep.mubr.bf16.mxu0 %v832
  %2017 = vmatmul.mubr.bf16.gmra.mrb[0].mxu0 %v831
  %v2018 = vpop.f32.mrb[0].mxu0
  %v2019 = vadd.f32 %v672, %v2018
  %v2020 = vpop.f32.mrb[0].mxu0
  %v2021 = vadd.f32 %v676, %v2020
  %v2022 = vpop.f32.mrb[0].mxu0
  %v2023 = vadd.f32 %v672, %v2022
  %v2024 = vpop.f32.mrb[0].mxu0
  %v2025 = vadd.f32 %v676, %v2024
  %2026 = vmatprep.mubr.bf16.mxu0 %v834
  %2027 = vmatmul.mubr.bf16.gmra.mrb[0].mxu0 %v833
  %v2028 = vpop.f32.mrb[0].mxu0
  %v2029 = vadd.f32 %v672, %v2028
  %v2030 = vpop.f32.mrb[0].mxu0
  %v2031 = vadd.f32 %v676, %v2030
  %v2032 = vpop.f32.mrb[0].mxu0
  %v2033 = vadd.f32 %v672, %v2032
  %v2034 = vpop.f32.mrb[0].mxu0
  %v2035 = vadd.f32 %v676, %v2034
  %2036 = vmatprep.mubr.bf16.mxu0 %v836
  %2037 = vmatmul.mubr.bf16.gmra.mrb[0].mxu0 %v835
  %v2038 = vpop.f32.mrb[0].mxu0
  %v2039 = vadd.f32 %v672, %v2038
  %v2040 = vpop.f32.mrb[0].mxu0
  %v2041 = vadd.f32 %v676, %v2040
  %v2042 = vpop.f32.mrb[0].mxu0
  %v2043 = vadd.f32 %v672, %v2042
  %v2044 = vpop.f32.mrb[0].mxu0
  %v2045 = vadd.f32 %v676, %v2044
  %2046 = vmatprep.mubr.bf16.mxu0 %v838
  %2047 = vmatmul.mubr.bf16.gmra.mrb[0].mxu0 %v837
  %v2048 = vpop.f32.mrb[0].mxu0
  %v2049 = vadd.f32 %v672, %v2048
  %v2050 = vpop.f32.mrb[0].mxu0
  %v2051 = vadd.f32 %v676, %v2050
  %v2052 = vpop.f32.mrb[0].mxu0
  %v2053 = vadd.f32 %v672, %v2052
  %v2054 = vpop.f32.mrb[0].mxu0
  %v2055 = vadd.f32 %v676, %v2054
  %2056 = vdwg.mxu0
  %2057 = vmatprep.subr.bf16.mxu0 %v1356
  %2058 = vmatpush1.bf16.msra.mxu0 %v1355
  %2059 = vmatprep.subr.bf16.mxu0 %v1366
  %2060 = vmatpush1.bf16.msra.mxu0 %v1365
  %2061 = vmatprep.subr.bf16.mxu0 %v1376
  %2062 = vmatpush1.bf16.msra.mxu0 %v1375
  %2063 = vmatprep.subr.bf16.mxu0 %v1386
  %2064 = vmatpush1.bf16.msra.mxu0 %v1385
  %2065 = vmatprep.subr.bf16.mxu0 %v1396
  %2066 = vmatpush1.bf16.msra.mxu0 %v1395
  %2067 = vmatprep.subr.bf16.mxu0 %v1406
  %2068 = vmatpush1.bf16.msra.mxu0 %v1405
  %2069 = vmatprep.subr.bf16.mxu0 %v1416
  %2070 = vmatpush1.bf16.msra.mxu0 %v1415
  %2071 = vmatprep.subr.bf16.mxu0 %v1426
  %2072 = vmatpush1.bf16.msra.mxu0 %v1425
  %2073 = vmatprep.subr.bf16.mxu0 %v1436
  %2074 = vmatpush1.bf16.msra.mxu0 %v1435
  %2075 = vmatprep.subr.bf16.mxu0 %v1446
  %2076 = vmatpush1.bf16.msra.mxu0 %v1445
  %2077 = vmatprep.subr.bf16.mxu0 %v1456
  %2078 = vmatpush1.bf16.msra.mxu0 %v1455
  %2079 = vmatprep.subr.bf16.mxu0 %v1466
  %2080 = vmatpush1.bf16.msra.mxu0 %v1465
  %2081 = vmatprep.subr.bf16.mxu0 %v1476
  %2082 = vmatpush1.bf16.msra.mxu0 %v1475
  %2083 = vmatprep.subr.bf16.mxu0 %v1486
  %2084 = vmatpush1.bf16.msra.mxu0 %v1485
  %2085 = vmatprep.subr.bf16.mxu0 %v1496
  %2086 = vmatpush1.bf16.msra.mxu0 %v1495
  %2087 = vmatprep.subr.bf16.mxu0 %v1506
  %2088 = vmatpush1.bf16.msra.mxu0 %v1505
  %2089 = vmatprep.mubr.bf16.mxu0 %v808
  %2090 = vmatmul.mubr.bf16.gmra.mrb[0].mxu0 %v807
  %v2091 = vpop.f32.mrb[0].mxu0
  %v2092 = vadd.f32 %v680, %v2091
  %v2093 = vpop.f32.mrb[0].mxu0
  %v2094 = vadd.f32 %v684, %v2093
  %v2095 = vpop.f32.mrb[0].mxu0
  %v2096 = vadd.f32 %v680, %v2095
  %v2097 = vpop.f32.mrb[0].mxu0
  %v2098 = vadd.f32 %v684, %v2097
  %2099 = vmatprep.mubr.bf16.mxu0 %v810
  %2100 = vmatmul.mubr.bf16.gmra.mrb[0].mxu0 %v809
  %v2101 = vpop.f32.mrb[0].mxu0
  %v2102 = vadd.f32 %v680, %v2101
  %v2103 = vpop.f32.mrb[0].mxu0
  %v2104 = vadd.f32 %v684, %v2103
  %v2105 = vpop.f32.mrb[0].mxu0
  %v2106 = vadd.f32 %v680, %v2105
  %v2107 = vpop.f32.mrb[0].mxu0
  %v2108 = vadd.f32 %v684, %v2107
  %2109 = vmatprep.mubr.bf16.mxu0 %v812
  %2110 = vmatmul.mubr.bf16.gmra.mrb[0].mxu0 %v811
  %v2111 = vpop.f32.mrb[0].mxu0
  %v2112 = vadd.f32 %v680, %v2111
  %v2113 = vpop.f32.mrb[0].mxu0
  %v2114 = vadd.f32 %v684, %v2113
  %v2115 = vpop.f32.mrb[0].mxu0
  %v2116 = vadd.f32 %v680, %v2115
  %v2117 = vpop.f32.mrb[0].mxu0
  %v2118 = vadd.f32 %v684, %v2117
  %2119 = vmatprep.mubr.bf16.mxu0 %v814
  %2120 = vmatmul.mubr.bf16.gmra.mrb[0].mxu0 %v813
  %v2121 = vpop.f32.mrb[0].mxu0
  %v2122 = vadd.f32 %v680, %v2121
  %v2123 = vpop.f32.mrb[0].mxu0
  %v2124 = vadd.f32 %v684, %v2123
  %v2125 = vpop.f32.mrb[0].mxu0
  %v2126 = vadd.f32 %v680, %v2125
  %v2127 = vpop.f32.mrb[0].mxu0
  %v2128 = vadd.f32 %v684, %v2127
  %2129 = vmatprep.mubr.bf16.mxu0 %v816
  %2130 = vmatmul.mubr.bf16.gmra.mrb[0].mxu0 %v815
  %v2131 = vpop.f32.mrb[0].mxu0
  %v2132 = vadd.f32 %v680, %v2131
  %v2133 = vpop.f32.mrb[0].mxu0
  %v2134 = vadd.f32 %v684, %v2133
  %v2135 = vpop.f32.mrb[0].mxu0
  %v2136 = vadd.f32 %v680, %v2135
  %v2137 = vpop.f32.mrb[0].mxu0
  %v2138 = vadd.f32 %v684, %v2137
  %2139 = vmatprep.mubr.bf16.mxu0 %v818
  %2140 = vmatmul.mubr.bf16.gmra.mrb[0].mxu0 %v817
  %v2141 = vpop.f32.mrb[0].mxu0
  %v2142 = vadd.f32 %v680, %v2141
  %v2143 = vpop.f32.mrb[0].mxu0
  %v2144 = vadd.f32 %v684, %v2143
  %v2145 = vpop.f32.mrb[0].mxu0
  %v2146 = vadd.f32 %v680, %v2145
  %v2147 = vpop.f32.mrb[0].mxu0
  %v2148 = vadd.f32 %v684, %v2147
  %2149 = vmatprep.mubr.bf16.mxu0 %v820
  %2150 = vmatmul.mubr.bf16.gmra.mrb[0].mxu0 %v819
  %v2151 = vpop.f32.mrb[0].mxu0
  %v2152 = vadd.f32 %v680, %v2151
  %v2153 = vpop.f32.mrb[0].mxu0
  %v2154 = vadd.f32 %v684, %v2153
  %v2155 = vpop.f32.mrb[0].mxu0
  %v2156 = vadd.f32 %v680, %v2155
  %v2157 = vpop.f32.mrb[0].mxu0
  %v2158 = vadd.f32 %v684, %v2157
  %2159 = vmatprep.mubr.bf16.mxu0 %v822
  %2160 = vmatmul.mubr.bf16.gmra.mrb[0].mxu0 %v821
  %v2161 = vpop.f32.mrb[0].mxu0
  %v2162 = vadd.f32 %v680, %v2161
  %v2163 = vpop.f32.mrb[0].mxu0
  %v2164 = vadd.f32 %v684, %v2163
  %v2165 = vpop.f32.mrb[0].mxu0
  %v2166 = vadd.f32 %v680, %v2165
  %v2167 = vpop.f32.mrb[0].mxu0
  %v2168 = vadd.f32 %v684, %v2167
  %2169 = vmatprep.mubr.bf16.mxu0 %v824
  %2170 = vmatmul.mubr.bf16.gmra.mrb[0].mxu0 %v823
  %v2171 = vpop.f32.mrb[0].mxu0
  %v2172 = vadd.f32 %v680, %v2171
  %v2173 = vpop.f32.mrb[0].mxu0
  %v2174 = vadd.f32 %v684, %v2173
  %v2175 = vpop.f32.mrb[0].mxu0
  %v2176 = vadd.f32 %v680, %v2175
  %v2177 = vpop.f32.mrb[0].mxu0
  %v2178 = vadd.f32 %v684, %v2177
  %2179 = vmatprep.mubr.bf16.mxu0 %v826
  %2180 = vmatmul.mubr.bf16.gmra.mrb[0].mxu0 %v825
  %v2181 = vpop.f32.mrb[0].mxu0
  %v2182 = vadd.f32 %v680, %v2181
  %v2183 = vpop.f32.mrb[0].mxu0
  %v2184 = vadd.f32 %v684, %v2183
  %v2185 = vpop.f32.mrb[0].mxu0
  %v2186 = vadd.f32 %v680, %v2185
  %v2187 = vpop.f32.mrb[0].mxu0
  %v2188 = vadd.f32 %v684, %v2187
  %2189 = vmatprep.mubr.bf16.mxu0 %v828
  %2190 = vmatmul.mubr.bf16.gmra.mrb[0].mxu0 %v827
  %v2191 = vpop.f32.mrb[0].mxu0
  %v2192 = vadd.f32 %v680, %v2191
  %v2193 = vpop.f32.mrb[0].mxu0
  %v2194 = vadd.f32 %v684, %v2193
  %v2195 = vpop.f32.mrb[0].mxu0
  %v2196 = vadd.f32 %v680, %v2195
  %v2197 = vpop.f32.mrb[0].mxu0
  %v2198 = vadd.f32 %v684, %v2197
  %2199 = vmatprep.mubr.bf16.mxu0 %v830
  %2200 = vmatmul.mubr.bf16.gmra.mrb[0].mxu0 %v829
  %v2201 = vpop.f32.mrb[0].mxu0
  %v2202 = vadd.f32 %v680, %v2201
  %v2203 = vpop.f32.mrb[0].mxu0
  %v2204 = vadd.f32 %v684, %v2203
  %v2205 = vpop.f32.mrb[0].mxu0
  %v2206 = vadd.f32 %v680, %v2205
  %v2207 = vpop.f32.mrb[0].mxu0
  %v2208 = vadd.f32 %v684, %v2207
  %2209 = vmatprep.mubr.bf16.mxu0 %v832
  %2210 = vmatmul.mubr.bf16.gmra.mrb[0].mxu0 %v831
  %v2211 = vpop.f32.mrb[0].mxu0
  %v2212 = vadd.f32 %v680, %v2211
  %v2213 = vpop.f32.mrb[0].mxu0
  %v2214 = vadd.f32 %v684, %v2213
  %v2215 = vpop.f32.mrb[0].mxu0
  %v2216 = vadd.f32 %v680, %v2215
  %v2217 = vpop.f32.mrb[0].mxu0
  %v2218 = vadd.f32 %v684, %v2217
  %2219 = vmatprep.mubr.bf16.mxu0 %v834
  %2220 = vmatmul.mubr.bf16.gmra.mrb[0].mxu0 %v833
  %v2221 = vpop.f32.mrb[0].mxu0
  %v2222 = vadd.f32 %v680, %v2221
  %v2223 = vpop.f32.mrb[0].mxu0
  %v2224 = vadd.f32 %v684, %v2223
  %v2225 = vpop.f32.mrb[0].mxu0
  %v2226 = vadd.f32 %v680, %v2225
  %v2227 = vpop.f32.mrb[0].mxu0
  %v2228 = vadd.f32 %v684, %v2227
  %2229 = vmatprep.mubr.bf16.mxu0 %v836
  %2230 = vmatmul.mubr.bf16.gmra.mrb[0].mxu0 %v835
  %v2231 = vpop.f32.mrb[0].mxu0
  %v2232 = vadd.f32 %v680, %v2231
  %v2233 = vpop.f32.mrb[0].mxu0
  %v2234 = vadd.f32 %v684, %v2233
  %v2235 = vpop.f32.mrb[0].mxu0
  %v2236 = vadd.f32 %v680, %v2235
  %v2237 = vpop.f32.mrb[0].mxu0
  %v2238 = vadd.f32 %v684, %v2237
  %2239 = vmatprep.mubr.bf16.mxu0 %v838
  %2240 = vmatmul.mubr.bf16.gmra.mrb[0].mxu0 %v837
  %v2241 = vpop.f32.mrb[0].mxu0
  %v2242 = vadd.f32 %v680, %v2241
  %v2243 = vpop.f32.mrb[0].mxu0
  %v2244 = vadd.f32 %v684, %v2243
  %v2245 = vpop.f32.mrb[0].mxu0
  %v2246 = vadd.f32 %v680, %v2245
  %v2247 = vpop.f32.mrb[0].mxu0
  %v2248 = vadd.f32 %v684, %v2247
  %2249 = vdwg.mxu0
  %2250 = vmatprep.subr.bf16.mxu0 %v1358
  %2251 = vmatpush1.bf16.msra.mxu0 %v1357
  %2252 = vmatprep.subr.bf16.mxu0 %v1368
  %2253 = vmatpush1.bf16.msra.mxu0 %v1367
  %2254 = vmatprep.subr.bf16.mxu0 %v1378
  %2255 = vmatpush1.bf16.msra.mxu0 %v1377
  %2256 = vmatprep.subr.bf16.mxu0 %v1388
  %2257 = vmatpush1.bf16.msra.mxu0 %v1387
  %2258 = vmatprep.subr.bf16.mxu0 %v1398
  %2259 = vmatpush1.bf16.msra.mxu0 %v1397
  %2260 = vmatprep.subr.bf16.mxu0 %v1408
  %2261 = vmatpush1.bf16.msra.mxu0 %v1407
  %2262 = vmatprep.subr.bf16.mxu0 %v1418
  %2263 = vmatpush1.bf16.msra.mxu0 %v1417
  %2264 = vmatprep.subr.bf16.mxu0 %v1428
  %2265 = vmatpush1.bf16.msra.mxu0 %v1427
  %2266 = vmatprep.subr.bf16.mxu0 %v1438
  %2267 = vmatpush1.bf16.msra.mxu0 %v1437
  %2268 = vmatprep.subr.bf16.mxu0 %v1448
  %2269 = vmatpush1.bf16.msra.mxu0 %v1447
  %2270 = vmatprep.subr.bf16.mxu0 %v1458
  %2271 = vmatpush1.bf16.msra.mxu0 %v1457
  %2272 = vmatprep.subr.bf16.mxu0 %v1468
  %2273 = vmatpush1.bf16.msra.mxu0 %v1467
  %2274 = vmatprep.subr.bf16.mxu0 %v1478
  %2275 = vmatpush1.bf16.msra.mxu0 %v1477
  %2276 = vmatprep.subr.bf16.mxu0 %v1488
  %2277 = vmatpush1.bf16.msra.mxu0 %v1487
  %2278 = vmatprep.subr.bf16.mxu0 %v1498
  %2279 = vmatpush1.bf16.msra.mxu0 %v1497
  %2280 = vmatprep.subr.bf16.mxu0 %v1508
  %2281 = vmatpush1.bf16.msra.mxu0 %v1507
  %2282 = vmatprep.mubr.bf16.mxu0 %v808
  %2283 = vmatmul.mubr.bf16.gmra.mrb[0].mxu0 %v807
  %v2284 = vpop.f32.mrb[0].mxu0
  %v2285 = vadd.f32 %v688, %v2284
  %v2286 = vpop.f32.mrb[0].mxu0
  %v2287 = vadd.f32 %v692, %v2286
  %v2288 = vpop.f32.mrb[0].mxu0
  %v2289 = vadd.f32 %v688, %v2288
  %v2290 = vpop.f32.mrb[0].mxu0
  %v2291 = vadd.f32 %v692, %v2290
  %2292 = vmatprep.mubr.bf16.mxu0 %v810
  %2293 = vmatmul.mubr.bf16.gmra.mrb[0].mxu0 %v809
  %v2294 = vpop.f32.mrb[0].mxu0
  %v2295 = vadd.f32 %v688, %v2294
  %v2296 = vpop.f32.mrb[0].mxu0
  %v2297 = vadd.f32 %v692, %v2296
  %v2298 = vpop.f32.mrb[0].mxu0
  %v2299 = vadd.f32 %v688, %v2298
  %v2300 = vpop.f32.mrb[0].mxu0
  %v2301 = vadd.f32 %v692, %v2300
  %2302 = vmatprep.mubr.bf16.mxu0 %v812
  %2303 = vmatmul.mubr.bf16.gmra.mrb[0].mxu0 %v811
  %v2304 = vpop.f32.mrb[0].mxu0
  %v2305 = vadd.f32 %v688, %v2304
  %v2306 = vpop.f32.mrb[0].mxu0
  %v2307 = vadd.f32 %v692, %v2306
  %v2308 = vpop.f32.mrb[0].mxu0
  %v2309 = vadd.f32 %v688, %v2308
  %v2310 = vpop.f32.mrb[0].mxu0
  %v2311 = vadd.f32 %v692, %v2310
  %2312 = vmatprep.mubr.bf16.mxu0 %v814
  %2313 = vmatmul.mubr.bf16.gmra.mrb[0].mxu0 %v813
  %v2314 = vpop.f32.mrb[0].mxu0
  %v2315 = vadd.f32 %v688, %v2314
  %v2316 = vpop.f32.mrb[0].mxu0
  %v2317 = vadd.f32 %v692, %v2316
  %v2318 = vpop.f32.mrb[0].mxu0
  %v2319 = vadd.f32 %v688, %v2318
  %v2320 = vpop.f32.mrb[0].mxu0
  %v2321 = vadd.f32 %v692, %v2320
  %2322 = vmatprep.mubr.bf16.mxu0 %v816
  %2323 = vmatmul.mubr.bf16.gmra.mrb[0].mxu0 %v815
  %v2324 = vpop.f32.mrb[0].mxu0
  %v2325 = vadd.f32 %v688, %v2324
  %v2326 = vpop.f32.mrb[0].mxu0
  %v2327 = vadd.f32 %v692, %v2326
  %v2328 = vpop.f32.mrb[0].mxu0
  %v2329 = vadd.f32 %v688, %v2328
  %v2330 = vpop.f32.mrb[0].mxu0
  %v2331 = vadd.f32 %v692, %v2330
  %2332 = vmatprep.mubr.bf16.mxu0 %v818
  %2333 = vmatmul.mubr.bf16.gmra.mrb[0].mxu0 %v817
  %v2334 = vpop.f32.mrb[0].mxu0
  %v2335 = vadd.f32 %v688, %v2334
  %v2336 = vpop.f32.mrb[0].mxu0
  %v2337 = vadd.f32 %v692, %v2336
  %v2338 = vpop.f32.mrb[0].mxu0
  %v2339 = vadd.f32 %v688, %v2338
  %v2340 = vpop.f32.mrb[0].mxu0
  %v2341 = vadd.f32 %v692, %v2340
  %2342 = vmatprep.mubr.bf16.mxu0 %v820
  %2343 = vmatmul.mubr.bf16.gmra.mrb[0].mxu0 %v819
  %v2344 = vpop.f32.mrb[0].mxu0
  %v2345 = vadd.f32 %v688, %v2344
  %v2346 = vpop.f32.mrb[0].mxu0
  %v2347 = vadd.f32 %v692, %v2346
  %v2348 = vpop.f32.mrb[0].mxu0
  %v2349 = vadd.f32 %v688, %v2348
  %v2350 = vpop.f32.mrb[0].mxu0
  %v2351 = vadd.f32 %v692, %v2350
  %2352 = vmatprep.mubr.bf16.mxu0 %v822
  %2353 = vmatmul.mubr.bf16.gmra.mrb[0].mxu0 %v821
  %v2354 = vpop.f32.mrb[0].mxu0
  %v2355 = vadd.f32 %v688, %v2354
  %v2356 = vpop.f32.mrb[0].mxu0
  %v2357 = vadd.f32 %v692, %v2356
  %v2358 = vpop.f32.mrb[0].mxu0
  %v2359 = vadd.f32 %v688, %v2358
  %v2360 = vpop.f32.mrb[0].mxu0
  %v2361 = vadd.f32 %v692, %v2360
  %2362 = vmatprep.mubr.bf16.mxu0 %v824
  %2363 = vmatmul.mubr.bf16.gmra.mrb[0].mxu0 %v823
  %v2364 = vpop.f32.mrb[0].mxu0
  %v2365 = vadd.f32 %v688, %v2364
  %v2366 = vpop.f32.mrb[0].mxu0
  %v2367 = vadd.f32 %v692, %v2366
  %v2368 = vpop.f32.mrb[0].mxu0
  %v2369 = vadd.f32 %v688, %v2368
  %v2370 = vpop.f32.mrb[0].mxu0
  %v2371 = vadd.f32 %v692, %v2370
  %2372 = vmatprep.mubr.bf16.mxu0 %v826
  %2373 = vmatmul.mubr.bf16.gmra.mrb[0].mxu0 %v825
  %v2374 = vpop.f32.mrb[0].mxu0
  %v2375 = vadd.f32 %v688, %v2374
  %v2376 = vpop.f32.mrb[0].mxu0
  %v2377 = vadd.f32 %v692, %v2376
  %v2378 = vpop.f32.mrb[0].mxu0
  %v2379 = vadd.f32 %v688, %v2378
  %v2380 = vpop.f32.mrb[0].mxu0
  %v2381 = vadd.f32 %v692, %v2380
  %2382 = vmatprep.mubr.bf16.mxu0 %v828
  %2383 = vmatmul.mubr.bf16.gmra.mrb[0].mxu0 %v827
  %v2384 = vpop.f32.mrb[0].mxu0
  %v2385 = vadd.f32 %v688, %v2384
  %v2386 = vpop.f32.mrb[0].mxu0
  %v2387 = vadd.f32 %v692, %v2386
  %v2388 = vpop.f32.mrb[0].mxu0
  %v2389 = vadd.f32 %v688, %v2388
  %v2390 = vpop.f32.mrb[0].mxu0
  %v2391 = vadd.f32 %v692, %v2390
  %2392 = vmatprep.mubr.bf16.mxu0 %v830
  %2393 = vmatmul.mubr.bf16.gmra.mrb[0].mxu0 %v829
  %v2394 = vpop.f32.mrb[0].mxu0
  %v2395 = vadd.f32 %v688, %v2394
  %v2396 = vpop.f32.mrb[0].mxu0
  %v2397 = vadd.f32 %v692, %v2396
  %v2398 = vpop.f32.mrb[0].mxu0
  %v2399 = vadd.f32 %v688, %v2398
  %v2400 = vpop.f32.mrb[0].mxu0
  %v2401 = vadd.f32 %v692, %v2400
  %2402 = vmatprep.mubr.bf16.mxu0 %v832
  %2403 = vmatmul.mubr.bf16.gmra.mrb[0].mxu0 %v831
  %v2404 = vpop.f32.mrb[0].mxu0
  %v2405 = vadd.f32 %v688, %v2404
  %v2406 = vpop.f32.mrb[0].mxu0
  %v2407 = vadd.f32 %v692, %v2406
  %v2408 = vpop.f32.mrb[0].mxu0
  %v2409 = vadd.f32 %v688, %v2408
  %v2410 = vpop.f32.mrb[0].mxu0
  %v2411 = vadd.f32 %v692, %v2410
  %2412 = vmatprep.mubr.bf16.mxu0 %v834
  %2413 = vmatmul.mubr.bf16.gmra.mrb[0].mxu0 %v833
  %v2414 = vpop.f32.mrb[0].mxu0
  %v2415 = vadd.f32 %v688, %v2414
  %v2416 = vpop.f32.mrb[0].mxu0
  %v2417 = vadd.f32 %v692, %v2416
  %v2418 = vpop.f32.mrb[0].mxu0
  %v2419 = vadd.f32 %v688, %v2418
  %v2420 = vpop.f32.mrb[0].mxu0
  %v2421 = vadd.f32 %v692, %v2420
  %2422 = vmatprep.mubr.bf16.mxu0 %v836
  %2423 = vmatmul.mubr.bf16.gmra.mrb[0].mxu0 %v835
  %v2424 = vpop.f32.mrb[0].mxu0
  %v2425 = vadd.f32 %v688, %v2424
  %v2426 = vpop.f32.mrb[0].mxu0
  %v2427 = vadd.f32 %v692, %v2426
  %v2428 = vpop.f32.mrb[0].mxu0
  %v2429 = vadd.f32 %v688, %v2428
  %v2430 = vpop.f32.mrb[0].mxu0
  %v2431 = vadd.f32 %v692, %v2430
  %2432 = vmatprep.mubr.bf16.mxu0 %v838
  %2433 = vmatmul.mubr.bf16.gmra.mrb[0].mxu0 %v837
  %v2434 = vpop.f32.mrb[0].mxu0
  %v2435 = vadd.f32 %v688, %v2434
  %v2436 = vpop.f32.mrb[0].mxu0
  %v2437 = vadd.f32 %v692, %v2436
  %v2438 = vpop.f32.mrb[0].mxu0
  %v2439 = vadd.f32 %v688, %v2438
  %v2440 = vpop.f32.mrb[0].mxu0
  %v2441 = vadd.f32 %v692, %v2440
  %2442 = vdwg.mxu0
  %2443 = vmatprep.subr.bf16.mxu0 %v1360
  %2444 = vmatpush1.bf16.msra.mxu0 %v1359
  %2445 = vmatprep.subr.bf16.mxu0 %v1370
  %2446 = vmatpush1.bf16.msra.mxu0 %v1369
  %2447 = vmatprep.subr.bf16.mxu0 %v1380
  %2448 = vmatpush1.bf16.msra.mxu0 %v1379
  %2449 = vmatprep.subr.bf16.mxu0 %v1390
  %2450 = vmatpush1.bf16.msra.mxu0 %v1389
  %2451 = vmatprep.subr.bf16.mxu0 %v1400
  %2452 = vmatpush1.bf16.msra.mxu0 %v1399
  %2453 = vmatprep.subr.bf16.mxu0 %v1410
  %2454 = vmatpush1.bf16.msra.mxu0 %v1409
  %2455 = vmatprep.subr.bf16.mxu0 %v1420
  %2456 = vmatpush1.bf16.msra.mxu0 %v1419
  %2457 = vmatprep.subr.bf16.mxu0 %v1430
  %2458 = vmatpush1.bf16.msra.mxu0 %v1429
  %2459 = vmatprep.subr.bf16.mxu0 %v1440
  %2460 = vmatpush1.bf16.msra.mxu0 %v1439
  %2461 = vmatprep.subr.bf16.mxu0 %v1450
  %2462 = vmatpush1.bf16.msra.mxu0 %v1449
  %2463 = vmatprep.subr.bf16.mxu0 %v1460
  %2464 = vmatpush1.bf16.msra.mxu0 %v1459
  %2465 = vmatprep.subr.bf16.mxu0 %v1470
  %2466 = vmatpush1.bf16.msra.mxu0 %v1469
  %2467 = vmatprep.subr.bf16.mxu0 %v1480
  %2468 = vmatpush1.bf16.msra.mxu0 %v1479
  %2469 = vmatprep.subr.bf16.mxu0 %v1490
  %2470 = vmatpush1.bf16.msra.mxu0 %v1489
  %2471 = vmatprep.subr.bf16.mxu0 %v1500
  %2472 = vmatpush1.bf16.msra.mxu0 %v1499
  %2473 = vmatprep.subr.bf16.mxu0 %v1510
  %2474 = vmatpush1.bf16.msra.mxu0 %v1509
  %2475 = vmatprep.mubr.bf16.mxu0 %v808
  %2476 = vmatmul.mubr.bf16.gmra.mrb[0].mxu0 %v807
  %v2477 = vpop.f32.mrb[0].mxu0
  %v2478 = vadd.f32 %v696, %v2477
  %v2479 = vpop.f32.mrb[0].mxu0
  %v2480 = vadd.f32 %v700, %v2479
  %v2481 = vpop.f32.mrb[0].mxu0
  %v2482 = vadd.f32 %v696, %v2481
  %v2483 = vpop.f32.mrb[0].mxu0
  %v2484 = vadd.f32 %v700, %v2483
  %2485 = vmatprep.mubr.bf16.mxu0 %v810
  %2486 = vmatmul.mubr.bf16.gmra.mrb[0].mxu0 %v809
  %v2487 = vpop.f32.mrb[0].mxu0
  %v2488 = vadd.f32 %v696, %v2487
  %v2489 = vpop.f32.mrb[0].mxu0
  %v2490 = vadd.f32 %v700, %v2489
  %v2491 = vpop.f32.mrb[0].mxu0
  %v2492 = vadd.f32 %v696, %v2491
  %v2493 = vpop.f32.mrb[0].mxu0
  %v2494 = vadd.f32 %v700, %v2493
  %2495 = vmatprep.mubr.bf16.mxu0 %v812
  %2496 = vmatmul.mubr.bf16.gmra.mrb[0].mxu0 %v811
  %v2497 = vpop.f32.mrb[0].mxu0
  %v2498 = vadd.f32 %v696, %v2497
  %v2499 = vpop.f32.mrb[0].mxu0
  %v2500 = vadd.f32 %v700, %v2499
  %v2501 = vpop.f32.mrb[0].mxu0
  %v2502 = vadd.f32 %v696, %v2501
  %v2503 = vpop.f32.mrb[0].mxu0
  %v2504 = vadd.f32 %v700, %v2503
  %2505 = vmatprep.mubr.bf16.mxu0 %v814
  %2506 = vmatmul.mubr.bf16.gmra.mrb[0].mxu0 %v813
  %v2507 = vpop.f32.mrb[0].mxu0
  %v2508 = vadd.f32 %v696, %v2507
  %v2509 = vpop.f32.mrb[0].mxu0
  %v2510 = vadd.f32 %v700, %v2509
  %v2511 = vpop.f32.mrb[0].mxu0
  %v2512 = vadd.f32 %v696, %v2511
  %v2513 = vpop.f32.mrb[0].mxu0
  %v2514 = vadd.f32 %v700, %v2513
  %2515 = vmatprep.mubr.bf16.mxu0 %v816
  %2516 = vmatmul.mubr.bf16.gmra.mrb[0].mxu0 %v815
  %v2517 = vpop.f32.mrb[0].mxu0
  %v2518 = vadd.f32 %v696, %v2517
  %v2519 = vpop.f32.mrb[0].mxu0
  %v2520 = vadd.f32 %v700, %v2519
  %v2521 = vpop.f32.mrb[0].mxu0
  %v2522 = vadd.f32 %v696, %v2521
  %v2523 = vpop.f32.mrb[0].mxu0
  %v2524 = vadd.f32 %v700, %v2523
  %2525 = vmatprep.mubr.bf16.mxu0 %v818
  %2526 = vmatmul.mubr.bf16.gmra.mrb[0].mxu0 %v817
  %v2527 = vpop.f32.mrb[0].mxu0
  %v2528 = vadd.f32 %v696, %v2527
  %v2529 = vpop.f32.mrb[0].mxu0
  %v2530 = vadd.f32 %v700, %v2529
  %v2531 = vpop.f32.mrb[0].mxu0
  %v2532 = vadd.f32 %v696, %v2531
  %v2533 = vpop.f32.mrb[0].mxu0
  %v2534 = vadd.f32 %v700, %v2533
  %2535 = vmatprep.mubr.bf16.mxu0 %v820
  %2536 = vmatmul.mubr.bf16.gmra.mrb[0].mxu0 %v819
  %v2537 = vpop.f32.mrb[0].mxu0
  %v2538 = vadd.f32 %v696, %v2537
  %v2539 = vpop.f32.mrb[0].mxu0
  %v2540 = vadd.f32 %v700, %v2539
  %v2541 = vpop.f32.mrb[0].mxu0
  %v2542 = vadd.f32 %v696, %v2541
  %v2543 = vpop.f32.mrb[0].mxu0
  %v2544 = vadd.f32 %v700, %v2543
  %2545 = vmatprep.mubr.bf16.mxu0 %v822
  %2546 = vmatmul.mubr.bf16.gmra.mrb[0].mxu0 %v821
  %v2547 = vpop.f32.mrb[0].mxu0
  %v2548 = vadd.f32 %v696, %v2547
  %v2549 = vpop.f32.mrb[0].mxu0
  %v2550 = vadd.f32 %v700, %v2549
  %v2551 = vpop.f32.mrb[0].mxu0
  %v2552 = vadd.f32 %v696, %v2551
  %v2553 = vpop.f32.mrb[0].mxu0
  %v2554 = vadd.f32 %v700, %v2553
  %2555 = vmatprep.mubr.bf16.mxu0 %v824
  %2556 = vmatmul.mubr.bf16.gmra.mrb[0].mxu0 %v823
  %v2557 = vpop.f32.mrb[0].mxu0
  %v2558 = vadd.f32 %v696, %v2557
  %v2559 = vpop.f32.mrb[0].mxu0
  %v2560 = vadd.f32 %v700, %v2559
  %v2561 = vpop.f32.mrb[0].mxu0
  %v2562 = vadd.f32 %v696, %v2561
  %v2563 = vpop.f32.mrb[0].mxu0
  %v2564 = vadd.f32 %v700, %v2563
  %2565 = vmatprep.mubr.bf16.mxu0 %v826
  %2566 = vmatmul.mubr.bf16.gmra.mrb[0].mxu0 %v825
  %v2567 = vpop.f32.mrb[0].mxu0
  %v2568 = vadd.f32 %v696, %v2567
  %v2569 = vpop.f32.mrb[0].mxu0
  %v2570 = vadd.f32 %v700, %v2569
  %v2571 = vpop.f32.mrb[0].mxu0
  %v2572 = vadd.f32 %v696, %v2571
  %v2573 = vpop.f32.mrb[0].mxu0
  %v2574 = vadd.f32 %v700, %v2573
  %2575 = vmatprep.mubr.bf16.mxu0 %v828
  %2576 = vmatmul.mubr.bf16.gmra.mrb[0].mxu0 %v827
  %v2577 = vpop.f32.mrb[0].mxu0
  %v2578 = vadd.f32 %v696, %v2577
  %v2579 = vpop.f32.mrb[0].mxu0
  %v2580 = vadd.f32 %v700, %v2579
  %v2581 = vpop.f32.mrb[0].mxu0
  %v2582 = vadd.f32 %v696, %v2581
  %v2583 = vpop.f32.mrb[0].mxu0
  %v2584 = vadd.f32 %v700, %v2583
  %2585 = vmatprep.mubr.bf16.mxu0 %v830
  %2586 = vmatmul.mubr.bf16.gmra.mrb[0].mxu0 %v829
  %v2587 = vpop.f32.mrb[0].mxu0
  %v2588 = vadd.f32 %v696, %v2587
  %v2589 = vpop.f32.mrb[0].mxu0
  %v2590 = vadd.f32 %v700, %v2589
  %v2591 = vpop.f32.mrb[0].mxu0
  %v2592 = vadd.f32 %v696, %v2591
  %v2593 = vpop.f32.mrb[0].mxu0
  %v2594 = vadd.f32 %v700, %v2593
  %2595 = vmatprep.mubr.bf16.mxu0 %v832
  %2596 = vmatmul.mubr.bf16.gmra.mrb[0].mxu0 %v831
  %v2597 = vpop.f32.mrb[0].mxu0
  %v2598 = vadd.f32 %v696, %v2597
  %v2599 = vpop.f32.mrb[0].mxu0
  %v2600 = vadd.f32 %v700, %v2599
  %v2601 = vpop.f32.mrb[0].mxu0
  %v2602 = vadd.f32 %v696, %v2601
  %v2603 = vpop.f32.mrb[0].mxu0
  %v2604 = vadd.f32 %v700, %v2603
  %2605 = vmatprep.mubr.bf16.mxu0 %v834
  %2606 = vmatmul.mubr.bf16.gmra.mrb[0].mxu0 %v833
  %v2607 = vpop.f32.mrb[0].mxu0
  %v2608 = vadd.f32 %v696, %v2607
  %v2609 = vpop.f32.mrb[0].mxu0
  %v2610 = vadd.f32 %v700, %v2609
  %v2611 = vpop.f32.mrb[0].mxu0
  %v2612 = vadd.f32 %v696, %v2611
  %v2613 = vpop.f32.mrb[0].mxu0
  %v2614 = vadd.f32 %v700, %v2613
  %2615 = vmatprep.mubr.bf16.mxu0 %v836
  %2616 = vmatmul.mubr.bf16.gmra.mrb[0].mxu0 %v835
  %v2617 = vpop.f32.mrb[0].mxu0
  %v2618 = vadd.f32 %v696, %v2617
  %v2619 = vpop.f32.mrb[0].mxu0
  %v2620 = vadd.f32 %v700, %v2619
  %v2621 = vpop.f32.mrb[0].mxu0
  %v2622 = vadd.f32 %v696, %v2621
  %v2623 = vpop.f32.mrb[0].mxu0
  %v2624 = vadd.f32 %v700, %v2623
  %2625 = vmatprep.mubr.bf16.mxu0 %v838
  %2626 = vmatmul.mubr.bf16.gmra.mrb[0].mxu0 %v837
  %v2627 = vpop.f32.mrb[0].mxu0
  %v2628 = vadd.f32 %v696, %v2627
  %v2629 = vpop.f32.mrb[0].mxu0
  %v2630 = vadd.f32 %v700, %v2629
  %v2631 = vpop.f32.mrb[0].mxu0
  %v2632 = vadd.f32 %v696, %v2631
  %v2633 = vpop.f32.mrb[0].mxu0
  %v2634 = vadd.f32 %v700, %v2633
  %2635 = vdwg.mxu0
  %v2636 = vmax.f32 %v1706, 0.0
  %v2637 = vmax.f32 %v1708, 0.0
  %v2638 = vmax.f32 %v1899, 0.0
  %v2639 = vmax.f32 %v1901, 0.0
  %v2640 = vmax.f32 %v2092, 0.0
  %v2641 = vmax.f32 %v2094, 0.0
  %v2642 = vmax.f32 %v2285, 0.0
  %v2643 = vmax.f32 %v2287, 0.0
  %v2644 = vmax.f32 %v2478, 0.0
  %v2645 = vmax.f32 %v2480, 0.0
  %v2646 = vmax.f32 %v1710, 0.0
  %v2647 = vmax.f32 %v1712, 0.0
  %v2648 = vmax.f32 %v1903, 0.0
  %v2649 = vmax.f32 %v1905, 0.0
  %v2650 = vmax.f32 %v2096, 0.0
  %v2651 = vmax.f32 %v2098, 0.0
  %v2652 = vmax.f32 %v2289, 0.0
  %v2653 = vmax.f32 %v2291, 0.0
  %v2654 = vmax.f32 %v2482, 0.0
  %v2655 = vmax.f32 %v2484, 0.0
  %v2656 = vmax.f32 %v1716, 0.0
  %v2657 = vmax.f32 %v1718, 0.0
  %v2658 = vmax.f32 %v1909, 0.0
  %v2659 = vmax.f32 %v1911, 0.0
  %v2660 = vmax.f32 %v2102, 0.0
  %v2661 = vmax.f32 %v2104, 0.0
  %v2662 = vmax.f32 %v2295, 0.0
  %v2663 = vmax.f32 %v2297, 0.0
  %v2664 = vmax.f32 %v2488, 0.0
  %v2665 = vmax.f32 %v2490, 0.0
  %v2666 = vmax.f32 %v1720, 0.0
  %v2667 = vmax.f32 %v1722, 0.0
  %v2668 = vmax.f32 %v1913, 0.0
  %v2669 = vmax.f32 %v1915, 0.0
  %v2670 = vmax.f32 %v2106, 0.0
  %v2671 = vmax.f32 %v2108, 0.0
  %v2672 = vmax.f32 %v2299, 0.0
  %v2673 = vmax.f32 %v2301, 0.0
  %v2674 = vmax.f32 %v2492, 0.0
  %v2675 = vmax.f32 %v2494, 0.0
  %v2676 = vmax.f32 %v1726, 0.0
  %v2677 = vmax.f32 %v1728, 0.0
  %v2678 = vmax.f32 %v1919, 0.0
  %v2679 = vmax.f32 %v1921, 0.0
  %v2680 = vmax.f32 %v2112, 0.0
  %v2681 = vmax.f32 %v2114, 0.0
  %v2682 = vmax.f32 %v2305, 0.0
  %v2683 = vmax.f32 %v2307, 0.0
  %v2684 = vmax.f32 %v2498, 0.0
  %v2685 = vmax.f32 %v2500, 0.0
  %v2686 = vmax.f32 %v1730, 0.0
  %v2687 = vmax.f32 %v1732, 0.0
  %v2688 = vmax.f32 %v1923, 0.0
  %v2689 = vmax.f32 %v1925, 0.0
  %v2690 = vmax.f32 %v2116, 0.0
  %v2691 = vmax.f32 %v2118, 0.0
  %v2692 = vmax.f32 %v2309, 0.0
  %v2693 = vmax.f32 %v2311, 0.0
  %v2694 = vmax.f32 %v2502, 0.0
  %v2695 = vmax.f32 %v2504, 0.0
  %v2696 = vmax.f32 %v1736, 0.0
  %v2697 = vmax.f32 %v1738, 0.0
  %v2698 = vmax.f32 %v1929, 0.0
  %v2699 = vmax.f32 %v1931, 0.0
  %v2700 = vmax.f32 %v2122, 0.0
  %v2701 = vmax.f32 %v2124, 0.0
  %v2702 = vmax.f32 %v2315, 0.0
  %v2703 = vmax.f32 %v2317, 0.0
  %v2704 = vmax.f32 %v2508, 0.0
  %v2705 = vmax.f32 %v2510, 0.0
  %v2706 = vmax.f32 %v1740, 0.0
  %v2707 = vmax.f32 %v1742, 0.0
  %v2708 = vmax.f32 %v1933, 0.0
  %v2709 = vmax.f32 %v1935, 0.0
  %v2710 = vmax.f32 %v2126, 0.0
  %v2711 = vmax.f32 %v2128, 0.0
  %v2712 = vmax.f32 %v2319, 0.0
  %v2713 = vmax.f32 %v2321, 0.0
  %v2714 = vmax.f32 %v2512, 0.0
  %v2715 = vmax.f32 %v2514, 0.0
  %v2716 = vmax.f32 %v1746, 0.0
  %v2717 = vmax.f32 %v1748, 0.0
  %v2718 = vmax.f32 %v1939, 0.0
  %v2719 = vmax.f32 %v1941, 0.0
  %v2720 = vmax.f32 %v2132, 0.0
  %v2721 = vmax.f32 %v2134, 0.0
  %v2722 = vmax.f32 %v2325, 0.0
  %v2723 = vmax.f32 %v2327, 0.0
  %v2724 = vmax.f32 %v2518, 0.0
  %v2725 = vmax.f32 %v2520, 0.0
  %v2726 = vmax.f32 %v1750, 0.0
  %v2727 = vmax.f32 %v1752, 0.0
  %v2728 = vmax.f32 %v1943, 0.0
  %v2729 = vmax.f32 %v1945, 0.0
  %v2730 = vmax.f32 %v2136, 0.0
  %v2731 = vmax.f32 %v2138, 0.0
  %v2732 = vmax.f32 %v2329, 0.0
  %v2733 = vmax.f32 %v2331, 0.0
  %v2734 = vmax.f32 %v2522, 0.0
  %v2735 = vmax.f32 %v2524, 0.0
  %v2736 = vmax.f32 %v1756, 0.0
  %v2737 = vmax.f32 %v1758, 0.0
  %v2738 = vmax.f32 %v1949, 0.0
  %v2739 = vmax.f32 %v1951, 0.0
  %v2740 = vmax.f32 %v2142, 0.0
  %v2741 = vmax.f32 %v2144, 0.0
  %v2742 = vmax.f32 %v2335, 0.0
  %v2743 = vmax.f32 %v2337, 0.0
  %v2744 = vmax.f32 %v2528, 0.0
  %v2745 = vmax.f32 %v2530, 0.0
  %v2746 = vmax.f32 %v1760, 0.0
  %v2747 = vmax.f32 %v1762, 0.0
  %v2748 = vmax.f32 %v1953, 0.0
  %v2749 = vmax.f32 %v1955, 0.0
  %v2750 = vmax.f32 %v2146, 0.0
  %v2751 = vmax.f32 %v2148, 0.0
  %v2752 = vmax.f32 %v2339, 0.0
  %v2753 = vmax.f32 %v2341, 0.0
  %v2754 = vmax.f32 %v2532, 0.0
  %v2755 = vmax.f32 %v2534, 0.0
  %v2756 = vmax.f32 %v1766, 0.0
  %v2757 = vmax.f32 %v1768, 0.0
  %v2758 = vmax.f32 %v1959, 0.0
  %v2759 = vmax.f32 %v1961, 0.0
  %v2760 = vmax.f32 %v2152, 0.0
  %v2761 = vmax.f32 %v2154, 0.0
  %v2762 = vmax.f32 %v2345, 0.0
  %v2763 = vmax.f32 %v2347, 0.0
  %v2764 = vmax.f32 %v2538, 0.0
  %v2765 = vmax.f32 %v2540, 0.0
  %v2766 = vmax.f32 %v1770, 0.0
  %v2767 = vmax.f32 %v1772, 0.0
  %v2768 = vmax.f32 %v1963, 0.0
  %v2769 = vmax.f32 %v1965, 0.0
  %v2770 = vmax.f32 %v2156, 0.0
  %v2771 = vmax.f32 %v2158, 0.0
  %v2772 = vmax.f32 %v2349, 0.0
  %v2773 = vmax.f32 %v2351, 0.0
  %v2774 = vmax.f32 %v2542, 0.0
  %v2775 = vmax.f32 %v2544, 0.0
  %v2776 = vmax.f32 %v1776, 0.0
  %v2777 = vmax.f32 %v1778, 0.0
  %v2778 = vmax.f32 %v1969, 0.0
  %v2779 = vmax.f32 %v1971, 0.0
  %v2780 = vmax.f32 %v2162, 0.0
  %v2781 = vmax.f32 %v2164, 0.0
  %v2782 = vmax.f32 %v2355, 0.0
  %v2783 = vmax.f32 %v2357, 0.0
  %v2784 = vmax.f32 %v2548, 0.0
  %v2785 = vmax.f32 %v2550, 0.0
  %v2786 = vmax.f32 %v1780, 0.0
  %v2787 = vmax.f32 %v1782, 0.0
  %v2788 = vmax.f32 %v1973, 0.0
  %v2789 = vmax.f32 %v1975, 0.0
  %v2790 = vmax.f32 %v2166, 0.0
  %v2791 = vmax.f32 %v2168, 0.0
  %v2792 = vmax.f32 %v2359, 0.0
  %v2793 = vmax.f32 %v2361, 0.0
  %v2794 = vmax.f32 %v2552, 0.0
  %v2795 = vmax.f32 %v2554, 0.0
  %v2796 = vmax.f32 %v1786, 0.0
  %v2797 = vmax.f32 %v1788, 0.0
  %v2798 = vmax.f32 %v1979, 0.0
  %v2799 = vmax.f32 %v1981, 0.0
  %v2800 = vmax.f32 %v2172, 0.0
  %v2801 = vmax.f32 %v2174, 0.0
  %v2802 = vmax.f32 %v2365, 0.0
  %v2803 = vmax.f32 %v2367, 0.0
  %v2804 = vmax.f32 %v2558, 0.0
  %v2805 = vmax.f32 %v2560, 0.0
  %v2806 = vmax.f32 %v1790, 0.0
  %v2807 = vmax.f32 %v1792, 0.0
  %v2808 = vmax.f32 %v1983, 0.0
  %v2809 = vmax.f32 %v1985, 0.0
  %v2810 = vmax.f32 %v2176, 0.0
  %v2811 = vmax.f32 %v2178, 0.0
  %v2812 = vmax.f32 %v2369, 0.0
  %v2813 = vmax.f32 %v2371, 0.0
  %v2814 = vmax.f32 %v2562, 0.0
  %v2815 = vmax.f32 %v2564, 0.0
  %v2816 = vmax.f32 %v1796, 0.0
  %v2817 = vmax.f32 %v1798, 0.0
  %v2818 = vmax.f32 %v1989, 0.0
  %v2819 = vmax.f32 %v1991, 0.0
  %v2820 = vmax.f32 %v2182, 0.0
  %v2821 = vmax.f32 %v2184, 0.0
  %v2822 = vmax.f32 %v2375, 0.0
  %v2823 = vmax.f32 %v2377, 0.0
  %v2824 = vmax.f32 %v2568, 0.0
  %v2825 = vmax.f32 %v2570, 0.0
  %v2826 = vmax.f32 %v1800, 0.0
  %v2827 = vmax.f32 %v1802, 0.0
  %v2828 = vmax.f32 %v1993, 0.0
  %v2829 = vmax.f32 %v1995, 0.0
  %v2830 = vmax.f32 %v2186, 0.0
  %v2831 = vmax.f32 %v2188, 0.0
  %v2832 = vmax.f32 %v2379, 0.0
  %v2833 = vmax.f32 %v2381, 0.0
  %v2834 = vmax.f32 %v2572, 0.0
  %v2835 = vmax.f32 %v2574, 0.0
  %v2836 = vmax.f32 %v1806, 0.0
  %v2837 = vmax.f32 %v1808, 0.0
  %v2838 = vmax.f32 %v1999, 0.0
  %v2839 = vmax.f32 %v2001, 0.0
  %v2840 = vmax.f32 %v2192, 0.0
  %v2841 = vmax.f32 %v2194, 0.0
  %v2842 = vmax.f32 %v2385, 0.0
  %v2843 = vmax.f32 %v2387, 0.0
  %v2844 = vmax.f32 %v2578, 0.0
  %v2845 = vmax.f32 %v2580, 0.0
  %v2846 = vmax.f32 %v1810, 0.0
  %v2847 = vmax.f32 %v1812, 0.0
  %v2848 = vmax.f32 %v2003, 0.0
  %v2849 = vmax.f32 %v2005, 0.0
  %v2850 = vmax.f32 %v2196, 0.0
  %v2851 = vmax.f32 %v2198, 0.0
  %v2852 = vmax.f32 %v2389, 0.0
  %v2853 = vmax.f32 %v2391, 0.0
  %v2854 = vmax.f32 %v2582, 0.0
  %v2855 = vmax.f32 %v2584, 0.0
  %v2856 = vmax.f32 %v1816, 0.0
  %v2857 = vmax.f32 %v1818, 0.0
  %v2858 = vmax.f32 %v2009, 0.0
  %v2859 = vmax.f32 %v2011, 0.0
  %v2860 = vmax.f32 %v2202, 0.0
  %v2861 = vmax.f32 %v2204, 0.0
  %v2862 = vmax.f32 %v2395, 0.0
  %v2863 = vmax.f32 %v2397, 0.0
  %v2864 = vmax.f32 %v2588, 0.0
  %v2865 = vmax.f32 %v2590, 0.0
  %v2866 = vmax.f32 %v1820, 0.0
  %v2867 = vmax.f32 %v1822, 0.0
  %v2868 = vmax.f32 %v2013, 0.0
  %v2869 = vmax.f32 %v2015, 0.0
  %v2870 = vmax.f32 %v2206, 0.0
  %v2871 = vmax.f32 %v2208, 0.0
  %v2872 = vmax.f32 %v2399, 0.0
  %v2873 = vmax.f32 %v2401, 0.0
  %v2874 = vmax.f32 %v2592, 0.0
  %v2875 = vmax.f32 %v2594, 0.0
  %v2876 = vmax.f32 %v1826, 0.0
  %v2877 = vmax.f32 %v1828, 0.0
  %v2878 = vmax.f32 %v2019, 0.0
  %v2879 = vmax.f32 %v2021, 0.0
  %v2880 = vmax.f32 %v2212, 0.0
  %v2881 = vmax.f32 %v2214, 0.0
  %v2882 = vmax.f32 %v2405, 0.0
  %v2883 = vmax.f32 %v2407, 0.0
  %v2884 = vmax.f32 %v2598, 0.0
  %v2885 = vmax.f32 %v2600, 0.0
  %v2886 = vmax.f32 %v1830, 0.0
  %v2887 = vmax.f32 %v1832, 0.0
  %v2888 = vmax.f32 %v2023, 0.0
  %v2889 = vmax.f32 %v2025, 0.0
  %v2890 = vmax.f32 %v2216, 0.0
  %v2891 = vmax.f32 %v2218, 0.0
  %v2892 = vmax.f32 %v2409, 0.0
  %v2893 = vmax.f32 %v2411, 0.0
  %v2894 = vmax.f32 %v2602, 0.0
  %v2895 = vmax.f32 %v2604, 0.0
  %v2896 = vmax.f32 %v1836, 0.0
  %v2897 = vmax.f32 %v1838, 0.0
  %v2898 = vmax.f32 %v2029, 0.0
  %v2899 = vmax.f32 %v2031, 0.0
  %v2900 = vmax.f32 %v2222, 0.0
  %v2901 = vmax.f32 %v2224, 0.0
  %v2902 = vmax.f32 %v2415, 0.0
  %v2903 = vmax.f32 %v2417, 0.0
  %v2904 = vmax.f32 %v2608, 0.0
  %v2905 = vmax.f32 %v2610, 0.0
  %v2906 = vmax.f32 %v1840, 0.0
  %v2907 = vmax.f32 %v1842, 0.0
  %v2908 = vmax.f32 %v2033, 0.0
  %v2909 = vmax.f32 %v2035, 0.0
  %v2910 = vmax.f32 %v2226, 0.0
  %v2911 = vmax.f32 %v2228, 0.0
  %v2912 = vmax.f32 %v2419, 0.0
  %v2913 = vmax.f32 %v2421, 0.0
  %v2914 = vmax.f32 %v2612, 0.0
  %v2915 = vmax.f32 %v2614, 0.0
  %v2916 = vmax.f32 %v1846, 0.0
  %v2917 = vmax.f32 %v1848, 0.0
  %v2918 = vmax.f32 %v2039, 0.0
  %v2919 = vmax.f32 %v2041, 0.0
  %v2920 = vmax.f32 %v2232, 0.0
  %v2921 = vmax.f32 %v2234, 0.0
  %v2922 = vmax.f32 %v2425, 0.0
  %v2923 = vmax.f32 %v2427, 0.0
  %v2924 = vmax.f32 %v2618, 0.0
  %v2925 = vmax.f32 %v2620, 0.0
  %v2926 = vmax.f32 %v1850, 0.0
  %v2927 = vmax.f32 %v1852, 0.0
  %v2928 = vmax.f32 %v2043, 0.0
  %v2929 = vmax.f32 %v2045, 0.0
  %v2930 = vmax.f32 %v2236, 0.0
  %v2931 = vmax.f32 %v2238, 0.0
  %v2932 = vmax.f32 %v2429, 0.0
  %v2933 = vmax.f32 %v2431, 0.0
  %v2934 = vmax.f32 %v2622, 0.0
  %v2935 = vmax.f32 %v2624, 0.0
  %v2936 = vmax.f32 %v1856, 0.0
  %v2937 = vmax.f32 %v1858, 0.0
  %v2938 = vmax.f32 %v2049, 0.0
  %v2939 = vmax.f32 %v2051, 0.0
  %v2940 = vmax.f32 %v2242, 0.0
  %v2941 = vmax.f32 %v2244, 0.0
  %v2942 = vmax.f32 %v2435, 0.0
  %v2943 = vmax.f32 %v2437, 0.0
  %v2944 = vmax.f32 %v2628, 0.0
  %v2945 = vmax.f32 %v2630, 0.0
  %v2946 = vmax.f32 %v1860, 0.0
  %v2947 = vmax.f32 %v1862, 0.0
  %v2948 = vmax.f32 %v2053, 0.0
  %v2949 = vmax.f32 %v2055, 0.0
  %v2950 = vmax.f32 %v2246, 0.0
  %v2951 = vmax.f32 %v2248, 0.0
  %v2952 = vmax.f32 %v2439, 0.0
  %v2953 = vmax.f32 %v2441, 0.0
  %v2954 = vmax.f32 %v2632, 0.0
  %v2955 = vmax.f32 %v2634, 0.0
  %v2956 = vpack.c.bf16 %v2646, %v2636
  %v2957 = vpack.c.bf16 %v2647, %v2637
  %v2958 = vpack.c.bf16 %v2648, %v2638
  %v2959 = vpack.c.bf16 %v2649, %v2639
  %v2960 = vpack.c.bf16 %v2650, %v2640
  %v2961 = vpack.c.bf16 %v2651, %v2641
  %v2962 = vpack.c.bf16 %v2652, %v2642
  %v2963 = vpack.c.bf16 %v2653, %v2643
  %v2964 = vpack.c.bf16 %v2654, %v2644
  %v2965 = vpack.c.bf16 %v2655, %v2645
  %v2966 = vpack.c.bf16 %v2666, %v2656
  %v2967 = vpack.c.bf16 %v2667, %v2657
  %v2968 = vpack.c.bf16 %v2668, %v2658
  %v2969 = vpack.c.bf16 %v2669, %v2659
  %v2970 = vpack.c.bf16 %v2670, %v2660
  %v2971 = vpack.c.bf16 %v2671, %v2661
  %v2972 = vpack.c.bf16 %v2672, %v2662
  %v2973 = vpack.c.bf16 %v2673, %v2663
  %v2974 = vpack.c.bf16 %v2674, %v2664
  %v2975 = vpack.c.bf16 %v2675, %v2665
  %v2976 = vpack.c.bf16 %v2686, %v2676
  %v2977 = vpack.c.bf16 %v2687, %v2677
  %v2978 = vpack.c.bf16 %v2688, %v2678
  %v2979 = vpack.c.bf16 %v2689, %v2679
  %v2980 = vpack.c.bf16 %v2690, %v2680
  %v2981 = vpack.c.bf16 %v2691, %v2681
  %v2982 = vpack.c.bf16 %v2692, %v2682
  %v2983 = vpack.c.bf16 %v2693, %v2683
  %v2984 = vpack.c.bf16 %v2694, %v2684
  %v2985 = vpack.c.bf16 %v2695, %v2685
  %v2986 = vpack.c.bf16 %v2706, %v2696
  %v2987 = vpack.c.bf16 %v2707, %v2697
  %v2988 = vpack.c.bf16 %v2708, %v2698
  %v2989 = vpack.c.bf16 %v2709, %v2699
  %v2990 = vpack.c.bf16 %v2710, %v2700
  %v2991 = vpack.c.bf16 %v2711, %v2701
  %v2992 = vpack.c.bf16 %v2712, %v2702
  %v2993 = vpack.c.bf16 %v2713, %v2703
  %v2994 = vpack.c.bf16 %v2714, %v2704
  %v2995 = vpack.c.bf16 %v2715, %v2705
  %v2996 = vpack.c.bf16 %v2726, %v2716
  %v2997 = vpack.c.bf16 %v2727, %v2717
  %v2998 = vpack.c.bf16 %v2728, %v2718
  %v2999 = vpack.c.bf16 %v2729, %v2719
  %v3000 = vpack.c.bf16 %v2730, %v2720
  %v3001 = vpack.c.bf16 %v2731, %v2721
  %v3002 = vpack.c.bf16 %v2732, %v2722
  %v3003 = vpack.c.bf16 %v2733, %v2723
  %v3004 = vpack.c.bf16 %v2734, %v2724
  %v3005 = vpack.c.bf16 %v2735, %v2725
  %v3006 = vpack.c.bf16 %v2746, %v2736
  %v3007 = vpack.c.bf16 %v2747, %v2737
  %v3008 = vpack.c.bf16 %v2748, %v2738
  %v3009 = vpack.c.bf16 %v2749, %v2739
  %v3010 = vpack.c.bf16 %v2750, %v2740
  %v3011 = vpack.c.bf16 %v2751, %v2741
  %v3012 = vpack.c.bf16 %v2752, %v2742
  %v3013 = vpack.c.bf16 %v2753, %v2743
  %v3014 = vpack.c.bf16 %v2754, %v2744
  %v3015 = vpack.c.bf16 %v2755, %v2745
  %v3016 = vpack.c.bf16 %v2766, %v2756
  %v3017 = vpack.c.bf16 %v2767, %v2757
  %v3018 = vpack.c.bf16 %v2768, %v2758
  %v3019 = vpack.c.bf16 %v2769, %v2759
  %v3020 = vpack.c.bf16 %v2770, %v2760
  %v3021 = vpack.c.bf16 %v2771, %v2761
  %v3022 = vpack.c.bf16 %v2772, %v2762
  %v3023 = vpack.c.bf16 %v2773, %v2763
  %v3024 = vpack.c.bf16 %v2774, %v2764
  %v3025 = vpack.c.bf16 %v2775, %v2765
  %v3026 = vpack.c.bf16 %v2786, %v2776
  %v3027 = vpack.c.bf16 %v2787, %v2777
  %v3028 = vpack.c.bf16 %v2788, %v2778
  %v3029 = vpack.c.bf16 %v2789, %v2779
  %v3030 = vpack.c.bf16 %v2790, %v2780
  %v3031 = vpack.c.bf16 %v2791, %v2781
  %v3032 = vpack.c.bf16 %v2792, %v2782
  %v3033 = vpack.c.bf16 %v2793, %v2783
  %v3034 = vpack.c.bf16 %v2794, %v2784
  %v3035 = vpack.c.bf16 %v2795, %v2785
  %v3036 = vpack.c.bf16 %v2806, %v2796
  %v3037 = vpack.c.bf16 %v2807, %v2797
  %v3038 = vpack.c.bf16 %v2808, %v2798
  %v3039 = vpack.c.bf16 %v2809, %v2799
  %v3040 = vpack.c.bf16 %v2810, %v2800
  %v3041 = vpack.c.bf16 %v2811, %v2801
  %v3042 = vpack.c.bf16 %v2812, %v2802
  %v3043 = vpack.c.bf16 %v2813, %v2803
  %v3044 = vpack.c.bf16 %v2814, %v2804
  %v3045 = vpack.c.bf16 %v2815, %v2805
  %v3046 = vpack.c.bf16 %v2826, %v2816
  %v3047 = vpack.c.bf16 %v2827, %v2817
  %v3048 = vpack.c.bf16 %v2828, %v2818
  %v3049 = vpack.c.bf16 %v2829, %v2819
  %v3050 = vpack.c.bf16 %v2830, %v2820
  %v3051 = vpack.c.bf16 %v2831, %v2821
  %v3052 = vpack.c.bf16 %v2832, %v2822
  %v3053 = vpack.c.bf16 %v2833, %v2823
  %v3054 = vpack.c.bf16 %v2834, %v2824
  %v3055 = vpack.c.bf16 %v2835, %v2825
  %v3056 = vpack.c.bf16 %v2846, %v2836
  %v3057 = vpack.c.bf16 %v2847, %v2837
  %v3058 = vpack.c.bf16 %v2848, %v2838
  %v3059 = vpack.c.bf16 %v2849, %v2839
  %v3060 = vpack.c.bf16 %v2850, %v2840
  %v3061 = vpack.c.bf16 %v2851, %v2841
  %v3062 = vpack.c.bf16 %v2852, %v2842
  %v3063 = vpack.c.bf16 %v2853, %v2843
  %v3064 = vpack.c.bf16 %v2854, %v2844
  %v3065 = vpack.c.bf16 %v2855, %v2845
  %v3066 = vpack.c.bf16 %v2866, %v2856
  %v3067 = vpack.c.bf16 %v2867, %v2857
  %v3068 = vpack.c.bf16 %v2868, %v2858
  %v3069 = vpack.c.bf16 %v2869, %v2859
  %v3070 = vpack.c.bf16 %v2870, %v2860
  %v3071 = vpack.c.bf16 %v2871, %v2861
  %v3072 = vpack.c.bf16 %v2872, %v2862
  %v3073 = vpack.c.bf16 %v2873, %v2863
  %v3074 = vpack.c.bf16 %v2874, %v2864
  %v3075 = vpack.c.bf16 %v2875, %v2865
  %v3076 = vpack.c.bf16 %v2886, %v2876
  %v3077 = vpack.c.bf16 %v2887, %v2877
  %v3078 = vpack.c.bf16 %v2888, %v2878
  %v3079 = vpack.c.bf16 %v2889, %v2879
  %v3080 = vpack.c.bf16 %v2890, %v2880
  %v3081 = vpack.c.bf16 %v2891, %v2881
  %v3082 = vpack.c.bf16 %v2892, %v2882
  %v3083 = vpack.c.bf16 %v2893, %v2883
  %v3084 = vpack.c.bf16 %v2894, %v2884
  %v3085 = vpack.c.bf16 %v2895, %v2885
  %v3086 = vpack.c.bf16 %v2906, %v2896
  %v3087 = vpack.c.bf16 %v2907, %v2897
  %v3088 = vpack.c.bf16 %v2908, %v2898
  %v3089 = vpack.c.bf16 %v2909, %v2899
  %v3090 = vpack.c.bf16 %v2910, %v2900
  %v3091 = vpack.c.bf16 %v2911, %v2901
  %v3092 = vpack.c.bf16 %v2912, %v2902
  %v3093 = vpack.c.bf16 %v2913, %v2903
  %v3094 = vpack.c.bf16 %v2914, %v2904
  %v3095 = vpack.c.bf16 %v2915, %v2905
  %v3096 = vpack.c.bf16 %v2926, %v2916
  %v3097 = vpack.c.bf16 %v2927, %v2917
  %v3098 = vpack.c.bf16 %v2928, %v2918
  %v3099 = vpack.c.bf16 %v2929, %v2919
  %v3100 = vpack.c.bf16 %v2930, %v2920
  %v3101 = vpack.c.bf16 %v2931, %v2921
  %v3102 = vpack.c.bf16 %v2932, %v2922
  %v3103 = vpack.c.bf16 %v2933, %v2923
  %v3104 = vpack.c.bf16 %v2934, %v2924
  %v3105 = vpack.c.bf16 %v2935, %v2925
  %v3106 = vpack.c.bf16 %v2946, %v2936
  %v3107 = vpack.c.bf16 %v2947, %v2937
  %v3108 = vpack.c.bf16 %v2948, %v2938
  %v3109 = vpack.c.bf16 %v2949, %v2939
  %v3110 = vpack.c.bf16 %v2950, %v2940
  %v3111 = vpack.c.bf16 %v2951, %v2941
  %v3112 = vpack.c.bf16 %v2952, %v2942
  %v3113 = vpack.c.bf16 %v2953, %v2943
  %v3114 = vpack.c.bf16 %v2954, %v2944
  %v3115 = vpack.c.bf16 %v2955, %v2945
  %v3116 = vunpack.c.l.bf16 %v2956
  %v3117 = vunpack.c.l.bf16 %v2957
  %v3118 = vunpack.c.h.bf16 %v2956
  %v3119 = vunpack.c.h.bf16 %v2957
  %v3120 = vunpack.c.l.bf16 %v2966
  %v3121 = vunpack.c.l.bf16 %v2967
  %v3122 = vunpack.c.h.bf16 %v2966
  %v3123 = vunpack.c.h.bf16 %v2967
  %v3124 = vunpack.c.l.bf16 %v2976
  %v3125 = vunpack.c.l.bf16 %v2977
  %v3126 = vunpack.c.h.bf16 %v2976
  %v3127 = vunpack.c.h.bf16 %v2977
  %v3128 = vunpack.c.l.bf16 %v2986
  %v3129 = vunpack.c.l.bf16 %v2987
  %v3130 = vunpack.c.h.bf16 %v2986
  %v3131 = vunpack.c.h.bf16 %v2987
  %v3132 = vunpack.c.l.bf16 %v2996
  %v3133 = vunpack.c.l.bf16 %v2997
  %v3134 = vunpack.c.h.bf16 %v2996
  %v3135 = vunpack.c.h.bf16 %v2997
  %v3136 = vunpack.c.l.bf16 %v3006
  %v3137 = vunpack.c.l.bf16 %v3007
  %v3138 = vunpack.c.h.bf16 %v3006
  %v3139 = vunpack.c.h.bf16 %v3007
  %v3140 = vunpack.c.l.bf16 %v3016
  %v3141 = vunpack.c.l.bf16 %v3017
  %v3142 = vunpack.c.h.bf16 %v3016
  %v3143 = vunpack.c.h.bf16 %v3017
  %v3144 = vunpack.c.l.bf16 %v3026
  %v3145 = vunpack.c.l.bf16 %v3027
  %v3146 = vunpack.c.h.bf16 %v3026
  %v3147 = vunpack.c.h.bf16 %v3027
  %v3148 = vunpack.c.l.bf16 %v3036
  %v3149 = vunpack.c.l.bf16 %v3037
  %v3150 = vunpack.c.h.bf16 %v3036
  %v3151 = vunpack.c.h.bf16 %v3037
  %v3152 = vunpack.c.l.bf16 %v3046
  %v3153 = vunpack.c.l.bf16 %v3047
  %v3154 = vunpack.c.h.bf16 %v3046
  %v3155 = vunpack.c.h.bf16 %v3047
  %v3156 = vunpack.c.l.bf16 %v3056
  %v3157 = vunpack.c.l.bf16 %v3057
  %v3158 = vunpack.c.h.bf16 %v3056
  %v3159 = vunpack.c.h.bf16 %v3057
  %v3160 = vunpack.c.l.bf16 %v3066
  %v3161 = vunpack.c.l.bf16 %v3067
  %v3162 = vunpack.c.h.bf16 %v3066
  %v3163 = vunpack.c.h.bf16 %v3067
  %v3164 = vunpack.c.l.bf16 %v3076
  %v3165 = vunpack.c.l.bf16 %v3077
  %v3166 = vunpack.c.h.bf16 %v3076
  %v3167 = vunpack.c.h.bf16 %v3077
  %v3168 = vunpack.c.l.bf16 %v3086
  %v3169 = vunpack.c.l.bf16 %v3087
  %v3170 = vunpack.c.h.bf16 %v3086
  %v3171 = vunpack.c.h.bf16 %v3087
  %v3172 = vunpack.c.l.bf16 %v3096
  %v3173 = vunpack.c.l.bf16 %v3097
  %v3174 = vunpack.c.h.bf16 %v3096
  %v3175 = vunpack.c.h.bf16 %v3097
  %v3176 = vunpack.c.l.bf16 %v3106
  %v3177 = vunpack.c.l.bf16 %v3107
  %v3178 = vunpack.c.h.bf16 %v3106
  %v3179 = vunpack.c.h.bf16 %v3107
  %v3180 = vadd.f32 %v307, %v3116
  %v3181 = vadd.f32 %v309, %v3117
  %v3182 = vadd.f32 %v311, %v3118
  %v3183 = vadd.f32 %v313, %v3119
  %v3184 = vadd.f32 %v317, %v3120
  %v3185 = vadd.f32 %v319, %v3121
  %v3186 = vadd.f32 %v321, %v3122
  %v3187 = vadd.f32 %v323, %v3123
  %v3188 = vadd.f32 %v327, %v3124
  %v3189 = vadd.f32 %v329, %v3125
  %v3190 = vadd.f32 %v331, %v3126
  %v3191 = vadd.f32 %v333, %v3127
  %v3192 = vadd.f32 %v337, %v3128
  %v3193 = vadd.f32 %v339, %v3129
  %v3194 = vadd.f32 %v341, %v3130
  %v3195 = vadd.f32 %v343, %v3131
  %v3196 = vadd.f32 %v347, %v3132
  %v3197 = vadd.f32 %v349, %v3133
  %v3198 = vadd.f32 %v351, %v3134
  %v3199 = vadd.f32 %v353, %v3135
  %v3200 = vadd.f32 %v357, %v3136
  %v3201 = vadd.f32 %v359, %v3137
  %v3202 = vadd.f32 %v361, %v3138
  %v3203 = vadd.f32 %v363, %v3139
  %v3204 = vadd.f32 %v367, %v3140
  %v3205 = vadd.f32 %v369, %v3141
  %v3206 = vadd.f32 %v371, %v3142
  %v3207 = vadd.f32 %v373, %v3143
  %v3208 = vadd.f32 %v377, %v3144
  %v3209 = vadd.f32 %v379, %v3145
  %v3210 = vadd.f32 %v381, %v3146
  %v3211 = vadd.f32 %v383, %v3147
  %v3212 = vadd.f32 %v387, %v3148
  %v3213 = vadd.f32 %v389, %v3149
  %v3214 = vadd.f32 %v391, %v3150
  %v3215 = vadd.f32 %v393, %v3151
  %v3216 = vadd.f32 %v397, %v3152
  %v3217 = vadd.f32 %v399, %v3153
  %v3218 = vadd.f32 %v401, %v3154
  %v3219 = vadd.f32 %v403, %v3155
  %v3220 = vadd.f32 %v407, %v3156
  %v3221 = vadd.f32 %v409, %v3157
  %v3222 = vadd.f32 %v411, %v3158
  %v3223 = vadd.f32 %v413, %v3159
  %v3224 = vadd.f32 %v417, %v3160
  %v3225 = vadd.f32 %v419, %v3161
  %v3226 = vadd.f32 %v421, %v3162
  %v3227 = vadd.f32 %v423, %v3163
  %v3228 = vadd.f32 %v427, %v3164
  %v3229 = vadd.f32 %v429, %v3165
  %v3230 = vadd.f32 %v431, %v3166
  %v3231 = vadd.f32 %v433, %v3167
  %v3232 = vadd.f32 %v437, %v3168
  %v3233 = vadd.f32 %v439, %v3169
  %v3234 = vadd.f32 %v441, %v3170
  %v3235 = vadd.f32 %v443, %v3171
  %v3236 = vadd.f32 %v447, %v3172
  %v3237 = vadd.f32 %v449, %v3173
  %v3238 = vadd.f32 %v451, %v3174
  %v3239 = vadd.f32 %v453, %v3175
  %v3240 = vadd.f32 %v457, %v3176
  %v3241 = vadd.f32 %v459, %v3177
  %v3242 = vadd.f32 %v461, %v3178
  %v3243 = vadd.f32 %v463, %v3179
  %v3244 = vpack.c.bf16 %v3182, %v3180
  %v3245 = vpack.c.bf16 %v3183, %v3181
  %v3246 = vpack.c.bf16 %v3186, %v3184
  %v3247 = vpack.c.bf16 %v3187, %v3185
  %v3248 = vpack.c.bf16 %v3190, %v3188
  %v3249 = vpack.c.bf16 %v3191, %v3189
  %v3250 = vpack.c.bf16 %v3194, %v3192
  %v3251 = vpack.c.bf16 %v3195, %v3193
  %v3252 = vpack.c.bf16 %v3198, %v3196
  %v3253 = vpack.c.bf16 %v3199, %v3197
  %v3254 = vpack.c.bf16 %v3202, %v3200
  %v3255 = vpack.c.bf16 %v3203, %v3201
  %v3256 = vpack.c.bf16 %v3206, %v3204
  %v3257 = vpack.c.bf16 %v3207, %v3205
  %v3258 = vpack.c.bf16 %v3210, %v3208
  %v3259 = vpack.c.bf16 %v3211, %v3209
  %v3260 = vpack.c.bf16 %v3214, %v3212
  %v3261 = vpack.c.bf16 %v3215, %v3213
  %v3262 = vpack.c.bf16 %v3218, %v3216
  %v3263 = vpack.c.bf16 %v3219, %v3217
  %v3264 = vpack.c.bf16 %v3222, %v3220
  %v3265 = vpack.c.bf16 %v3223, %v3221
  %v3266 = vpack.c.bf16 %v3226, %v3224
  %v3267 = vpack.c.bf16 %v3227, %v3225
  %v3268 = vpack.c.bf16 %v3230, %v3228
  %v3269 = vpack.c.bf16 %v3231, %v3229
  %v3270 = vpack.c.bf16 %v3234, %v3232
  %v3271 = vpack.c.bf16 %v3235, %v3233
  %v3272 = vpack.c.bf16 %v3238, %v3236
  %v3273 = vpack.c.bf16 %v3239, %v3237
  %v3274 = vpack.c.bf16 %v3242, %v3240
  %v3275 = vpack.c.bf16 %v3243, %v3241
  %v3276 = vld [vmem:[%s6] sm:$0xff]
  %v3277 = vld [vmem:[%s6 + $0x8] sm:$0xff]
  %v3278 = vld [vmem:[%s6 + $0x10] sm:$0xff]
  %v3279 = vld [vmem:[%s6 + $0x18] sm:$0xff]
  %v3280 = vld [vmem:[%s6 + $0x20] sm:$0xff]
  %v3281 = vld [vmem:[%s6 + $0x28] sm:$0xff]
  %v3282 = vld [vmem:[%s6 + $0x30] sm:$0xff]
  %v3283 = vld [vmem:[%s6 + $0x38] sm:$0xff]
  %v3284 = vld [vmem:[%s6 + $0x40] sm:$0xff]
  %v3285 = vld [vmem:[%s6 + $0x48] sm:$0xff]
  %v3286 = vld [vmem:[%s6 + $0x50] sm:$0xff]
  %v3287 = vld [vmem:[%s6 + $0x58] sm:$0xff]
  %v3288 = vld [vmem:[%s6 + $0x60] sm:$0xff]
  %v3289 = vld [vmem:[%s6 + $0x68] sm:$0xff]
  %v3290 = vld [vmem:[%s6 + $0x70] sm:$0xff]
  %v3291 = vld [vmem:[%s6 + $0x78] sm:$0xff]
  %v3292 = vld [vmem:[%s6 + $0x80] sm:$0xff]
  %v3293 = vld [vmem:[%s6 + $0x88] sm:$0xff]
  %v3294 = vld [vmem:[%s6 + $0x90] sm:$0xff]
  %v3295 = vld [vmem:[%s6 + $0x98] sm:$0xff]
  %v3296 = vld [vmem:[%s6 + $0xa0] sm:$0xff]
  %v3297 = vld [vmem:[%s6 + $0xa8] sm:$0xff]
  %v3298 = vld [vmem:[%s6 + $0xb0] sm:$0xff]
  %v3299 = vld [vmem:[%s6 + $0xb8] sm:$0xff]
  %v3300 = vld [vmem:[%s6 + $0xc0] sm:$0xff]
  %v3301 = vld [vmem:[%s6 + $0xc8] sm:$0xff]
  %v3302 = vld [vmem:[%s6 + $0xd0] sm:$0xff]
  %v3303 = vld [vmem:[%s6 + $0xd8] sm:$0xff]
  %v3304 = vld [vmem:[%s6 + $0xe0] sm:$0xff]
  %v3305 = vld [vmem:[%s6 + $0xe8] sm:$0xff]
  %v3306 = vld [vmem:[%s6 + $0xf0] sm:$0xff]
  %v3307 = vld [vmem:[%s6 + $0xf8] sm:$0xff]
  %v3308 = vld [vmem:[%s7] sm:$0x3]
  %v3310 = vlaneseq
  %v3311 = vshrl.u32 %v3310, 7
  %v3312 = vsub.s32 0, %v3311
  %v3313 = vrot.slane %v3308, %v3312
  %v3314 = vlaneseq
  %v3315 = vshrl.u32 %v3314, 7
  %v3316 = vsub.s32 1, %v3315
  %v3317 = vrot.slane %v3308, %v3316
  %v3352 = vunpack.c.l.b16 %v3276
  %v3353 = vunpack.c.h.b16 %v3276
  %v3354 = vunpack.c.l.b16 %v3277
  %v3355 = vunpack.c.h.b16 %v3277
  %v3356 = vunpack.c.l.b16 %v3278
  %v3357 = vunpack.c.h.b16 %v3278
  %v3358 = vunpack.c.l.b16 %v3279
  %v3359 = vunpack.c.h.b16 %v3279
  %v3360 = vunpack.c.l.b16 %v3280
  %v3361 = vunpack.c.h.b16 %v3280
  %v3362 = vunpack.c.l.b16 %v3281
  %v3363 = vunpack.c.h.b16 %v3281
  %v3364 = vunpack.c.l.b16 %v3282
  %v3365 = vunpack.c.h.b16 %v3282
  %v3366 = vunpack.c.l.b16 %v3283
  %v3367 = vunpack.c.h.b16 %v3283
  %v3368 = vunpack.c.l.b16 %v3284
  %v3369 = vunpack.c.h.b16 %v3284
  %v3370 = vunpack.c.l.b16 %v3285
  %v3371 = vunpack.c.h.b16 %v3285
  %v3372 = vunpack.c.l.b16 %v3286
  %v3373 = vunpack.c.h.b16 %v3286
  %v3374 = vunpack.c.l.b16 %v3287
  %v3375 = vunpack.c.h.b16 %v3287
  %v3376 = vunpack.c.l.b16 %v3288
  %v3377 = vunpack.c.h.b16 %v3288
  %v3378 = vunpack.c.l.b16 %v3289
  %v3379 = vunpack.c.h.b16 %v3289
  %v3380 = vunpack.c.l.b16 %v3290
  %v3381 = vunpack.c.h.b16 %v3290
  %v3382 = vunpack.c.l.b16 %v3291
  %v3383 = vunpack.c.h.b16 %v3291
  %v3384 = vunpack.c.l.b16 %v3292
  %v3385 = vunpack.c.h.b16 %v3292
  %v3386 = vunpack.c.l.b16 %v3293
  %v3387 = vunpack.c.h.b16 %v3293
  %v3388 = vunpack.c.l.b16 %v3294
  %v3389 = vunpack.c.h.b16 %v3294
  %v3390 = vunpack.c.l.b16 %v3295
  %v3391 = vunpack.c.h.b16 %v3295
  %v3392 = vunpack.c.l.b16 %v3296
  %v3393 = vunpack.c.h.b16 %v3296
  %v3394 = vunpack.c.l.b16 %v3297
  %v3395 = vunpack.c.h.b16 %v3297
  %v3396 = vunpack.c.l.b16 %v3298
  %v3397 = vunpack.c.h.b16 %v3298
  %v3398 = vunpack.c.l.b16 %v3299
  %v3399 = vunpack.c.h.b16 %v3299
  %v3400 = vunpack.c.l.b16 %v3300
  %v3401 = vunpack.c.h.b16 %v3300
  %v3402 = vunpack.c.l.b16 %v3301
  %v3403 = vunpack.c.h.b16 %v3301
  %v3404 = vunpack.c.l.b16 %v3302
  %v3405 = vunpack.c.h.b16 %v3302
  %v3406 = vunpack.c.l.b16 %v3303
  %v3407 = vunpack.c.h.b16 %v3303
  %v3408 = vunpack.c.l.b16 %v3304
  %v3409 = vunpack.c.h.b16 %v3304
  %v3410 = vunpack.c.l.b16 %v3305
  %v3411 = vunpack.c.h.b16 %v3305
  %v3412 = vunpack.c.l.b16 %v3306
  %v3413 = vunpack.c.h.b16 %v3306
  %v3414 = vunpack.c.l.b16 %v3307
  %v3415 = vunpack.c.h.b16 %v3307
  %v3416 = vpack.c.b16 %v3354, %v3352
  %v3417 = vpack.c.b16 %v3355, %v3353
  %v3418 = vpack.c.b16 %v3358, %v3356
  %v3419 = vpack.c.b16 %v3359, %v3357
  %v3420 = vpack.c.b16 %v3362, %v3360
  %v3421 = vpack.c.b16 %v3363, %v3361
  %v3422 = vpack.c.b16 %v3366, %v3364
  %v3423 = vpack.c.b16 %v3367, %v3365
  %v3424 = vpack.c.b16 %v3370, %v3368
  %v3425 = vpack.c.b16 %v3371, %v3369
  %v3426 = vpack.c.b16 %v3374, %v3372
  %v3427 = vpack.c.b16 %v3375, %v3373
  %v3428 = vpack.c.b16 %v3378, %v3376
  %v3429 = vpack.c.b16 %v3379, %v3377
  %v3430 = vpack.c.b16 %v3382, %v3380
  %v3431 = vpack.c.b16 %v3383, %v3381
  %v3432 = vpack.c.b16 %v3386, %v3384
  %v3433 = vpack.c.b16 %v3387, %v3385
  %v3434 = vpack.c.b16 %v3390, %v3388
  %v3435 = vpack.c.b16 %v3391, %v3389
  %v3436 = vpack.c.b16 %v3394, %v3392
  %v3437 = vpack.c.b16 %v3395, %v3393
  %v3438 = vpack.c.b16 %v3398, %v3396
  %v3439 = vpack.c.b16 %v3399, %v3397
  %v3440 = vpack.c.b16 %v3402, %v3400
  %v3441 = vpack.c.b16 %v3403, %v3401
  %v3442 = vpack.c.b16 %v3406, %v3404
  %v3443 = vpack.c.b16 %v3407, %v3405
  %v3444 = vpack.c.b16 %v3410, %v3408
  %v3445 = vpack.c.b16 %v3411, %v3409
  %v3446 = vpack.c.b16 %v3414, %v3412
  %v3447 = vpack.c.b16 %v3415, %v3413
  %3480 = vmatprep.subr.bf16.mxu0 %v3417
  %3481 = vmatpush1.bf16.msra.mxu0 %v3416
  %3482 = vmatprep.subr.bf16.mxu0 %v3419
  %3483 = vmatpush1.bf16.msra.mxu0 %v3418
  %3484 = vmatprep.subr.bf16.mxu0 %v3421
  %3485 = vmatpush1.bf16.msra.mxu0 %v3420
  %3486 = vmatprep.subr.bf16.mxu0 %v3423
  %3487 = vmatpush1.bf16.msra.mxu0 %v3422
  %3488 = vmatprep.subr.bf16.mxu0 %v3425
  %3489 = vmatpush1.bf16.msra.mxu0 %v3424
  %3490 = vmatprep.subr.bf16.mxu0 %v3427
  %3491 = vmatpush1.bf16.msra.mxu0 %v3426
  %3492 = vmatprep.subr.bf16.mxu0 %v3429
  %3493 = vmatpush1.bf16.msra.mxu0 %v3428
  %3494 = vmatprep.subr.bf16.mxu0 %v3431
  %3495 = vmatpush1.bf16.msra.mxu0 %v3430
  %3496 = vmatprep.subr.bf16.mxu0 %v3433
  %3497 = vmatpush1.bf16.msra.mxu0 %v3432
  %3498 = vmatprep.subr.bf16.mxu0 %v3435
  %3499 = vmatpush1.bf16.msra.mxu0 %v3434
  %3500 = vmatprep.subr.bf16.mxu0 %v3437
  %3501 = vmatpush1.bf16.msra.mxu0 %v3436
  %3502 = vmatprep.subr.bf16.mxu0 %v3439
  %3503 = vmatpush1.bf16.msra.mxu0 %v3438
  %3504 = vmatprep.subr.bf16.mxu0 %v3441
  %3505 = vmatpush1.bf16.msra.mxu0 %v3440
  %3506 = vmatprep.subr.bf16.mxu0 %v3443
  %3507 = vmatpush1.bf16.msra.mxu0 %v3442
  %3508 = vmatprep.subr.bf16.mxu0 %v3445
  %3509 = vmatpush1.bf16.msra.mxu0 %v3444
  %3510 = vmatprep.subr.bf16.mxu0 %v3447
  %3511 = vmatpush1.bf16.msra.mxu0 %v3446
  %3512 = vmatprep.mubr.bf16.mxu0 %v3245
  %3513 = vmatmul.mubr.bf16.gmra.mrb[0].mxu0 %v3244
  %v3514 = vpop.f32.mrb[0].mxu0
  %v3515 = vadd.f32 %v3313, %v3514
  %v3516 = vpop.f32.mrb[0].mxu0
  %v3517 = vadd.f32 %v3317, %v3516
  %v3518 = vpop.f32.mrb[0].mxu0
  %v3519 = vadd.f32 %v3313, %v3518
  %v3520 = vpop.f32.mrb[0].mxu0
  %v3521 = vadd.f32 %v3317, %v3520
  %3522 = vmatprep.mubr.bf16.mxu0 %v3247
  %3523 = vmatmul.mubr.bf16.gmra.mrb[0].mxu0 %v3246
  %v3524 = vpop.f32.mrb[0].mxu0
  %v3525 = vadd.f32 %v3313, %v3524
  %v3526 = vpop.f32.mrb[0].mxu0
  %v3527 = vadd.f32 %v3317, %v3526
  %v3528 = vpop.f32.mrb[0].mxu0
  %v3529 = vadd.f32 %v3313, %v3528
  %v3530 = vpop.f32.mrb[0].mxu0
  %v3531 = vadd.f32 %v3317, %v3530
  %3532 = vmatprep.mubr.bf16.mxu0 %v3249
  %3533 = vmatmul.mubr.bf16.gmra.mrb[0].mxu0 %v3248
  %v3534 = vpop.f32.mrb[0].mxu0
  %v3535 = vadd.f32 %v3313, %v3534
  %v3536 = vpop.f32.mrb[0].mxu0
  %v3537 = vadd.f32 %v3317, %v3536
  %v3538 = vpop.f32.mrb[0].mxu0
  %v3539 = vadd.f32 %v3313, %v3538
  %v3540 = vpop.f32.mrb[0].mxu0
  %v3541 = vadd.f32 %v3317, %v3540
  %3542 = vmatprep.mubr.bf16.mxu0 %v3251
  %3543 = vmatmul.mubr.bf16.gmra.mrb[0].mxu0 %v3250
  %v3544 = vpop.f32.mrb[0].mxu0
  %v3545 = vadd.f32 %v3313, %v3544
  %v3546 = vpop.f32.mrb[0].mxu0
  %v3547 = vadd.f32 %v3317, %v3546
  %v3548 = vpop.f32.mrb[0].mxu0
  %v3549 = vadd.f32 %v3313, %v3548
  %v3550 = vpop.f32.mrb[0].mxu0
  %v3551 = vadd.f32 %v3317, %v3550
  %3552 = vmatprep.mubr.bf16.mxu0 %v3253
  %3553 = vmatmul.mubr.bf16.gmra.mrb[0].mxu0 %v3252
  %v3554 = vpop.f32.mrb[0].mxu0
  %v3555 = vadd.f32 %v3313, %v3554
  %v3556 = vpop.f32.mrb[0].mxu0
  %v3557 = vadd.f32 %v3317, %v3556
  %v3558 = vpop.f32.mrb[0].mxu0
  %v3559 = vadd.f32 %v3313, %v3558
  %v3560 = vpop.f32.mrb[0].mxu0
  %v3561 = vadd.f32 %v3317, %v3560
  %3562 = vmatprep.mubr.bf16.mxu0 %v3255
  %3563 = vmatmul.mubr.bf16.gmra.mrb[0].mxu0 %v3254
  %v3564 = vpop.f32.mrb[0].mxu0
  %v3565 = vadd.f32 %v3313, %v3564
  %v3566 = vpop.f32.mrb[0].mxu0
  %v3567 = vadd.f32 %v3317, %v3566
  %v3568 = vpop.f32.mrb[0].mxu0
  %v3569 = vadd.f32 %v3313, %v3568
  %v3570 = vpop.f32.mrb[0].mxu0
  %v3571 = vadd.f32 %v3317, %v3570
  %3572 = vmatprep.mubr.bf16.mxu0 %v3257
  %3573 = vmatmul.mubr.bf16.gmra.mrb[0].mxu0 %v3256
  %v3574 = vpop.f32.mrb[0].mxu0
  %v3575 = vadd.f32 %v3313, %v3574
  %v3576 = vpop.f32.mrb[0].mxu0
  %v3577 = vadd.f32 %v3317, %v3576
  %v3578 = vpop.f32.mrb[0].mxu0
  %v3579 = vadd.f32 %v3313, %v3578
  %v3580 = vpop.f32.mrb[0].mxu0
  %v3581 = vadd.f32 %v3317, %v3580
  %3582 = vmatprep.mubr.bf16.mxu0 %v3259
  %3583 = vmatmul.mubr.bf16.gmra.mrb[0].mxu0 %v3258
  %v3584 = vpop.f32.mrb[0].mxu0
  %v3585 = vadd.f32 %v3313, %v3584
  %v3586 = vpop.f32.mrb[0].mxu0
  %v3587 = vadd.f32 %v3317, %v3586
  %v3588 = vpop.f32.mrb[0].mxu0
  %v3589 = vadd.f32 %v3313, %v3588
  %v3590 = vpop.f32.mrb[0].mxu0
  %v3591 = vadd.f32 %v3317, %v3590
  %3592 = vmatprep.mubr.bf16.mxu0 %v3261
  %3593 = vmatmul.mubr.bf16.gmra.mrb[0].mxu0 %v3260
  %v3594 = vpop.f32.mrb[0].mxu0
  %v3595 = vadd.f32 %v3313, %v3594
  %v3596 = vpop.f32.mrb[0].mxu0
  %v3597 = vadd.f32 %v3317, %v3596
  %v3598 = vpop.f32.mrb[0].mxu0
  %v3599 = vadd.f32 %v3313, %v3598
  %v3600 = vpop.f32.mrb[0].mxu0
  %v3601 = vadd.f32 %v3317, %v3600
  %3602 = vmatprep.mubr.bf16.mxu0 %v3263
  %3603 = vmatmul.mubr.bf16.gmra.mrb[0].mxu0 %v3262
  %v3604 = vpop.f32.mrb[0].mxu0
  %v3605 = vadd.f32 %v3313, %v3604
  %v3606 = vpop.f32.mrb[0].mxu0
  %v3607 = vadd.f32 %v3317, %v3606
  %v3608 = vpop.f32.mrb[0].mxu0
  %v3609 = vadd.f32 %v3313, %v3608
  %v3610 = vpop.f32.mrb[0].mxu0
  %v3611 = vadd.f32 %v3317, %v3610
  %3612 = vmatprep.mubr.bf16.mxu0 %v3265
  %3613 = vmatmul.mubr.bf16.gmra.mrb[0].mxu0 %v3264
  %v3614 = vpop.f32.mrb[0].mxu0
  %v3615 = vadd.f32 %v3313, %v3614
  %v3616 = vpop.f32.mrb[0].mxu0
  %v3617 = vadd.f32 %v3317, %v3616
  %v3618 = vpop.f32.mrb[0].mxu0
  %v3619 = vadd.f32 %v3313, %v3618
  %v3620 = vpop.f32.mrb[0].mxu0
  %v3621 = vadd.f32 %v3317, %v3620
  %3622 = vmatprep.mubr.bf16.mxu0 %v3267
  %3623 = vmatmul.mubr.bf16.gmra.mrb[0].mxu0 %v3266
  %v3624 = vpop.f32.mrb[0].mxu0
  %v3625 = vadd.f32 %v3313, %v3624
  %v3626 = vpop.f32.mrb[0].mxu0
  %v3627 = vadd.f32 %v3317, %v3626
  %v3628 = vpop.f32.mrb[0].mxu0
  %v3629 = vadd.f32 %v3313, %v3628
  %v3630 = vpop.f32.mrb[0].mxu0
  %v3631 = vadd.f32 %v3317, %v3630
  %3632 = vmatprep.mubr.bf16.mxu0 %v3269
  %3633 = vmatmul.mubr.bf16.gmra.mrb[0].mxu0 %v3268
  %v3634 = vpop.f32.mrb[0].mxu0
  %v3635 = vadd.f32 %v3313, %v3634
  %v3636 = vpop.f32.mrb[0].mxu0
  %v3637 = vadd.f32 %v3317, %v3636
  %v3638 = vpop.f32.mrb[0].mxu0
  %v3639 = vadd.f32 %v3313, %v3638
  %v3640 = vpop.f32.mrb[0].mxu0
  %v3641 = vadd.f32 %v3317, %v3640
  %3642 = vmatprep.mubr.bf16.mxu0 %v3271
  %3643 = vmatmul.mubr.bf16.gmra.mrb[0].mxu0 %v3270
  %v3644 = vpop.f32.mrb[0].mxu0
  %v3645 = vadd.f32 %v3313, %v3644
  %v3646 = vpop.f32.mrb[0].mxu0
  %v3647 = vadd.f32 %v3317, %v3646
  %v3648 = vpop.f32.mrb[0].mxu0
  %v3649 = vadd.f32 %v3313, %v3648
  %v3650 = vpop.f32.mrb[0].mxu0
  %v3651 = vadd.f32 %v3317, %v3650
  %3652 = vmatprep.mubr.bf16.mxu0 %v3273
  %3653 = vmatmul.mubr.bf16.gmra.mrb[0].mxu0 %v3272
  %v3654 = vpop.f32.mrb[0].mxu0
  %v3655 = vadd.f32 %v3313, %v3654
  %v3656 = vpop.f32.mrb[0].mxu0
  %v3657 = vadd.f32 %v3317, %v3656
  %v3658 = vpop.f32.mrb[0].mxu0
  %v3659 = vadd.f32 %v3313, %v3658
  %v3660 = vpop.f32.mrb[0].mxu0
  %v3661 = vadd.f32 %v3317, %v3660
  %3662 = vmatprep.mubr.bf16.mxu0 %v3275
  %3663 = vmatmul.mubr.bf16.gmra.mrb[0].mxu0 %v3274
  %v3664 = vpop.f32.mrb[0].mxu0
  %v3665 = vadd.f32 %v3313, %v3664
  %v3666 = vpop.f32.mrb[0].mxu0
  %v3667 = vadd.f32 %v3317, %v3666
  %v3668 = vpop.f32.mrb[0].mxu0
  %v3669 = vadd.f32 %v3313, %v3668
  %v3670 = vpop.f32.mrb[0].mxu0
  %v3671 = vadd.f32 %v3317, %v3670
  %3672 = vdwg.mxu0
  %v3673 = vmax.f32 %v3515, 0.0
  %v3674 = vmax.f32 %v3517, 0.0
  %v3675 = vmax.f32 %v3519, 0.0
  %v3676 = vmax.f32 %v3521, 0.0
  %v3677 = vmax.f32 %v3525, 0.0
  %v3678 = vmax.f32 %v3527, 0.0
  %v3679 = vmax.f32 %v3529, 0.0
  %v3680 = vmax.f32 %v3531, 0.0
  %v3681 = vmax.f32 %v3535, 0.0
  %v3682 = vmax.f32 %v3537, 0.0
  %v3683 = vmax.f32 %v3539, 0.0
  %v3684 = vmax.f32 %v3541, 0.0
  %v3685 = vmax.f32 %v3545, 0.0
  %v3686 = vmax.f32 %v3547, 0.0
  %v3687 = vmax.f32 %v3549, 0.0
  %v3688 = vmax.f32 %v3551, 0.0
  %v3689 = vmax.f32 %v3555, 0.0
  %v3690 = vmax.f32 %v3557, 0.0
  %v3691 = vmax.f32 %v3559, 0.0
  %v3692 = vmax.f32 %v3561, 0.0
  %v3693 = vmax.f32 %v3565, 0.0
  %v3694 = vmax.f32 %v3567, 0.0
  %v3695 = vmax.f32 %v3569, 0.0
  %v3696 = vmax.f32 %v3571, 0.0
  %v3697 = vmax.f32 %v3575, 0.0
  %v3698 = vmax.f32 %v3577, 0.0
  %v3699 = vmax.f32 %v3579, 0.0
  %v3700 = vmax.f32 %v3581, 0.0
  %v3701 = vmax.f32 %v3585, 0.0
  %v3702 = vmax.f32 %v3587, 0.0
  %v3703 = vmax.f32 %v3589, 0.0
  %v3704 = vmax.f32 %v3591, 0.0
  %v3705 = vmax.f32 %v3595, 0.0
  %v3706 = vmax.f32 %v3597, 0.0
  %v3707 = vmax.f32 %v3599, 0.0
  %v3708 = vmax.f32 %v3601, 0.0
  %v3709 = vmax.f32 %v3605, 0.0
  %v3710 = vmax.f32 %v3607, 0.0
  %v3711 = vmax.f32 %v3609, 0.0
  %v3712 = vmax.f32 %v3611, 0.0
  %v3713 = vmax.f32 %v3615, 0.0
  %v3714 = vmax.f32 %v3617, 0.0
  %v3715 = vmax.f32 %v3619, 0.0
  %v3716 = vmax.f32 %v3621, 0.0
  %v3717 = vmax.f32 %v3625, 0.0
  %v3718 = vmax.f32 %v3627, 0.0
  %v3719 = vmax.f32 %v3629, 0.0
  %v3720 = vmax.f32 %v3631, 0.0
  %v3721 = vmax.f32 %v3635, 0.0
  %v3722 = vmax.f32 %v3637, 0.0
  %v3723 = vmax.f32 %v3639, 0.0
  %v3724 = vmax.f32 %v3641, 0.0
  %v3725 = vmax.f32 %v3645, 0.0
  %v3726 = vmax.f32 %v3647, 0.0
  %v3727 = vmax.f32 %v3649, 0.0
  %v3728 = vmax.f32 %v3651, 0.0
  %v3729 = vmax.f32 %v3655, 0.0
  %v3730 = vmax.f32 %v3657, 0.0
  %v3731 = vmax.f32 %v3659, 0.0
  %v3732 = vmax.f32 %v3661, 0.0
  %v3733 = vmax.f32 %v3665, 0.0
  %v3734 = vmax.f32 %v3667, 0.0
  %v3735 = vmax.f32 %v3669, 0.0
  %v3736 = vmax.f32 %v3671, 0.0
  %v3737 = vpack.c.bf16 %v3675, %v3673
  %v3738 = vpack.c.bf16 %v3676, %v3674
  %v3739 = vpack.c.bf16 %v3679, %v3677
  %v3740 = vpack.c.bf16 %v3680, %v3678
  %v3741 = vpack.c.bf16 %v3683, %v3681
  %v3742 = vpack.c.bf16 %v3684, %v3682
  %v3743 = vpack.c.bf16 %v3687, %v3685
  %v3744 = vpack.c.bf16 %v3688, %v3686
  %v3745 = vpack.c.bf16 %v3691, %v3689
  %v3746 = vpack.c.bf16 %v3692, %v3690
  %v3747 = vpack.c.bf16 %v3695, %v3693
  %v3748 = vpack.c.bf16 %v3696, %v3694
  %v3749 = vpack.c.bf16 %v3699, %v3697
  %v3750 = vpack.c.bf16 %v3700, %v3698
  %v3751 = vpack.c.bf16 %v3703, %v3701
  %v3752 = vpack.c.bf16 %v3704, %v3702
  %v3753 = vpack.c.bf16 %v3707, %v3705
  %v3754 = vpack.c.bf16 %v3708, %v3706
  %v3755 = vpack.c.bf16 %v3711, %v3709
  %v3756 = vpack.c.bf16 %v3712, %v3710
  %v3757 = vpack.c.bf16 %v3715, %v3713
  %v3758 = vpack.c.bf16 %v3716, %v3714
  %v3759 = vpack.c.bf16 %v3719, %v3717
  %v3760 = vpack.c.bf16 %v3720, %v3718
  %v3761 = vpack.c.bf16 %v3723, %v3721
  %v3762 = vpack.c.bf16 %v3724, %v3722
  %v3763 = vpack.c.bf16 %v3727, %v3725
  %v3764 = vpack.c.bf16 %v3728, %v3726
  %v3765 = vpack.c.bf16 %v3731, %v3729
  %v3766 = vpack.c.bf16 %v3732, %v3730
  %v3767 = vpack.c.bf16 %v3735, %v3733
  %v3768 = vpack.c.bf16 %v3736, %v3734
  %v3769 = vld [vmem:[%s8] sm:$0xff]
  %v3770 = vld [vmem:[%s8 + $0x8] sm:$0xff]
  %v3771 = vld [vmem:[%s8 + $0x10] sm:$0xff]
  %v3772 = vld [vmem:[%s8 + $0x18] sm:$0xff]
  %v3773 = vld [vmem:[%s8 + $0x20] sm:$0xff]
  %v3774 = vld [vmem:[%s8 + $0x28] sm:$0xff]
  %v3775 = vld [vmem:[%s8 + $0x30] sm:$0xff]
  %v3776 = vld [vmem:[%s8 + $0x38] sm:$0xff]
  %v3777 = vld [vmem:[%s8 + $0x40] sm:$0xff]
  %v3778 = vld [vmem:[%s8 + $0x48] sm:$0xff]
  %v3779 = vld [vmem:[%s8 + $0x50] sm:$0xff]
  %v3780 = vld [vmem:[%s8 + $0x58] sm:$0xff]
  %v3781 = vld [vmem:[%s8 + $0x60] sm:$0xff]
  %v3782 = vld [vmem:[%s8 + $0x68] sm:$0xff]
  %v3783 = vld [vmem:[%s8 + $0x70] sm:$0xff]
  %v3784 = vld [vmem:[%s8 + $0x78] sm:$0xff]
  %v3785 = vld [vmem:[%s8 + $0x80] sm:$0xff]
  %v3786 = vld [vmem:[%s8 + $0x88] sm:$0xff]
  %v3787 = vld [vmem:[%s8 + $0x90] sm:$0xff]
  %v3788 = vld [vmem:[%s8 + $0x98] sm:$0xff]
  %v3789 = vld [vmem:[%s8 + $0xa0] sm:$0xff]
  %v3790 = vld [vmem:[%s8 + $0xa8] sm:$0xff]
  %v3791 = vld [vmem:[%s8 + $0xb0] sm:$0xff]
  %v3792 = vld [vmem:[%s8 + $0xb8] sm:$0xff]
  %v3793 = vld [vmem:[%s8 + $0xc0] sm:$0xff]
  %v3794 = vld [vmem:[%s8 + $0xc8] sm:$0xff]
  %v3795 = vld [vmem:[%s8 + $0xd0] sm:$0xff]
  %v3796 = vld [vmem:[%s8 + $0xd8] sm:$0xff]
  %v3797 = vld [vmem:[%s8 + $0xe0] sm:$0xff]
  %v3798 = vld [vmem:[%s8 + $0xe8] sm:$0xff]
  %v3799 = vld [vmem:[%s8 + $0xf0] sm:$0xff]
  %v3800 = vld [vmem:[%s8 + $0xf8] sm:$0xff]
  %v3801 = vld [vmem:[%s9] sm:$0x3]
  %v3803 = vlaneseq
  %v3804 = vshrl.u32 %v3803, 7
  %v3805 = vsub.s32 0, %v3804
  %v3806 = vrot.slane %v3801, %v3805
  %v3807 = vlaneseq
  %v3808 = vshrl.u32 %v3807, 7
  %v3809 = vsub.s32 1, %v3808
  %v3810 = vrot.slane %v3801, %v3809
  %v3845 = vunpack.c.l.b16 %v3769
  %v3846 = vunpack.c.h.b16 %v3769
  %v3847 = vunpack.c.l.b16 %v3770
  %v3848 = vunpack.c.h.b16 %v3770
  %v3849 = vunpack.c.l.b16 %v3771
  %v3850 = vunpack.c.h.b16 %v3771
  %v3851 = vunpack.c.l.b16 %v3772
  %v3852 = vunpack.c.h.b16 %v3772
  %v3853 = vunpack.c.l.b16 %v3773
  %v3854 = vunpack.c.h.b16 %v3773
  %v3855 = vunpack.c.l.b16 %v3774
  %v3856 = vunpack.c.h.b16 %v3774
  %v3857 = vunpack.c.l.b16 %v3775
  %v3858 = vunpack.c.h.b16 %v3775
  %v3859 = vunpack.c.l.b16 %v3776
  %v3860 = vunpack.c.h.b16 %v3776
  %v3861 = vunpack.c.l.b16 %v3777
  %v3862 = vunpack.c.h.b16 %v3777
  %v3863 = vunpack.c.l.b16 %v3778
  %v3864 = vunpack.c.h.b16 %v3778
  %v3865 = vunpack.c.l.b16 %v3779
  %v3866 = vunpack.c.h.b16 %v3779
  %v3867 = vunpack.c.l.b16 %v3780
  %v3868 = vunpack.c.h.b16 %v3780
  %v3869 = vunpack.c.l.b16 %v3781
  %v3870 = vunpack.c.h.b16 %v3781
  %v3871 = vunpack.c.l.b16 %v3782
  %v3872 = vunpack.c.h.b16 %v3782
  %v3873 = vunpack.c.l.b16 %v3783
  %v3874 = vunpack.c.h.b16 %v3783
  %v3875 = vunpack.c.l.b16 %v3784
  %v3876 = vunpack.c.h.b16 %v3784
  %v3877 = vunpack.c.l.b16 %v3785
  %v3878 = vunpack.c.h.b16 %v3785
  %v3879 = vunpack.c.l.b16 %v3786
  %v3880 = vunpack.c.h.b16 %v3786
  %v3881 = vunpack.c.l.b16 %v3787
  %v3882 = vunpack.c.h.b16 %v3787
  %v3883 = vunpack.c.l.b16 %v3788
  %v3884 = vunpack.c.h.b16 %v3788
  %v3885 = vunpack.c.l.b16 %v3789
  %v3886 = vunpack.c.h.b16 %v3789
  %v3887 = vunpack.c.l.b16 %v3790
  %v3888 = vunpack.c.h.b16 %v3790
  %v3889 = vunpack.c.l.b16 %v3791
  %v3890 = vunpack.c.h.b16 %v3791
  %v3891 = vunpack.c.l.b16 %v3792
  %v3892 = vunpack.c.h.b16 %v3792
  %v3893 = vunpack.c.l.b16 %v3793
  %v3894 = vunpack.c.h.b16 %v3793
  %v3895 = vunpack.c.l.b16 %v3794
  %v3896 = vunpack.c.h.b16 %v3794
  %v3897 = vunpack.c.l.b16 %v3795
  %v3898 = vunpack.c.h.b16 %v3795
  %v3899 = vunpack.c.l.b16 %v3796
  %v3900 = vunpack.c.h.b16 %v3796
  %v3901 = vunpack.c.l.b16 %v3797
  %v3902 = vunpack.c.h.b16 %v3797
  %v3903 = vunpack.c.l.b16 %v3798
  %v3904 = vunpack.c.h.b16 %v3798
  %v3905 = vunpack.c.l.b16 %v3799
  %v3906 = vunpack.c.h.b16 %v3799
  %v3907 = vunpack.c.l.b16 %v3800
  %v3908 = vunpack.c.h.b16 %v3800
  %v3909 = vpack.c.b16 %v3847, %v3845
  %v3910 = vpack.c.b16 %v3848, %v3846
  %v3911 = vpack.c.b16 %v3851, %v3849
  %v3912 = vpack.c.b16 %v3852, %v3850
  %v3913 = vpack.c.b16 %v3855, %v3853
  %v3914 = vpack.c.b16 %v3856, %v3854
  %v3915 = vpack.c.b16 %v3859, %v3857
  %v3916 = vpack.c.b16 %v3860, %v3858
  %v3917 = vpack.c.b16 %v3863, %v3861
  %v3918 = vpack.c.b16 %v3864, %v3862
  %v3919 = vpack.c.b16 %v3867, %v3865
  %v3920 = vpack.c.b16 %v3868, %v3866
  %v3921 = vpack.c.b16 %v3871, %v3869
  %v3922 = vpack.c.b16 %v3872, %v3870
  %v3923 = vpack.c.b16 %v3875, %v3873
  %v3924 = vpack.c.b16 %v3876, %v3874
  %v3925 = vpack.c.b16 %v3879, %v3877
  %v3926 = vpack.c.b16 %v3880, %v3878
  %v3927 = vpack.c.b16 %v3883, %v3881
  %v3928 = vpack.c.b16 %v3884, %v3882
  %v3929 = vpack.c.b16 %v3887, %v3885
  %v3930 = vpack.c.b16 %v3888, %v3886
  %v3931 = vpack.c.b16 %v3891, %v3889
  %v3932 = vpack.c.b16 %v3892, %v3890
  %v3933 = vpack.c.b16 %v3895, %v3893
  %v3934 = vpack.c.b16 %v3896, %v3894
  %v3935 = vpack.c.b16 %v3899, %v3897
  %v3936 = vpack.c.b16 %v3900, %v3898
  %v3937 = vpack.c.b16 %v3903, %v3901
  %v3938 = vpack.c.b16 %v3904, %v3902
  %v3939 = vpack.c.b16 %v3907, %v3905
  %v3940 = vpack.c.b16 %v3908, %v3906
  %3973 = vmatprep.subr.bf16.mxu0 %v3910
  %3974 = vmatpush1.bf16.msra.mxu0 %v3909
  %3975 = vmatprep.subr.bf16.mxu0 %v3912
  %3976 = vmatpush1.bf16.msra.mxu0 %v3911
  %3977 = vmatprep.subr.bf16.mxu0 %v3914
  %3978 = vmatpush1.bf16.msra.mxu0 %v3913
  %3979 = vmatprep.subr.bf16.mxu0 %v3916
  %3980 = vmatpush1.bf16.msra.mxu0 %v3915
  %3981 = vmatprep.subr.bf16.mxu0 %v3918
  %3982 = vmatpush1.bf16.msra.mxu0 %v3917
  %3983 = vmatprep.subr.bf16.mxu0 %v3920
  %3984 = vmatpush1.bf16.msra.mxu0 %v3919
  %3985 = vmatprep.subr.bf16.mxu0 %v3922
  %3986 = vmatpush1.bf16.msra.mxu0 %v3921
  %3987 = vmatprep.subr.bf16.mxu0 %v3924
  %3988 = vmatpush1.bf16.msra.mxu0 %v3923
  %3989 = vmatprep.subr.bf16.mxu0 %v3926
  %3990 = vmatpush1.bf16.msra.mxu0 %v3925
  %3991 = vmatprep.subr.bf16.mxu0 %v3928
  %3992 = vmatpush1.bf16.msra.mxu0 %v3927
  %3993 = vmatprep.subr.bf16.mxu0 %v3930
  %3994 = vmatpush1.bf16.msra.mxu0 %v3929
  %3995 = vmatprep.subr.bf16.mxu0 %v3932
  %3996 = vmatpush1.bf16.msra.mxu0 %v3931
  %3997 = vmatprep.subr.bf16.mxu0 %v3934
  %3998 = vmatpush1.bf16.msra.mxu0 %v3933
  %3999 = vmatprep.subr.bf16.mxu0 %v3936
  %4000 = vmatpush1.bf16.msra.mxu0 %v3935
  %4001 = vmatprep.subr.bf16.mxu0 %v3938
  %4002 = vmatpush1.bf16.msra.mxu0 %v3937
  %4003 = vmatprep.subr.bf16.mxu0 %v3940
  %4004 = vmatpush1.bf16.msra.mxu0 %v3939
  %4005 = vmatprep.mubr.bf16.mxu0 %v3738
  %4006 = vmatmul.mubr.bf16.gmra.mrb[0].mxu0 %v3737
  %v4007 = vpop.f32.mrb[0].mxu0
  %v4008 = vadd.f32 %v3806, %v4007
  %v4009 = vpop.f32.mrb[0].mxu0
  %v4010 = vadd.f32 %v3810, %v4009
  %v4011 = vpop.f32.mrb[0].mxu0
  %v4012 = vadd.f32 %v3806, %v4011
  %v4013 = vpop.f32.mrb[0].mxu0
  %v4014 = vadd.f32 %v3810, %v4013
  %4015 = vmatprep.mubr.bf16.mxu0 %v3740
  %4016 = vmatmul.mubr.bf16.gmra.mrb[0].mxu0 %v3739
  %v4017 = vpop.f32.mrb[0].mxu0
  %v4018 = vadd.f32 %v3806, %v4017
  %v4019 = vpop.f32.mrb[0].mxu0
  %v4020 = vadd.f32 %v3810, %v4019
  %v4021 = vpop.f32.mrb[0].mxu0
  %v4022 = vadd.f32 %v3806, %v4021
  %v4023 = vpop.f32.mrb[0].mxu0
  %v4024 = vadd.f32 %v3810, %v4023
  %4025 = vmatprep.mubr.bf16.mxu0 %v3742
  %4026 = vmatmul.mubr.bf16.gmra.mrb[0].mxu0 %v3741
  %v4027 = vpop.f32.mrb[0].mxu0
  %v4028 = vadd.f32 %v3806, %v4027
  %v4029 = vpop.f32.mrb[0].mxu0
  %v4030 = vadd.f32 %v3810, %v4029
  %v4031 = vpop.f32.mrb[0].mxu0
  %v4032 = vadd.f32 %v3806, %v4031
  %v4033 = vpop.f32.mrb[0].mxu0
  %v4034 = vadd.f32 %v3810, %v4033
  %4035 = vmatprep.mubr.bf16.mxu0 %v3744
  %4036 = vmatmul.mubr.bf16.gmra.mrb[0].mxu0 %v3743
  %v4037 = vpop.f32.mrb[0].mxu0
  %v4038 = vadd.f32 %v3806, %v4037
  %v4039 = vpop.f32.mrb[0].mxu0
  %v4040 = vadd.f32 %v3810, %v4039
  %v4041 = vpop.f32.mrb[0].mxu0
  %v4042 = vadd.f32 %v3806, %v4041
  %v4043 = vpop.f32.mrb[0].mxu0
  %v4044 = vadd.f32 %v3810, %v4043
  %4045 = vmatprep.mubr.bf16.mxu0 %v3746
  %4046 = vmatmul.mubr.bf16.gmra.mrb[0].mxu0 %v3745
  %v4047 = vpop.f32.mrb[0].mxu0
  %v4048 = vadd.f32 %v3806, %v4047
  %v4049 = vpop.f32.mrb[0].mxu0
  %v4050 = vadd.f32 %v3810, %v4049
  %v4051 = vpop.f32.mrb[0].mxu0
  %v4052 = vadd.f32 %v3806, %v4051
  %v4053 = vpop.f32.mrb[0].mxu0
  %v4054 = vadd.f32 %v3810, %v4053
  %4055 = vmatprep.mubr.bf16.mxu0 %v3748
  %4056 = vmatmul.mubr.bf16.gmra.mrb[0].mxu0 %v3747
  %v4057 = vpop.f32.mrb[0].mxu0
  %v4058 = vadd.f32 %v3806, %v4057
  %v4059 = vpop.f32.mrb[0].mxu0
  %v4060 = vadd.f32 %v3810, %v4059
  %v4061 = vpop.f32.mrb[0].mxu0
  %v4062 = vadd.f32 %v3806, %v4061
  %v4063 = vpop.f32.mrb[0].mxu0
  %v4064 = vadd.f32 %v3810, %v4063
  %4065 = vmatprep.mubr.bf16.mxu0 %v3750
  %4066 = vmatmul.mubr.bf16.gmra.mrb[0].mxu0 %v3749
  %v4067 = vpop.f32.mrb[0].mxu0
  %v4068 = vadd.f32 %v3806, %v4067
  %v4069 = vpop.f32.mrb[0].mxu0
  %v4070 = vadd.f32 %v3810, %v4069
  %v4071 = vpop.f32.mrb[0].mxu0
  %v4072 = vadd.f32 %v3806, %v4071
  %v4073 = vpop.f32.mrb[0].mxu0
  %v4074 = vadd.f32 %v3810, %v4073
  %4075 = vmatprep.mubr.bf16.mxu0 %v3752
  %4076 = vmatmul.mubr.bf16.gmra.mrb[0].mxu0 %v3751
  %v4077 = vpop.f32.mrb[0].mxu0
  %v4078 = vadd.f32 %v3806, %v4077
  %v4079 = vpop.f32.mrb[0].mxu0
  %v4080 = vadd.f32 %v3810, %v4079
  %v4081 = vpop.f32.mrb[0].mxu0
  %v4082 = vadd.f32 %v3806, %v4081
  %v4083 = vpop.f32.mrb[0].mxu0
  %v4084 = vadd.f32 %v3810, %v4083
  %4085 = vmatprep.mubr.bf16.mxu0 %v3754
  %4086 = vmatmul.mubr.bf16.gmra.mrb[0].mxu0 %v3753
  %v4087 = vpop.f32.mrb[0].mxu0
  %v4088 = vadd.f32 %v3806, %v4087
  %v4089 = vpop.f32.mrb[0].mxu0
  %v4090 = vadd.f32 %v3810, %v4089
  %v4091 = vpop.f32.mrb[0].mxu0
  %v4092 = vadd.f32 %v3806, %v4091
  %v4093 = vpop.f32.mrb[0].mxu0
  %v4094 = vadd.f32 %v3810, %v4093
  %4095 = vmatprep.mubr.bf16.mxu0 %v3756
  %4096 = vmatmul.mubr.bf16.gmra.mrb[0].mxu0 %v3755
  %v4097 = vpop.f32.mrb[0].mxu0
  %v4098 = vadd.f32 %v3806, %v4097
  %v4099 = vpop.f32.mrb[0].mxu0
  %v4100 = vadd.f32 %v3810, %v4099
  %v4101 = vpop.f32.mrb[0].mxu0
  %v4102 = vadd.f32 %v3806, %v4101
  %v4103 = vpop.f32.mrb[0].mxu0
  %v4104 = vadd.f32 %v3810, %v4103
  %4105 = vmatprep.mubr.bf16.mxu0 %v3758
  %4106 = vmatmul.mubr.bf16.gmra.mrb[0].mxu0 %v3757
  %v4107 = vpop.f32.mrb[0].mxu0
  %v4108 = vadd.f32 %v3806, %v4107
  %v4109 = vpop.f32.mrb[0].mxu0
  %v4110 = vadd.f32 %v3810, %v4109
  %v4111 = vpop.f32.mrb[0].mxu0
  %v4112 = vadd.f32 %v3806, %v4111
  %v4113 = vpop.f32.mrb[0].mxu0
  %v4114 = vadd.f32 %v3810, %v4113
  %4115 = vmatprep.mubr.bf16.mxu0 %v3760
  %4116 = vmatmul.mubr.bf16.gmra.mrb[0].mxu0 %v3759
  %v4117 = vpop.f32.mrb[0].mxu0
  %v4118 = vadd.f32 %v3806, %v4117
  %v4119 = vpop.f32.mrb[0].mxu0
  %v4120 = vadd.f32 %v3810, %v4119
  %v4121 = vpop.f32.mrb[0].mxu0
  %v4122 = vadd.f32 %v3806, %v4121
  %v4123 = vpop.f32.mrb[0].mxu0
  %v4124 = vadd.f32 %v3810, %v4123
  %4125 = vmatprep.mubr.bf16.mxu0 %v3762
  %4126 = vmatmul.mubr.bf16.gmra.mrb[0].mxu0 %v3761
  %v4127 = vpop.f32.mrb[0].mxu0
  %v4128 = vadd.f32 %v3806, %v4127
  %v4129 = vpop.f32.mrb[0].mxu0
  %v4130 = vadd.f32 %v3810, %v4129
  %v4131 = vpop.f32.mrb[0].mxu0
  %v4132 = vadd.f32 %v3806, %v4131
  %v4133 = vpop.f32.mrb[0].mxu0
  %v4134 = vadd.f32 %v3810, %v4133
  %4135 = vmatprep.mubr.bf16.mxu0 %v3764
  %4136 = vmatmul.mubr.bf16.gmra.mrb[0].mxu0 %v3763
  %v4137 = vpop.f32.mrb[0].mxu0
  %v4138 = vadd.f32 %v3806, %v4137
  %v4139 = vpop.f32.mrb[0].mxu0
  %v4140 = vadd.f32 %v3810, %v4139
  %v4141 = vpop.f32.mrb[0].mxu0
  %v4142 = vadd.f32 %v3806, %v4141
  %v4143 = vpop.f32.mrb[0].mxu0
  %v4144 = vadd.f32 %v3810, %v4143
  %4145 = vmatprep.mubr.bf16.mxu0 %v3766
  %4146 = vmatmul.mubr.bf16.gmra.mrb[0].mxu0 %v3765
  %v4147 = vpop.f32.mrb[0].mxu0
  %v4148 = vadd.f32 %v3806, %v4147
  %v4149 = vpop.f32.mrb[0].mxu0
  %v4150 = vadd.f32 %v3810, %v4149
  %v4151 = vpop.f32.mrb[0].mxu0
  %v4152 = vadd.f32 %v3806, %v4151
  %v4153 = vpop.f32.mrb[0].mxu0
  %v4154 = vadd.f32 %v3810, %v4153
  %4155 = vmatprep.mubr.bf16.mxu0 %v3768
  %4156 = vmatmul.mubr.bf16.gmra.mrb[0].mxu0 %v3767
  %v4157 = vpop.f32.mrb[0].mxu0
  %v4158 = vadd.f32 %v3806, %v4157
  %v4159 = vpop.f32.mrb[0].mxu0
  %v4160 = vadd.f32 %v3810, %v4159
  %v4161 = vpop.f32.mrb[0].mxu0
  %v4162 = vadd.f32 %v3806, %v4161
  %v4163 = vpop.f32.mrb[0].mxu0
  %v4164 = vadd.f32 %v3810, %v4163
  %4165 = vdwg.mxu0
  %v4166 = vmax.f32 %v4008, 0.0
  %v4167 = vmax.f32 %v4010, 0.0
  %v4168 = vmax.f32 %v4012, 0.0
  %v4169 = vmax.f32 %v4014, 0.0
  %v4170 = vmax.f32 %v4018, 0.0
  %v4171 = vmax.f32 %v4020, 0.0
  %v4172 = vmax.f32 %v4022, 0.0
  %v4173 = vmax.f32 %v4024, 0.0
  %v4174 = vmax.f32 %v4028, 0.0
  %v4175 = vmax.f32 %v4030, 0.0
  %v4176 = vmax.f32 %v4032, 0.0
  %v4177 = vmax.f32 %v4034, 0.0
  %v4178 = vmax.f32 %v4038, 0.0
  %v4179 = vmax.f32 %v4040, 0.0
  %v4180 = vmax.f32 %v4042, 0.0
  %v4181 = vmax.f32 %v4044, 0.0
  %v4182 = vmax.f32 %v4048, 0.0
  %v4183 = vmax.f32 %v4050, 0.0
  %v4184 = vmax.f32 %v4052, 0.0
  %v4185 = vmax.f32 %v4054, 0.0
  %v4186 = vmax.f32 %v4058, 0.0
  %v4187 = vmax.f32 %v4060, 0.0
  %v4188 = vmax.f32 %v4062, 0.0
  %v4189 = vmax.f32 %v4064, 0.0
  %v4190 = vmax.f32 %v4068, 0.0
  %v4191 = vmax.f32 %v4070, 0.0
  %v4192 = vmax.f32 %v4072, 0.0
  %v4193 = vmax.f32 %v4074, 0.0
  %v4194 = vmax.f32 %v4078, 0.0
  %v4195 = vmax.f32 %v4080, 0.0
  %v4196 = vmax.f32 %v4082, 0.0
  %v4197 = vmax.f32 %v4084, 0.0
  %v4198 = vmax.f32 %v4088, 0.0
  %v4199 = vmax.f32 %v4090, 0.0
  %v4200 = vmax.f32 %v4092, 0.0
  %v4201 = vmax.f32 %v4094, 0.0
  %v4202 = vmax.f32 %v4098, 0.0
  %v4203 = vmax.f32 %v4100, 0.0
  %v4204 = vmax.f32 %v4102, 0.0
  %v4205 = vmax.f32 %v4104, 0.0
  %v4206 = vmax.f32 %v4108, 0.0
  %v4207 = vmax.f32 %v4110, 0.0
  %v4208 = vmax.f32 %v4112, 0.0
  %v4209 = vmax.f32 %v4114, 0.0
  %v4210 = vmax.f32 %v4118, 0.0
  %v4211 = vmax.f32 %v4120, 0.0
  %v4212 = vmax.f32 %v4122, 0.0
  %v4213 = vmax.f32 %v4124, 0.0
  %v4214 = vmax.f32 %v4128, 0.0
  %v4215 = vmax.f32 %v4130, 0.0
  %v4216 = vmax.f32 %v4132, 0.0
  %v4217 = vmax.f32 %v4134, 0.0
  %v4218 = vmax.f32 %v4138, 0.0
  %v4219 = vmax.f32 %v4140, 0.0
  %v4220 = vmax.f32 %v4142, 0.0
  %v4221 = vmax.f32 %v4144, 0.0
  %v4222 = vmax.f32 %v4148, 0.0
  %v4223 = vmax.f32 %v4150, 0.0
  %v4224 = vmax.f32 %v4152, 0.0
  %v4225 = vmax.f32 %v4154, 0.0
  %v4226 = vmax.f32 %v4158, 0.0
  %v4227 = vmax.f32 %v4160, 0.0
  %v4228 = vmax.f32 %v4162, 0.0
  %v4229 = vmax.f32 %v4164, 0.0
  %v4230 = vadd.f32 %v4166, %v3180
  %v4231 = vadd.f32 %v4167, %v3181
  %v4232 = vadd.f32 %v4168, %v3182
  %v4233 = vadd.f32 %v4169, %v3183
  %v4234 = vadd.f32 %v4170, %v3184
  %v4235 = vadd.f32 %v4171, %v3185
  %v4236 = vadd.f32 %v4172, %v3186
  %v4237 = vadd.f32 %v4173, %v3187
  %v4238 = vadd.f32 %v4174, %v3188
  %v4239 = vadd.f32 %v4175, %v3189
  %v4240 = vadd.f32 %v4176, %v3190
  %v4241 = vadd.f32 %v4177, %v3191
  %v4242 = vadd.f32 %v4178, %v3192
  %v4243 = vadd.f32 %v4179, %v3193
  %v4244 = vadd.f32 %v4180, %v3194
  %v4245 = vadd.f32 %v4181, %v3195
  %v4246 = vadd.f32 %v4182, %v3196
  %v4247 = vadd.f32 %v4183, %v3197
  %v4248 = vadd.f32 %v4184, %v3198
  %v4249 = vadd.f32 %v4185, %v3199
  %v4250 = vadd.f32 %v4186, %v3200
  %v4251 = vadd.f32 %v4187, %v3201
  %v4252 = vadd.f32 %v4188, %v3202
  %v4253 = vadd.f32 %v4189, %v3203
  %v4254 = vadd.f32 %v4190, %v3204
  %v4255 = vadd.f32 %v4191, %v3205
  %v4256 = vadd.f32 %v4192, %v3206
  %v4257 = vadd.f32 %v4193, %v3207
  %v4258 = vadd.f32 %v4194, %v3208
  %v4259 = vadd.f32 %v4195, %v3209
  %v4260 = vadd.f32 %v4196, %v3210
  %v4261 = vadd.f32 %v4197, %v3211
  %v4262 = vadd.f32 %v4198, %v3212
  %v4263 = vadd.f32 %v4199, %v3213
  %v4264 = vadd.f32 %v4200, %v3214
  %v4265 = vadd.f32 %v4201, %v3215
  %v4266 = vadd.f32 %v4202, %v3216
  %v4267 = vadd.f32 %v4203, %v3217
  %v4268 = vadd.f32 %v4204, %v3218
  %v4269 = vadd.f32 %v4205, %v3219
  %v4270 = vadd.f32 %v4206, %v3220
  %v4271 = vadd.f32 %v4207, %v3221
  %v4272 = vadd.f32 %v4208, %v3222
  %v4273 = vadd.f32 %v4209, %v3223
  %v4274 = vadd.f32 %v4210, %v3224
  %v4275 = vadd.f32 %v4211, %v3225
  %v4276 = vadd.f32 %v4212, %v3226
  %v4277 = vadd.f32 %v4213, %v3227
  %v4278 = vadd.f32 %v4214, %v3228
  %v4279 = vadd.f32 %v4215, %v3229
  %v4280 = vadd.f32 %v4216, %v3230
  %v4281 = vadd.f32 %v4217, %v3231
  %v4282 = vadd.f32 %v4218, %v3232
  %v4283 = vadd.f32 %v4219, %v3233
  %v4284 = vadd.f32 %v4220, %v3234
  %v4285 = vadd.f32 %v4221, %v3235
  %v4286 = vadd.f32 %v4222, %v3236
  %v4287 = vadd.f32 %v4223, %v3237
  %v4288 = vadd.f32 %v4224, %v3238
  %v4289 = vadd.f32 %v4225, %v3239
  %v4290 = vadd.f32 %v4226, %v3240
  %v4291 = vadd.f32 %v4227, %v3241
  %v4292 = vadd.f32 %v4228, %v3242
  %v4293 = vadd.f32 %v4229, %v3243
  %v4294 = vunpack.c.l.bf16 %v2958
  %v4295 = vunpack.c.l.bf16 %v2959
  %v4296 = vunpack.c.h.bf16 %v2958
  %v4297 = vunpack.c.h.bf16 %v2959
  %v4298 = vunpack.c.l.bf16 %v2968
  %v4299 = vunpack.c.l.bf16 %v2969
  %v4300 = vunpack.c.h.bf16 %v2968
  %v4301 = vunpack.c.h.bf16 %v2969
  %v4302 = vunpack.c.l.bf16 %v2978
  %v4303 = vunpack.c.l.bf16 %v2979
  %v4304 = vunpack.c.h.bf16 %v2978
  %v4305 = vunpack.c.h.bf16 %v2979
  %v4306 = vunpack.c.l.bf16 %v2988
  %v4307 = vunpack.c.l.bf16 %v2989
  %v4308 = vunpack.c.h.bf16 %v2988
  %v4309 = vunpack.c.h.bf16 %v2989
  %v4310 = vunpack.c.l.bf16 %v2998
  %v4311 = vunpack.c.l.bf16 %v2999
  %v4312 = vunpack.c.h.bf16 %v2998
  %v4313 = vunpack.c.h.bf16 %v2999
  %v4314 = vunpack.c.l.bf16 %v3008
  %v4315 = vunpack.c.l.bf16 %v3009
  %v4316 = vunpack.c.h.bf16 %v3008
  %v4317 = vunpack.c.h.bf16 %v3009
  %v4318 = vunpack.c.l.bf16 %v3018
  %v4319 = vunpack.c.l.bf16 %v3019
  %v4320 = vunpack.c.h.bf16 %v3018
  %v4321 = vunpack.c.h.bf16 %v3019
  %v4322 = vunpack.c.l.bf16 %v3028
  %v4323 = vunpack.c.l.bf16 %v3029
  %v4324 = vunpack.c.h.bf16 %v3028
  %v4325 = vunpack.c.h.bf16 %v3029
  %v4326 = vunpack.c.l.bf16 %v3038
  %v4327 = vunpack.c.l.bf16 %v3039
  %v4328 = vunpack.c.h.bf16 %v3038
  %v4329 = vunpack.c.h.bf16 %v3039
  %v4330 = vunpack.c.l.bf16 %v3048
  %v4331 = vunpack.c.l.bf16 %v3049
  %v4332 = vunpack.c.h.bf16 %v3048
  %v4333 = vunpack.c.h.bf16 %v3049
  %v4334 = vunpack.c.l.bf16 %v3058
  %v4335 = vunpack.c.l.bf16 %v3059
  %v4336 = vunpack.c.h.bf16 %v3058
  %v4337 = vunpack.c.h.bf16 %v3059
  %v4338 = vunpack.c.l.bf16 %v3068
  %v4339 = vunpack.c.l.bf16 %v3069
  %v4340 = vunpack.c.h.bf16 %v3068
  %v4341 = vunpack.c.h.bf16 %v3069
  %v4342 = vunpack.c.l.bf16 %v3078
  %v4343 = vunpack.c.l.bf16 %v3079
  %v4344 = vunpack.c.h.bf16 %v3078
  %v4345 = vunpack.c.h.bf16 %v3079
  %v4346 = vunpack.c.l.bf16 %v3088
  %v4347 = vunpack.c.l.bf16 %v3089
  %v4348 = vunpack.c.h.bf16 %v3088
  %v4349 = vunpack.c.h.bf16 %v3089
  %v4350 = vunpack.c.l.bf16 %v3098
  %v4351 = vunpack.c.l.bf16 %v3099
  %v4352 = vunpack.c.h.bf16 %v3098
  %v4353 = vunpack.c.h.bf16 %v3099
  %v4354 = vunpack.c.l.bf16 %v3108
  %v4355 = vunpack.c.l.bf16 %v3109
  %v4356 = vunpack.c.h.bf16 %v3108
  %v4357 = vunpack.c.h.bf16 %v3109
  %v4358 = vadd.f32 %v4230, %v4294
  %v4359 = vadd.f32 %v4231, %v4295
  %v4360 = vadd.f32 %v4232, %v4296
  %v4361 = vadd.f32 %v4233, %v4297
  %v4362 = vadd.f32 %v4234, %v4298
  %v4363 = vadd.f32 %v4235, %v4299
  %v4364 = vadd.f32 %v4236, %v4300
  %v4365 = vadd.f32 %v4237, %v4301
  %v4366 = vadd.f32 %v4238, %v4302
  %v4367 = vadd.f32 %v4239, %v4303
  %v4368 = vadd.f32 %v4240, %v4304
  %v4369 = vadd.f32 %v4241, %v4305
  %v4370 = vadd.f32 %v4242, %v4306
  %v4371 = vadd.f32 %v4243, %v4307
  %v4372 = vadd.f32 %v4244, %v4308
  %v4373 = vadd.f32 %v4245, %v4309
  %v4374 = vadd.f32 %v4246, %v4310
  %v4375 = vadd.f32 %v4247, %v4311
  %v4376 = vadd.f32 %v4248, %v4312
  %v4377 = vadd.f32 %v4249, %v4313
  %v4378 = vadd.f32 %v4250, %v4314
  %v4379 = vadd.f32 %v4251, %v4315
  %v4380 = vadd.f32 %v4252, %v4316
  %v4381 = vadd.f32 %v4253, %v4317
  %v4382 = vadd.f32 %v4254, %v4318
  %v4383 = vadd.f32 %v4255, %v4319
  %v4384 = vadd.f32 %v4256, %v4320
  %v4385 = vadd.f32 %v4257, %v4321
  %v4386 = vadd.f32 %v4258, %v4322
  %v4387 = vadd.f32 %v4259, %v4323
  %v4388 = vadd.f32 %v4260, %v4324
  %v4389 = vadd.f32 %v4261, %v4325
  %v4390 = vadd.f32 %v4262, %v4326
  %v4391 = vadd.f32 %v4263, %v4327
  %v4392 = vadd.f32 %v4264, %v4328
  %v4393 = vadd.f32 %v4265, %v4329
  %v4394 = vadd.f32 %v4266, %v4330
  %v4395 = vadd.f32 %v4267, %v4331
  %v4396 = vadd.f32 %v4268, %v4332
  %v4397 = vadd.f32 %v4269, %v4333
  %v4398 = vadd.f32 %v4270, %v4334
  %v4399 = vadd.f32 %v4271, %v4335
  %v4400 = vadd.f32 %v4272, %v4336
  %v4401 = vadd.f32 %v4273, %v4337
  %v4402 = vadd.f32 %v4274, %v4338
  %v4403 = vadd.f32 %v4275, %v4339
  %v4404 = vadd.f32 %v4276, %v4340
  %v4405 = vadd.f32 %v4277, %v4341
  %v4406 = vadd.f32 %v4278, %v4342
  %v4407 = vadd.f32 %v4279, %v4343
  %v4408 = vadd.f32 %v4280, %v4344
  %v4409 = vadd.f32 %v4281, %v4345
  %v4410 = vadd.f32 %v4282, %v4346
  %v4411 = vadd.f32 %v4283, %v4347
  %v4412 = vadd.f32 %v4284, %v4348
  %v4413 = vadd.f32 %v4285, %v4349
  %v4414 = vadd.f32 %v4286, %v4350
  %v4415 = vadd.f32 %v4287, %v4351
  %v4416 = vadd.f32 %v4288, %v4352
  %v4417 = vadd.f32 %v4289, %v4353
  %v4418 = vadd.f32 %v4290, %v4354
  %v4419 = vadd.f32 %v4291, %v4355
  %v4420 = vadd.f32 %v4292, %v4356
  %v4421 = vadd.f32 %v4293, %v4357
  %v4422 = vpack.c.bf16 %v4360, %v4358
  %v4423 = vpack.c.bf16 %v4361, %v4359
  %v4424 = vpack.c.bf16 %v4364, %v4362
  %v4425 = vpack.c.bf16 %v4365, %v4363
  %v4426 = vpack.c.bf16 %v4368, %v4366
  %v4427 = vpack.c.bf16 %v4369, %v4367
  %v4428 = vpack.c.bf16 %v4372, %v4370
  %v4429 = vpack.c.bf16 %v4373, %v4371
  %v4430 = vpack.c.bf16 %v4376, %v4374
  %v4431 = vpack.c.bf16 %v4377, %v4375
  %v4432 = vpack.c.bf16 %v4380, %v4378
  %v4433 = vpack.c.bf16 %v4381, %v4379
  %v4434 = vpack.c.bf16 %v4384, %v4382
  %v4435 = vpack.c.bf16 %v4385, %v4383
  %v4436 = vpack.c.bf16 %v4388, %v4386
  %v4437 = vpack.c.bf16 %v4389, %v4387
  %v4438 = vpack.c.bf16 %v4392, %v4390
  %v4439 = vpack.c.bf16 %v4393, %v4391
  %v4440 = vpack.c.bf16 %v4396, %v4394
  %v4441 = vpack.c.bf16 %v4397, %v4395
  %v4442 = vpack.c.bf16 %v4400, %v4398
  %v4443 = vpack.c.bf16 %v4401, %v4399
  %v4444 = vpack.c.bf16 %v4404, %v4402
  %v4445 = vpack.c.bf16 %v4405, %v4403
  %v4446 = vpack.c.bf16 %v4408, %v4406
  %v4447 = vpack.c.bf16 %v4409, %v4407
  %v4448 = vpack.c.bf16 %v4412, %v4410
  %v4449 = vpack.c.bf16 %v4413, %v4411
  %v4450 = vpack.c.bf16 %v4416, %v4414
  %v4451 = vpack.c.bf16 %v4417, %v4415
  %v4452 = vpack.c.bf16 %v4420, %v4418
  %v4453 = vpack.c.bf16 %v4421, %v4419
  %s4454 = scalar_lea.vmem %s6, 256
  %v4455 = vld [vmem:[%s4454] sm:$0xff]
  %v4456 = vld [vmem:[%s4454 + $0x8] sm:$0xff]
  %v4457 = vld [vmem:[%s4454 + $0x10] sm:$0xff]
  %v4458 = vld [vmem:[%s4454 + $0x18] sm:$0xff]
  %v4459 = vld [vmem:[%s4454 + $0x20] sm:$0xff]
  %v4460 = vld [vmem:[%s4454 + $0x28] sm:$0xff]
  %v4461 = vld [vmem:[%s4454 + $0x30] sm:$0xff]
  %v4462 = vld [vmem:[%s4454 + $0x38] sm:$0xff]
  %v4463 = vld [vmem:[%s4454 + $0x40] sm:$0xff]
  %v4464 = vld [vmem:[%s4454 + $0x48] sm:$0xff]
  %v4465 = vld [vmem:[%s4454 + $0x50] sm:$0xff]
  %v4466 = vld [vmem:[%s4454 + $0x58] sm:$0xff]
  %v4467 = vld [vmem:[%s4454 + $0x60] sm:$0xff]
  %v4468 = vld [vmem:[%s4454 + $0x68] sm:$0xff]
  %v4469 = vld [vmem:[%s4454 + $0x70] sm:$0xff]
  %v4470 = vld [vmem:[%s4454 + $0x78] sm:$0xff]
  %v4471 = vld [vmem:[%s4454 + $0x80] sm:$0xff]
  %v4472 = vld [vmem:[%s4454 + $0x88] sm:$0xff]
  %v4473 = vld [vmem:[%s4454 + $0x90] sm:$0xff]
  %v4474 = vld [vmem:[%s4454 + $0x98] sm:$0xff]
  %v4475 = vld [vmem:[%s4454 + $0xa0] sm:$0xff]
  %v4476 = vld [vmem:[%s4454 + $0xa8] sm:$0xff]
  %v4477 = vld [vmem:[%s4454 + $0xb0] sm:$0xff]
  %v4478 = vld [vmem:[%s4454 + $0xb8] sm:$0xff]
  %v4479 = vld [vmem:[%s4454 + $0xc0] sm:$0xff]
  %v4480 = vld [vmem:[%s4454 + $0xc8] sm:$0xff]
  %v4481 = vld [vmem:[%s4454 + $0xd0] sm:$0xff]
  %v4482 = vld [vmem:[%s4454 + $0xd8] sm:$0xff]
  %v4483 = vld [vmem:[%s4454 + $0xe0] sm:$0xff]
  %v4484 = vld [vmem:[%s4454 + $0xe8] sm:$0xff]
  %v4485 = vld [vmem:[%s4454 + $0xf0] sm:$0xff]
  %v4486 = vld [vmem:[%s4454 + $0xf8] sm:$0xff]
  %s4487 = scalar_lea.vmem %s7, 2
  %v4488 = vld [vmem:[%s4487] sm:$0x3]
  %v4490 = vlaneseq
  %v4491 = vshrl.u32 %v4490, 7
  %v4492 = vsub.s32 0, %v4491
  %v4493 = vrot.slane %v4488, %v4492
  %v4494 = vlaneseq
  %v4495 = vshrl.u32 %v4494, 7
  %v4496 = vsub.s32 1, %v4495
  %v4497 = vrot.slane %v4488, %v4496
  %v4532 = vunpack.c.l.b16 %v4455
  %v4533 = vunpack.c.h.b16 %v4455
  %v4534 = vunpack.c.l.b16 %v4456
  %v4535 = vunpack.c.h.b16 %v4456
  %v4536 = vunpack.c.l.b16 %v4457
  %v4537 = vunpack.c.h.b16 %v4457
  %v4538 = vunpack.c.l.b16 %v4458
  %v4539 = vunpack.c.h.b16 %v4458
  %v4540 = vunpack.c.l.b16 %v4459
  %v4541 = vunpack.c.h.b16 %v4459
  %v4542 = vunpack.c.l.b16 %v4460
  %v4543 = vunpack.c.h.b16 %v4460
  %v4544 = vunpack.c.l.b16 %v4461
  %v4545 = vunpack.c.h.b16 %v4461
  %v4546 = vunpack.c.l.b16 %v4462
  %v4547 = vunpack.c.h.b16 %v4462
  %v4548 = vunpack.c.l.b16 %v4463
  %v4549 = vunpack.c.h.b16 %v4463
  %v4550 = vunpack.c.l.b16 %v4464
  %v4551 = vunpack.c.h.b16 %v4464
  %v4552 = vunpack.c.l.b16 %v4465
  %v4553 = vunpack.c.h.b16 %v4465
  %v4554 = vunpack.c.l.b16 %v4466
  %v4555 = vunpack.c.h.b16 %v4466
  %v4556 = vunpack.c.l.b16 %v4467
  %v4557 = vunpack.c.h.b16 %v4467
  %v4558 = vunpack.c.l.b16 %v4468
  %v4559 = vunpack.c.h.b16 %v4468
  %v4560 = vunpack.c.l.b16 %v4469
  %v4561 = vunpack.c.h.b16 %v4469
  %v4562 = vunpack.c.l.b16 %v4470
  %v4563 = vunpack.c.h.b16 %v4470
  %v4564 = vunpack.c.l.b16 %v4471
  %v4565 = vunpack.c.h.b16 %v4471
  %v4566 = vunpack.c.l.b16 %v4472
  %v4567 = vunpack.c.h.b16 %v4472
  %v4568 = vunpack.c.l.b16 %v4473
  %v4569 = vunpack.c.h.b16 %v4473
  %v4570 = vunpack.c.l.b16 %v4474
  %v4571 = vunpack.c.h.b16 %v4474
  %v4572 = vunpack.c.l.b16 %v4475
  %v4573 = vunpack.c.h.b16 %v4475
  %v4574 = vunpack.c.l.b16 %v4476
  %v4575 = vunpack.c.h.b16 %v4476
  %v4576 = vunpack.c.l.b16 %v4477
  %v4577 = vunpack.c.h.b16 %v4477
  %v4578 = vunpack.c.l.b16 %v4478
  %v4579 = vunpack.c.h.b16 %v4478
  %v4580 = vunpack.c.l.b16 %v4479
  %v4581 = vunpack.c.h.b16 %v4479
  %v4582 = vunpack.c.l.b16 %v4480
  %v4583 = vunpack.c.h.b16 %v4480
  %v4584 = vunpack.c.l.b16 %v4481
  %v4585 = vunpack.c.h.b16 %v4481
  %v4586 = vunpack.c.l.b16 %v4482
  %v4587 = vunpack.c.h.b16 %v4482
  %v4588 = vunpack.c.l.b16 %v4483
  %v4589 = vunpack.c.h.b16 %v4483
  %v4590 = vunpack.c.l.b16 %v4484
  %v4591 = vunpack.c.h.b16 %v4484
  %v4592 = vunpack.c.l.b16 %v4485
  %v4593 = vunpack.c.h.b16 %v4485
  %v4594 = vunpack.c.l.b16 %v4486
  %v4595 = vunpack.c.h.b16 %v4486
  %v4596 = vpack.c.b16 %v4534, %v4532
  %v4597 = vpack.c.b16 %v4535, %v4533
  %v4598 = vpack.c.b16 %v4538, %v4536
  %v4599 = vpack.c.b16 %v4539, %v4537
  %v4600 = vpack.c.b16 %v4542, %v4540
  %v4601 = vpack.c.b16 %v4543, %v4541
  %v4602 = vpack.c.b16 %v4546, %v4544
  %v4603 = vpack.c.b16 %v4547, %v4545
  %v4604 = vpack.c.b16 %v4550, %v4548
  %v4605 = vpack.c.b16 %v4551, %v4549
  %v4606 = vpack.c.b16 %v4554, %v4552
  %v4607 = vpack.c.b16 %v4555, %v4553
  %v4608 = vpack.c.b16 %v4558, %v4556
  %v4609 = vpack.c.b16 %v4559, %v4557
  %v4610 = vpack.c.b16 %v4562, %v4560
  %v4611 = vpack.c.b16 %v4563, %v4561
  %v4612 = vpack.c.b16 %v4566, %v4564
  %v4613 = vpack.c.b16 %v4567, %v4565
  %v4614 = vpack.c.b16 %v4570, %v4568
  %v4615 = vpack.c.b16 %v4571, %v4569
  %v4616 = vpack.c.b16 %v4574, %v4572
  %v4617 = vpack.c.b16 %v4575, %v4573
  %v4618 = vpack.c.b16 %v4578, %v4576
  %v4619 = vpack.c.b16 %v4579, %v4577
  %v4620 = vpack.c.b16 %v4582, %v4580
  %v4621 = vpack.c.b16 %v4583, %v4581
  %v4622 = vpack.c.b16 %v4586, %v4584
  %v4623 = vpack.c.b16 %v4587, %v4585
  %v4624 = vpack.c.b16 %v4590, %v4588
  %v4625 = vpack.c.b16 %v4591, %v4589
  %v4626 = vpack.c.b16 %v4594, %v4592
  %v4627 = vpack.c.b16 %v4595, %v4593
  %4660 = vmatprep.subr.bf16.mxu0 %v4597
  %4661 = vmatpush1.bf16.msra.mxu0 %v4596
  %4662 = vmatprep.subr.bf16.mxu0 %v4599
  %4663 = vmatpush1.bf16.msra.mxu0 %v4598
  %4664 = vmatprep.subr.bf16.mxu0 %v4601
  %4665 = vmatpush1.bf16.msra.mxu0 %v4600
  %4666 = vmatprep.subr.bf16.mxu0 %v4603
  %4667 = vmatpush1.bf16.msra.mxu0 %v4602
  %4668 = vmatprep.subr.bf16.mxu0 %v4605
  %4669 = vmatpush1.bf16.msra.mxu0 %v4604
  %4670 = vmatprep.subr.bf16.mxu0 %v4607
  %4671 = vmatpush1.bf16.msra.mxu0 %v4606
  %4672 = vmatprep.subr.bf16.mxu0 %v4609
  %4673 = vmatpush1.bf16.msra.mxu0 %v4608
  %4674 = vmatprep.subr.bf16.mxu0 %v4611
  %4675 = vmatpush1.bf16.msra.mxu0 %v4610
  %4676 = vmatprep.subr.bf16.mxu0 %v4613
  %4677 = vmatpush1.bf16.msra.mxu0 %v4612
  %4678 = vmatprep.subr.bf16.mxu0 %v4615
  %4679 = vmatpush1.bf16.msra.mxu0 %v4614
  %4680 = vmatprep.subr.bf16.mxu0 %v4617
  %4681 = vmatpush1.bf16.msra.mxu0 %v4616
  %4682 = vmatprep.subr.bf16.mxu0 %v4619
  %4683 = vmatpush1.bf16.msra.mxu0 %v4618
  %4684 = vmatprep.subr.bf16.mxu0 %v4621
  %4685 = vmatpush1.bf16.msra.mxu0 %v4620
  %4686 = vmatprep.subr.bf16.mxu0 %v4623
  %4687 = vmatpush1.bf16.msra.mxu0 %v4622
  %4688 = vmatprep.subr.bf16.mxu0 %v4625
  %4689 = vmatpush1.bf16.msra.mxu0 %v4624
  %4690 = vmatprep.subr.bf16.mxu0 %v4627
  %4691 = vmatpush1.bf16.msra.mxu0 %v4626
  %4692 = vmatprep.mubr.bf16.mxu0 %v4423
  %4693 = vmatmul.mubr.bf16.gmra.mrb[0].mxu0 %v4422
  %v4694 = vpop.f32.mrb[0].mxu0
  %v4695 = vadd.f32 %v4493, %v4694
  %v4696 = vpop.f32.mrb[0].mxu0
  %v4697 = vadd.f32 %v4497, %v4696
  %v4698 = vpop.f32.mrb[0].mxu0
  %v4699 = vadd.f32 %v4493, %v4698
  %v4700 = vpop.f32.mrb[0].mxu0
  %v4701 = vadd.f32 %v4497, %v4700
  %4702 = vmatprep.mubr.bf16.mxu0 %v4425
  %4703 = vmatmul.mubr.bf16.gmra.mrb[0].mxu0 %v4424
  %v4704 = vpop.f32.mrb[0].mxu0
  %v4705 = vadd.f32 %v4493, %v4704
  %v4706 = vpop.f32.mrb[0].mxu0
  %v4707 = vadd.f32 %v4497, %v4706
  %v4708 = vpop.f32.mrb[0].mxu0
  %v4709 = vadd.f32 %v4493, %v4708
  %v4710 = vpop.f32.mrb[0].mxu0
  %v4711 = vadd.f32 %v4497, %v4710
  %4712 = vmatprep.mubr.bf16.mxu0 %v4427
  %4713 = vmatmul.mubr.bf16.gmra.mrb[0].mxu0 %v4426
  %v4714 = vpop.f32.mrb[0].mxu0
  %v4715 = vadd.f32 %v4493, %v4714
  %v4716 = vpop.f32.mrb[0].mxu0
  %v4717 = vadd.f32 %v4497, %v4716
  %v4718 = vpop.f32.mrb[0].mxu0
  %v4719 = vadd.f32 %v4493, %v4718
  %v4720 = vpop.f32.mrb[0].mxu0
  %v4721 = vadd.f32 %v4497, %v4720
  %4722 = vmatprep.mubr.bf16.mxu0 %v4429
  %4723 = vmatmul.mubr.bf16.gmra.mrb[0].mxu0 %v4428
  %v4724 = vpop.f32.mrb[0].mxu0
  %v4725 = vadd.f32 %v4493, %v4724
  %v4726 = vpop.f32.mrb[0].mxu0
  %v4727 = vadd.f32 %v4497, %v4726
  %v4728 = vpop.f32.mrb[0].mxu0
  %v4729 = vadd.f32 %v4493, %v4728
  %v4730 = vpop.f32.mrb[0].mxu0
  %v4731 = vadd.f32 %v4497, %v4730
  %4732 = vmatprep.mubr.bf16.mxu0 %v4431
  %4733 = vmatmul.mubr.bf16.gmra.mrb[0].mxu0 %v4430
  %v4734 = vpop.f32.mrb[0].mxu0
  %v4735 = vadd.f32 %v4493, %v4734
  %v4736 = vpop.f32.mrb[0].mxu0
  %v4737 = vadd.f32 %v4497, %v4736
  %v4738 = vpop.f32.mrb[0].mxu0
  %v4739 = vadd.f32 %v4493, %v4738
  %v4740 = vpop.f32.mrb[0].mxu0
  %v4741 = vadd.f32 %v4497, %v4740
  %4742 = vmatprep.mubr.bf16.mxu0 %v4433
  %4743 = vmatmul.mubr.bf16.gmra.mrb[0].mxu0 %v4432
  %v4744 = vpop.f32.mrb[0].mxu0
  %v4745 = vadd.f32 %v4493, %v4744
  %v4746 = vpop.f32.mrb[0].mxu0
  %v4747 = vadd.f32 %v4497, %v4746
  %v4748 = vpop.f32.mrb[0].mxu0
  %v4749 = vadd.f32 %v4493, %v4748
  %v4750 = vpop.f32.mrb[0].mxu0
  %v4751 = vadd.f32 %v4497, %v4750
  %4752 = vmatprep.mubr.bf16.mxu0 %v4435
  %4753 = vmatmul.mubr.bf16.gmra.mrb[0].mxu0 %v4434
  %v4754 = vpop.f32.mrb[0].mxu0
  %v4755 = vadd.f32 %v4493, %v4754
  %v4756 = vpop.f32.mrb[0].mxu0
  %v4757 = vadd.f32 %v4497, %v4756
  %v4758 = vpop.f32.mrb[0].mxu0
  %v4759 = vadd.f32 %v4493, %v4758
  %v4760 = vpop.f32.mrb[0].mxu0
  %v4761 = vadd.f32 %v4497, %v4760
  %4762 = vmatprep.mubr.bf16.mxu0 %v4437
  %4763 = vmatmul.mubr.bf16.gmra.mrb[0].mxu0 %v4436
  %v4764 = vpop.f32.mrb[0].mxu0
  %v4765 = vadd.f32 %v4493, %v4764
  %v4766 = vpop.f32.mrb[0].mxu0
  %v4767 = vadd.f32 %v4497, %v4766
  %v4768 = vpop.f32.mrb[0].mxu0
  %v4769 = vadd.f32 %v4493, %v4768
  %v4770 = vpop.f32.mrb[0].mxu0
  %v4771 = vadd.f32 %v4497, %v4770
  %4772 = vmatprep.mubr.bf16.mxu0 %v4439
  %4773 = vmatmul.mubr.bf16.gmra.mrb[0].mxu0 %v4438
  %v4774 = vpop.f32.mrb[0].mxu0
  %v4775 = vadd.f32 %v4493, %v4774
  %v4776 = vpop.f32.mrb[0].mxu0
  %v4777 = vadd.f32 %v4497, %v4776
  %v4778 = vpop.f32.mrb[0].mxu0
  %v4779 = vadd.f32 %v4493, %v4778
  %v4780 = vpop.f32.mrb[0].mxu0
  %v4781 = vadd.f32 %v4497, %v4780
  %4782 = vmatprep.mubr.bf16.mxu0 %v4441
  %4783 = vmatmul.mubr.bf16.gmra.mrb[0].mxu0 %v4440
  %v4784 = vpop.f32.mrb[0].mxu0
  %v4785 = vadd.f32 %v4493, %v4784
  %v4786 = vpop.f32.mrb[0].mxu0
  %v4787 = vadd.f32 %v4497, %v4786
  %v4788 = vpop.f32.mrb[0].mxu0
  %v4789 = vadd.f32 %v4493, %v4788
  %v4790 = vpop.f32.mrb[0].mxu0
  %v4791 = vadd.f32 %v4497, %v4790
  %4792 = vmatprep.mubr.bf16.mxu0 %v4443
  %4793 = vmatmul.mubr.bf16.gmra.mrb[0].mxu0 %v4442
  %v4794 = vpop.f32.mrb[0].mxu0
  %v4795 = vadd.f32 %v4493, %v4794
  %v4796 = vpop.f32.mrb[0].mxu0
  %v4797 = vadd.f32 %v4497, %v4796
  %v4798 = vpop.f32.mrb[0].mxu0
  %v4799 = vadd.f32 %v4493, %v4798
  %v4800 = vpop.f32.mrb[0].mxu0
  %v4801 = vadd.f32 %v4497, %v4800
  %4802 = vmatprep.mubr.bf16.mxu0 %v4445
  %4803 = vmatmul.mubr.bf16.gmra.mrb[0].mxu0 %v4444
  %v4804 = vpop.f32.mrb[0].mxu0
  %v4805 = vadd.f32 %v4493, %v4804
  %v4806 = vpop.f32.mrb[0].mxu0
  %v4807 = vadd.f32 %v4497, %v4806
  %v4808 = vpop.f32.mrb[0].mxu0
  %v4809 = vadd.f32 %v4493, %v4808
  %v4810 = vpop.f32.mrb[0].mxu0
  %v4811 = vadd.f32 %v4497, %v4810
  %4812 = vmatprep.mubr.bf16.mxu0 %v4447
  %4813 = vmatmul.mubr.bf16.gmra.mrb[0].mxu0 %v4446
  %v4814 = vpop.f32.mrb[0].mxu0
  %v4815 = vadd.f32 %v4493, %v4814
  %v4816 = vpop.f32.mrb[0].mxu0
  %v4817 = vadd.f32 %v4497, %v4816
  %v4818 = vpop.f32.mrb[0].mxu0
  %v4819 = vadd.f32 %v4493, %v4818
  %v4820 = vpop.f32.mrb[0].mxu0
  %v4821 = vadd.f32 %v4497, %v4820
  %4822 = vmatprep.mubr.bf16.mxu0 %v4449
  %4823 = vmatmul.mubr.bf16.gmra.mrb[0].mxu0 %v4448
  %v4824 = vpop.f32.mrb[0].mxu0
  %v4825 = vadd.f32 %v4493, %v4824
  %v4826 = vpop.f32.mrb[0].mxu0
  %v4827 = vadd.f32 %v4497, %v4826
  %v4828 = vpop.f32.mrb[0].mxu0
  %v4829 = vadd.f32 %v4493, %v4828
  %v4830 = vpop.f32.mrb[0].mxu0
  %v4831 = vadd.f32 %v4497, %v4830
  %4832 = vmatprep.mubr.bf16.mxu0 %v4451
  %4833 = vmatmul.mubr.bf16.gmra.mrb[0].mxu0 %v4450
  %v4834 = vpop.f32.mrb[0].mxu0
  %v4835 = vadd.f32 %v4493, %v4834
  %v4836 = vpop.f32.mrb[0].mxu0
  %v4837 = vadd.f32 %v4497, %v4836
  %v4838 = vpop.f32.mrb[0].mxu0
  %v4839 = vadd.f32 %v4493, %v4838
  %v4840 = vpop.f32.mrb[0].mxu0
  %v4841 = vadd.f32 %v4497, %v4840
  %4842 = vmatprep.mubr.bf16.mxu0 %v4453
  %4843 = vmatmul.mubr.bf16.gmra.mrb[0].mxu0 %v4452
  %v4844 = vpop.f32.mrb[0].mxu0
  %v4845 = vadd.f32 %v4493, %v4844
  %v4846 = vpop.f32.mrb[0].mxu0
  %v4847 = vadd.f32 %v4497, %v4846
  %v4848 = vpop.f32.mrb[0].mxu0
  %v4849 = vadd.f32 %v4493, %v4848
  %v4850 = vpop.f32.mrb[0].mxu0
  %v4851 = vadd.f32 %v4497, %v4850
  %4852 = vdwg.mxu0
  %v4853 = vmax.f32 %v4695, 0.0
  %v4854 = vmax.f32 %v4697, 0.0
  %v4855 = vmax.f32 %v4699, 0.0
  %v4856 = vmax.f32 %v4701, 0.0
  %v4857 = vmax.f32 %v4705, 0.0
  %v4858 = vmax.f32 %v4707, 0.0
  %v4859 = vmax.f32 %v4709, 0.0
  %v4860 = vmax.f32 %v4711, 0.0
  %v4861 = vmax.f32 %v4715, 0.0
  %v4862 = vmax.f32 %v4717, 0.0
  %v4863 = vmax.f32 %v4719, 0.0
  %v4864 = vmax.f32 %v4721, 0.0
  %v4865 = vmax.f32 %v4725, 0.0
  %v4866 = vmax.f32 %v4727, 0.0
  %v4867 = vmax.f32 %v4729, 0.0
  %v4868 = vmax.f32 %v4731, 0.0
  %v4869 = vmax.f32 %v4735, 0.0
  %v4870 = vmax.f32 %v4737, 0.0
  %v4871 = vmax.f32 %v4739, 0.0
  %v4872 = vmax.f32 %v4741, 0.0
  %v4873 = vmax.f32 %v4745, 0.0
  %v4874 = vmax.f32 %v4747, 0.0
  %v4875 = vmax.f32 %v4749, 0.0
  %v4876 = vmax.f32 %v4751, 0.0
  %v4877 = vmax.f32 %v4755, 0.0
  %v4878 = vmax.f32 %v4757, 0.0
  %v4879 = vmax.f32 %v4759, 0.0
  %v4880 = vmax.f32 %v4761, 0.0
  %v4881 = vmax.f32 %v4765, 0.0
  %v4882 = vmax.f32 %v4767, 0.0
  %v4883 = vmax.f32 %v4769, 0.0
  %v4884 = vmax.f32 %v4771, 0.0
  %v4885 = vmax.f32 %v4775, 0.0
  %v4886 = vmax.f32 %v4777, 0.0
  %v4887 = vmax.f32 %v4779, 0.0
  %v4888 = vmax.f32 %v4781, 0.0
  %v4889 = vmax.f32 %v4785, 0.0
  %v4890 = vmax.f32 %v4787, 0.0
  %v4891 = vmax.f32 %v4789, 0.0
  %v4892 = vmax.f32 %v4791, 0.0
  %v4893 = vmax.f32 %v4795, 0.0
  %v4894 = vmax.f32 %v4797, 0.0
  %v4895 = vmax.f32 %v4799, 0.0
  %v4896 = vmax.f32 %v4801, 0.0
  %v4897 = vmax.f32 %v4805, 0.0
  %v4898 = vmax.f32 %v4807, 0.0
  %v4899 = vmax.f32 %v4809, 0.0
  %v4900 = vmax.f32 %v4811, 0.0
  %v4901 = vmax.f32 %v4815, 0.0
  %v4902 = vmax.f32 %v4817, 0.0
  %v4903 = vmax.f32 %v4819, 0.0
  %v4904 = vmax.f32 %v4821, 0.0
  %v4905 = vmax.f32 %v4825, 0.0
  %v4906 = vmax.f32 %v4827, 0.0
  %v4907 = vmax.f32 %v4829, 0.0
  %v4908 = vmax.f32 %v4831, 0.0
  %v4909 = vmax.f32 %v4835, 0.0
  %v4910 = vmax.f32 %v4837, 0.0
  %v4911 = vmax.f32 %v4839, 0.0
  %v4912 = vmax.f32 %v4841, 0.0
  %v4913 = vmax.f32 %v4845, 0.0
  %v4914 = vmax.f32 %v4847, 0.0
  %v4915 = vmax.f32 %v4849, 0.0
  %v4916 = vmax.f32 %v4851, 0.0
  %v4917 = vpack.c.bf16 %v4855, %v4853
  %v4918 = vpack.c.bf16 %v4856, %v4854
  %v4919 = vpack.c.bf16 %v4859, %v4857
  %v4920 = vpack.c.bf16 %v4860, %v4858
  %v4921 = vpack.c.bf16 %v4863, %v4861
  %v4922 = vpack.c.bf16 %v4864, %v4862
  %v4923 = vpack.c.bf16 %v4867, %v4865
  %v4924 = vpack.c.bf16 %v4868, %v4866
  %v4925 = vpack.c.bf16 %v4871, %v4869
  %v4926 = vpack.c.bf16 %v4872, %v4870
  %v4927 = vpack.c.bf16 %v4875, %v4873
  %v4928 = vpack.c.bf16 %v4876, %v4874
  %v4929 = vpack.c.bf16 %v4879, %v4877
  %v4930 = vpack.c.bf16 %v4880, %v4878
  %v4931 = vpack.c.bf16 %v4883, %v4881
  %v4932 = vpack.c.bf16 %v4884, %v4882
  %v4933 = vpack.c.bf16 %v4887, %v4885
  %v4934 = vpack.c.bf16 %v4888, %v4886
  %v4935 = vpack.c.bf16 %v4891, %v4889
  %v4936 = vpack.c.bf16 %v4892, %v4890
  %v4937 = vpack.c.bf16 %v4895, %v4893
  %v4938 = vpack.c.bf16 %v4896, %v4894
  %v4939 = vpack.c.bf16 %v4899, %v4897
  %v4940 = vpack.c.bf16 %v4900, %v4898
  %v4941 = vpack.c.bf16 %v4903, %v4901
  %v4942 = vpack.c.bf16 %v4904, %v4902
  %v4943 = vpack.c.bf16 %v4907, %v4905
  %v4944 = vpack.c.bf16 %v4908, %v4906
  %v4945 = vpack.c.bf16 %v4911, %v4909
  %v4946 = vpack.c.bf16 %v4912, %v4910
  %v4947 = vpack.c.bf16 %v4915, %v4913
  %v4948 = vpack.c.bf16 %v4916, %v4914
  %s4949 = scalar_lea.vmem %s8, 256
  %v4950 = vld [vmem:[%s4949] sm:$0xff]
  %v4951 = vld [vmem:[%s4949 + $0x8] sm:$0xff]
  %v4952 = vld [vmem:[%s4949 + $0x10] sm:$0xff]
  %v4953 = vld [vmem:[%s4949 + $0x18] sm:$0xff]
  %v4954 = vld [vmem:[%s4949 + $0x20] sm:$0xff]
  %v4955 = vld [vmem:[%s4949 + $0x28] sm:$0xff]
  %v4956 = vld [vmem:[%s4949 + $0x30] sm:$0xff]
  %v4957 = vld [vmem:[%s4949 + $0x38] sm:$0xff]
  %v4958 = vld [vmem:[%s4949 + $0x40] sm:$0xff]
  %v4959 = vld [vmem:[%s4949 + $0x48] sm:$0xff]
  %v4960 = vld [vmem:[%s4949 + $0x50] sm:$0xff]
  %v4961 = vld [vmem:[%s4949 + $0x58] sm:$0xff]
  %v4962 = vld [vmem:[%s4949 + $0x60] sm:$0xff]
  %v4963 = vld [vmem:[%s4949 + $0x68] sm:$0xff]
  %v4964 = vld [vmem:[%s4949 + $0x70] sm:$0xff]
  %v4965 = vld [vmem:[%s4949 + $0x78] sm:$0xff]
  %v4966 = vld [vmem:[%s4949 + $0x80] sm:$0xff]
  %v4967 = vld [vmem:[%s4949 + $0x88] sm:$0xff]
  %v4968 = vld [vmem:[%s4949 + $0x90] sm:$0xff]
  %v4969 = vld [vmem:[%s4949 + $0x98] sm:$0xff]
  %v4970 = vld [vmem:[%s4949 + $0xa0] sm:$0xff]
  %v4971 = vld [vmem:[%s4949 + $0xa8] sm:$0xff]
  %v4972 = vld [vmem:[%s4949 + $0xb0] sm:$0xff]
  %v4973 = vld [vmem:[%s4949 + $0xb8] sm:$0xff]
  %v4974 = vld [vmem:[%s4949 + $0xc0] sm:$0xff]
  %v4975 = vld [vmem:[%s4949 + $0xc8] sm:$0xff]
  %v4976 = vld [vmem:[%s4949 + $0xd0] sm:$0xff]
  %v4977 = vld [vmem:[%s4949 + $0xd8] sm:$0xff]
  %v4978 = vld [vmem:[%s4949 + $0xe0] sm:$0xff]
  %v4979 = vld [vmem:[%s4949 + $0xe8] sm:$0xff]
  %v4980 = vld [vmem:[%s4949 + $0xf0] sm:$0xff]
  %v4981 = vld [vmem:[%s4949 + $0xf8] sm:$0xff]
  %s4982 = scalar_lea.vmem %s9, 2
  %v4983 = vld [vmem:[%s4982] sm:$0x3]
  %v4985 = vlaneseq
  %v4986 = vshrl.u32 %v4985, 7
  %v4987 = vsub.s32 0, %v4986
  %v4988 = vrot.slane %v4983, %v4987
  %v4989 = vlaneseq
  %v4990 = vshrl.u32 %v4989, 7
  %v4991 = vsub.s32 1, %v4990
  %v4992 = vrot.slane %v4983, %v4991
  %v5027 = vunpack.c.l.b16 %v4950
  %v5028 = vunpack.c.h.b16 %v4950
  %v5029 = vunpack.c.l.b16 %v4951
  %v5030 = vunpack.c.h.b16 %v4951
  %v5031 = vunpack.c.l.b16 %v4952
  %v5032 = vunpack.c.h.b16 %v4952
  %v5033 = vunpack.c.l.b16 %v4953
  %v5034 = vunpack.c.h.b16 %v4953
  %v5035 = vunpack.c.l.b16 %v4954
  %v5036 = vunpack.c.h.b16 %v4954
  %v5037 = vunpack.c.l.b16 %v4955
  %v5038 = vunpack.c.h.b16 %v4955
  %v5039 = vunpack.c.l.b16 %v4956
  %v5040 = vunpack.c.h.b16 %v4956
  %v5041 = vunpack.c.l.b16 %v4957
  %v5042 = vunpack.c.h.b16 %v4957
  %v5043 = vunpack.c.l.b16 %v4958
  %v5044 = vunpack.c.h.b16 %v4958
  %v5045 = vunpack.c.l.b16 %v4959
  %v5046 = vunpack.c.h.b16 %v4959
  %v5047 = vunpack.c.l.b16 %v4960
  %v5048 = vunpack.c.h.b16 %v4960
  %v5049 = vunpack.c.l.b16 %v4961
  %v5050 = vunpack.c.h.b16 %v4961
  %v5051 = vunpack.c.l.b16 %v4962
  %v5052 = vunpack.c.h.b16 %v4962
  %v5053 = vunpack.c.l.b16 %v4963
  %v5054 = vunpack.c.h.b16 %v4963
  %v5055 = vunpack.c.l.b16 %v4964
  %v5056 = vunpack.c.h.b16 %v4964
  %v5057 = vunpack.c.l.b16 %v4965
  %v5058 = vunpack.c.h.b16 %v4965
  %v5059 = vunpack.c.l.b16 %v4966
  %v5060 = vunpack.c.h.b16 %v4966
  %v5061 = vunpack.c.l.b16 %v4967
  %v5062 = vunpack.c.h.b16 %v4967
  %v5063 = vunpack.c.l.b16 %v4968
  %v5064 = vunpack.c.h.b16 %v4968
  %v5065 = vunpack.c.l.b16 %v4969
  %v5066 = vunpack.c.h.b16 %v4969
  %v5067 = vunpack.c.l.b16 %v4970
  %v5068 = vunpack.c.h.b16 %v4970
  %v5069 = vunpack.c.l.b16 %v4971
  %v5070 = vunpack.c.h.b16 %v4971
  %v5071 = vunpack.c.l.b16 %v4972
  %v5072 = vunpack.c.h.b16 %v4972
  %v5073 = vunpack.c.l.b16 %v4973
  %v5074 = vunpack.c.h.b16 %v4973
  %v5075 = vunpack.c.l.b16 %v4974
  %v5076 = vunpack.c.h.b16 %v4974
  %v5077 = vunpack.c.l.b16 %v4975
  %v5078 = vunpack.c.h.b16 %v4975
  %v5079 = vunpack.c.l.b16 %v4976
  %v5080 = vunpack.c.h.b16 %v4976
  %v5081 = vunpack.c.l.b16 %v4977
  %v5082 = vunpack.c.h.b16 %v4977
  %v5083 = vunpack.c.l.b16 %v4978
  %v5084 = vunpack.c.h.b16 %v4978
  %v5085 = vunpack.c.l.b16 %v4979
  %v5086 = vunpack.c.h.b16 %v4979
  %v5087 = vunpack.c.l.b16 %v4980
  %v5088 = vunpack.c.h.b16 %v4980
  %v5089 = vunpack.c.l.b16 %v4981
  %v5090 = vunpack.c.h.b16 %v4981
  %v5091 = vpack.c.b16 %v5029, %v5027
  %v5092 = vpack.c.b16 %v5030, %v5028
  %v5093 = vpack.c.b16 %v5033, %v5031
  %v5094 = vpack.c.b16 %v5034, %v5032
  %v5095 = vpack.c.b16 %v5037, %v5035
  %v5096 = vpack.c.b16 %v5038, %v5036
  %v5097 = vpack.c.b16 %v5041, %v5039
  %v5098 = vpack.c.b16 %v5042, %v5040
  %v5099 = vpack.c.b16 %v5045, %v5043
  %v5100 = vpack.c.b16 %v5046, %v5044
  %v5101 = vpack.c.b16 %v5049, %v5047
  %v5102 = vpack.c.b16 %v5050, %v5048
  %v5103 = vpack.c.b16 %v5053, %v5051
  %v5104 = vpack.c.b16 %v5054, %v5052
  %v5105 = vpack.c.b16 %v5057, %v5055
  %v5106 = vpack.c.b16 %v5058, %v5056
  %v5107 = vpack.c.b16 %v5061, %v5059
  %v5108 = vpack.c.b16 %v5062, %v5060
  %v5109 = vpack.c.b16 %v5065, %v5063
  %v5110 = vpack.c.b16 %v5066, %v5064
  %v5111 = vpack.c.b16 %v5069, %v5067
  %v5112 = vpack.c.b16 %v5070, %v5068
  %v5113 = vpack.c.b16 %v5073, %v5071
  %v5114 = vpack.c.b16 %v5074, %v5072
  %v5115 = vpack.c.b16 %v5077, %v5075
  %v5116 = vpack.c.b16 %v5078, %v5076
  %v5117 = vpack.c.b16 %v5081, %v5079
  %v5118 = vpack.c.b16 %v5082, %v5080
  %v5119 = vpack.c.b16 %v5085, %v5083
  %v5120 = vpack.c.b16 %v5086, %v5084
  %v5121 = vpack.c.b16 %v5089, %v5087
  %v5122 = vpack.c.b16 %v5090, %v5088
  %5155 = vmatprep.subr.bf16.mxu0 %v5092
  %5156 = vmatpush1.bf16.msra.mxu0 %v5091
  %5157 = vmatprep.subr.bf16.mxu0 %v5094
  %5158 = vmatpush1.bf16.msra.mxu0 %v5093
  %5159 = vmatprep.subr.bf16.mxu0 %v5096
  %5160 = vmatpush1.bf16.msra.mxu0 %v5095
  %5161 = vmatprep.subr.bf16.mxu0 %v5098
  %5162 = vmatpush1.bf16.msra.mxu0 %v5097
  %5163 = vmatprep.subr.bf16.mxu0 %v5100
  %5164 = vmatpush1.bf16.msra.mxu0 %v5099
  %5165 = vmatprep.subr.bf16.mxu0 %v5102
  %5166 = vmatpush1.bf16.msra.mxu0 %v5101
  %5167 = vmatprep.subr.bf16.mxu0 %v5104
  %5168 = vmatpush1.bf16.msra.mxu0 %v5103
  %5169 = vmatprep.subr.bf16.mxu0 %v5106
  %5170 = vmatpush1.bf16.msra.mxu0 %v5105
  %5171 = vmatprep.subr.bf16.mxu0 %v5108
  %5172 = vmatpush1.bf16.msra.mxu0 %v5107
  %5173 = vmatprep.subr.bf16.mxu0 %v5110
  %5174 = vmatpush1.bf16.msra.mxu0 %v5109
  %5175 = vmatprep.subr.bf16.mxu0 %v5112
  %5176 = vmatpush1.bf16.msra.mxu0 %v5111
  %5177 = vmatprep.subr.bf16.mxu0 %v5114
  %5178 = vmatpush1.bf16.msra.mxu0 %v5113
  %5179 = vmatprep.subr.bf16.mxu0 %v5116
  %5180 = vmatpush1.bf16.msra.mxu0 %v5115
  %5181 = vmatprep.subr.bf16.mxu0 %v5118
  %5182 = vmatpush1.bf16.msra.mxu0 %v5117
  %5183 = vmatprep.subr.bf16.mxu0 %v5120
  %5184 = vmatpush1.bf16.msra.mxu0 %v5119
  %5185 = vmatprep.subr.bf16.mxu0 %v5122
  %5186 = vmatpush1.bf16.msra.mxu0 %v5121
  %5187 = vmatprep.mubr.bf16.mxu0 %v4918
  %5188 = vmatmul.mubr.bf16.gmra.mrb[0].mxu0 %v4917
  %v5189 = vpop.f32.mrb[0].mxu0
  %v5190 = vadd.f32 %v4988, %v5189
  %v5191 = vpop.f32.mrb[0].mxu0
  %v5192 = vadd.f32 %v4992, %v5191
  %v5193 = vpop.f32.mrb[0].mxu0
  %v5194 = vadd.f32 %v4988, %v5193
  %v5195 = vpop.f32.mrb[0].mxu0
  %v5196 = vadd.f32 %v4992, %v5195
  %5197 = vmatprep.mubr.bf16.mxu0 %v4920
  %5198 = vmatmul.mubr.bf16.gmra.mrb[0].mxu0 %v4919
  %v5199 = vpop.f32.mrb[0].mxu0
  %v5200 = vadd.f32 %v4988, %v5199
  %v5201 = vpop.f32.mrb[0].mxu0
  %v5202 = vadd.f32 %v4992, %v5201
  %v5203 = vpop.f32.mrb[0].mxu0
  %v5204 = vadd.f32 %v4988, %v5203
  %v5205 = vpop.f32.mrb[0].mxu0
  %v5206 = vadd.f32 %v4992, %v5205
  %5207 = vmatprep.mubr.bf16.mxu0 %v4922
  %5208 = vmatmul.mubr.bf16.gmra.mrb[0].mxu0 %v4921
  %v5209 = vpop.f32.mrb[0].mxu0
  %v5210 = vadd.f32 %v4988, %v5209
  %v5211 = vpop.f32.mrb[0].mxu0
  %v5212 = vadd.f32 %v4992, %v5211
  %v5213 = vpop.f32.mrb[0].mxu0
  %v5214 = vadd.f32 %v4988, %v5213
  %v5215 = vpop.f32.mrb[0].mxu0
  %v5216 = vadd.f32 %v4992, %v5215
  %5217 = vmatprep.mubr.bf16.mxu0 %v4924
  %5218 = vmatmul.mubr.bf16.gmra.mrb[0].mxu0 %v4923
  %v5219 = vpop.f32.mrb[0].mxu0
  %v5220 = vadd.f32 %v4988, %v5219
  %v5221 = vpop.f32.mrb[0].mxu0
  %v5222 = vadd.f32 %v4992, %v5221
  %v5223 = vpop.f32.mrb[0].mxu0
  %v5224 = vadd.f32 %v4988, %v5223
  %v5225 = vpop.f32.mrb[0].mxu0
  %v5226 = vadd.f32 %v4992, %v5225
  %5227 = vmatprep.mubr.bf16.mxu0 %v4926
  %5228 = vmatmul.mubr.bf16.gmra.mrb[0].mxu0 %v4925
  %v5229 = vpop.f32.mrb[0].mxu0
  %v5230 = vadd.f32 %v4988, %v5229
  %v5231 = vpop.f32.mrb[0].mxu0
  %v5232 = vadd.f32 %v4992, %v5231
  %v5233 = vpop.f32.mrb[0].mxu0
  %v5234 = vadd.f32 %v4988, %v5233
  %v5235 = vpop.f32.mrb[0].mxu0
  %v5236 = vadd.f32 %v4992, %v5235
  %5237 = vmatprep.mubr.bf16.mxu0 %v4928
  %5238 = vmatmul.mubr.bf16.gmra.mrb[0].mxu0 %v4927
  %v5239 = vpop.f32.mrb[0].mxu0
  %v5240 = vadd.f32 %v4988, %v5239
  %v5241 = vpop.f32.mrb[0].mxu0
  %v5242 = vadd.f32 %v4992, %v5241
  %v5243 = vpop.f32.mrb[0].mxu0
  %v5244 = vadd.f32 %v4988, %v5243
  %v5245 = vpop.f32.mrb[0].mxu0
  %v5246 = vadd.f32 %v4992, %v5245
  %5247 = vmatprep.mubr.bf16.mxu0 %v4930
  %5248 = vmatmul.mubr.bf16.gmra.mrb[0].mxu0 %v4929
  %v5249 = vpop.f32.mrb[0].mxu0
  %v5250 = vadd.f32 %v4988, %v5249
  %v5251 = vpop.f32.mrb[0].mxu0
  %v5252 = vadd.f32 %v4992, %v5251
  %v5253 = vpop.f32.mrb[0].mxu0
  %v5254 = vadd.f32 %v4988, %v5253
  %v5255 = vpop.f32.mrb[0].mxu0
  %v5256 = vadd.f32 %v4992, %v5255
  %5257 = vmatprep.mubr.bf16.mxu0 %v4932
  %5258 = vmatmul.mubr.bf16.gmra.mrb[0].mxu0 %v4931
  %v5259 = vpop.f32.mrb[0].mxu0
  %v5260 = vadd.f32 %v4988, %v5259
  %v5261 = vpop.f32.mrb[0].mxu0
  %v5262 = vadd.f32 %v4992, %v5261
  %v5263 = vpop.f32.mrb[0].mxu0
  %v5264 = vadd.f32 %v4988, %v5263
  %v5265 = vpop.f32.mrb[0].mxu0
  %v5266 = vadd.f32 %v4992, %v5265
  %5267 = vmatprep.mubr.bf16.mxu0 %v4934
  %5268 = vmatmul.mubr.bf16.gmra.mrb[0].mxu0 %v4933
  %v5269 = vpop.f32.mrb[0].mxu0
  %v5270 = vadd.f32 %v4988, %v5269
  %v5271 = vpop.f32.mrb[0].mxu0
  %v5272 = vadd.f32 %v4992, %v5271
  %v5273 = vpop.f32.mrb[0].mxu0
  %v5274 = vadd.f32 %v4988, %v5273
  %v5275 = vpop.f32.mrb[0].mxu0
  %v5276 = vadd.f32 %v4992, %v5275
  %5277 = vmatprep.mubr.bf16.mxu0 %v4936
  %5278 = vmatmul.mubr.bf16.gmra.mrb[0].mxu0 %v4935
  %v5279 = vpop.f32.mrb[0].mxu0
  %v5280 = vadd.f32 %v4988, %v5279
  %v5281 = vpop.f32.mrb[0].mxu0
  %v5282 = vadd.f32 %v4992, %v5281
  %v5283 = vpop.f32.mrb[0].mxu0
  %v5284 = vadd.f32 %v4988, %v5283
  %v5285 = vpop.f32.mrb[0].mxu0
  %v5286 = vadd.f32 %v4992, %v5285
  %5287 = vmatprep.mubr.bf16.mxu0 %v4938
  %5288 = vmatmul.mubr.bf16.gmra.mrb[0].mxu0 %v4937
  %v5289 = vpop.f32.mrb[0].mxu0
  %v5290 = vadd.f32 %v4988, %v5289
  %v5291 = vpop.f32.mrb[0].mxu0
  %v5292 = vadd.f32 %v4992, %v5291
  %v5293 = vpop.f32.mrb[0].mxu0
  %v5294 = vadd.f32 %v4988, %v5293
  %v5295 = vpop.f32.mrb[0].mxu0
  %v5296 = vadd.f32 %v4992, %v5295
  %5297 = vmatprep.mubr.bf16.mxu0 %v4940
  %5298 = vmatmul.mubr.bf16.gmra.mrb[0].mxu0 %v4939
  %v5299 = vpop.f32.mrb[0].mxu0
  %v5300 = vadd.f32 %v4988, %v5299
  %v5301 = vpop.f32.mrb[0].mxu0
  %v5302 = vadd.f32 %v4992, %v5301
  %v5303 = vpop.f32.mrb[0].mxu0
  %v5304 = vadd.f32 %v4988, %v5303
  %v5305 = vpop.f32.mrb[0].mxu0
  %v5306 = vadd.f32 %v4992, %v5305
  %5307 = vmatprep.mubr.bf16.mxu0 %v4942
  %5308 = vmatmul.mubr.bf16.gmra.mrb[0].mxu0 %v4941
  %v5309 = vpop.f32.mrb[0].mxu0
  %v5310 = vadd.f32 %v4988, %v5309
  %v5311 = vpop.f32.mrb[0].mxu0
  %v5312 = vadd.f32 %v4992, %v5311
  %v5313 = vpop.f32.mrb[0].mxu0
  %v5314 = vadd.f32 %v4988, %v5313
  %v5315 = vpop.f32.mrb[0].mxu0
  %v5316 = vadd.f32 %v4992, %v5315
  %5317 = vmatprep.mubr.bf16.mxu0 %v4944
  %5318 = vmatmul.mubr.bf16.gmra.mrb[0].mxu0 %v4943
  %v5319 = vpop.f32.mrb[0].mxu0
  %v5320 = vadd.f32 %v4988, %v5319
  %v5321 = vpop.f32.mrb[0].mxu0
  %v5322 = vadd.f32 %v4992, %v5321
  %v5323 = vpop.f32.mrb[0].mxu0
  %v5324 = vadd.f32 %v4988, %v5323
  %v5325 = vpop.f32.mrb[0].mxu0
  %v5326 = vadd.f32 %v4992, %v5325
  %5327 = vmatprep.mubr.bf16.mxu0 %v4946
  %5328 = vmatmul.mubr.bf16.gmra.mrb[0].mxu0 %v4945
  %v5329 = vpop.f32.mrb[0].mxu0
  %v5330 = vadd.f32 %v4988, %v5329
  %v5331 = vpop.f32.mrb[0].mxu0
  %v5332 = vadd.f32 %v4992, %v5331
  %v5333 = vpop.f32.mrb[0].mxu0
  %v5334 = vadd.f32 %v4988, %v5333
  %v5335 = vpop.f32.mrb[0].mxu0
  %v5336 = vadd.f32 %v4992, %v5335
  %5337 = vmatprep.mubr.bf16.mxu0 %v4948
  %5338 = vmatmul.mubr.bf16.gmra.mrb[0].mxu0 %v4947
  %v5339 = vpop.f32.mrb[0].mxu0
  %v5340 = vadd.f32 %v4988, %v5339
  %v5341 = vpop.f32.mrb[0].mxu0
  %v5342 = vadd.f32 %v4992, %v5341
  %v5343 = vpop.f32.mrb[0].mxu0
  %v5344 = vadd.f32 %v4988, %v5343
  %v5345 = vpop.f32.mrb[0].mxu0
  %v5346 = vadd.f32 %v4992, %v5345
  %5347 = vdwg.mxu0
  %v5348 = vmax.f32 %v5190, 0.0
  %v5349 = vmax.f32 %v5192, 0.0
  %v5350 = vmax.f32 %v5194, 0.0
  %v5351 = vmax.f32 %v5196, 0.0
  %v5352 = vmax.f32 %v5200, 0.0
  %v5353 = vmax.f32 %v5202, 0.0
  %v5354 = vmax.f32 %v5204, 0.0
  %v5355 = vmax.f32 %v5206, 0.0
  %v5356 = vmax.f32 %v5210, 0.0
  %v5357 = vmax.f32 %v5212, 0.0
  %v5358 = vmax.f32 %v5214, 0.0
  %v5359 = vmax.f32 %v5216, 0.0
  %v5360 = vmax.f32 %v5220, 0.0
  %v5361 = vmax.f32 %v5222, 0.0
  %v5362 = vmax.f32 %v5224, 0.0
  %v5363 = vmax.f32 %v5226, 0.0
  %v5364 = vmax.f32 %v5230, 0.0
  %v5365 = vmax.f32 %v5232, 0.0
  %v5366 = vmax.f32 %v5234, 0.0
  %v5367 = vmax.f32 %v5236, 0.0
  %v5368 = vmax.f32 %v5240, 0.0
  %v5369 = vmax.f32 %v5242, 0.0
  %v5370 = vmax.f32 %v5244, 0.0
  %v5371 = vmax.f32 %v5246, 0.0
  %v5372 = vmax.f32 %v5250, 0.0
  %v5373 = vmax.f32 %v5252, 0.0
  %v5374 = vmax.f32 %v5254, 0.0
  %v5375 = vmax.f32 %v5256, 0.0
  %v5376 = vmax.f32 %v5260, 0.0
  %v5377 = vmax.f32 %v5262, 0.0
  %v5378 = vmax.f32 %v5264, 0.0
  %v5379 = vmax.f32 %v5266, 0.0
  %v5380 = vmax.f32 %v5270, 0.0
  %v5381 = vmax.f32 %v5272, 0.0
  %v5382 = vmax.f32 %v5274, 0.0
  %v5383 = vmax.f32 %v5276, 0.0
  %v5384 = vmax.f32 %v5280, 0.0
  %v5385 = vmax.f32 %v5282, 0.0
  %v5386 = vmax.f32 %v5284, 0.0
  %v5387 = vmax.f32 %v5286, 0.0
  %v5388 = vmax.f32 %v5290, 0.0
  %v5389 = vmax.f32 %v5292, 0.0
  %v5390 = vmax.f32 %v5294, 0.0
  %v5391 = vmax.f32 %v5296, 0.0
  %v5392 = vmax.f32 %v5300, 0.0
  %v5393 = vmax.f32 %v5302, 0.0
  %v5394 = vmax.f32 %v5304, 0.0
  %v5395 = vmax.f32 %v5306, 0.0
  %v5396 = vmax.f32 %v5310, 0.0
  %v5397 = vmax.f32 %v5312, 0.0
  %v5398 = vmax.f32 %v5314, 0.0
  %v5399 = vmax.f32 %v5316, 0.0
  %v5400 = vmax.f32 %v5320, 0.0
  %v5401 = vmax.f32 %v5322, 0.0
  %v5402 = vmax.f32 %v5324, 0.0
  %v5403 = vmax.f32 %v5326, 0.0
  %v5404 = vmax.f32 %v5330, 0.0
  %v5405 = vmax.f32 %v5332, 0.0
  %v5406 = vmax.f32 %v5334, 0.0
  %v5407 = vmax.f32 %v5336, 0.0
  %v5408 = vmax.f32 %v5340, 0.0
  %v5409 = vmax.f32 %v5342, 0.0
  %v5410 = vmax.f32 %v5344, 0.0
  %v5411 = vmax.f32 %v5346, 0.0
  %v5412 = vadd.f32 %v5348, %v4358
  %v5413 = vadd.f32 %v5349, %v4359
  %v5414 = vadd.f32 %v5350, %v4360
  %v5415 = vadd.f32 %v5351, %v4361
  %v5416 = vadd.f32 %v5352, %v4362
  %v5417 = vadd.f32 %v5353, %v4363
  %v5418 = vadd.f32 %v5354, %v4364
  %v5419 = vadd.f32 %v5355, %v4365
  %v5420 = vadd.f32 %v5356, %v4366
  %v5421 = vadd.f32 %v5357, %v4367
  %v5422 = vadd.f32 %v5358, %v4368
  %v5423 = vadd.f32 %v5359, %v4369
  %v5424 = vadd.f32 %v5360, %v4370
  %v5425 = vadd.f32 %v5361, %v4371
  %v5426 = vadd.f32 %v5362, %v4372
  %v5427 = vadd.f32 %v5363, %v4373
  %v5428 = vadd.f32 %v5364, %v4374
  %v5429 = vadd.f32 %v5365, %v4375
  %v5430 = vadd.f32 %v5366, %v4376
  %v5431 = vadd.f32 %v5367, %v4377
  %v5432 = vadd.f32 %v5368, %v4378
  %v5433 = vadd.f32 %v5369, %v4379
  %v5434 = vadd.f32 %v5370, %v4380
  %v5435 = vadd.f32 %v5371, %v4381
  %v5436 = vadd.f32 %v5372, %v4382
  %v5437 = vadd.f32 %v5373, %v4383
  %v5438 = vadd.f32 %v5374, %v4384
  %v5439 = vadd.f32 %v5375, %v4385
  %v5440 = vadd.f32 %v5376, %v4386
  %v5441 = vadd.f32 %v5377, %v4387
  %v5442 = vadd.f32 %v5378, %v4388
  %v5443 = vadd.f32 %v5379, %v4389
  %v5444 = vadd.f32 %v5380, %v4390
  %v5445 = vadd.f32 %v5381, %v4391
  %v5446 = vadd.f32 %v5382, %v4392
  %v5447 = vadd.f32 %v5383, %v4393
  %v5448 = vadd.f32 %v5384, %v4394
  %v5449 = vadd.f32 %v5385, %v4395
  %v5450 = vadd.f32 %v5386, %v4396
  %v5451 = vadd.f32 %v5387, %v4397
  %v5452 = vadd.f32 %v5388, %v4398
  %v5453 = vadd.f32 %v5389, %v4399
  %v5454 = vadd.f32 %v5390, %v4400
  %v5455 = vadd.f32 %v5391, %v4401
  %v5456 = vadd.f32 %v5392, %v4402
  %v5457 = vadd.f32 %v5393, %v4403
  %v5458 = vadd.f32 %v5394, %v4404
  %v5459 = vadd.f32 %v5395, %v4405
  %v5460 = vadd.f32 %v5396, %v4406
  %v5461 = vadd.f32 %v5397, %v4407
  %v5462 = vadd.f32 %v5398, %v4408
  %v5463 = vadd.f32 %v5399, %v4409
  %v5464 = vadd.f32 %v5400, %v4410
  %v5465 = vadd.f32 %v5401, %v4411
  %v5466 = vadd.f32 %v5402, %v4412
  %v5467 = vadd.f32 %v5403, %v4413
  %v5468 = vadd.f32 %v5404, %v4414
  %v5469 = vadd.f32 %v5405, %v4415
  %v5470 = vadd.f32 %v5406, %v4416
  %v5471 = vadd.f32 %v5407, %v4417
  %v5472 = vadd.f32 %v5408, %v4418
  %v5473 = vadd.f32 %v5409, %v4419
  %v5474 = vadd.f32 %v5410, %v4420
  %v5475 = vadd.f32 %v5411, %v4421
  %v5476 = vunpack.c.l.bf16 %v2960
  %v5477 = vunpack.c.l.bf16 %v2961
  %v5478 = vunpack.c.h.bf16 %v2960
  %v5479 = vunpack.c.h.bf16 %v2961
  %v5480 = vunpack.c.l.bf16 %v2970
  %v5481 = vunpack.c.l.bf16 %v2971
  %v5482 = vunpack.c.h.bf16 %v2970
  %v5483 = vunpack.c.h.bf16 %v2971
  %v5484 = vunpack.c.l.bf16 %v2980
  %v5485 = vunpack.c.l.bf16 %v2981
  %v5486 = vunpack.c.h.bf16 %v2980
  %v5487 = vunpack.c.h.bf16 %v2981
  %v5488 = vunpack.c.l.bf16 %v2990
  %v5489 = vunpack.c.l.bf16 %v2991
  %v5490 = vunpack.c.h.bf16 %v2990
  %v5491 = vunpack.c.h.bf16 %v2991
  %v5492 = vunpack.c.l.bf16 %v3000
  %v5493 = vunpack.c.l.bf16 %v3001
  %v5494 = vunpack.c.h.bf16 %v3000
  %v5495 = vunpack.c.h.bf16 %v3001
  %v5496 = vunpack.c.l.bf16 %v3010
  %v5497 = vunpack.c.l.bf16 %v3011
  %v5498 = vunpack.c.h.bf16 %v3010
  %v5499 = vunpack.c.h.bf16 %v3011
  %v5500 = vunpack.c.l.bf16 %v3020
  %v5501 = vunpack.c.l.bf16 %v3021
  %v5502 = vunpack.c.h.bf16 %v3020
  %v5503 = vunpack.c.h.bf16 %v3021
  %v5504 = vunpack.c.l.bf16 %v3030
  %v5505 = vunpack.c.l.bf16 %v3031
  %v5506 = vunpack.c.h.bf16 %v3030
  %v5507 = vunpack.c.h.bf16 %v3031
  %v5508 = vunpack.c.l.bf16 %v3040
  %v5509 = vunpack.c.l.bf16 %v3041
  %v5510 = vunpack.c.h.bf16 %v3040
  %v5511 = vunpack.c.h.bf16 %v3041
  %v5512 = vunpack.c.l.bf16 %v3050
  %v5513 = vunpack.c.l.bf16 %v3051
  %v5514 = vunpack.c.h.bf16 %v3050
  %v5515 = vunpack.c.h.bf16 %v3051
  %v5516 = vunpack.c.l.bf16 %v3060
  %v5517 = vunpack.c.l.bf16 %v3061
  %v5518 = vunpack.c.h.bf16 %v3060
  %v5519 = vunpack.c.h.bf16 %v3061
  %v5520 = vunpack.c.l.bf16 %v3070
  %v5521 = vunpack.c.l.bf16 %v3071
  %v5522 = vunpack.c.h.bf16 %v3070
  %v5523 = vunpack.c.h.bf16 %v3071
  %v5524 = vunpack.c.l.bf16 %v3080
  %v5525 = vunpack.c.l.bf16 %v3081
  %v5526 = vunpack.c.h.bf16 %v3080
  %v5527 = vunpack.c.h.bf16 %v3081
  %v5528 = vunpack.c.l.bf16 %v3090
  %v5529 = vunpack.c.l.bf16 %v3091
  %v5530 = vunpack.c.h.bf16 %v3090
  %v5531 = vunpack.c.h.bf16 %v3091
  %v5532 = vunpack.c.l.bf16 %v3100
  %v5533 = vunpack.c.l.bf16 %v3101
  %v5534 = vunpack.c.h.bf16 %v3100
  %v5535 = vunpack.c.h.bf16 %v3101
  %v5536 = vunpack.c.l.bf16 %v3110
  %v5537 = vunpack.c.l.bf16 %v3111
  %v5538 = vunpack.c.h.bf16 %v3110
  %v5539 = vunpack.c.h.bf16 %v3111
  %v5540 = vadd.f32 %v5412, %v5476
  %v5541 = vadd.f32 %v5413, %v5477
  %v5542 = vadd.f32 %v5414, %v5478
  %v5543 = vadd.f32 %v5415, %v5479
  %v5544 = vadd.f32 %v5416, %v5480
  %v5545 = vadd.f32 %v5417, %v5481
  %v5546 = vadd.f32 %v5418, %v5482
  %v5547 = vadd.f32 %v5419, %v5483
  %v5548 = vadd.f32 %v5420, %v5484
  %v5549 = vadd.f32 %v5421, %v5485
  %v5550 = vadd.f32 %v5422, %v5486
  %v5551 = vadd.f32 %v5423, %v5487
  %v5552 = vadd.f32 %v5424, %v5488
  %v5553 = vadd.f32 %v5425, %v5489
  %v5554 = vadd.f32 %v5426, %v5490
  %v5555 = vadd.f32 %v5427, %v5491
  %v5556 = vadd.f32 %v5428, %v5492
  %v5557 = vadd.f32 %v5429, %v5493
  %v5558 = vadd.f32 %v5430, %v5494
  %v5559 = vadd.f32 %v5431, %v5495
  %v5560 = vadd.f32 %v5432, %v5496
  %v5561 = vadd.f32 %v5433, %v5497
  %v5562 = vadd.f32 %v5434, %v5498
  %v5563 = vadd.f32 %v5435, %v5499
  %v5564 = vadd.f32 %v5436, %v5500
  %v5565 = vadd.f32 %v5437, %v5501
  %v5566 = vadd.f32 %v5438, %v5502
  %v5567 = vadd.f32 %v5439, %v5503
  %v5568 = vadd.f32 %v5440, %v5504
  %v5569 = vadd.f32 %v5441, %v5505
  %v5570 = vadd.f32 %v5442, %v5506
  %v5571 = vadd.f32 %v5443, %v5507
  %v5572 = vadd.f32 %v5444, %v5508
  %v5573 = vadd.f32 %v5445, %v5509
  %v5574 = vadd.f32 %v5446, %v5510
  %v5575 = vadd.f32 %v5447, %v5511
  %v5576 = vadd.f32 %v5448, %v5512
  %v5577 = vadd.f32 %v5449, %v5513
  %v5578 = vadd.f32 %v5450, %v5514
  %v5579 = vadd.f32 %v5451, %v5515
  %v5580 = vadd.f32 %v5452, %v5516
  %v5581 = vadd.f32 %v5453, %v5517
  %v5582 = vadd.f32 %v5454, %v5518
  %v5583 = vadd.f32 %v5455, %v5519
  %v5584 = vadd.f32 %v5456, %v5520
  %v5585 = vadd.f32 %v5457, %v5521
  %v5586 = vadd.f32 %v5458, %v5522
  %v5587 = vadd.f32 %v5459, %v5523
  %v5588 = vadd.f32 %v5460, %v5524
  %v5589 = vadd.f32 %v5461, %v5525
  %v5590 = vadd.f32 %v5462, %v5526
  %v5591 = vadd.f32 %v5463, %v5527
  %v5592 = vadd.f32 %v5464, %v5528
  %v5593 = vadd.f32 %v5465, %v5529
  %v5594 = vadd.f32 %v5466, %v5530
  %v5595 = vadd.f32 %v5467, %v5531
  %v5596 = vadd.f32 %v5468, %v5532
  %v5597 = vadd.f32 %v5469, %v5533
  %v5598 = vadd.f32 %v5470, %v5534
  %v5599 = vadd.f32 %v5471, %v5535
  %v5600 = vadd.f32 %v5472, %v5536
  %v5601 = vadd.f32 %v5473, %v5537
  %v5602 = vadd.f32 %v5474, %v5538
  %v5603 = vadd.f32 %v5475, %v5539
  %v5604 = vpack.c.bf16 %v5542, %v5540
  %v5605 = vpack.c.bf16 %v5543, %v5541
  %v5606 = vpack.c.bf16 %v5546, %v5544
  %v5607 = vpack.c.bf16 %v5547, %v5545
  %v5608 = vpack.c.bf16 %v5550, %v5548
  %v5609 = vpack.c.bf16 %v5551, %v5549
  %v5610 = vpack.c.bf16 %v5554, %v5552
  %v5611 = vpack.c.bf16 %v5555, %v5553
  %v5612 = vpack.c.bf16 %v5558, %v5556
  %v5613 = vpack.c.bf16 %v5559, %v5557
  %v5614 = vpack.c.bf16 %v5562, %v5560
  %v5615 = vpack.c.bf16 %v5563, %v5561
  %v5616 = vpack.c.bf16 %v5566, %v5564
  %v5617 = vpack.c.bf16 %v5567, %v5565
  %v5618 = vpack.c.bf16 %v5570, %v5568
  %v5619 = vpack.c.bf16 %v5571, %v5569
  %v5620 = vpack.c.bf16 %v5574, %v5572
  %v5621 = vpack.c.bf16 %v5575, %v5573
  %v5622 = vpack.c.bf16 %v5578, %v5576
  %v5623 = vpack.c.bf16 %v5579, %v5577
  %v5624 = vpack.c.bf16 %v5582, %v5580
  %v5625 = vpack.c.bf16 %v5583, %v5581
  %v5626 = vpack.c.bf16 %v5586, %v5584
  %v5627 = vpack.c.bf16 %v5587, %v5585
  %v5628 = vpack.c.bf16 %v5590, %v5588
  %v5629 = vpack.c.bf16 %v5591, %v5589
  %v5630 = vpack.c.bf16 %v5594, %v5592
  %v5631 = vpack.c.bf16 %v5595, %v5593
  %v5632 = vpack.c.bf16 %v5598, %v5596
  %v5633 = vpack.c.bf16 %v5599, %v5597
  %v5634 = vpack.c.bf16 %v5602, %v5600
  %v5635 = vpack.c.bf16 %v5603, %v5601
  %s5636 = scalar_lea.vmem %s6, 512
  %v5637 = vld [vmem:[%s5636] sm:$0xff]
  %v5638 = vld [vmem:[%s5636 + $0x8] sm:$0xff]
  %v5639 = vld [vmem:[%s5636 + $0x10] sm:$0xff]
  %v5640 = vld [vmem:[%s5636 + $0x18] sm:$0xff]
  %v5641 = vld [vmem:[%s5636 + $0x20] sm:$0xff]
  %v5642 = vld [vmem:[%s5636 + $0x28] sm:$0xff]
  %v5643 = vld [vmem:[%s5636 + $0x30] sm:$0xff]
  %v5644 = vld [vmem:[%s5636 + $0x38] sm:$0xff]
  %v5645 = vld [vmem:[%s5636 + $0x40] sm:$0xff]
  %v5646 = vld [vmem:[%s5636 + $0x48] sm:$0xff]
  %v5647 = vld [vmem:[%s5636 + $0x50] sm:$0xff]
  %v5648 = vld [vmem:[%s5636 + $0x58] sm:$0xff]
  %v5649 = vld [vmem:[%s5636 + $0x60] sm:$0xff]
  %v5650 = vld [vmem:[%s5636 + $0x68] sm:$0xff]
  %v5651 = vld [vmem:[%s5636 + $0x70] sm:$0xff]
  %v5652 = vld [vmem:[%s5636 + $0x78] sm:$0xff]
  %v5653 = vld [vmem:[%s5636 + $0x80] sm:$0xff]
  %v5654 = vld [vmem:[%s5636 + $0x88] sm:$0xff]
  %v5655 = vld [vmem:[%s5636 + $0x90] sm:$0xff]
  %v5656 = vld [vmem:[%s5636 + $0x98] sm:$0xff]
  %v5657 = vld [vmem:[%s5636 + $0xa0] sm:$0xff]
  %v5658 = vld [vmem:[%s5636 + $0xa8] sm:$0xff]
  %v5659 = vld [vmem:[%s5636 + $0xb0] sm:$0xff]
  %v5660 = vld [vmem:[%s5636 + $0xb8] sm:$0xff]
  %v5661 = vld [vmem:[%s5636 + $0xc0] sm:$0xff]
  %v5662 = vld [vmem:[%s5636 + $0xc8] sm:$0xff]
  %v5663 = vld [vmem:[%s5636 + $0xd0] sm:$0xff]
  %v5664 = vld [vmem:[%s5636 + $0xd8] sm:$0xff]
  %v5665 = vld [vmem:[%s5636 + $0xe0] sm:$0xff]
  %v5666 = vld [vmem:[%s5636 + $0xe8] sm:$0xff]
  %v5667 = vld [vmem:[%s5636 + $0xf0] sm:$0xff]
  %v5668 = vld [vmem:[%s5636 + $0xf8] sm:$0xff]
  %s5669 = scalar_lea.vmem %s7, 4
  %v5670 = vld [vmem:[%s5669] sm:$0x3]
  %v5672 = vlaneseq
  %v5673 = vshrl.u32 %v5672, 7
  %v5674 = vsub.s32 0, %v5673
  %v5675 = vrot.slane %v5670, %v5674
  %v5676 = vlaneseq
  %v5677 = vshrl.u32 %v5676, 7
  %v5678 = vsub.s32 1, %v5677
  %v5679 = vrot.slane %v5670, %v5678
  %v5714 = vunpack.c.l.b16 %v5637
  %v5715 = vunpack.c.h.b16 %v5637
  %v5716 = vunpack.c.l.b16 %v5638
  %v5717 = vunpack.c.h.b16 %v5638
  %v5718 = vunpack.c.l.b16 %v5639
  %v5719 = vunpack.c.h.b16 %v5639
  %v5720 = vunpack.c.l.b16 %v5640
  %v5721 = vunpack.c.h.b16 %v5640
  %v5722 = vunpack.c.l.b16 %v5641
  %v5723 = vunpack.c.h.b16 %v5641
  %v5724 = vunpack.c.l.b16 %v5642
  %v5725 = vunpack.c.h.b16 %v5642
  %v5726 = vunpack.c.l.b16 %v5643
  %v5727 = vunpack.c.h.b16 %v5643
  %v5728 = vunpack.c.l.b16 %v5644
  %v5729 = vunpack.c.h.b16 %v5644
  %v5730 = vunpack.c.l.b16 %v5645
  %v5731 = vunpack.c.h.b16 %v5645
  %v5732 = vunpack.c.l.b16 %v5646
  %v5733 = vunpack.c.h.b16 %v5646
  %v5734 = vunpack.c.l.b16 %v5647
  %v5735 = vunpack.c.h.b16 %v5647
  %v5736 = vunpack.c.l.b16 %v5648
  %v5737 = vunpack.c.h.b16 %v5648
  %v5738 = vunpack.c.l.b16 %v5649
  %v5739 = vunpack.c.h.b16 %v5649
  %v5740 = vunpack.c.l.b16 %v5650
  %v5741 = vunpack.c.h.b16 %v5650
  %v5742 = vunpack.c.l.b16 %v5651
  %v5743 = vunpack.c.h.b16 %v5651
  %v5744 = vunpack.c.l.b16 %v5652
  %v5745 = vunpack.c.h.b16 %v5652
  %v5746 = vunpack.c.l.b16 %v5653
  %v5747 = vunpack.c.h.b16 %v5653
  %v5748 = vunpack.c.l.b16 %v5654
  %v5749 = vunpack.c.h.b16 %v5654
  %v5750 = vunpack.c.l.b16 %v5655
  %v5751 = vunpack.c.h.b16 %v5655
  %v5752 = vunpack.c.l.b16 %v5656
  %v5753 = vunpack.c.h.b16 %v5656
  %v5754 = vunpack.c.l.b16 %v5657
  %v5755 = vunpack.c.h.b16 %v5657
  %v5756 = vunpack.c.l.b16 %v5658
  %v5757 = vunpack.c.h.b16 %v5658
  %v5758 = vunpack.c.l.b16 %v5659
  %v5759 = vunpack.c.h.b16 %v5659
  %v5760 = vunpack.c.l.b16 %v5660
  %v5761 = vunpack.c.h.b16 %v5660
  %v5762 = vunpack.c.l.b16 %v5661
  %v5763 = vunpack.c.h.b16 %v5661
  %v5764 = vunpack.c.l.b16 %v5662
  %v5765 = vunpack.c.h.b16 %v5662
  %v5766 = vunpack.c.l.b16 %v5663
  %v5767 = vunpack.c.h.b16 %v5663
  %v5768 = vunpack.c.l.b16 %v5664
  %v5769 = vunpack.c.h.b16 %v5664
  %v5770 = vunpack.c.l.b16 %v5665
  %v5771 = vunpack.c.h.b16 %v5665
  %v5772 = vunpack.c.l.b16 %v5666
  %v5773 = vunpack.c.h.b16 %v5666
  %v5774 = vunpack.c.l.b16 %v5667
  %v5775 = vunpack.c.h.b16 %v5667
  %v5776 = vunpack.c.l.b16 %v5668
  %v5777 = vunpack.c.h.b16 %v5668
  %v5778 = vpack.c.b16 %v5716, %v5714
  %v5779 = vpack.c.b16 %v5717, %v5715
  %v5780 = vpack.c.b16 %v5720, %v5718
  %v5781 = vpack.c.b16 %v5721, %v5719
  %v5782 = vpack.c.b16 %v5724, %v5722
  %v5783 = vpack.c.b16 %v5725, %v5723
  %v5784 = vpack.c.b16 %v5728, %v5726
  %v5785 = vpack.c.b16 %v5729, %v5727
  %v5786 = vpack.c.b16 %v5732, %v5730
  %v5787 = vpack.c.b16 %v5733, %v5731
  %v5788 = vpack.c.b16 %v5736, %v5734
  %v5789 = vpack.c.b16 %v5737, %v5735
  %v5790 = vpack.c.b16 %v5740, %v5738
  %v5791 = vpack.c.b16 %v5741, %v5739
  %v5792 = vpack.c.b16 %v5744, %v5742
  %v5793 = vpack.c.b16 %v5745, %v5743
  %v5794 = vpack.c.b16 %v5748, %v5746
  %v5795 = vpack.c.b16 %v5749, %v5747
  %v5796 = vpack.c.b16 %v5752, %v5750
  %v5797 = vpack.c.b16 %v5753, %v5751
  %v5798 = vpack.c.b16 %v5756, %v5754
  %v5799 = vpack.c.b16 %v5757, %v5755
  %v5800 = vpack.c.b16 %v5760, %v5758
  %v5801 = vpack.c.b16 %v5761, %v5759
  %v5802 = vpack.c.b16 %v5764, %v5762
  %v5803 = vpack.c.b16 %v5765, %v5763
  %v5804 = vpack.c.b16 %v5768, %v5766
  %v5805 = vpack.c.b16 %v5769, %v5767
  %v5806 = vpack.c.b16 %v5772, %v5770
  %v5807 = vpack.c.b16 %v5773, %v5771
  %v5808 = vpack.c.b16 %v5776, %v5774
  %v5809 = vpack.c.b16 %v5777, %v5775
  %5842 = vmatprep.subr.bf16.mxu0 %v5779
  %5843 = vmatpush1.bf16.msra.mxu0 %v5778
  %5844 = vmatprep.subr.bf16.mxu0 %v5781
  %5845 = vmatpush1.bf16.msra.mxu0 %v5780
  %5846 = vmatprep.subr.bf16.mxu0 %v5783
  %5847 = vmatpush1.bf16.msra.mxu0 %v5782
  %5848 = vmatprep.subr.bf16.mxu0 %v5785
  %5849 = vmatpush1.bf16.msra.mxu0 %v5784
  %5850 = vmatprep.subr.bf16.mxu0 %v5787
  %5851 = vmatpush1.bf16.msra.mxu0 %v5786
  %5852 = vmatprep.subr.bf16.mxu0 %v5789
  %5853 = vmatpush1.bf16.msra.mxu0 %v5788
  %5854 = vmatprep.subr.bf16.mxu0 %v5791
  %5855 = vmatpush1.bf16.msra.mxu0 %v5790
  %5856 = vmatprep.subr.bf16.mxu0 %v5793
  %5857 = vmatpush1.bf16.msra.mxu0 %v5792
  %5858 = vmatprep.subr.bf16.mxu0 %v5795
  %5859 = vmatpush1.bf16.msra.mxu0 %v5794
  %5860 = vmatprep.subr.bf16.mxu0 %v5797
  %5861 = vmatpush1.bf16.msra.mxu0 %v5796
  %5862 = vmatprep.subr.bf16.mxu0 %v5799
  %5863 = vmatpush1.bf16.msra.mxu0 %v5798
  %5864 = vmatprep.subr.bf16.mxu0 %v5801
  %5865 = vmatpush1.bf16.msra.mxu0 %v5800
  %5866 = vmatprep.subr.bf16.mxu0 %v5803
  %5867 = vmatpush1.bf16.msra.mxu0 %v5802
  %5868 = vmatprep.subr.bf16.mxu0 %v5805
  %5869 = vmatpush1.bf16.msra.mxu0 %v5804
  %5870 = vmatprep.subr.bf16.mxu0 %v5807
  %5871 = vmatpush1.bf16.msra.mxu0 %v5806
  %5872 = vmatprep.subr.bf16.mxu0 %v5809
  %5873 = vmatpush1.bf16.msra.mxu0 %v5808
  %5874 = vmatprep.mubr.bf16.mxu0 %v5605
  %5875 = vmatmul.mubr.bf16.gmra.mrb[0].mxu0 %v5604
  %v5876 = vpop.f32.mrb[0].mxu0
  %v5877 = vadd.f32 %v5675, %v5876
  %v5878 = vpop.f32.mrb[0].mxu0
  %v5879 = vadd.f32 %v5679, %v5878
  %v5880 = vpop.f32.mrb[0].mxu0
  %v5881 = vadd.f32 %v5675, %v5880
  %v5882 = vpop.f32.mrb[0].mxu0
  %v5883 = vadd.f32 %v5679, %v5882
  %5884 = vmatprep.mubr.bf16.mxu0 %v5607
  %5885 = vmatmul.mubr.bf16.gmra.mrb[0].mxu0 %v5606
  %v5886 = vpop.f32.mrb[0].mxu0
  %v5887 = vadd.f32 %v5675, %v5886
  %v5888 = vpop.f32.mrb[0].mxu0
  %v5889 = vadd.f32 %v5679, %v5888
  %v5890 = vpop.f32.mrb[0].mxu0
  %v5891 = vadd.f32 %v5675, %v5890
  %v5892 = vpop.f32.mrb[0].mxu0
  %v5893 = vadd.f32 %v5679, %v5892
  %5894 = vmatprep.mubr.bf16.mxu0 %v5609
  %5895 = vmatmul.mubr.bf16.gmra.mrb[0].mxu0 %v5608
  %v5896 = vpop.f32.mrb[0].mxu0
  %v5897 = vadd.f32 %v5675, %v5896
  %v5898 = vpop.f32.mrb[0].mxu0
  %v5899 = vadd.f32 %v5679, %v5898
  %v5900 = vpop.f32.mrb[0].mxu0
  %v5901 = vadd.f32 %v5675, %v5900
  %v5902 = vpop.f32.mrb[0].mxu0
  %v5903 = vadd.f32 %v5679, %v5902
  %5904 = vmatprep.mubr.bf16.mxu0 %v5611
  %5905 = vmatmul.mubr.bf16.gmra.mrb[0].mxu0 %v5610
  %v5906 = vpop.f32.mrb[0].mxu0
  %v5907 = vadd.f32 %v5675, %v5906
  %v5908 = vpop.f32.mrb[0].mxu0
  %v5909 = vadd.f32 %v5679, %v5908
  %v5910 = vpop.f32.mrb[0].mxu0
  %v5911 = vadd.f32 %v5675, %v5910
  %v5912 = vpop.f32.mrb[0].mxu0
  %v5913 = vadd.f32 %v5679, %v5912
  %5914 = vmatprep.mubr.bf16.mxu0 %v5613
  %5915 = vmatmul.mubr.bf16.gmra.mrb[0].mxu0 %v5612
  %v5916 = vpop.f32.mrb[0].mxu0
  %v5917 = vadd.f32 %v5675, %v5916
  %v5918 = vpop.f32.mrb[0].mxu0
  %v5919 = vadd.f32 %v5679, %v5918
  %v5920 = vpop.f32.mrb[0].mxu0
  %v5921 = vadd.f32 %v5675, %v5920
  %v5922 = vpop.f32.mrb[0].mxu0
  %v5923 = vadd.f32 %v5679, %v5922
  %5924 = vmatprep.mubr.bf16.mxu0 %v5615
  %5925 = vmatmul.mubr.bf16.gmra.mrb[0].mxu0 %v5614
  %v5926 = vpop.f32.mrb[0].mxu0
  %v5927 = vadd.f32 %v5675, %v5926
  %v5928 = vpop.f32.mrb[0].mxu0
  %v5929 = vadd.f32 %v5679, %v5928
  %v5930 = vpop.f32.mrb[0].mxu0
  %v5931 = vadd.f32 %v5675, %v5930
  %v5932 = vpop.f32.mrb[0].mxu0
  %v5933 = vadd.f32 %v5679, %v5932
  %5934 = vmatprep.mubr.bf16.mxu0 %v5617
  %5935 = vmatmul.mubr.bf16.gmra.mrb[0].mxu0 %v5616
  %v5936 = vpop.f32.mrb[0].mxu0
  %v5937 = vadd.f32 %v5675, %v5936
  %v5938 = vpop.f32.mrb[0].mxu0
  %v5939 = vadd.f32 %v5679, %v5938
  %v5940 = vpop.f32.mrb[0].mxu0
  %v5941 = vadd.f32 %v5675, %v5940
  %v5942 = vpop.f32.mrb[0].mxu0
  %v5943 = vadd.f32 %v5679, %v5942
  %5944 = vmatprep.mubr.bf16.mxu0 %v5619
  %5945 = vmatmul.mubr.bf16.gmra.mrb[0].mxu0 %v5618
  %v5946 = vpop.f32.mrb[0].mxu0
  %v5947 = vadd.f32 %v5675, %v5946
  %v5948 = vpop.f32.mrb[0].mxu0
  %v5949 = vadd.f32 %v5679, %v5948
  %v5950 = vpop.f32.mrb[0].mxu0
  %v5951 = vadd.f32 %v5675, %v5950
  %v5952 = vpop.f32.mrb[0].mxu0
  %v5953 = vadd.f32 %v5679, %v5952
  %5954 = vmatprep.mubr.bf16.mxu0 %v5621
  %5955 = vmatmul.mubr.bf16.gmra.mrb[0].mxu0 %v5620
  %v5956 = vpop.f32.mrb[0].mxu0
  %v5957 = vadd.f32 %v5675, %v5956
  %v5958 = vpop.f32.mrb[0].mxu0
  %v5959 = vadd.f32 %v5679, %v5958
  %v5960 = vpop.f32.mrb[0].mxu0
  %v5961 = vadd.f32 %v5675, %v5960
  %v5962 = vpop.f32.mrb[0].mxu0
  %v5963 = vadd.f32 %v5679, %v5962
  %5964 = vmatprep.mubr.bf16.mxu0 %v5623
  %5965 = vmatmul.mubr.bf16.gmra.mrb[0].mxu0 %v5622
  %v5966 = vpop.f32.mrb[0].mxu0
  %v5967 = vadd.f32 %v5675, %v5966
  %v5968 = vpop.f32.mrb[0].mxu0
  %v5969 = vadd.f32 %v5679, %v5968
  %v5970 = vpop.f32.mrb[0].mxu0
  %v5971 = vadd.f32 %v5675, %v5970
  %v5972 = vpop.f32.mrb[0].mxu0
  %v5973 = vadd.f32 %v5679, %v5972
  %5974 = vmatprep.mubr.bf16.mxu0 %v5625
  %5975 = vmatmul.mubr.bf16.gmra.mrb[0].mxu0 %v5624
  %v5976 = vpop.f32.mrb[0].mxu0
  %v5977 = vadd.f32 %v5675, %v5976
  %v5978 = vpop.f32.mrb[0].mxu0
  %v5979 = vadd.f32 %v5679, %v5978
  %v5980 = vpop.f32.mrb[0].mxu0
  %v5981 = vadd.f32 %v5675, %v5980
  %v5982 = vpop.f32.mrb[0].mxu0
  %v5983 = vadd.f32 %v5679, %v5982
  %5984 = vmatprep.mubr.bf16.mxu0 %v5627
  %5985 = vmatmul.mubr.bf16.gmra.mrb[0].mxu0 %v5626
  %v5986 = vpop.f32.mrb[0].mxu0
  %v5987 = vadd.f32 %v5675, %v5986
  %v5988 = vpop.f32.mrb[0].mxu0
  %v5989 = vadd.f32 %v5679, %v5988
  %v5990 = vpop.f32.mrb[0].mxu0
  %v5991 = vadd.f32 %v5675, %v5990
  %v5992 = vpop.f32.mrb[0].mxu0
  %v5993 = vadd.f32 %v5679, %v5992
  %5994 = vmatprep.mubr.bf16.mxu0 %v5629
  %5995 = vmatmul.mubr.bf16.gmra.mrb[0].mxu0 %v5628
  %v5996 = vpop.f32.mrb[0].mxu0
  %v5997 = vadd.f32 %v5675, %v5996
  %v5998 = vpop.f32.mrb[0].mxu0
  %v5999 = vadd.f32 %v5679, %v5998
  %v6000 = vpop.f32.mrb[0].mxu0
  %v6001 = vadd.f32 %v5675, %v6000
  %v6002 = vpop.f32.mrb[0].mxu0
  %v6003 = vadd.f32 %v5679, %v6002
  %6004 = vmatprep.mubr.bf16.mxu0 %v5631
  %6005 = vmatmul.mubr.bf16.gmra.mrb[0].mxu0 %v5630
  %v6006 = vpop.f32.mrb[0].mxu0
  %v6007 = vadd.f32 %v5675, %v6006
  %v6008 = vpop.f32.mrb[0].mxu0
  %v6009 = vadd.f32 %v5679, %v6008
  %v6010 = vpop.f32.mrb[0].mxu0
  %v6011 = vadd.f32 %v5675, %v6010
  %v6012 = vpop.f32.mrb[0].mxu0
  %v6013 = vadd.f32 %v5679, %v6012
  %6014 = vmatprep.mubr.bf16.mxu0 %v5633
  %6015 = vmatmul.mubr.bf16.gmra.mrb[0].mxu0 %v5632
  %v6016 = vpop.f32.mrb[0].mxu0
  %v6017 = vadd.f32 %v5675, %v6016
  %v6018 = vpop.f32.mrb[0].mxu0
  %v6019 = vadd.f32 %v5679, %v6018
  %v6020 = vpop.f32.mrb[0].mxu0
  %v6021 = vadd.f32 %v5675, %v6020
  %v6022 = vpop.f32.mrb[0].mxu0
  %v6023 = vadd.f32 %v5679, %v6022
  %6024 = vmatprep.mubr.bf16.mxu0 %v5635
  %6025 = vmatmul.mubr.bf16.gmra.mrb[0].mxu0 %v5634
  %v6026 = vpop.f32.mrb[0].mxu0
  %v6027 = vadd.f32 %v5675, %v6026
  %v6028 = vpop.f32.mrb[0].mxu0
  %v6029 = vadd.f32 %v5679, %v6028
  %v6030 = vpop.f32.mrb[0].mxu0
  %v6031 = vadd.f32 %v5675, %v6030
  %v6032 = vpop.f32.mrb[0].mxu0
  %v6033 = vadd.f32 %v5679, %v6032
  %6034 = vdwg.mxu0
  %v6035 = vmax.f32 %v5877, 0.0
  %v6036 = vmax.f32 %v5879, 0.0
  %v6037 = vmax.f32 %v5881, 0.0
  %v6038 = vmax.f32 %v5883, 0.0
  %v6039 = vmax.f32 %v5887, 0.0
  %v6040 = vmax.f32 %v5889, 0.0
  %v6041 = vmax.f32 %v5891, 0.0
  %v6042 = vmax.f32 %v5893, 0.0
  %v6043 = vmax.f32 %v5897, 0.0
  %v6044 = vmax.f32 %v5899, 0.0
  %v6045 = vmax.f32 %v5901, 0.0
  %v6046 = vmax.f32 %v5903, 0.0
  %v6047 = vmax.f32 %v5907, 0.0
  %v6048 = vmax.f32 %v5909, 0.0
  %v6049 = vmax.f32 %v5911, 0.0
  %v6050 = vmax.f32 %v5913, 0.0
  %v6051 = vmax.f32 %v5917, 0.0
  %v6052 = vmax.f32 %v5919, 0.0
  %v6053 = vmax.f32 %v5921, 0.0
  %v6054 = vmax.f32 %v5923, 0.0
  %v6055 = vmax.f32 %v5927, 0.0
  %v6056 = vmax.f32 %v5929, 0.0
  %v6057 = vmax.f32 %v5931, 0.0
  %v6058 = vmax.f32 %v5933, 0.0
  %v6059 = vmax.f32 %v5937, 0.0
  %v6060 = vmax.f32 %v5939, 0.0
  %v6061 = vmax.f32 %v5941, 0.0
  %v6062 = vmax.f32 %v5943, 0.0
  %v6063 = vmax.f32 %v5947, 0.0
  %v6064 = vmax.f32 %v5949, 0.0
  %v6065 = vmax.f32 %v5951, 0.0
  %v6066 = vmax.f32 %v5953, 0.0
  %v6067 = vmax.f32 %v5957, 0.0
  %v6068 = vmax.f32 %v5959, 0.0
  %v6069 = vmax.f32 %v5961, 0.0
  %v6070 = vmax.f32 %v5963, 0.0
  %v6071 = vmax.f32 %v5967, 0.0
  %v6072 = vmax.f32 %v5969, 0.0
  %v6073 = vmax.f32 %v5971, 0.0
  %v6074 = vmax.f32 %v5973, 0.0
  %v6075 = vmax.f32 %v5977, 0.0
  %v6076 = vmax.f32 %v5979, 0.0
  %v6077 = vmax.f32 %v5981, 0.0
  %v6078 = vmax.f32 %v5983, 0.0
  %v6079 = vmax.f32 %v5987, 0.0
  %v6080 = vmax.f32 %v5989, 0.0
  %v6081 = vmax.f32 %v5991, 0.0
  %v6082 = vmax.f32 %v5993, 0.0
  %v6083 = vmax.f32 %v5997, 0.0
  %v6084 = vmax.f32 %v5999, 0.0
  %v6085 = vmax.f32 %v6001, 0.0
  %v6086 = vmax.f32 %v6003, 0.0
  %v6087 = vmax.f32 %v6007, 0.0
  %v6088 = vmax.f32 %v6009, 0.0
  %v6089 = vmax.f32 %v6011, 0.0
  %v6090 = vmax.f32 %v6013, 0.0
  %v6091 = vmax.f32 %v6017, 0.0
  %v6092 = vmax.f32 %v6019, 0.0
  %v6093 = vmax.f32 %v6021, 0.0
  %v6094 = vmax.f32 %v6023, 0.0
  %v6095 = vmax.f32 %v6027, 0.0
  %v6096 = vmax.f32 %v6029, 0.0
  %v6097 = vmax.f32 %v6031, 0.0
  %v6098 = vmax.f32 %v6033, 0.0
  %v6099 = vpack.c.bf16 %v6037, %v6035
  %v6100 = vpack.c.bf16 %v6038, %v6036
  %v6101 = vpack.c.bf16 %v6041, %v6039
  %v6102 = vpack.c.bf16 %v6042, %v6040
  %v6103 = vpack.c.bf16 %v6045, %v6043
  %v6104 = vpack.c.bf16 %v6046, %v6044
  %v6105 = vpack.c.bf16 %v6049, %v6047
  %v6106 = vpack.c.bf16 %v6050, %v6048
  %v6107 = vpack.c.bf16 %v6053, %v6051
  %v6108 = vpack.c.bf16 %v6054, %v6052
  %v6109 = vpack.c.bf16 %v6057, %v6055
  %v6110 = vpack.c.bf16 %v6058, %v6056
  %v6111 = vpack.c.bf16 %v6061, %v6059
  %v6112 = vpack.c.bf16 %v6062, %v6060
  %v6113 = vpack.c.bf16 %v6065, %v6063
  %v6114 = vpack.c.bf16 %v6066, %v6064
  %v6115 = vpack.c.bf16 %v6069, %v6067
  %v6116 = vpack.c.bf16 %v6070, %v6068
  %v6117 = vpack.c.bf16 %v6073, %v6071
  %v6118 = vpack.c.bf16 %v6074, %v6072
  %v6119 = vpack.c.bf16 %v6077, %v6075
  %v6120 = vpack.c.bf16 %v6078, %v6076
  %v6121 = vpack.c.bf16 %v6081, %v6079
  %v6122 = vpack.c.bf16 %v6082, %v6080
  %v6123 = vpack.c.bf16 %v6085, %v6083
  %v6124 = vpack.c.bf16 %v6086, %v6084
  %v6125 = vpack.c.bf16 %v6089, %v6087
  %v6126 = vpack.c.bf16 %v6090, %v6088
  %v6127 = vpack.c.bf16 %v6093, %v6091
  %v6128 = vpack.c.bf16 %v6094, %v6092
  %v6129 = vpack.c.bf16 %v6097, %v6095
  %v6130 = vpack.c.bf16 %v6098, %v6096
  %s6131 = scalar_lea.vmem %s8, 512
  %v6132 = vld [vmem:[%s6131] sm:$0xff]
  %v6133 = vld [vmem:[%s6131 + $0x8] sm:$0xff]
  %v6134 = vld [vmem:[%s6131 + $0x10] sm:$0xff]
  %v6135 = vld [vmem:[%s6131 + $0x18] sm:$0xff]
  %v6136 = vld [vmem:[%s6131 + $0x20] sm:$0xff]
  %v6137 = vld [vmem:[%s6131 + $0x28] sm:$0xff]
  %v6138 = vld [vmem:[%s6131 + $0x30] sm:$0xff]
  %v6139 = vld [vmem:[%s6131 + $0x38] sm:$0xff]
  %v6140 = vld [vmem:[%s6131 + $0x40] sm:$0xff]
  %v6141 = vld [vmem:[%s6131 + $0x48] sm:$0xff]
  %v6142 = vld [vmem:[%s6131 + $0x50] sm:$0xff]
  %v6143 = vld [vmem:[%s6131 + $0x58] sm:$0xff]
  %v6144 = vld [vmem:[%s6131 + $0x60] sm:$0xff]
  %v6145 = vld [vmem:[%s6131 + $0x68] sm:$0xff]
  %v6146 = vld [vmem:[%s6131 + $0x70] sm:$0xff]
  %v6147 = vld [vmem:[%s6131 + $0x78] sm:$0xff]
  %v6148 = vld [vmem:[%s6131 + $0x80] sm:$0xff]
  %v6149 = vld [vmem:[%s6131 + $0x88] sm:$0xff]
  %v6150 = vld [vmem:[%s6131 + $0x90] sm:$0xff]
  %v6151 = vld [vmem:[%s6131 + $0x98] sm:$0xff]
  %v6152 = vld [vmem:[%s6131 + $0xa0] sm:$0xff]
  %v6153 = vld [vmem:[%s6131 + $0xa8] sm:$0xff]
  %v6154 = vld [vmem:[%s6131 + $0xb0] sm:$0xff]
  %v6155 = vld [vmem:[%s6131 + $0xb8] sm:$0xff]
  %v6156 = vld [vmem:[%s6131 + $0xc0] sm:$0xff]
  %v6157 = vld [vmem:[%s6131 + $0xc8] sm:$0xff]
  %v6158 = vld [vmem:[%s6131 + $0xd0] sm:$0xff]
  %v6159 = vld [vmem:[%s6131 + $0xd8] sm:$0xff]
  %v6160 = vld [vmem:[%s6131 + $0xe0] sm:$0xff]
  %v6161 = vld [vmem:[%s6131 + $0xe8] sm:$0xff]
  %v6162 = vld [vmem:[%s6131 + $0xf0] sm:$0xff]
  %v6163 = vld [vmem:[%s6131 + $0xf8] sm:$0xff]
  %s6164 = scalar_lea.vmem %s9, 4
  %v6165 = vld [vmem:[%s6164] sm:$0x3]
  %v6167 = vlaneseq
  %v6168 = vshrl.u32 %v6167, 7
  %v6169 = vsub.s32 0, %v6168
  %v6170 = vrot.slane %v6165, %v6169
  %v6171 = vlaneseq
  %v6172 = vshrl.u32 %v6171, 7
  %v6173 = vsub.s32 1, %v6172
  %v6174 = vrot.slane %v6165, %v6173
  %v6209 = vunpack.c.l.b16 %v6132
  %v6210 = vunpack.c.h.b16 %v6132
  %v6211 = vunpack.c.l.b16 %v6133
  %v6212 = vunpack.c.h.b16 %v6133
  %v6213 = vunpack.c.l.b16 %v6134
  %v6214 = vunpack.c.h.b16 %v6134
  %v6215 = vunpack.c.l.b16 %v6135
  %v6216 = vunpack.c.h.b16 %v6135
  %v6217 = vunpack.c.l.b16 %v6136
  %v6218 = vunpack.c.h.b16 %v6136
  %v6219 = vunpack.c.l.b16 %v6137
  %v6220 = vunpack.c.h.b16 %v6137
  %v6221 = vunpack.c.l.b16 %v6138
  %v6222 = vunpack.c.h.b16 %v6138
  %v6223 = vunpack.c.l.b16 %v6139
  %v6224 = vunpack.c.h.b16 %v6139
  %v6225 = vunpack.c.l.b16 %v6140
  %v6226 = vunpack.c.h.b16 %v6140
  %v6227 = vunpack.c.l.b16 %v6141
  %v6228 = vunpack.c.h.b16 %v6141
  %v6229 = vunpack.c.l.b16 %v6142
  %v6230 = vunpack.c.h.b16 %v6142
  %v6231 = vunpack.c.l.b16 %v6143
  %v6232 = vunpack.c.h.b16 %v6143
  %v6233 = vunpack.c.l.b16 %v6144
  %v6234 = vunpack.c.h.b16 %v6144
  %v6235 = vunpack.c.l.b16 %v6145
  %v6236 = vunpack.c.h.b16 %v6145
  %v6237 = vunpack.c.l.b16 %v6146
  %v6238 = vunpack.c.h.b16 %v6146
  %v6239 = vunpack.c.l.b16 %v6147
  %v6240 = vunpack.c.h.b16 %v6147
  %v6241 = vunpack.c.l.b16 %v6148
  %v6242 = vunpack.c.h.b16 %v6148
  %v6243 = vunpack.c.l.b16 %v6149
  %v6244 = vunpack.c.h.b16 %v6149
  %v6245 = vunpack.c.l.b16 %v6150
  %v6246 = vunpack.c.h.b16 %v6150
  %v6247 = vunpack.c.l.b16 %v6151
  %v6248 = vunpack.c.h.b16 %v6151
  %v6249 = vunpack.c.l.b16 %v6152
  %v6250 = vunpack.c.h.b16 %v6152
  %v6251 = vunpack.c.l.b16 %v6153
  %v6252 = vunpack.c.h.b16 %v6153
  %v6253 = vunpack.c.l.b16 %v6154
  %v6254 = vunpack.c.h.b16 %v6154
  %v6255 = vunpack.c.l.b16 %v6155
  %v6256 = vunpack.c.h.b16 %v6155
  %v6257 = vunpack.c.l.b16 %v6156
  %v6258 = vunpack.c.h.b16 %v6156
  %v6259 = vunpack.c.l.b16 %v6157
  %v6260 = vunpack.c.h.b16 %v6157
  %v6261 = vunpack.c.l.b16 %v6158
  %v6262 = vunpack.c.h.b16 %v6158
  %v6263 = vunpack.c.l.b16 %v6159
  %v6264 = vunpack.c.h.b16 %v6159
  %v6265 = vunpack.c.l.b16 %v6160
  %v6266 = vunpack.c.h.b16 %v6160
  %v6267 = vunpack.c.l.b16 %v6161
  %v6268 = vunpack.c.h.b16 %v6161
  %v6269 = vunpack.c.l.b16 %v6162
  %v6270 = vunpack.c.h.b16 %v6162
  %v6271 = vunpack.c.l.b16 %v6163
  %v6272 = vunpack.c.h.b16 %v6163
  %v6273 = vpack.c.b16 %v6211, %v6209
  %v6274 = vpack.c.b16 %v6212, %v6210
  %v6275 = vpack.c.b16 %v6215, %v6213
  %v6276 = vpack.c.b16 %v6216, %v6214
  %v6277 = vpack.c.b16 %v6219, %v6217
  %v6278 = vpack.c.b16 %v6220, %v6218
  %v6279 = vpack.c.b16 %v6223, %v6221
  %v6280 = vpack.c.b16 %v6224, %v6222
  %v6281 = vpack.c.b16 %v6227, %v6225
  %v6282 = vpack.c.b16 %v6228, %v6226
  %v6283 = vpack.c.b16 %v6231, %v6229
  %v6284 = vpack.c.b16 %v6232, %v6230
  %v6285 = vpack.c.b16 %v6235, %v6233
  %v6286 = vpack.c.b16 %v6236, %v6234
  %v6287 = vpack.c.b16 %v6239, %v6237
  %v6288 = vpack.c.b16 %v6240, %v6238
  %v6289 = vpack.c.b16 %v6243, %v6241
  %v6290 = vpack.c.b16 %v6244, %v6242
  %v6291 = vpack.c.b16 %v6247, %v6245
  %v6292 = vpack.c.b16 %v6248, %v6246
  %v6293 = vpack.c.b16 %v6251, %v6249
  %v6294 = vpack.c.b16 %v6252, %v6250
  %v6295 = vpack.c.b16 %v6255, %v6253
  %v6296 = vpack.c.b16 %v6256, %v6254
  %v6297 = vpack.c.b16 %v6259, %v6257
  %v6298 = vpack.c.b16 %v6260, %v6258
  %v6299 = vpack.c.b16 %v6263, %v6261
  %v6300 = vpack.c.b16 %v6264, %v6262
  %v6301 = vpack.c.b16 %v6267, %v6265
  %v6302 = vpack.c.b16 %v6268, %v6266
  %v6303 = vpack.c.b16 %v6271, %v6269
  %v6304 = vpack.c.b16 %v6272, %v6270
  %6337 = vmatprep.subr.bf16.mxu0 %v6274
  %6338 = vmatpush1.bf16.msra.mxu0 %v6273
  %6339 = vmatprep.subr.bf16.mxu0 %v6276
  %6340 = vmatpush1.bf16.msra.mxu0 %v6275
  %6341 = vmatprep.subr.bf16.mxu0 %v6278
  %6342 = vmatpush1.bf16.msra.mxu0 %v6277
  %6343 = vmatprep.subr.bf16.mxu0 %v6280
  %6344 = vmatpush1.bf16.msra.mxu0 %v6279
  %6345 = vmatprep.subr.bf16.mxu0 %v6282
  %6346 = vmatpush1.bf16.msra.mxu0 %v6281
  %6347 = vmatprep.subr.bf16.mxu0 %v6284
  %6348 = vmatpush1.bf16.msra.mxu0 %v6283
  %6349 = vmatprep.subr.bf16.mxu0 %v6286
  %6350 = vmatpush1.bf16.msra.mxu0 %v6285
  %6351 = vmatprep.subr.bf16.mxu0 %v6288
  %6352 = vmatpush1.bf16.msra.mxu0 %v6287
  %6353 = vmatprep.subr.bf16.mxu0 %v6290
  %6354 = vmatpush1.bf16.msra.mxu0 %v6289
  %6355 = vmatprep.subr.bf16.mxu0 %v6292
  %6356 = vmatpush1.bf16.msra.mxu0 %v6291
  %6357 = vmatprep.subr.bf16.mxu0 %v6294
  %6358 = vmatpush1.bf16.msra.mxu0 %v6293
  %6359 = vmatprep.subr.bf16.mxu0 %v6296
  %6360 = vmatpush1.bf16.msra.mxu0 %v6295
  %6361 = vmatprep.subr.bf16.mxu0 %v6298
  %6362 = vmatpush1.bf16.msra.mxu0 %v6297
  %6363 = vmatprep.subr.bf16.mxu0 %v6300
  %6364 = vmatpush1.bf16.msra.mxu0 %v6299
  %6365 = vmatprep.subr.bf16.mxu0 %v6302
  %6366 = vmatpush1.bf16.msra.mxu0 %v6301
  %6367 = vmatprep.subr.bf16.mxu0 %v6304
  %6368 = vmatpush1.bf16.msra.mxu0 %v6303
  %6369 = vmatprep.mubr.bf16.mxu0 %v6100
  %6370 = vmatmul.mubr.bf16.gmra.mrb[0].mxu0 %v6099
  %v6371 = vpop.f32.mrb[0].mxu0
  %v6372 = vadd.f32 %v6170, %v6371
  %v6373 = vpop.f32.mrb[0].mxu0
  %v6374 = vadd.f32 %v6174, %v6373
  %v6375 = vpop.f32.mrb[0].mxu0
  %v6376 = vadd.f32 %v6170, %v6375
  %v6377 = vpop.f32.mrb[0].mxu0
  %v6378 = vadd.f32 %v6174, %v6377
  %6379 = vmatprep.mubr.bf16.mxu0 %v6102
  %6380 = vmatmul.mubr.bf16.gmra.mrb[0].mxu0 %v6101
  %v6381 = vpop.f32.mrb[0].mxu0
  %v6382 = vadd.f32 %v6170, %v6381
  %v6383 = vpop.f32.mrb[0].mxu0
  %v6384 = vadd.f32 %v6174, %v6383
  %v6385 = vpop.f32.mrb[0].mxu0
  %v6386 = vadd.f32 %v6170, %v6385
  %v6387 = vpop.f32.mrb[0].mxu0
  %v6388 = vadd.f32 %v6174, %v6387
  %6389 = vmatprep.mubr.bf16.mxu0 %v6104
  %6390 = vmatmul.mubr.bf16.gmra.mrb[0].mxu0 %v6103
  %v6391 = vpop.f32.mrb[0].mxu0
  %v6392 = vadd.f32 %v6170, %v6391
  %v6393 = vpop.f32.mrb[0].mxu0
  %v6394 = vadd.f32 %v6174, %v6393
  %v6395 = vpop.f32.mrb[0].mxu0
  %v6396 = vadd.f32 %v6170, %v6395
  %v6397 = vpop.f32.mrb[0].mxu0
  %v6398 = vadd.f32 %v6174, %v6397
  %6399 = vmatprep.mubr.bf16.mxu0 %v6106
  %6400 = vmatmul.mubr.bf16.gmra.mrb[0].mxu0 %v6105
  %v6401 = vpop.f32.mrb[0].mxu0
  %v6402 = vadd.f32 %v6170, %v6401
  %v6403 = vpop.f32.mrb[0].mxu0
  %v6404 = vadd.f32 %v6174, %v6403
  %v6405 = vpop.f32.mrb[0].mxu0
  %v6406 = vadd.f32 %v6170, %v6405
  %v6407 = vpop.f32.mrb[0].mxu0
  %v6408 = vadd.f32 %v6174, %v6407
  %6409 = vmatprep.mubr.bf16.mxu0 %v6108
  %6410 = vmatmul.mubr.bf16.gmra.mrb[0].mxu0 %v6107
  %v6411 = vpop.f32.mrb[0].mxu0
  %v6412 = vadd.f32 %v6170, %v6411
  %v6413 = vpop.f32.mrb[0].mxu0
  %v6414 = vadd.f32 %v6174, %v6413
  %v6415 = vpop.f32.mrb[0].mxu0
  %v6416 = vadd.f32 %v6170, %v6415
  %v6417 = vpop.f32.mrb[0].mxu0
  %v6418 = vadd.f32 %v6174, %v6417
  %6419 = vmatprep.mubr.bf16.mxu0 %v6110
  %6420 = vmatmul.mubr.bf16.gmra.mrb[0].mxu0 %v6109
  %v6421 = vpop.f32.mrb[0].mxu0
  %v6422 = vadd.f32 %v6170, %v6421
  %v6423 = vpop.f32.mrb[0].mxu0
  %v6424 = vadd.f32 %v6174, %v6423
  %v6425 = vpop.f32.mrb[0].mxu0
  %v6426 = vadd.f32 %v6170, %v6425
  %v6427 = vpop.f32.mrb[0].mxu0
  %v6428 = vadd.f32 %v6174, %v6427
  %6429 = vmatprep.mubr.bf16.mxu0 %v6112
  %6430 = vmatmul.mubr.bf16.gmra.mrb[0].mxu0 %v6111
  %v6431 = vpop.f32.mrb[0].mxu0
  %v6432 = vadd.f32 %v6170, %v6431
  %v6433 = vpop.f32.mrb[0].mxu0
  %v6434 = vadd.f32 %v6174, %v6433
  %v6435 = vpop.f32.mrb[0].mxu0
  %v6436 = vadd.f32 %v6170, %v6435
  %v6437 = vpop.f32.mrb[0].mxu0
  %v6438 = vadd.f32 %v6174, %v6437
  %6439 = vmatprep.mubr.bf16.mxu0 %v6114
  %6440 = vmatmul.mubr.bf16.gmra.mrb[0].mxu0 %v6113
  %v6441 = vpop.f32.mrb[0].mxu0
  %v6442 = vadd.f32 %v6170, %v6441
  %v6443 = vpop.f32.mrb[0].mxu0
  %v6444 = vadd.f32 %v6174, %v6443
  %v6445 = vpop.f32.mrb[0].mxu0
  %v6446 = vadd.f32 %v6170, %v6445
  %v6447 = vpop.f32.mrb[0].mxu0
  %v6448 = vadd.f32 %v6174, %v6447
  %6449 = vmatprep.mubr.bf16.mxu0 %v6116
  %6450 = vmatmul.mubr.bf16.gmra.mrb[0].mxu0 %v6115
  %v6451 = vpop.f32.mrb[0].mxu0
  %v6452 = vadd.f32 %v6170, %v6451
  %v6453 = vpop.f32.mrb[0].mxu0
  %v6454 = vadd.f32 %v6174, %v6453
  %v6455 = vpop.f32.mrb[0].mxu0
  %v6456 = vadd.f32 %v6170, %v6455
  %v6457 = vpop.f32.mrb[0].mxu0
  %v6458 = vadd.f32 %v6174, %v6457
  %6459 = vmatprep.mubr.bf16.mxu0 %v6118
  %6460 = vmatmul.mubr.bf16.gmra.mrb[0].mxu0 %v6117
  %v6461 = vpop.f32.mrb[0].mxu0
  %v6462 = vadd.f32 %v6170, %v6461
  %v6463 = vpop.f32.mrb[0].mxu0
  %v6464 = vadd.f32 %v6174, %v6463
  %v6465 = vpop.f32.mrb[0].mxu0
  %v6466 = vadd.f32 %v6170, %v6465
  %v6467 = vpop.f32.mrb[0].mxu0
  %v6468 = vadd.f32 %v6174, %v6467
  %6469 = vmatprep.mubr.bf16.mxu0 %v6120
  %6470 = vmatmul.mubr.bf16.gmra.mrb[0].mxu0 %v6119
  %v6471 = vpop.f32.mrb[0].mxu0
  %v6472 = vadd.f32 %v6170, %v6471
  %v6473 = vpop.f32.mrb[0].mxu0
  %v6474 = vadd.f32 %v6174, %v6473
  %v6475 = vpop.f32.mrb[0].mxu0
  %v6476 = vadd.f32 %v6170, %v6475
  %v6477 = vpop.f32.mrb[0].mxu0
  %v6478 = vadd.f32 %v6174, %v6477
  %6479 = vmatprep.mubr.bf16.mxu0 %v6122
  %6480 = vmatmul.mubr.bf16.gmra.mrb[0].mxu0 %v6121
  %v6481 = vpop.f32.mrb[0].mxu0
  %v6482 = vadd.f32 %v6170, %v6481
  %v6483 = vpop.f32.mrb[0].mxu0
  %v6484 = vadd.f32 %v6174, %v6483
  %v6485 = vpop.f32.mrb[0].mxu0
  %v6486 = vadd.f32 %v6170, %v6485
  %v6487 = vpop.f32.mrb[0].mxu0
  %v6488 = vadd.f32 %v6174, %v6487
  %6489 = vmatprep.mubr.bf16.mxu0 %v6124
  %6490 = vmatmul.mubr.bf16.gmra.mrb[0].mxu0 %v6123
  %v6491 = vpop.f32.mrb[0].mxu0
  %v6492 = vadd.f32 %v6170, %v6491
  %v6493 = vpop.f32.mrb[0].mxu0
  %v6494 = vadd.f32 %v6174, %v6493
  %v6495 = vpop.f32.mrb[0].mxu0
  %v6496 = vadd.f32 %v6170, %v6495
  %v6497 = vpop.f32.mrb[0].mxu0
  %v6498 = vadd.f32 %v6174, %v6497
  %6499 = vmatprep.mubr.bf16.mxu0 %v6126
  %6500 = vmatmul.mubr.bf16.gmra.mrb[0].mxu0 %v6125
  %v6501 = vpop.f32.mrb[0].mxu0
  %v6502 = vadd.f32 %v6170, %v6501
  %v6503 = vpop.f32.mrb[0].mxu0
  %v6504 = vadd.f32 %v6174, %v6503
  %v6505 = vpop.f32.mrb[0].mxu0
  %v6506 = vadd.f32 %v6170, %v6505
  %v6507 = vpop.f32.mrb[0].mxu0
  %v6508 = vadd.f32 %v6174, %v6507
  %6509 = vmatprep.mubr.bf16.mxu0 %v6128
  %6510 = vmatmul.mubr.bf16.gmra.mrb[0].mxu0 %v6127
  %v6511 = vpop.f32.mrb[0].mxu0
  %v6512 = vadd.f32 %v6170, %v6511
  %v6513 = vpop.f32.mrb[0].mxu0
  %v6514 = vadd.f32 %v6174, %v6513
  %v6515 = vpop.f32.mrb[0].mxu0
  %v6516 = vadd.f32 %v6170, %v6515
  %v6517 = vpop.f32.mrb[0].mxu0
  %v6518 = vadd.f32 %v6174, %v6517
  %6519 = vmatprep.mubr.bf16.mxu0 %v6130
  %6520 = vmatmul.mubr.bf16.gmra.mrb[0].mxu0 %v6129
  %v6521 = vpop.f32.mrb[0].mxu0
  %v6522 = vadd.f32 %v6170, %v6521
  %v6523 = vpop.f32.mrb[0].mxu0
  %v6524 = vadd.f32 %v6174, %v6523
  %v6525 = vpop.f32.mrb[0].mxu0
  %v6526 = vadd.f32 %v6170, %v6525
  %v6527 = vpop.f32.mrb[0].mxu0
  %v6528 = vadd.f32 %v6174, %v6527
  %6529 = vdwg.mxu0
  %v6530 = vmax.f32 %v6372, 0.0
  %v6531 = vmax.f32 %v6374, 0.0
  %v6532 = vmax.f32 %v6376, 0.0
  %v6533 = vmax.f32 %v6378, 0.0
  %v6534 = vmax.f32 %v6382, 0.0
  %v6535 = vmax.f32 %v6384, 0.0
  %v6536 = vmax.f32 %v6386, 0.0
  %v6537 = vmax.f32 %v6388, 0.0
  %v6538 = vmax.f32 %v6392, 0.0
  %v6539 = vmax.f32 %v6394, 0.0
  %v6540 = vmax.f32 %v6396, 0.0
  %v6541 = vmax.f32 %v6398, 0.0
  %v6542 = vmax.f32 %v6402, 0.0
  %v6543 = vmax.f32 %v6404, 0.0
  %v6544 = vmax.f32 %v6406, 0.0
  %v6545 = vmax.f32 %v6408, 0.0
  %v6546 = vmax.f32 %v6412, 0.0
  %v6547 = vmax.f32 %v6414, 0.0
  %v6548 = vmax.f32 %v6416, 0.0
  %v6549 = vmax.f32 %v6418, 0.0
  %v6550 = vmax.f32 %v6422, 0.0
  %v6551 = vmax.f32 %v6424, 0.0
  %v6552 = vmax.f32 %v6426, 0.0
  %v6553 = vmax.f32 %v6428, 0.0
  %v6554 = vmax.f32 %v6432, 0.0
  %v6555 = vmax.f32 %v6434, 0.0
  %v6556 = vmax.f32 %v6436, 0.0
  %v6557 = vmax.f32 %v6438, 0.0
  %v6558 = vmax.f32 %v6442, 0.0
  %v6559 = vmax.f32 %v6444, 0.0
  %v6560 = vmax.f32 %v6446, 0.0
  %v6561 = vmax.f32 %v6448, 0.0
  %v6562 = vmax.f32 %v6452, 0.0
  %v6563 = vmax.f32 %v6454, 0.0
  %v6564 = vmax.f32 %v6456, 0.0
  %v6565 = vmax.f32 %v6458, 0.0
  %v6566 = vmax.f32 %v6462, 0.0
  %v6567 = vmax.f32 %v6464, 0.0
  %v6568 = vmax.f32 %v6466, 0.0
  %v6569 = vmax.f32 %v6468, 0.0
  %v6570 = vmax.f32 %v6472, 0.0
  %v6571 = vmax.f32 %v6474, 0.0
  %v6572 = vmax.f32 %v6476, 0.0
  %v6573 = vmax.f32 %v6478, 0.0
  %v6574 = vmax.f32 %v6482, 0.0
  %v6575 = vmax.f32 %v6484, 0.0
  %v6576 = vmax.f32 %v6486, 0.0
  %v6577 = vmax.f32 %v6488, 0.0
  %v6578 = vmax.f32 %v6492, 0.0
  %v6579 = vmax.f32 %v6494, 0.0
  %v6580 = vmax.f32 %v6496, 0.0
  %v6581 = vmax.f32 %v6498, 0.0
  %v6582 = vmax.f32 %v6502, 0.0
  %v6583 = vmax.f32 %v6504, 0.0
  %v6584 = vmax.f32 %v6506, 0.0
  %v6585 = vmax.f32 %v6508, 0.0
  %v6586 = vmax.f32 %v6512, 0.0
  %v6587 = vmax.f32 %v6514, 0.0
  %v6588 = vmax.f32 %v6516, 0.0
  %v6589 = vmax.f32 %v6518, 0.0
  %v6590 = vmax.f32 %v6522, 0.0
  %v6591 = vmax.f32 %v6524, 0.0
  %v6592 = vmax.f32 %v6526, 0.0
  %v6593 = vmax.f32 %v6528, 0.0
  %v6594 = vadd.f32 %v6530, %v5540
  %v6595 = vadd.f32 %v6531, %v5541
  %v6596 = vadd.f32 %v6532, %v5542
  %v6597 = vadd.f32 %v6533, %v5543
  %v6598 = vadd.f32 %v6534, %v5544
  %v6599 = vadd.f32 %v6535, %v5545
  %v6600 = vadd.f32 %v6536, %v5546
  %v6601 = vadd.f32 %v6537, %v5547
  %v6602 = vadd.f32 %v6538, %v5548
  %v6603 = vadd.f32 %v6539, %v5549
  %v6604 = vadd.f32 %v6540, %v5550
  %v6605 = vadd.f32 %v6541, %v5551
  %v6606 = vadd.f32 %v6542, %v5552
  %v6607 = vadd.f32 %v6543, %v5553
  %v6608 = vadd.f32 %v6544, %v5554
  %v6609 = vadd.f32 %v6545, %v5555
  %v6610 = vadd.f32 %v6546, %v5556
  %v6611 = vadd.f32 %v6547, %v5557
  %v6612 = vadd.f32 %v6548, %v5558
  %v6613 = vadd.f32 %v6549, %v5559
  %v6614 = vadd.f32 %v6550, %v5560
  %v6615 = vadd.f32 %v6551, %v5561
  %v6616 = vadd.f32 %v6552, %v5562
  %v6617 = vadd.f32 %v6553, %v5563
  %v6618 = vadd.f32 %v6554, %v5564
  %v6619 = vadd.f32 %v6555, %v5565
  %v6620 = vadd.f32 %v6556, %v5566
  %v6621 = vadd.f32 %v6557, %v5567
  %v6622 = vadd.f32 %v6558, %v5568
  %v6623 = vadd.f32 %v6559, %v5569
  %v6624 = vadd.f32 %v6560, %v5570
  %v6625 = vadd.f32 %v6561, %v5571
  %v6626 = vadd.f32 %v6562, %v5572
  %v6627 = vadd.f32 %v6563, %v5573
  %v6628 = vadd.f32 %v6564, %v5574
  %v6629 = vadd.f32 %v6565, %v5575
  %v6630 = vadd.f32 %v6566, %v5576
  %v6631 = vadd.f32 %v6567, %v5577
  %v6632 = vadd.f32 %v6568, %v5578
  %v6633 = vadd.f32 %v6569, %v5579
  %v6634 = vadd.f32 %v6570, %v5580
  %v6635 = vadd.f32 %v6571, %v5581
  %v6636 = vadd.f32 %v6572, %v5582
  %v6637 = vadd.f32 %v6573, %v5583
  %v6638 = vadd.f32 %v6574, %v5584
  %v6639 = vadd.f32 %v6575, %v5585
  %v6640 = vadd.f32 %v6576, %v5586
  %v6641 = vadd.f32 %v6577, %v5587
  %v6642 = vadd.f32 %v6578, %v5588
  %v6643 = vadd.f32 %v6579, %v5589
  %v6644 = vadd.f32 %v6580, %v5590
  %v6645 = vadd.f32 %v6581, %v5591
  %v6646 = vadd.f32 %v6582, %v5592
  %v6647 = vadd.f32 %v6583, %v5593
  %v6648 = vadd.f32 %v6584, %v5594
  %v6649 = vadd.f32 %v6585, %v5595
  %v6650 = vadd.f32 %v6586, %v5596
  %v6651 = vadd.f32 %v6587, %v5597
  %v6652 = vadd.f32 %v6588, %v5598
  %v6653 = vadd.f32 %v6589, %v5599
  %v6654 = vadd.f32 %v6590, %v5600
  %v6655 = vadd.f32 %v6591, %v5601
  %v6656 = vadd.f32 %v6592, %v5602
  %v6657 = vadd.f32 %v6593, %v5603
  %v6658 = vunpack.c.l.bf16 %v2962
  %v6659 = vunpack.c.l.bf16 %v2963
  %v6660 = vunpack.c.h.bf16 %v2962
  %v6661 = vunpack.c.h.bf16 %v2963
  %v6662 = vunpack.c.l.bf16 %v2972
  %v6663 = vunpack.c.l.bf16 %v2973
  %v6664 = vunpack.c.h.bf16 %v2972
  %v6665 = vunpack.c.h.bf16 %v2973
  %v6666 = vunpack.c.l.bf16 %v2982
  %v6667 = vunpack.c.l.bf16 %v2983
  %v6668 = vunpack.c.h.bf16 %v2982
  %v6669 = vunpack.c.h.bf16 %v2983
  %v6670 = vunpack.c.l.bf16 %v2992
  %v6671 = vunpack.c.l.bf16 %v2993
  %v6672 = vunpack.c.h.bf16 %v2992
  %v6673 = vunpack.c.h.bf16 %v2993
  %v6674 = vunpack.c.l.bf16 %v3002
  %v6675 = vunpack.c.l.bf16 %v3003
  %v6676 = vunpack.c.h.bf16 %v3002
  %v6677 = vunpack.c.h.bf16 %v3003
  %v6678 = vunpack.c.l.bf16 %v3012
  %v6679 = vunpack.c.l.bf16 %v3013
  %v6680 = vunpack.c.h.bf16 %v3012
  %v6681 = vunpack.c.h.bf16 %v3013
  %v6682 = vunpack.c.l.bf16 %v3022
  %v6683 = vunpack.c.l.bf16 %v3023
  %v6684 = vunpack.c.h.bf16 %v3022
  %v6685 = vunpack.c.h.bf16 %v3023
  %v6686 = vunpack.c.l.bf16 %v3032
  %v6687 = vunpack.c.l.bf16 %v3033
  %v6688 = vunpack.c.h.bf16 %v3032
  %v6689 = vunpack.c.h.bf16 %v3033
  %v6690 = vunpack.c.l.bf16 %v3042
  %v6691 = vunpack.c.l.bf16 %v3043
  %v6692 = vunpack.c.h.bf16 %v3042
  %v6693 = vunpack.c.h.bf16 %v3043
  %v6694 = vunpack.c.l.bf16 %v3052
  %v6695 = vunpack.c.l.bf16 %v3053
  %v6696 = vunpack.c.h.bf16 %v3052
  %v6697 = vunpack.c.h.bf16 %v3053
  %v6698 = vunpack.c.l.bf16 %v3062
  %v6699 = vunpack.c.l.bf16 %v3063
  %v6700 = vunpack.c.h.bf16 %v3062
  %v6701 = vunpack.c.h.bf16 %v3063
  %v6702 = vunpack.c.l.bf16 %v3072
  %v6703 = vunpack.c.l.bf16 %v3073
  %v6704 = vunpack.c.h.bf16 %v3072
  %v6705 = vunpack.c.h.bf16 %v3073
  %v6706 = vunpack.c.l.bf16 %v3082
  %v6707 = vunpack.c.l.bf16 %v3083
  %v6708 = vunpack.c.h.bf16 %v3082
  %v6709 = vunpack.c.h.bf16 %v3083
  %v6710 = vunpack.c.l.bf16 %v3092
  %v6711 = vunpack.c.l.bf16 %v3093
  %v6712 = vunpack.c.h.bf16 %v3092
  %v6713 = vunpack.c.h.bf16 %v3093
  %v6714 = vunpack.c.l.bf16 %v3102
  %v6715 = vunpack.c.l.bf16 %v3103
  %v6716 = vunpack.c.h.bf16 %v3102
  %v6717 = vunpack.c.h.bf16 %v3103
  %v6718 = vunpack.c.l.bf16 %v3112
  %v6719 = vunpack.c.l.bf16 %v3113
  %v6720 = vunpack.c.h.bf16 %v3112
  %v6721 = vunpack.c.h.bf16 %v3113
  %v6722 = vadd.f32 %v6594, %v6658
  %v6723 = vadd.f32 %v6595, %v6659
  %v6724 = vadd.f32 %v6596, %v6660
  %v6725 = vadd.f32 %v6597, %v6661
  %v6726 = vadd.f32 %v6598, %v6662
  %v6727 = vadd.f32 %v6599, %v6663
  %v6728 = vadd.f32 %v6600, %v6664
  %v6729 = vadd.f32 %v6601, %v6665
  %v6730 = vadd.f32 %v6602, %v6666
  %v6731 = vadd.f32 %v6603, %v6667
  %v6732 = vadd.f32 %v6604, %v6668
  %v6733 = vadd.f32 %v6605, %v6669
  %v6734 = vadd.f32 %v6606, %v6670
  %v6735 = vadd.f32 %v6607, %v6671
  %v6736 = vadd.f32 %v6608, %v6672
  %v6737 = vadd.f32 %v6609, %v6673
  %v6738 = vadd.f32 %v6610, %v6674
  %v6739 = vadd.f32 %v6611, %v6675
  %v6740 = vadd.f32 %v6612, %v6676
  %v6741 = vadd.f32 %v6613, %v6677
  %v6742 = vadd.f32 %v6614, %v6678
  %v6743 = vadd.f32 %v6615, %v6679
  %v6744 = vadd.f32 %v6616, %v6680
  %v6745 = vadd.f32 %v6617, %v6681
  %v6746 = vadd.f32 %v6618, %v6682
  %v6747 = vadd.f32 %v6619, %v6683
  %v6748 = vadd.f32 %v6620, %v6684
  %v6749 = vadd.f32 %v6621, %v6685
  %v6750 = vadd.f32 %v6622, %v6686
  %v6751 = vadd.f32 %v6623, %v6687
  %v6752 = vadd.f32 %v6624, %v6688
  %v6753 = vadd.f32 %v6625, %v6689
  %v6754 = vadd.f32 %v6626, %v6690
  %v6755 = vadd.f32 %v6627, %v6691
  %v6756 = vadd.f32 %v6628, %v6692
  %v6757 = vadd.f32 %v6629, %v6693
  %v6758 = vadd.f32 %v6630, %v6694
  %v6759 = vadd.f32 %v6631, %v6695
  %v6760 = vadd.f32 %v6632, %v6696
  %v6761 = vadd.f32 %v6633, %v6697
  %v6762 = vadd.f32 %v6634, %v6698
  %v6763 = vadd.f32 %v6635, %v6699
  %v6764 = vadd.f32 %v6636, %v6700
  %v6765 = vadd.f32 %v6637, %v6701
  %v6766 = vadd.f32 %v6638, %v6702
  %v6767 = vadd.f32 %v6639, %v6703
  %v6768 = vadd.f32 %v6640, %v6704
  %v6769 = vadd.f32 %v6641, %v6705
  %v6770 = vadd.f32 %v6642, %v6706
  %v6771 = vadd.f32 %v6643, %v6707
  %v6772 = vadd.f32 %v6644, %v6708
  %v6773 = vadd.f32 %v6645, %v6709
  %v6774 = vadd.f32 %v6646, %v6710
  %v6775 = vadd.f32 %v6647, %v6711
  %v6776 = vadd.f32 %v6648, %v6712
  %v6777 = vadd.f32 %v6649, %v6713
  %v6778 = vadd.f32 %v6650, %v6714
  %v6779 = vadd.f32 %v6651, %v6715
  %v6780 = vadd.f32 %v6652, %v6716
  %v6781 = vadd.f32 %v6653, %v6717
  %v6782 = vadd.f32 %v6654, %v6718
  %v6783 = vadd.f32 %v6655, %v6719
  %v6784 = vadd.f32 %v6656, %v6720
  %v6785 = vadd.f32 %v6657, %v6721
  %v6786 = vpack.c.bf16 %v6724, %v6722
  %v6787 = vpack.c.bf16 %v6725, %v6723
  %v6788 = vpack.c.bf16 %v6728, %v6726
  %v6789 = vpack.c.bf16 %v6729, %v6727
  %v6790 = vpack.c.bf16 %v6732, %v6730
  %v6791 = vpack.c.bf16 %v6733, %v6731
  %v6792 = vpack.c.bf16 %v6736, %v6734
  %v6793 = vpack.c.bf16 %v6737, %v6735
  %v6794 = vpack.c.bf16 %v6740, %v6738
  %v6795 = vpack.c.bf16 %v6741, %v6739
  %v6796 = vpack.c.bf16 %v6744, %v6742
  %v6797 = vpack.c.bf16 %v6745, %v6743
  %v6798 = vpack.c.bf16 %v6748, %v6746
  %v6799 = vpack.c.bf16 %v6749, %v6747
  %v6800 = vpack.c.bf16 %v6752, %v6750
  %v6801 = vpack.c.bf16 %v6753, %v6751
  %v6802 = vpack.c.bf16 %v6756, %v6754
  %v6803 = vpack.c.bf16 %v6757, %v6755
  %v6804 = vpack.c.bf16 %v6760, %v6758
  %v6805 = vpack.c.bf16 %v6761, %v6759
  %v6806 = vpack.c.bf16 %v6764, %v6762
  %v6807 = vpack.c.bf16 %v6765, %v6763
  %v6808 = vpack.c.bf16 %v6768, %v6766
  %v6809 = vpack.c.bf16 %v6769, %v6767
  %v6810 = vpack.c.bf16 %v6772, %v6770
  %v6811 = vpack.c.bf16 %v6773, %v6771
  %v6812 = vpack.c.bf16 %v6776, %v6774
  %v6813 = vpack.c.bf16 %v6777, %v6775
  %v6814 = vpack.c.bf16 %v6780, %v6778
  %v6815 = vpack.c.bf16 %v6781, %v6779
  %v6816 = vpack.c.bf16 %v6784, %v6782
  %v6817 = vpack.c.bf16 %v6785, %v6783
  %s6818 = scalar_lea.vmem %s6, 768
  %v6819 = vld [vmem:[%s6818] sm:$0xff]
  %v6820 = vld [vmem:[%s6818 + $0x8] sm:$0xff]
  %v6821 = vld [vmem:[%s6818 + $0x10] sm:$0xff]
  %v6822 = vld [vmem:[%s6818 + $0x18] sm:$0xff]
  %v6823 = vld [vmem:[%s6818 + $0x20] sm:$0xff]
  %v6824 = vld [vmem:[%s6818 + $0x28] sm:$0xff]
  %v6825 = vld [vmem:[%s6818 + $0x30] sm:$0xff]
  %v6826 = vld [vmem:[%s6818 + $0x38] sm:$0xff]
  %v6827 = vld [vmem:[%s6818 + $0x40] sm:$0xff]
  %v6828 = vld [vmem:[%s6818 + $0x48] sm:$0xff]
  %v6829 = vld [vmem:[%s6818 + $0x50] sm:$0xff]
  %v6830 = vld [vmem:[%s6818 + $0x58] sm:$0xff]
  %v6831 = vld [vmem:[%s6818 + $0x60] sm:$0xff]
  %v6832 = vld [vmem:[%s6818 + $0x68] sm:$0xff]
  %v6833 = vld [vmem:[%s6818 + $0x70] sm:$0xff]
  %v6834 = vld [vmem:[%s6818 + $0x78] sm:$0xff]
  %v6835 = vld [vmem:[%s6818 + $0x80] sm:$0xff]
  %v6836 = vld [vmem:[%s6818 + $0x88] sm:$0xff]
  %v6837 = vld [vmem:[%s6818 + $0x90] sm:$0xff]
  %v6838 = vld [vmem:[%s6818 + $0x98] sm:$0xff]
  %v6839 = vld [vmem:[%s6818 + $0xa0] sm:$0xff]
  %v6840 = vld [vmem:[%s6818 + $0xa8] sm:$0xff]
  %v6841 = vld [vmem:[%s6818 + $0xb0] sm:$0xff]
  %v6842 = vld [vmem:[%s6818 + $0xb8] sm:$0xff]
  %v6843 = vld [vmem:[%s6818 + $0xc0] sm:$0xff]
  %v6844 = vld [vmem:[%s6818 + $0xc8] sm:$0xff]
  %v6845 = vld [vmem:[%s6818 + $0xd0] sm:$0xff]
  %v6846 = vld [vmem:[%s6818 + $0xd8] sm:$0xff]
  %v6847 = vld [vmem:[%s6818 + $0xe0] sm:$0xff]
  %v6848 = vld [vmem:[%s6818 + $0xe8] sm:$0xff]
  %v6849 = vld [vmem:[%s6818 + $0xf0] sm:$0xff]
  %v6850 = vld [vmem:[%s6818 + $0xf8] sm:$0xff]
  %s6851 = scalar_lea.vmem %s7, 6
  %v6852 = vld [vmem:[%s6851] sm:$0x3]
  %v6854 = vlaneseq
  %v6855 = vshrl.u32 %v6854, 7
  %v6856 = vsub.s32 0, %v6855
  %v6857 = vrot.slane %v6852, %v6856
  %v6858 = vlaneseq
  %v6859 = vshrl.u32 %v6858, 7
  %v6860 = vsub.s32 1, %v6859
  %v6861 = vrot.slane %v6852, %v6860
  %v6896 = vunpack.c.l.b16 %v6819
  %v6897 = vunpack.c.h.b16 %v6819
  %v6898 = vunpack.c.l.b16 %v6820
  %v6899 = vunpack.c.h.b16 %v6820
  %v6900 = vunpack.c.l.b16 %v6821
  %v6901 = vunpack.c.h.b16 %v6821
  %v6902 = vunpack.c.l.b16 %v6822
  %v6903 = vunpack.c.h.b16 %v6822
  %v6904 = vunpack.c.l.b16 %v6823
  %v6905 = vunpack.c.h.b16 %v6823
  %v6906 = vunpack.c.l.b16 %v6824
  %v6907 = vunpack.c.h.b16 %v6824
  %v6908 = vunpack.c.l.b16 %v6825
  %v6909 = vunpack.c.h.b16 %v6825
  %v6910 = vunpack.c.l.b16 %v6826
  %v6911 = vunpack.c.h.b16 %v6826
  %v6912 = vunpack.c.l.b16 %v6827
  %v6913 = vunpack.c.h.b16 %v6827
  %v6914 = vunpack.c.l.b16 %v6828
  %v6915 = vunpack.c.h.b16 %v6828
  %v6916 = vunpack.c.l.b16 %v6829
  %v6917 = vunpack.c.h.b16 %v6829
  %v6918 = vunpack.c.l.b16 %v6830
  %v6919 = vunpack.c.h.b16 %v6830
  %v6920 = vunpack.c.l.b16 %v6831
  %v6921 = vunpack.c.h.b16 %v6831
  %v6922 = vunpack.c.l.b16 %v6832
  %v6923 = vunpack.c.h.b16 %v6832
  %v6924 = vunpack.c.l.b16 %v6833
  %v6925 = vunpack.c.h.b16 %v6833
  %v6926 = vunpack.c.l.b16 %v6834
  %v6927 = vunpack.c.h.b16 %v6834
  %v6928 = vunpack.c.l.b16 %v6835
  %v6929 = vunpack.c.h.b16 %v6835
  %v6930 = vunpack.c.l.b16 %v6836
  %v6931 = vunpack.c.h.b16 %v6836
  %v6932 = vunpack.c.l.b16 %v6837
  %v6933 = vunpack.c.h.b16 %v6837
  %v6934 = vunpack.c.l.b16 %v6838
  %v6935 = vunpack.c.h.b16 %v6838
  %v6936 = vunpack.c.l.b16 %v6839
  %v6937 = vunpack.c.h.b16 %v6839
  %v6938 = vunpack.c.l.b16 %v6840
  %v6939 = vunpack.c.h.b16 %v6840
  %v6940 = vunpack.c.l.b16 %v6841
  %v6941 = vunpack.c.h.b16 %v6841
  %v6942 = vunpack.c.l.b16 %v6842
  %v6943 = vunpack.c.h.b16 %v6842
  %v6944 = vunpack.c.l.b16 %v6843
  %v6945 = vunpack.c.h.b16 %v6843
  %v6946 = vunpack.c.l.b16 %v6844
  %v6947 = vunpack.c.h.b16 %v6844
  %v6948 = vunpack.c.l.b16 %v6845
  %v6949 = vunpack.c.h.b16 %v6845
  %v6950 = vunpack.c.l.b16 %v6846
  %v6951 = vunpack.c.h.b16 %v6846
  %v6952 = vunpack.c.l.b16 %v6847
  %v6953 = vunpack.c.h.b16 %v6847
  %v6954 = vunpack.c.l.b16 %v6848
  %v6955 = vunpack.c.h.b16 %v6848
  %v6956 = vunpack.c.l.b16 %v6849
  %v6957 = vunpack.c.h.b16 %v6849
  %v6958 = vunpack.c.l.b16 %v6850
  %v6959 = vunpack.c.h.b16 %v6850
  %v6960 = vpack.c.b16 %v6898, %v6896
  %v6961 = vpack.c.b16 %v6899, %v6897
  %v6962 = vpack.c.b16 %v6902, %v6900
  %v6963 = vpack.c.b16 %v6903, %v6901
  %v6964 = vpack.c.b16 %v6906, %v6904
  %v6965 = vpack.c.b16 %v6907, %v6905
  %v6966 = vpack.c.b16 %v6910, %v6908
  %v6967 = vpack.c.b16 %v6911, %v6909
  %v6968 = vpack.c.b16 %v6914, %v6912
  %v6969 = vpack.c.b16 %v6915, %v6913
  %v6970 = vpack.c.b16 %v6918, %v6916
  %v6971 = vpack.c.b16 %v6919, %v6917
  %v6972 = vpack.c.b16 %v6922, %v6920
  %v6973 = vpack.c.b16 %v6923, %v6921
  %v6974 = vpack.c.b16 %v6926, %v6924
  %v6975 = vpack.c.b16 %v6927, %v6925
  %v6976 = vpack.c.b16 %v6930, %v6928
  %v6977 = vpack.c.b16 %v6931, %v6929
  %v6978 = vpack.c.b16 %v6934, %v6932
  %v6979 = vpack.c.b16 %v6935, %v6933
  %v6980 = vpack.c.b16 %v6938, %v6936
  %v6981 = vpack.c.b16 %v6939, %v6937
  %v6982 = vpack.c.b16 %v6942, %v6940
  %v6983 = vpack.c.b16 %v6943, %v6941
  %v6984 = vpack.c.b16 %v6946, %v6944
  %v6985 = vpack.c.b16 %v6947, %v6945
  %v6986 = vpack.c.b16 %v6950, %v6948
  %v6987 = vpack.c.b16 %v6951, %v6949
  %v6988 = vpack.c.b16 %v6954, %v6952
  %v6989 = vpack.c.b16 %v6955, %v6953
  %v6990 = vpack.c.b16 %v6958, %v6956
  %v6991 = vpack.c.b16 %v6959, %v6957
  %7024 = vmatprep.subr.bf16.mxu0 %v6961
  %7025 = vmatpush1.bf16.msra.mxu0 %v6960
  %7026 = vmatprep.subr.bf16.mxu0 %v6963
  %7027 = vmatpush1.bf16.msra.mxu0 %v6962
  %7028 = vmatprep.subr.bf16.mxu0 %v6965
  %7029 = vmatpush1.bf16.msra.mxu0 %v6964
  %7030 = vmatprep.subr.bf16.mxu0 %v6967
  %7031 = vmatpush1.bf16.msra.mxu0 %v6966
  %7032 = vmatprep.subr.bf16.mxu0 %v6969
  %7033 = vmatpush1.bf16.msra.mxu0 %v6968
  %7034 = vmatprep.subr.bf16.mxu0 %v6971
  %7035 = vmatpush1.bf16.msra.mxu0 %v6970
  %7036 = vmatprep.subr.bf16.mxu0 %v6973
  %7037 = vmatpush1.bf16.msra.mxu0 %v6972
  %7038 = vmatprep.subr.bf16.mxu0 %v6975
  %7039 = vmatpush1.bf16.msra.mxu0 %v6974
  %7040 = vmatprep.subr.bf16.mxu0 %v6977
  %7041 = vmatpush1.bf16.msra.mxu0 %v6976
  %7042 = vmatprep.subr.bf16.mxu0 %v6979
  %7043 = vmatpush1.bf16.msra.mxu0 %v6978
  %7044 = vmatprep.subr.bf16.mxu0 %v6981
  %7045 = vmatpush1.bf16.msra.mxu0 %v6980
  %7046 = vmatprep.subr.bf16.mxu0 %v6983
  %7047 = vmatpush1.bf16.msra.mxu0 %v6982
  %7048 = vmatprep.subr.bf16.mxu0 %v6985
  %7049 = vmatpush1.bf16.msra.mxu0 %v6984
  %7050 = vmatprep.subr.bf16.mxu0 %v6987
  %7051 = vmatpush1.bf16.msra.mxu0 %v6986
  %7052 = vmatprep.subr.bf16.mxu0 %v6989
  %7053 = vmatpush1.bf16.msra.mxu0 %v6988
  %7054 = vmatprep.subr.bf16.mxu0 %v6991
  %7055 = vmatpush1.bf16.msra.mxu0 %v6990
  %7056 = vmatprep.mubr.bf16.mxu0 %v6787
  %7057 = vmatmul.mubr.bf16.gmra.mrb[0].mxu0 %v6786
  %v7058 = vpop.f32.mrb[0].mxu0
  %v7059 = vadd.f32 %v6857, %v7058
  %v7060 = vpop.f32.mrb[0].mxu0
  %v7061 = vadd.f32 %v6861, %v7060
  %v7062 = vpop.f32.mrb[0].mxu0
  %v7063 = vadd.f32 %v6857, %v7062
  %v7064 = vpop.f32.mrb[0].mxu0
  %v7065 = vadd.f32 %v6861, %v7064
  %7066 = vmatprep.mubr.bf16.mxu0 %v6789
  %7067 = vmatmul.mubr.bf16.gmra.mrb[0].mxu0 %v6788
  %v7068 = vpop.f32.mrb[0].mxu0
  %v7069 = vadd.f32 %v6857, %v7068
  %v7070 = vpop.f32.mrb[0].mxu0
  %v7071 = vadd.f32 %v6861, %v7070
  %v7072 = vpop.f32.mrb[0].mxu0
  %v7073 = vadd.f32 %v6857, %v7072
  %v7074 = vpop.f32.mrb[0].mxu0
  %v7075 = vadd.f32 %v6861, %v7074
  %7076 = vmatprep.mubr.bf16.mxu0 %v6791
  %7077 = vmatmul.mubr.bf16.gmra.mrb[0].mxu0 %v6790
  %v7078 = vpop.f32.mrb[0].mxu0
  %v7079 = vadd.f32 %v6857, %v7078
  %v7080 = vpop.f32.mrb[0].mxu0
  %v7081 = vadd.f32 %v6861, %v7080
  %v7082 = vpop.f32.mrb[0].mxu0
  %v7083 = vadd.f32 %v6857, %v7082
  %v7084 = vpop.f32.mrb[0].mxu0
  %v7085 = vadd.f32 %v6861, %v7084
  %7086 = vmatprep.mubr.bf16.mxu0 %v6793
  %7087 = vmatmul.mubr.bf16.gmra.mrb[0].mxu0 %v6792
  %v7088 = vpop.f32.mrb[0].mxu0
  %v7089 = vadd.f32 %v6857, %v7088
  %v7090 = vpop.f32.mrb[0].mxu0
  %v7091 = vadd.f32 %v6861, %v7090
  %v7092 = vpop.f32.mrb[0].mxu0
  %v7093 = vadd.f32 %v6857, %v7092
  %v7094 = vpop.f32.mrb[0].mxu0
  %v7095 = vadd.f32 %v6861, %v7094
  %7096 = vmatprep.mubr.bf16.mxu0 %v6795
  %7097 = vmatmul.mubr.bf16.gmra.mrb[0].mxu0 %v6794
  %v7098 = vpop.f32.mrb[0].mxu0
  %v7099 = vadd.f32 %v6857, %v7098
  %v7100 = vpop.f32.mrb[0].mxu0
  %v7101 = vadd.f32 %v6861, %v7100
  %v7102 = vpop.f32.mrb[0].mxu0
  %v7103 = vadd.f32 %v6857, %v7102
  %v7104 = vpop.f32.mrb[0].mxu0
  %v7105 = vadd.f32 %v6861, %v7104
  %7106 = vmatprep.mubr.bf16.mxu0 %v6797
  %7107 = vmatmul.mubr.bf16.gmra.mrb[0].mxu0 %v6796
  %v7108 = vpop.f32.mrb[0].mxu0
  %v7109 = vadd.f32 %v6857, %v7108
  %v7110 = vpop.f32.mrb[0].mxu0
  %v7111 = vadd.f32 %v6861, %v7110
  %v7112 = vpop.f32.mrb[0].mxu0
  %v7113 = vadd.f32 %v6857, %v7112
  %v7114 = vpop.f32.mrb[0].mxu0
  %v7115 = vadd.f32 %v6861, %v7114
  %7116 = vmatprep.mubr.bf16.mxu0 %v6799
  %7117 = vmatmul.mubr.bf16.gmra.mrb[0].mxu0 %v6798
  %v7118 = vpop.f32.mrb[0].mxu0
  %v7119 = vadd.f32 %v6857, %v7118
  %v7120 = vpop.f32.mrb[0].mxu0
  %v7121 = vadd.f32 %v6861, %v7120
  %v7122 = vpop.f32.mrb[0].mxu0
  %v7123 = vadd.f32 %v6857, %v7122
  %v7124 = vpop.f32.mrb[0].mxu0
  %v7125 = vadd.f32 %v6861, %v7124
  %7126 = vmatprep.mubr.bf16.mxu0 %v6801
  %7127 = vmatmul.mubr.bf16.gmra.mrb[0].mxu0 %v6800
  %v7128 = vpop.f32.mrb[0].mxu0
  %v7129 = vadd.f32 %v6857, %v7128
  %v7130 = vpop.f32.mrb[0].mxu0
  %v7131 = vadd.f32 %v6861, %v7130
  %v7132 = vpop.f32.mrb[0].mxu0
  %v7133 = vadd.f32 %v6857, %v7132
  %v7134 = vpop.f32.mrb[0].mxu0
  %v7135 = vadd.f32 %v6861, %v7134
  %7136 = vmatprep.mubr.bf16.mxu0 %v6803
  %7137 = vmatmul.mubr.bf16.gmra.mrb[0].mxu0 %v6802
  %v7138 = vpop.f32.mrb[0].mxu0
  %v7139 = vadd.f32 %v6857, %v7138
  %v7140 = vpop.f32.mrb[0].mxu0
  %v7141 = vadd.f32 %v6861, %v7140
  %v7142 = vpop.f32.mrb[0].mxu0
  %v7143 = vadd.f32 %v6857, %v7142
  %v7144 = vpop.f32.mrb[0].mxu0
  %v7145 = vadd.f32 %v6861, %v7144
  %7146 = vmatprep.mubr.bf16.mxu0 %v6805
  %7147 = vmatmul.mubr.bf16.gmra.mrb[0].mxu0 %v6804
  %v7148 = vpop.f32.mrb[0].mxu0
  %v7149 = vadd.f32 %v6857, %v7148
  %v7150 = vpop.f32.mrb[0].mxu0
  %v7151 = vadd.f32 %v6861, %v7150
  %v7152 = vpop.f32.mrb[0].mxu0
  %v7153 = vadd.f32 %v6857, %v7152
  %v7154 = vpop.f32.mrb[0].mxu0
  %v7155 = vadd.f32 %v6861, %v7154
  %7156 = vmatprep.mubr.bf16.mxu0 %v6807
  %7157 = vmatmul.mubr.bf16.gmra.mrb[0].mxu0 %v6806
  %v7158 = vpop.f32.mrb[0].mxu0
  %v7159 = vadd.f32 %v6857, %v7158
  %v7160 = vpop.f32.mrb[0].mxu0
  %v7161 = vadd.f32 %v6861, %v7160
  %v7162 = vpop.f32.mrb[0].mxu0
  %v7163 = vadd.f32 %v6857, %v7162
  %v7164 = vpop.f32.mrb[0].mxu0
  %v7165 = vadd.f32 %v6861, %v7164
  %7166 = vmatprep.mubr.bf16.mxu0 %v6809
  %7167 = vmatmul.mubr.bf16.gmra.mrb[0].mxu0 %v6808
  %v7168 = vpop.f32.mrb[0].mxu0
  %v7169 = vadd.f32 %v6857, %v7168
  %v7170 = vpop.f32.mrb[0].mxu0
  %v7171 = vadd.f32 %v6861, %v7170
  %v7172 = vpop.f32.mrb[0].mxu0
  %v7173 = vadd.f32 %v6857, %v7172
  %v7174 = vpop.f32.mrb[0].mxu0
  %v7175 = vadd.f32 %v6861, %v7174
  %7176 = vmatprep.mubr.bf16.mxu0 %v6811
  %7177 = vmatmul.mubr.bf16.gmra.mrb[0].mxu0 %v6810
  %v7178 = vpop.f32.mrb[0].mxu0
  %v7179 = vadd.f32 %v6857, %v7178
  %v7180 = vpop.f32.mrb[0].mxu0
  %v7181 = vadd.f32 %v6861, %v7180
  %v7182 = vpop.f32.mrb[0].mxu0
  %v7183 = vadd.f32 %v6857, %v7182
  %v7184 = vpop.f32.mrb[0].mxu0
  %v7185 = vadd.f32 %v6861, %v7184
  %7186 = vmatprep.mubr.bf16.mxu0 %v6813
  %7187 = vmatmul.mubr.bf16.gmra.mrb[0].mxu0 %v6812
  %v7188 = vpop.f32.mrb[0].mxu0
  %v7189 = vadd.f32 %v6857, %v7188
  %v7190 = vpop.f32.mrb[0].mxu0
  %v7191 = vadd.f32 %v6861, %v7190
  %v7192 = vpop.f32.mrb[0].mxu0
  %v7193 = vadd.f32 %v6857, %v7192
  %v7194 = vpop.f32.mrb[0].mxu0
  %v7195 = vadd.f32 %v6861, %v7194
  %7196 = vmatprep.mubr.bf16.mxu0 %v6815
  %7197 = vmatmul.mubr.bf16.gmra.mrb[0].mxu0 %v6814
  %v7198 = vpop.f32.mrb[0].mxu0
  %v7199 = vadd.f32 %v6857, %v7198
  %v7200 = vpop.f32.mrb[0].mxu0
  %v7201 = vadd.f32 %v6861, %v7200
  %v7202 = vpop.f32.mrb[0].mxu0
  %v7203 = vadd.f32 %v6857, %v7202
  %v7204 = vpop.f32.mrb[0].mxu0
  %v7205 = vadd.f32 %v6861, %v7204
  %7206 = vmatprep.mubr.bf16.mxu0 %v6817
  %7207 = vmatmul.mubr.bf16.gmra.mrb[0].mxu0 %v6816
  %v7208 = vpop.f32.mrb[0].mxu0
  %v7209 = vadd.f32 %v6857, %v7208
  %v7210 = vpop.f32.mrb[0].mxu0
  %v7211 = vadd.f32 %v6861, %v7210
  %v7212 = vpop.f32.mrb[0].mxu0
  %v7213 = vadd.f32 %v6857, %v7212
  %v7214 = vpop.f32.mrb[0].mxu0
  %v7215 = vadd.f32 %v6861, %v7214
  %7216 = vdwg.mxu0
  %v7217 = vmax.f32 %v7059, 0.0
  %v7218 = vmax.f32 %v7061, 0.0
  %v7219 = vmax.f32 %v7063, 0.0
  %v7220 = vmax.f32 %v7065, 0.0
  %v7221 = vmax.f32 %v7069, 0.0
  %v7222 = vmax.f32 %v7071, 0.0
  %v7223 = vmax.f32 %v7073, 0.0
  %v7224 = vmax.f32 %v7075, 0.0
  %v7225 = vmax.f32 %v7079, 0.0
  %v7226 = vmax.f32 %v7081, 0.0
  %v7227 = vmax.f32 %v7083, 0.0
  %v7228 = vmax.f32 %v7085, 0.0
  %v7229 = vmax.f32 %v7089, 0.0
  %v7230 = vmax.f32 %v7091, 0.0
  %v7231 = vmax.f32 %v7093, 0.0
  %v7232 = vmax.f32 %v7095, 0.0
  %v7233 = vmax.f32 %v7099, 0.0
  %v7234 = vmax.f32 %v7101, 0.0
  %v7235 = vmax.f32 %v7103, 0.0
  %v7236 = vmax.f32 %v7105, 0.0
  %v7237 = vmax.f32 %v7109, 0.0
  %v7238 = vmax.f32 %v7111, 0.0
  %v7239 = vmax.f32 %v7113, 0.0
  %v7240 = vmax.f32 %v7115, 0.0
  %v7241 = vmax.f32 %v7119, 0.0
  %v7242 = vmax.f32 %v7121, 0.0
  %v7243 = vmax.f32 %v7123, 0.0
  %v7244 = vmax.f32 %v7125, 0.0
  %v7245 = vmax.f32 %v7129, 0.0
  %v7246 = vmax.f32 %v7131, 0.0
  %v7247 = vmax.f32 %v7133, 0.0
  %v7248 = vmax.f32 %v7135, 0.0
  %v7249 = vmax.f32 %v7139, 0.0
  %v7250 = vmax.f32 %v7141, 0.0
  %v7251 = vmax.f32 %v7143, 0.0
  %v7252 = vmax.f32 %v7145, 0.0
  %v7253 = vmax.f32 %v7149, 0.0
  %v7254 = vmax.f32 %v7151, 0.0
  %v7255 = vmax.f32 %v7153, 0.0
  %v7256 = vmax.f32 %v7155, 0.0
  %v7257 = vmax.f32 %v7159, 0.0
  %v7258 = vmax.f32 %v7161, 0.0
  %v7259 = vmax.f32 %v7163, 0.0
  %v7260 = vmax.f32 %v7165, 0.0
  %v7261 = vmax.f32 %v7169, 0.0
  %v7262 = vmax.f32 %v7171, 0.0
  %v7263 = vmax.f32 %v7173, 0.0
  %v7264 = vmax.f32 %v7175, 0.0
  %v7265 = vmax.f32 %v7179, 0.0
  %v7266 = vmax.f32 %v7181, 0.0
  %v7267 = vmax.f32 %v7183, 0.0
  %v7268 = vmax.f32 %v7185, 0.0
  %v7269 = vmax.f32 %v7189, 0.0
  %v7270 = vmax.f32 %v7191, 0.0
  %v7271 = vmax.f32 %v7193, 0.0
  %v7272 = vmax.f32 %v7195, 0.0
  %v7273 = vmax.f32 %v7199, 0.0
  %v7274 = vmax.f32 %v7201, 0.0
  %v7275 = vmax.f32 %v7203, 0.0
  %v7276 = vmax.f32 %v7205, 0.0
  %v7277 = vmax.f32 %v7209, 0.0
  %v7278 = vmax.f32 %v7211, 0.0
  %v7279 = vmax.f32 %v7213, 0.0
  %v7280 = vmax.f32 %v7215, 0.0
  %v7281 = vpack.c.bf16 %v7219, %v7217
  %v7282 = vpack.c.bf16 %v7220, %v7218
  %v7283 = vpack.c.bf16 %v7223, %v7221
  %v7284 = vpack.c.bf16 %v7224, %v7222
  %v7285 = vpack.c.bf16 %v7227, %v7225
  %v7286 = vpack.c.bf16 %v7228, %v7226
  %v7287 = vpack.c.bf16 %v7231, %v7229
  %v7288 = vpack.c.bf16 %v7232, %v7230
  %v7289 = vpack.c.bf16 %v7235, %v7233
  %v7290 = vpack.c.bf16 %v7236, %v7234
  %v7291 = vpack.c.bf16 %v7239, %v7237
  %v7292 = vpack.c.bf16 %v7240, %v7238
  %v7293 = vpack.c.bf16 %v7243, %v7241
  %v7294 = vpack.c.bf16 %v7244, %v7242
  %v7295 = vpack.c.bf16 %v7247, %v7245
  %v7296 = vpack.c.bf16 %v7248, %v7246
  %v7297 = vpack.c.bf16 %v7251, %v7249
  %v7298 = vpack.c.bf16 %v7252, %v7250
  %v7299 = vpack.c.bf16 %v7255, %v7253
  %v7300 = vpack.c.bf16 %v7256, %v7254
  %v7301 = vpack.c.bf16 %v7259, %v7257
  %v7302 = vpack.c.bf16 %v7260, %v7258
  %v7303 = vpack.c.bf16 %v7263, %v7261
  %v7304 = vpack.c.bf16 %v7264, %v7262
  %v7305 = vpack.c.bf16 %v7267, %v7265
  %v7306 = vpack.c.bf16 %v7268, %v7266
  %v7307 = vpack.c.bf16 %v7271, %v7269
  %v7308 = vpack.c.bf16 %v7272, %v7270
  %v7309 = vpack.c.bf16 %v7275, %v7273
  %v7310 = vpack.c.bf16 %v7276, %v7274
  %v7311 = vpack.c.bf16 %v7279, %v7277
  %v7312 = vpack.c.bf16 %v7280, %v7278
  %s7313 = scalar_lea.vmem %s8, 768
  %v7314 = vld [vmem:[%s7313] sm:$0xff]
  %v7315 = vld [vmem:[%s7313 + $0x8] sm:$0xff]
  %v7316 = vld [vmem:[%s7313 + $0x10] sm:$0xff]
  %v7317 = vld [vmem:[%s7313 + $0x18] sm:$0xff]
  %v7318 = vld [vmem:[%s7313 + $0x20] sm:$0xff]
  %v7319 = vld [vmem:[%s7313 + $0x28] sm:$0xff]
  %v7320 = vld [vmem:[%s7313 + $0x30] sm:$0xff]
  %v7321 = vld [vmem:[%s7313 + $0x38] sm:$0xff]
  %v7322 = vld [vmem:[%s7313 + $0x40] sm:$0xff]
  %v7323 = vld [vmem:[%s7313 + $0x48] sm:$0xff]
  %v7324 = vld [vmem:[%s7313 + $0x50] sm:$0xff]
  %v7325 = vld [vmem:[%s7313 + $0x58] sm:$0xff]
  %v7326 = vld [vmem:[%s7313 + $0x60] sm:$0xff]
  %v7327 = vld [vmem:[%s7313 + $0x68] sm:$0xff]
  %v7328 = vld [vmem:[%s7313 + $0x70] sm:$0xff]
  %v7329 = vld [vmem:[%s7313 + $0x78] sm:$0xff]
  %v7330 = vld [vmem:[%s7313 + $0x80] sm:$0xff]
  %v7331 = vld [vmem:[%s7313 + $0x88] sm:$0xff]
  %v7332 = vld [vmem:[%s7313 + $0x90] sm:$0xff]
  %v7333 = vld [vmem:[%s7313 + $0x98] sm:$0xff]
  %v7334 = vld [vmem:[%s7313 + $0xa0] sm:$0xff]
  %v7335 = vld [vmem:[%s7313 + $0xa8] sm:$0xff]
  %v7336 = vld [vmem:[%s7313 + $0xb0] sm:$0xff]
  %v7337 = vld [vmem:[%s7313 + $0xb8] sm:$0xff]
  %v7338 = vld [vmem:[%s7313 + $0xc0] sm:$0xff]
  %v7339 = vld [vmem:[%s7313 + $0xc8] sm:$0xff]
  %v7340 = vld [vmem:[%s7313 + $0xd0] sm:$0xff]
  %v7341 = vld [vmem:[%s7313 + $0xd8] sm:$0xff]
  %v7342 = vld [vmem:[%s7313 + $0xe0] sm:$0xff]
  %v7343 = vld [vmem:[%s7313 + $0xe8] sm:$0xff]
  %v7344 = vld [vmem:[%s7313 + $0xf0] sm:$0xff]
  %v7345 = vld [vmem:[%s7313 + $0xf8] sm:$0xff]
  %s7346 = scalar_lea.vmem %s9, 6
  %v7347 = vld [vmem:[%s7346] sm:$0x3]
  %v7349 = vlaneseq
  %v7350 = vshrl.u32 %v7349, 7
  %v7351 = vsub.s32 0, %v7350
  %v7352 = vrot.slane %v7347, %v7351
  %v7353 = vlaneseq
  %v7354 = vshrl.u32 %v7353, 7
  %v7355 = vsub.s32 1, %v7354
  %v7356 = vrot.slane %v7347, %v7355
  %v7391 = vunpack.c.l.b16 %v7314
  %v7392 = vunpack.c.h.b16 %v7314
  %v7393 = vunpack.c.l.b16 %v7315
  %v7394 = vunpack.c.h.b16 %v7315
  %v7395 = vunpack.c.l.b16 %v7316
  %v7396 = vunpack.c.h.b16 %v7316
  %v7397 = vunpack.c.l.b16 %v7317
  %v7398 = vunpack.c.h.b16 %v7317
  %v7399 = vunpack.c.l.b16 %v7318
  %v7400 = vunpack.c.h.b16 %v7318
  %v7401 = vunpack.c.l.b16 %v7319
  %v7402 = vunpack.c.h.b16 %v7319
  %v7403 = vunpack.c.l.b16 %v7320
  %v7404 = vunpack.c.h.b16 %v7320
  %v7405 = vunpack.c.l.b16 %v7321
  %v7406 = vunpack.c.h.b16 %v7321
  %v7407 = vunpack.c.l.b16 %v7322
  %v7408 = vunpack.c.h.b16 %v7322
  %v7409 = vunpack.c.l.b16 %v7323
  %v7410 = vunpack.c.h.b16 %v7323
  %v7411 = vunpack.c.l.b16 %v7324
  %v7412 = vunpack.c.h.b16 %v7324
  %v7413 = vunpack.c.l.b16 %v7325
  %v7414 = vunpack.c.h.b16 %v7325
  %v7415 = vunpack.c.l.b16 %v7326
  %v7416 = vunpack.c.h.b16 %v7326
  %v7417 = vunpack.c.l.b16 %v7327
  %v7418 = vunpack.c.h.b16 %v7327
  %v7419 = vunpack.c.l.b16 %v7328
  %v7420 = vunpack.c.h.b16 %v7328
  %v7421 = vunpack.c.l.b16 %v7329
  %v7422 = vunpack.c.h.b16 %v7329
  %v7423 = vunpack.c.l.b16 %v7330
  %v7424 = vunpack.c.h.b16 %v7330
  %v7425 = vunpack.c.l.b16 %v7331
  %v7426 = vunpack.c.h.b16 %v7331
  %v7427 = vunpack.c.l.b16 %v7332
  %v7428 = vunpack.c.h.b16 %v7332
  %v7429 = vunpack.c.l.b16 %v7333
  %v7430 = vunpack.c.h.b16 %v7333
  %v7431 = vunpack.c.l.b16 %v7334
  %v7432 = vunpack.c.h.b16 %v7334
  %v7433 = vunpack.c.l.b16 %v7335
  %v7434 = vunpack.c.h.b16 %v7335
  %v7435 = vunpack.c.l.b16 %v7336
  %v7436 = vunpack.c.h.b16 %v7336
  %v7437 = vunpack.c.l.b16 %v7337
  %v7438 = vunpack.c.h.b16 %v7337
  %v7439 = vunpack.c.l.b16 %v7338
  %v7440 = vunpack.c.h.b16 %v7338
  %v7441 = vunpack.c.l.b16 %v7339
  %v7442 = vunpack.c.h.b16 %v7339
  %v7443 = vunpack.c.l.b16 %v7340
  %v7444 = vunpack.c.h.b16 %v7340
  %v7445 = vunpack.c.l.b16 %v7341
  %v7446 = vunpack.c.h.b16 %v7341
  %v7447 = vunpack.c.l.b16 %v7342
  %v7448 = vunpack.c.h.b16 %v7342
  %v7449 = vunpack.c.l.b16 %v7343
  %v7450 = vunpack.c.h.b16 %v7343
  %v7451 = vunpack.c.l.b16 %v7344
  %v7452 = vunpack.c.h.b16 %v7344
  %v7453 = vunpack.c.l.b16 %v7345
  %v7454 = vunpack.c.h.b16 %v7345
  %v7455 = vpack.c.b16 %v7393, %v7391
  %v7456 = vpack.c.b16 %v7394, %v7392
  %v7457 = vpack.c.b16 %v7397, %v7395
  %v7458 = vpack.c.b16 %v7398, %v7396
  %v7459 = vpack.c.b16 %v7401, %v7399
  %v7460 = vpack.c.b16 %v7402, %v7400
  %v7461 = vpack.c.b16 %v7405, %v7403
  %v7462 = vpack.c.b16 %v7406, %v7404
  %v7463 = vpack.c.b16 %v7409, %v7407
  %v7464 = vpack.c.b16 %v7410, %v7408
  %v7465 = vpack.c.b16 %v7413, %v7411
  %v7466 = vpack.c.b16 %v7414, %v7412
  %v7467 = vpack.c.b16 %v7417, %v7415
  %v7468 = vpack.c.b16 %v7418, %v7416
  %v7469 = vpack.c.b16 %v7421, %v7419
  %v7470 = vpack.c.b16 %v7422, %v7420
  %v7471 = vpack.c.b16 %v7425, %v7423
  %v7472 = vpack.c.b16 %v7426, %v7424
  %v7473 = vpack.c.b16 %v7429, %v7427
  %v7474 = vpack.c.b16 %v7430, %v7428
  %v7475 = vpack.c.b16 %v7433, %v7431
  %v7476 = vpack.c.b16 %v7434, %v7432
  %v7477 = vpack.c.b16 %v7437, %v7435
  %v7478 = vpack.c.b16 %v7438, %v7436
  %v7479 = vpack.c.b16 %v7441, %v7439
  %v7480 = vpack.c.b16 %v7442, %v7440
  %v7481 = vpack.c.b16 %v7445, %v7443
  %v7482 = vpack.c.b16 %v7446, %v7444
  %v7483 = vpack.c.b16 %v7449, %v7447
  %v7484 = vpack.c.b16 %v7450, %v7448
  %v7485 = vpack.c.b16 %v7453, %v7451
  %v7486 = vpack.c.b16 %v7454, %v7452
  %7519 = vmatprep.subr.bf16.mxu0 %v7456
  %7520 = vmatpush1.bf16.msra.mxu0 %v7455
  %7521 = vmatprep.subr.bf16.mxu0 %v7458
  %7522 = vmatpush1.bf16.msra.mxu0 %v7457
  %7523 = vmatprep.subr.bf16.mxu0 %v7460
  %7524 = vmatpush1.bf16.msra.mxu0 %v7459
  %7525 = vmatprep.subr.bf16.mxu0 %v7462
  %7526 = vmatpush1.bf16.msra.mxu0 %v7461
  %7527 = vmatprep.subr.bf16.mxu0 %v7464
  %7528 = vmatpush1.bf16.msra.mxu0 %v7463
  %7529 = vmatprep.subr.bf16.mxu0 %v7466
  %7530 = vmatpush1.bf16.msra.mxu0 %v7465
  %7531 = vmatprep.subr.bf16.mxu0 %v7468
  %7532 = vmatpush1.bf16.msra.mxu0 %v7467
  %7533 = vmatprep.subr.bf16.mxu0 %v7470
  %7534 = vmatpush1.bf16.msra.mxu0 %v7469
  %7535 = vmatprep.subr.bf16.mxu0 %v7472
  %7536 = vmatpush1.bf16.msra.mxu0 %v7471
  %7537 = vmatprep.subr.bf16.mxu0 %v7474
  %7538 = vmatpush1.bf16.msra.mxu0 %v7473
  %7539 = vmatprep.subr.bf16.mxu0 %v7476
  %7540 = vmatpush1.bf16.msra.mxu0 %v7475
  %7541 = vmatprep.subr.bf16.mxu0 %v7478
  %7542 = vmatpush1.bf16.msra.mxu0 %v7477
  %7543 = vmatprep.subr.bf16.mxu0 %v7480
  %7544 = vmatpush1.bf16.msra.mxu0 %v7479
  %7545 = vmatprep.subr.bf16.mxu0 %v7482
  %7546 = vmatpush1.bf16.msra.mxu0 %v7481
  %7547 = vmatprep.subr.bf16.mxu0 %v7484
  %7548 = vmatpush1.bf16.msra.mxu0 %v7483
  %7549 = vmatprep.subr.bf16.mxu0 %v7486
  %7550 = vmatpush1.bf16.msra.mxu0 %v7485
  %7551 = vmatprep.mubr.bf16.mxu0 %v7282
  %7552 = vmatmul.mubr.bf16.gmra.mrb[0].mxu0 %v7281
  %v7553 = vpop.f32.mrb[0].mxu0
  %v7554 = vadd.f32 %v7352, %v7553
  %v7555 = vpop.f32.mrb[0].mxu0
  %v7556 = vadd.f32 %v7356, %v7555
  %v7557 = vpop.f32.mrb[0].mxu0
  %v7558 = vadd.f32 %v7352, %v7557
  %v7559 = vpop.f32.mrb[0].mxu0
  %v7560 = vadd.f32 %v7356, %v7559
  %7561 = vmatprep.mubr.bf16.mxu0 %v7284
  %7562 = vmatmul.mubr.bf16.gmra.mrb[0].mxu0 %v7283
  %v7563 = vpop.f32.mrb[0].mxu0
  %v7564 = vadd.f32 %v7352, %v7563
  %v7565 = vpop.f32.mrb[0].mxu0
  %v7566 = vadd.f32 %v7356, %v7565
  %v7567 = vpop.f32.mrb[0].mxu0
  %v7568 = vadd.f32 %v7352, %v7567
  %v7569 = vpop.f32.mrb[0].mxu0
  %v7570 = vadd.f32 %v7356, %v7569
  %7571 = vmatprep.mubr.bf16.mxu0 %v7286
  %7572 = vmatmul.mubr.bf16.gmra.mrb[0].mxu0 %v7285
  %v7573 = vpop.f32.mrb[0].mxu0
  %v7574 = vadd.f32 %v7352, %v7573
  %v7575 = vpop.f32.mrb[0].mxu0
  %v7576 = vadd.f32 %v7356, %v7575
  %v7577 = vpop.f32.mrb[0].mxu0
  %v7578 = vadd.f32 %v7352, %v7577
  %v7579 = vpop.f32.mrb[0].mxu0
  %v7580 = vadd.f32 %v7356, %v7579
  %7581 = vmatprep.mubr.bf16.mxu0 %v7288
  %7582 = vmatmul.mubr.bf16.gmra.mrb[0].mxu0 %v7287
  %v7583 = vpop.f32.mrb[0].mxu0
  %v7584 = vadd.f32 %v7352, %v7583
  %v7585 = vpop.f32.mrb[0].mxu0
  %v7586 = vadd.f32 %v7356, %v7585
  %v7587 = vpop.f32.mrb[0].mxu0
  %v7588 = vadd.f32 %v7352, %v7587
  %v7589 = vpop.f32.mrb[0].mxu0
  %v7590 = vadd.f32 %v7356, %v7589
  %7591 = vmatprep.mubr.bf16.mxu0 %v7290
  %7592 = vmatmul.mubr.bf16.gmra.mrb[0].mxu0 %v7289
  %v7593 = vpop.f32.mrb[0].mxu0
  %v7594 = vadd.f32 %v7352, %v7593
  %v7595 = vpop.f32.mrb[0].mxu0
  %v7596 = vadd.f32 %v7356, %v7595
  %v7597 = vpop.f32.mrb[0].mxu0
  %v7598 = vadd.f32 %v7352, %v7597
  %v7599 = vpop.f32.mrb[0].mxu0
  %v7600 = vadd.f32 %v7356, %v7599
  %7601 = vmatprep.mubr.bf16.mxu0 %v7292
  %7602 = vmatmul.mubr.bf16.gmra.mrb[0].mxu0 %v7291
  %v7603 = vpop.f32.mrb[0].mxu0
  %v7604 = vadd.f32 %v7352, %v7603
  %v7605 = vpop.f32.mrb[0].mxu0
  %v7606 = vadd.f32 %v7356, %v7605
  %v7607 = vpop.f32.mrb[0].mxu0
  %v7608 = vadd.f32 %v7352, %v7607
  %v7609 = vpop.f32.mrb[0].mxu0
  %v7610 = vadd.f32 %v7356, %v7609
  %7611 = vmatprep.mubr.bf16.mxu0 %v7294
  %7612 = vmatmul.mubr.bf16.gmra.mrb[0].mxu0 %v7293
  %v7613 = vpop.f32.mrb[0].mxu0
  %v7614 = vadd.f32 %v7352, %v7613
  %v7615 = vpop.f32.mrb[0].mxu0
  %v7616 = vadd.f32 %v7356, %v7615
  %v7617 = vpop.f32.mrb[0].mxu0
  %v7618 = vadd.f32 %v7352, %v7617
  %v7619 = vpop.f32.mrb[0].mxu0
  %v7620 = vadd.f32 %v7356, %v7619
  %7621 = vmatprep.mubr.bf16.mxu0 %v7296
  %7622 = vmatmul.mubr.bf16.gmra.mrb[0].mxu0 %v7295
  %v7623 = vpop.f32.mrb[0].mxu0
  %v7624 = vadd.f32 %v7352, %v7623
  %v7625 = vpop.f32.mrb[0].mxu0
  %v7626 = vadd.f32 %v7356, %v7625
  %v7627 = vpop.f32.mrb[0].mxu0
  %v7628 = vadd.f32 %v7352, %v7627
  %v7629 = vpop.f32.mrb[0].mxu0
  %v7630 = vadd.f32 %v7356, %v7629
  %7631 = vmatprep.mubr.bf16.mxu0 %v7298
  %7632 = vmatmul.mubr.bf16.gmra.mrb[0].mxu0 %v7297
  %v7633 = vpop.f32.mrb[0].mxu0
  %v7634 = vadd.f32 %v7352, %v7633
  %v7635 = vpop.f32.mrb[0].mxu0
  %v7636 = vadd.f32 %v7356, %v7635
  %v7637 = vpop.f32.mrb[0].mxu0
  %v7638 = vadd.f32 %v7352, %v7637
  %v7639 = vpop.f32.mrb[0].mxu0
  %v7640 = vadd.f32 %v7356, %v7639
  %7641 = vmatprep.mubr.bf16.mxu0 %v7300
  %7642 = vmatmul.mubr.bf16.gmra.mrb[0].mxu0 %v7299
  %v7643 = vpop.f32.mrb[0].mxu0
  %v7644 = vadd.f32 %v7352, %v7643
  %v7645 = vpop.f32.mrb[0].mxu0
  %v7646 = vadd.f32 %v7356, %v7645
  %v7647 = vpop.f32.mrb[0].mxu0
  %v7648 = vadd.f32 %v7352, %v7647
  %v7649 = vpop.f32.mrb[0].mxu0
  %v7650 = vadd.f32 %v7356, %v7649
  %7651 = vmatprep.mubr.bf16.mxu0 %v7302
  %7652 = vmatmul.mubr.bf16.gmra.mrb[0].mxu0 %v7301
  %v7653 = vpop.f32.mrb[0].mxu0
  %v7654 = vadd.f32 %v7352, %v7653
  %v7655 = vpop.f32.mrb[0].mxu0
  %v7656 = vadd.f32 %v7356, %v7655
  %v7657 = vpop.f32.mrb[0].mxu0
  %v7658 = vadd.f32 %v7352, %v7657
  %v7659 = vpop.f32.mrb[0].mxu0
  %v7660 = vadd.f32 %v7356, %v7659
  %7661 = vmatprep.mubr.bf16.mxu0 %v7304
  %7662 = vmatmul.mubr.bf16.gmra.mrb[0].mxu0 %v7303
  %v7663 = vpop.f32.mrb[0].mxu0
  %v7664 = vadd.f32 %v7352, %v7663
  %v7665 = vpop.f32.mrb[0].mxu0
  %v7666 = vadd.f32 %v7356, %v7665
  %v7667 = vpop.f32.mrb[0].mxu0
  %v7668 = vadd.f32 %v7352, %v7667
  %v7669 = vpop.f32.mrb[0].mxu0
  %v7670 = vadd.f32 %v7356, %v7669
  %7671 = vmatprep.mubr.bf16.mxu0 %v7306
  %7672 = vmatmul.mubr.bf16.gmra.mrb[0].mxu0 %v7305
  %v7673 = vpop.f32.mrb[0].mxu0
  %v7674 = vadd.f32 %v7352, %v7673
  %v7675 = vpop.f32.mrb[0].mxu0
  %v7676 = vadd.f32 %v7356, %v7675
  %v7677 = vpop.f32.mrb[0].mxu0
  %v7678 = vadd.f32 %v7352, %v7677
  %v7679 = vpop.f32.mrb[0].mxu0
  %v7680 = vadd.f32 %v7356, %v7679
  %7681 = vmatprep.mubr.bf16.mxu0 %v7308
  %7682 = vmatmul.mubr.bf16.gmra.mrb[0].mxu0 %v7307
  %v7683 = vpop.f32.mrb[0].mxu0
  %v7684 = vadd.f32 %v7352, %v7683
  %v7685 = vpop.f32.mrb[0].mxu0
  %v7686 = vadd.f32 %v7356, %v7685
  %v7687 = vpop.f32.mrb[0].mxu0
  %v7688 = vadd.f32 %v7352, %v7687
  %v7689 = vpop.f32.mrb[0].mxu0
  %v7690 = vadd.f32 %v7356, %v7689
  %7691 = vmatprep.mubr.bf16.mxu0 %v7310
  %7692 = vmatmul.mubr.bf16.gmra.mrb[0].mxu0 %v7309
  %v7693 = vpop.f32.mrb[0].mxu0
  %v7694 = vadd.f32 %v7352, %v7693
  %v7695 = vpop.f32.mrb[0].mxu0
  %v7696 = vadd.f32 %v7356, %v7695
  %v7697 = vpop.f32.mrb[0].mxu0
  %v7698 = vadd.f32 %v7352, %v7697
  %v7699 = vpop.f32.mrb[0].mxu0
  %v7700 = vadd.f32 %v7356, %v7699
  %7701 = vmatprep.mubr.bf16.mxu0 %v7312
  %7702 = vmatmul.mubr.bf16.gmra.mrb[0].mxu0 %v7311
  %v7703 = vpop.f32.mrb[0].mxu0
  %v7704 = vadd.f32 %v7352, %v7703
  %v7705 = vpop.f32.mrb[0].mxu0
  %v7706 = vadd.f32 %v7356, %v7705
  %v7707 = vpop.f32.mrb[0].mxu0
  %v7708 = vadd.f32 %v7352, %v7707
  %v7709 = vpop.f32.mrb[0].mxu0
  %v7710 = vadd.f32 %v7356, %v7709
  %7711 = vdwg.mxu0
  %v7712 = vmax.f32 %v7554, 0.0
  %v7713 = vmax.f32 %v7556, 0.0
  %v7714 = vmax.f32 %v7558, 0.0
  %v7715 = vmax.f32 %v7560, 0.0
  %v7716 = vmax.f32 %v7564, 0.0
  %v7717 = vmax.f32 %v7566, 0.0
  %v7718 = vmax.f32 %v7568, 0.0
  %v7719 = vmax.f32 %v7570, 0.0
  %v7720 = vmax.f32 %v7574, 0.0
  %v7721 = vmax.f32 %v7576, 0.0
  %v7722 = vmax.f32 %v7578, 0.0
  %v7723 = vmax.f32 %v7580, 0.0
  %v7724 = vmax.f32 %v7584, 0.0
  %v7725 = vmax.f32 %v7586, 0.0
  %v7726 = vmax.f32 %v7588, 0.0
  %v7727 = vmax.f32 %v7590, 0.0
  %v7728 = vmax.f32 %v7594, 0.0
  %v7729 = vmax.f32 %v7596, 0.0
  %v7730 = vmax.f32 %v7598, 0.0
  %v7731 = vmax.f32 %v7600, 0.0
  %v7732 = vmax.f32 %v7604, 0.0
  %v7733 = vmax.f32 %v7606, 0.0
  %v7734 = vmax.f32 %v7608, 0.0
  %v7735 = vmax.f32 %v7610, 0.0
  %v7736 = vmax.f32 %v7614, 0.0
  %v7737 = vmax.f32 %v7616, 0.0
  %v7738 = vmax.f32 %v7618, 0.0
  %v7739 = vmax.f32 %v7620, 0.0
  %v7740 = vmax.f32 %v7624, 0.0
  %v7741 = vmax.f32 %v7626, 0.0
  %v7742 = vmax.f32 %v7628, 0.0
  %v7743 = vmax.f32 %v7630, 0.0
  %v7744 = vmax.f32 %v7634, 0.0
  %v7745 = vmax.f32 %v7636, 0.0
  %v7746 = vmax.f32 %v7638, 0.0
  %v7747 = vmax.f32 %v7640, 0.0
  %v7748 = vmax.f32 %v7644, 0.0
  %v7749 = vmax.f32 %v7646, 0.0
  %v7750 = vmax.f32 %v7648, 0.0
  %v7751 = vmax.f32 %v7650, 0.0
  %v7752 = vmax.f32 %v7654, 0.0
  %v7753 = vmax.f32 %v7656, 0.0
  %v7754 = vmax.f32 %v7658, 0.0
  %v7755 = vmax.f32 %v7660, 0.0
  %v7756 = vmax.f32 %v7664, 0.0
  %v7757 = vmax.f32 %v7666, 0.0
  %v7758 = vmax.f32 %v7668, 0.0
  %v7759 = vmax.f32 %v7670, 0.0
  %v7760 = vmax.f32 %v7674, 0.0
  %v7761 = vmax.f32 %v7676, 0.0
  %v7762 = vmax.f32 %v7678, 0.0
  %v7763 = vmax.f32 %v7680, 0.0
  %v7764 = vmax.f32 %v7684, 0.0
  %v7765 = vmax.f32 %v7686, 0.0
  %v7766 = vmax.f32 %v7688, 0.0
  %v7767 = vmax.f32 %v7690, 0.0
  %v7768 = vmax.f32 %v7694, 0.0
  %v7769 = vmax.f32 %v7696, 0.0
  %v7770 = vmax.f32 %v7698, 0.0
  %v7771 = vmax.f32 %v7700, 0.0
  %v7772 = vmax.f32 %v7704, 0.0
  %v7773 = vmax.f32 %v7706, 0.0
  %v7774 = vmax.f32 %v7708, 0.0
  %v7775 = vmax.f32 %v7710, 0.0
  %v7776 = vadd.f32 %v7712, %v6722
  %v7777 = vadd.f32 %v7713, %v6723
  %v7778 = vadd.f32 %v7714, %v6724
  %v7779 = vadd.f32 %v7715, %v6725
  %v7780 = vadd.f32 %v7716, %v6726
  %v7781 = vadd.f32 %v7717, %v6727
  %v7782 = vadd.f32 %v7718, %v6728
  %v7783 = vadd.f32 %v7719, %v6729
  %v7784 = vadd.f32 %v7720, %v6730
  %v7785 = vadd.f32 %v7721, %v6731
  %v7786 = vadd.f32 %v7722, %v6732
  %v7787 = vadd.f32 %v7723, %v6733
  %v7788 = vadd.f32 %v7724, %v6734
  %v7789 = vadd.f32 %v7725, %v6735
  %v7790 = vadd.f32 %v7726, %v6736
  %v7791 = vadd.f32 %v7727, %v6737
  %v7792 = vadd.f32 %v7728, %v6738
  %v7793 = vadd.f32 %v7729, %v6739
  %v7794 = vadd.f32 %v7730, %v6740
  %v7795 = vadd.f32 %v7731, %v6741
  %v7796 = vadd.f32 %v7732, %v6742
  %v7797 = vadd.f32 %v7733, %v6743
  %v7798 = vadd.f32 %v7734, %v6744
  %v7799 = vadd.f32 %v7735, %v6745
  %v7800 = vadd.f32 %v7736, %v6746
  %v7801 = vadd.f32 %v7737, %v6747
  %v7802 = vadd.f32 %v7738, %v6748
  %v7803 = vadd.f32 %v7739, %v6749
  %v7804 = vadd.f32 %v7740, %v6750
  %v7805 = vadd.f32 %v7741, %v6751
  %v7806 = vadd.f32 %v7742, %v6752
  %v7807 = vadd.f32 %v7743, %v6753
  %v7808 = vadd.f32 %v7744, %v6754
  %v7809 = vadd.f32 %v7745, %v6755
  %v7810 = vadd.f32 %v7746, %v6756
  %v7811 = vadd.f32 %v7747, %v6757
  %v7812 = vadd.f32 %v7748, %v6758
  %v7813 = vadd.f32 %v7749, %v6759
  %v7814 = vadd.f32 %v7750, %v6760
  %v7815 = vadd.f32 %v7751, %v6761
  %v7816 = vadd.f32 %v7752, %v6762
  %v7817 = vadd.f32 %v7753, %v6763
  %v7818 = vadd.f32 %v7754, %v6764
  %v7819 = vadd.f32 %v7755, %v6765
  %v7820 = vadd.f32 %v7756, %v6766
  %v7821 = vadd.f32 %v7757, %v6767
  %v7822 = vadd.f32 %v7758, %v6768
  %v7823 = vadd.f32 %v7759, %v6769
  %v7824 = vadd.f32 %v7760, %v6770
  %v7825 = vadd.f32 %v7761, %v6771
  %v7826 = vadd.f32 %v7762, %v6772
  %v7827 = vadd.f32 %v7763, %v6773
  %v7828 = vadd.f32 %v7764, %v6774
  %v7829 = vadd.f32 %v7765, %v6775
  %v7830 = vadd.f32 %v7766, %v6776
  %v7831 = vadd.f32 %v7767, %v6777
  %v7832 = vadd.f32 %v7768, %v6778
  %v7833 = vadd.f32 %v7769, %v6779
  %v7834 = vadd.f32 %v7770, %v6780
  %v7835 = vadd.f32 %v7771, %v6781
  %v7836 = vadd.f32 %v7772, %v6782
  %v7837 = vadd.f32 %v7773, %v6783
  %v7838 = vadd.f32 %v7774, %v6784
  %v7839 = vadd.f32 %v7775, %v6785
  %v7840 = vunpack.c.l.bf16 %v2964
  %v7841 = vunpack.c.l.bf16 %v2965
  %v7842 = vunpack.c.h.bf16 %v2964
  %v7843 = vunpack.c.h.bf16 %v2965
  %v7844 = vunpack.c.l.bf16 %v2974
  %v7845 = vunpack.c.l.bf16 %v2975
  %v7846 = vunpack.c.h.bf16 %v2974
  %v7847 = vunpack.c.h.bf16 %v2975
  %v7848 = vunpack.c.l.bf16 %v2984
  %v7849 = vunpack.c.l.bf16 %v2985
  %v7850 = vunpack.c.h.bf16 %v2984
  %v7851 = vunpack.c.h.bf16 %v2985
  %v7852 = vunpack.c.l.bf16 %v2994
  %v7853 = vunpack.c.l.bf16 %v2995
  %v7854 = vunpack.c.h.bf16 %v2994
  %v7855 = vunpack.c.h.bf16 %v2995
  %v7856 = vunpack.c.l.bf16 %v3004
  %v7857 = vunpack.c.l.bf16 %v3005
  %v7858 = vunpack.c.h.bf16 %v3004
  %v7859 = vunpack.c.h.bf16 %v3005
  %v7860 = vunpack.c.l.bf16 %v3014
  %v7861 = vunpack.c.l.bf16 %v3015
  %v7862 = vunpack.c.h.bf16 %v3014
  %v7863 = vunpack.c.h.bf16 %v3015
  %v7864 = vunpack.c.l.bf16 %v3024
  %v7865 = vunpack.c.l.bf16 %v3025
  %v7866 = vunpack.c.h.bf16 %v3024
  %v7867 = vunpack.c.h.bf16 %v3025
  %v7868 = vunpack.c.l.bf16 %v3034
  %v7869 = vunpack.c.l.bf16 %v3035
  %v7870 = vunpack.c.h.bf16 %v3034
  %v7871 = vunpack.c.h.bf16 %v3035
  %v7872 = vunpack.c.l.bf16 %v3044
  %v7873 = vunpack.c.l.bf16 %v3045
  %v7874 = vunpack.c.h.bf16 %v3044
  %v7875 = vunpack.c.h.bf16 %v3045
  %v7876 = vunpack.c.l.bf16 %v3054
  %v7877 = vunpack.c.l.bf16 %v3055
  %v7878 = vunpack.c.h.bf16 %v3054
  %v7879 = vunpack.c.h.bf16 %v3055
  %v7880 = vunpack.c.l.bf16 %v3064
  %v7881 = vunpack.c.l.bf16 %v3065
  %v7882 = vunpack.c.h.bf16 %v3064
  %v7883 = vunpack.c.h.bf16 %v3065
  %v7884 = vunpack.c.l.bf16 %v3074
  %v7885 = vunpack.c.l.bf16 %v3075
  %v7886 = vunpack.c.h.bf16 %v3074
  %v7887 = vunpack.c.h.bf16 %v3075
  %v7888 = vunpack.c.l.bf16 %v3084
  %v7889 = vunpack.c.l.bf16 %v3085
  %v7890 = vunpack.c.h.bf16 %v3084
  %v7891 = vunpack.c.h.bf16 %v3085
  %v7892 = vunpack.c.l.bf16 %v3094
  %v7893 = vunpack.c.l.bf16 %v3095
  %v7894 = vunpack.c.h.bf16 %v3094
  %v7895 = vunpack.c.h.bf16 %v3095
  %v7896 = vunpack.c.l.bf16 %v3104
  %v7897 = vunpack.c.l.bf16 %v3105
  %v7898 = vunpack.c.h.bf16 %v3104
  %v7899 = vunpack.c.h.bf16 %v3105
  %v7900 = vunpack.c.l.bf16 %v3114
  %v7901 = vunpack.c.l.bf16 %v3115
  %v7902 = vunpack.c.h.bf16 %v3114
  %v7903 = vunpack.c.h.bf16 %v3115
  %v7904 = vadd.f32 %v7776, %v7840
  %v7905 = vadd.f32 %v7777, %v7841
  %v7906 = vadd.f32 %v7778, %v7842
  %v7907 = vadd.f32 %v7779, %v7843
  %v7908 = vadd.f32 %v7780, %v7844
  %v7909 = vadd.f32 %v7781, %v7845
  %v7910 = vadd.f32 %v7782, %v7846
  %v7911 = vadd.f32 %v7783, %v7847
  %v7912 = vadd.f32 %v7784, %v7848
  %v7913 = vadd.f32 %v7785, %v7849
  %v7914 = vadd.f32 %v7786, %v7850
  %v7915 = vadd.f32 %v7787, %v7851
  %v7916 = vadd.f32 %v7788, %v7852
  %v7917 = vadd.f32 %v7789, %v7853
  %v7918 = vadd.f32 %v7790, %v7854
  %v7919 = vadd.f32 %v7791, %v7855
  %v7920 = vadd.f32 %v7792, %v7856
  %v7921 = vadd.f32 %v7793, %v7857
  %v7922 = vadd.f32 %v7794, %v7858
  %v7923 = vadd.f32 %v7795, %v7859
  %v7924 = vadd.f32 %v7796, %v7860
  %v7925 = vadd.f32 %v7797, %v7861
  %v7926 = vadd.f32 %v7798, %v7862
  %v7927 = vadd.f32 %v7799, %v7863
  %v7928 = vadd.f32 %v7800, %v7864
  %v7929 = vadd.f32 %v7801, %v7865
  %v7930 = vadd.f32 %v7802, %v7866
  %v7931 = vadd.f32 %v7803, %v7867
  %v7932 = vadd.f32 %v7804, %v7868
  %v7933 = vadd.f32 %v7805, %v7869
  %v7934 = vadd.f32 %v7806, %v7870
  %v7935 = vadd.f32 %v7807, %v7871
  %v7936 = vadd.f32 %v7808, %v7872
  %v7937 = vadd.f32 %v7809, %v7873
  %v7938 = vadd.f32 %v7810, %v7874
  %v7939 = vadd.f32 %v7811, %v7875
  %v7940 = vadd.f32 %v7812, %v7876
  %v7941 = vadd.f32 %v7813, %v7877
  %v7942 = vadd.f32 %v7814, %v7878
  %v7943 = vadd.f32 %v7815, %v7879
  %v7944 = vadd.f32 %v7816, %v7880
  %v7945 = vadd.f32 %v7817, %v7881
  %v7946 = vadd.f32 %v7818, %v7882
  %v7947 = vadd.f32 %v7819, %v7883
  %v7948 = vadd.f32 %v7820, %v7884
  %v7949 = vadd.f32 %v7821, %v7885
  %v7950 = vadd.f32 %v7822, %v7886
  %v7951 = vadd.f32 %v7823, %v7887
  %v7952 = vadd.f32 %v7824, %v7888
  %v7953 = vadd.f32 %v7825, %v7889
  %v7954 = vadd.f32 %v7826, %v7890
  %v7955 = vadd.f32 %v7827, %v7891
  %v7956 = vadd.f32 %v7828, %v7892
  %v7957 = vadd.f32 %v7829, %v7893
  %v7958 = vadd.f32 %v7830, %v7894
  %v7959 = vadd.f32 %v7831, %v7895
  %v7960 = vadd.f32 %v7832, %v7896
  %v7961 = vadd.f32 %v7833, %v7897
  %v7962 = vadd.f32 %v7834, %v7898
  %v7963 = vadd.f32 %v7835, %v7899
  %v7964 = vadd.f32 %v7836, %v7900
  %v7965 = vadd.f32 %v7837, %v7901
  %v7966 = vadd.f32 %v7838, %v7902
  %v7967 = vadd.f32 %v7839, %v7903
  %v7968 = vpack.c.bf16 %v7906, %v7904
  %v7969 = vpack.c.bf16 %v7907, %v7905
  %v7970 = vpack.c.bf16 %v7910, %v7908
  %v7971 = vpack.c.bf16 %v7911, %v7909
  %v7972 = vpack.c.bf16 %v7914, %v7912
  %v7973 = vpack.c.bf16 %v7915, %v7913
  %v7974 = vpack.c.bf16 %v7918, %v7916
  %v7975 = vpack.c.bf16 %v7919, %v7917
  %v7976 = vpack.c.bf16 %v7922, %v7920
  %v7977 = vpack.c.bf16 %v7923, %v7921
  %v7978 = vpack.c.bf16 %v7926, %v7924
  %v7979 = vpack.c.bf16 %v7927, %v7925
  %v7980 = vpack.c.bf16 %v7930, %v7928
  %v7981 = vpack.c.bf16 %v7931, %v7929
  %v7982 = vpack.c.bf16 %v7934, %v7932
  %v7983 = vpack.c.bf16 %v7935, %v7933
  %v7984 = vpack.c.bf16 %v7938, %v7936
  %v7985 = vpack.c.bf16 %v7939, %v7937
  %v7986 = vpack.c.bf16 %v7942, %v7940
  %v7987 = vpack.c.bf16 %v7943, %v7941
  %v7988 = vpack.c.bf16 %v7946, %v7944
  %v7989 = vpack.c.bf16 %v7947, %v7945
  %v7990 = vpack.c.bf16 %v7950, %v7948
  %v7991 = vpack.c.bf16 %v7951, %v7949
  %v7992 = vpack.c.bf16 %v7954, %v7952
  %v7993 = vpack.c.bf16 %v7955, %v7953
  %v7994 = vpack.c.bf16 %v7958, %v7956
  %v7995 = vpack.c.bf16 %v7959, %v7957
  %v7996 = vpack.c.bf16 %v7962, %v7960
  %v7997 = vpack.c.bf16 %v7963, %v7961
  %v7998 = vpack.c.bf16 %v7966, %v7964
  %v7999 = vpack.c.bf16 %v7967, %v7965
  %s8000 = scalar_lea.vmem %s6, 1024
  %v8001 = vld [vmem:[%s8000] sm:$0xff]
  %v8002 = vld [vmem:[%s8000 + $0x8] sm:$0xff]
  %v8003 = vld [vmem:[%s8000 + $0x10] sm:$0xff]
  %v8004 = vld [vmem:[%s8000 + $0x18] sm:$0xff]
  %v8005 = vld [vmem:[%s8000 + $0x20] sm:$0xff]
  %v8006 = vld [vmem:[%s8000 + $0x28] sm:$0xff]
  %v8007 = vld [vmem:[%s8000 + $0x30] sm:$0xff]
  %v8008 = vld [vmem:[%s8000 + $0x38] sm:$0xff]
  %v8009 = vld [vmem:[%s8000 + $0x40] sm:$0xff]
  %v8010 = vld [vmem:[%s8000 + $0x48] sm:$0xff]
  %v8011 = vld [vmem:[%s8000 + $0x50] sm:$0xff]
  %v8012 = vld [vmem:[%s8000 + $0x58] sm:$0xff]
  %v8013 = vld [vmem:[%s8000 + $0x60] sm:$0xff]
  %v8014 = vld [vmem:[%s8000 + $0x68] sm:$0xff]
  %v8015 = vld [vmem:[%s8000 + $0x70] sm:$0xff]
  %v8016 = vld [vmem:[%s8000 + $0x78] sm:$0xff]
  %v8017 = vld [vmem:[%s8000 + $0x80] sm:$0xff]
  %v8018 = vld [vmem:[%s8000 + $0x88] sm:$0xff]
  %v8019 = vld [vmem:[%s8000 + $0x90] sm:$0xff]
  %v8020 = vld [vmem:[%s8000 + $0x98] sm:$0xff]
  %v8021 = vld [vmem:[%s8000 + $0xa0] sm:$0xff]
  %v8022 = vld [vmem:[%s8000 + $0xa8] sm:$0xff]
  %v8023 = vld [vmem:[%s8000 + $0xb0] sm:$0xff]
  %v8024 = vld [vmem:[%s8000 + $0xb8] sm:$0xff]
  %v8025 = vld [vmem:[%s8000 + $0xc0] sm:$0xff]
  %v8026 = vld [vmem:[%s8000 + $0xc8] sm:$0xff]
  %v8027 = vld [vmem:[%s8000 + $0xd0] sm:$0xff]
  %v8028 = vld [vmem:[%s8000 + $0xd8] sm:$0xff]
  %v8029 = vld [vmem:[%s8000 + $0xe0] sm:$0xff]
  %v8030 = vld [vmem:[%s8000 + $0xe8] sm:$0xff]
  %v8031 = vld [vmem:[%s8000 + $0xf0] sm:$0xff]
  %v8032 = vld [vmem:[%s8000 + $0xf8] sm:$0xff]
  %s8033 = scalar_lea.vmem %s7, 8
  %v8034 = vld [vmem:[%s8033] sm:$0x3]
  %v8036 = vlaneseq
  %v8037 = vshrl.u32 %v8036, 7
  %v8038 = vsub.s32 0, %v8037
  %v8039 = vrot.slane %v8034, %v8038
  %v8040 = vlaneseq
  %v8041 = vshrl.u32 %v8040, 7
  %v8042 = vsub.s32 1, %v8041
  %v8043 = vrot.slane %v8034, %v8042
  %v8078 = vunpack.c.l.b16 %v8001
  %v8079 = vunpack.c.h.b16 %v8001
  %v8080 = vunpack.c.l.b16 %v8002
  %v8081 = vunpack.c.h.b16 %v8002
  %v8082 = vunpack.c.l.b16 %v8003
  %v8083 = vunpack.c.h.b16 %v8003
  %v8084 = vunpack.c.l.b16 %v8004
  %v8085 = vunpack.c.h.b16 %v8004
  %v8086 = vunpack.c.l.b16 %v8005
  %v8087 = vunpack.c.h.b16 %v8005
  %v8088 = vunpack.c.l.b16 %v8006
  %v8089 = vunpack.c.h.b16 %v8006
  %v8090 = vunpack.c.l.b16 %v8007
  %v8091 = vunpack.c.h.b16 %v8007
  %v8092 = vunpack.c.l.b16 %v8008
  %v8093 = vunpack.c.h.b16 %v8008
  %v8094 = vunpack.c.l.b16 %v8009
  %v8095 = vunpack.c.h.b16 %v8009
  %v8096 = vunpack.c.l.b16 %v8010
  %v8097 = vunpack.c.h.b16 %v8010
  %v8098 = vunpack.c.l.b16 %v8011
  %v8099 = vunpack.c.h.b16 %v8011
  %v8100 = vunpack.c.l.b16 %v8012
  %v8101 = vunpack.c.h.b16 %v8012
  %v8102 = vunpack.c.l.b16 %v8013
  %v8103 = vunpack.c.h.b16 %v8013
  %v8104 = vunpack.c.l.b16 %v8014
  %v8105 = vunpack.c.h.b16 %v8014
  %v8106 = vunpack.c.l.b16 %v8015
  %v8107 = vunpack.c.h.b16 %v8015
  %v8108 = vunpack.c.l.b16 %v8016
  %v8109 = vunpack.c.h.b16 %v8016
  %v8110 = vunpack.c.l.b16 %v8017
  %v8111 = vunpack.c.h.b16 %v8017
  %v8112 = vunpack.c.l.b16 %v8018
  %v8113 = vunpack.c.h.b16 %v8018
  %v8114 = vunpack.c.l.b16 %v8019
  %v8115 = vunpack.c.h.b16 %v8019
  %v8116 = vunpack.c.l.b16 %v8020
  %v8117 = vunpack.c.h.b16 %v8020
  %v8118 = vunpack.c.l.b16 %v8021
  %v8119 = vunpack.c.h.b16 %v8021
  %v8120 = vunpack.c.l.b16 %v8022
  %v8121 = vunpack.c.h.b16 %v8022
  %v8122 = vunpack.c.l.b16 %v8023
  %v8123 = vunpack.c.h.b16 %v8023
  %v8124 = vunpack.c.l.b16 %v8024
  %v8125 = vunpack.c.h.b16 %v8024
  %v8126 = vunpack.c.l.b16 %v8025
  %v8127 = vunpack.c.h.b16 %v8025
  %v8128 = vunpack.c.l.b16 %v8026
  %v8129 = vunpack.c.h.b16 %v8026
  %v8130 = vunpack.c.l.b16 %v8027
  %v8131 = vunpack.c.h.b16 %v8027
  %v8132 = vunpack.c.l.b16 %v8028
  %v8133 = vunpack.c.h.b16 %v8028
  %v8134 = vunpack.c.l.b16 %v8029
  %v8135 = vunpack.c.h.b16 %v8029
  %v8136 = vunpack.c.l.b16 %v8030
  %v8137 = vunpack.c.h.b16 %v8030
  %v8138 = vunpack.c.l.b16 %v8031
  %v8139 = vunpack.c.h.b16 %v8031
  %v8140 = vunpack.c.l.b16 %v8032
  %v8141 = vunpack.c.h.b16 %v8032
  %v8142 = vpack.c.b16 %v8080, %v8078
  %v8143 = vpack.c.b16 %v8081, %v8079
  %v8144 = vpack.c.b16 %v8084, %v8082
  %v8145 = vpack.c.b16 %v8085, %v8083
  %v8146 = vpack.c.b16 %v8088, %v8086
  %v8147 = vpack.c.b16 %v8089, %v8087
  %v8148 = vpack.c.b16 %v8092, %v8090
  %v8149 = vpack.c.b16 %v8093, %v8091
  %v8150 = vpack.c.b16 %v8096, %v8094
  %v8151 = vpack.c.b16 %v8097, %v8095
  %v8152 = vpack.c.b16 %v8100, %v8098
  %v8153 = vpack.c.b16 %v8101, %v8099
  %v8154 = vpack.c.b16 %v8104, %v8102
  %v8155 = vpack.c.b16 %v8105, %v8103
  %v8156 = vpack.c.b16 %v8108, %v8106
  %v8157 = vpack.c.b16 %v8109, %v8107
  %v8158 = vpack.c.b16 %v8112, %v8110
  %v8159 = vpack.c.b16 %v8113, %v8111
  %v8160 = vpack.c.b16 %v8116, %v8114
  %v8161 = vpack.c.b16 %v8117, %v8115
  %v8162 = vpack.c.b16 %v8120, %v8118
  %v8163 = vpack.c.b16 %v8121, %v8119
  %v8164 = vpack.c.b16 %v8124, %v8122
  %v8165 = vpack.c.b16 %v8125, %v8123
  %v8166 = vpack.c.b16 %v8128, %v8126
  %v8167 = vpack.c.b16 %v8129, %v8127
  %v8168 = vpack.c.b16 %v8132, %v8130
  %v8169 = vpack.c.b16 %v8133, %v8131
  %v8170 = vpack.c.b16 %v8136, %v8134
  %v8171 = vpack.c.b16 %v8137, %v8135
  %v8172 = vpack.c.b16 %v8140, %v8138
  %v8173 = vpack.c.b16 %v8141, %v8139
  %8206 = vmatprep.subr.bf16.mxu0 %v8143
  %8207 = vmatpush1.bf16.msra.mxu0 %v8142
  %8208 = vmatprep.subr.bf16.mxu0 %v8145
  %8209 = vmatpush1.bf16.msra.mxu0 %v8144
  %8210 = vmatprep.subr.bf16.mxu0 %v8147
  %8211 = vmatpush1.bf16.msra.mxu0 %v8146
  %8212 = vmatprep.subr.bf16.mxu0 %v8149
  %8213 = vmatpush1.bf16.msra.mxu0 %v8148
  %8214 = vmatprep.subr.bf16.mxu0 %v8151
  %8215 = vmatpush1.bf16.msra.mxu0 %v8150
  %8216 = vmatprep.subr.bf16.mxu0 %v8153
  %8217 = vmatpush1.bf16.msra.mxu0 %v8152
  %8218 = vmatprep.subr.bf16.mxu0 %v8155
  %8219 = vmatpush1.bf16.msra.mxu0 %v8154
  %8220 = vmatprep.subr.bf16.mxu0 %v8157
  %8221 = vmatpush1.bf16.msra.mxu0 %v8156
  %8222 = vmatprep.subr.bf16.mxu0 %v8159
  %8223 = vmatpush1.bf16.msra.mxu0 %v8158
  %8224 = vmatprep.subr.bf16.mxu0 %v8161
  %8225 = vmatpush1.bf16.msra.mxu0 %v8160
  %8226 = vmatprep.subr.bf16.mxu0 %v8163
  %8227 = vmatpush1.bf16.msra.mxu0 %v8162
  %8228 = vmatprep.subr.bf16.mxu0 %v8165
  %8229 = vmatpush1.bf16.msra.mxu0 %v8164
  %8230 = vmatprep.subr.bf16.mxu0 %v8167
  %8231 = vmatpush1.bf16.msra.mxu0 %v8166
  %8232 = vmatprep.subr.bf16.mxu0 %v8169
  %8233 = vmatpush1.bf16.msra.mxu0 %v8168
  %8234 = vmatprep.subr.bf16.mxu0 %v8171
  %8235 = vmatpush1.bf16.msra.mxu0 %v8170
  %8236 = vmatprep.subr.bf16.mxu0 %v8173
  %8237 = vmatpush1.bf16.msra.mxu0 %v8172
  %8238 = vmatprep.mubr.bf16.mxu0 %v7969
  %8239 = vmatmul.mubr.bf16.gmra.mrb[0].mxu0 %v7968
  %v8240 = vpop.f32.mrb[0].mxu0
  %v8241 = vadd.f32 %v8039, %v8240
  %v8242 = vpop.f32.mrb[0].mxu0
  %v8243 = vadd.f32 %v8043, %v8242
  %v8244 = vpop.f32.mrb[0].mxu0
  %v8245 = vadd.f32 %v8039, %v8244
  %v8246 = vpop.f32.mrb[0].mxu0
  %v8247 = vadd.f32 %v8043, %v8246
  %8248 = vmatprep.mubr.bf16.mxu0 %v7971
  %8249 = vmatmul.mubr.bf16.gmra.mrb[0].mxu0 %v7970
  %v8250 = vpop.f32.mrb[0].mxu0
  %v8251 = vadd.f32 %v8039, %v8250
  %v8252 = vpop.f32.mrb[0].mxu0
  %v8253 = vadd.f32 %v8043, %v8252
  %v8254 = vpop.f32.mrb[0].mxu0
  %v8255 = vadd.f32 %v8039, %v8254
  %v8256 = vpop.f32.mrb[0].mxu0
  %v8257 = vadd.f32 %v8043, %v8256
  %8258 = vmatprep.mubr.bf16.mxu0 %v7973
  %8259 = vmatmul.mubr.bf16.gmra.mrb[0].mxu0 %v7972
  %v8260 = vpop.f32.mrb[0].mxu0
  %v8261 = vadd.f32 %v8039, %v8260
  %v8262 = vpop.f32.mrb[0].mxu0
  %v8263 = vadd.f32 %v8043, %v8262
  %v8264 = vpop.f32.mrb[0].mxu0
  %v8265 = vadd.f32 %v8039, %v8264
  %v8266 = vpop.f32.mrb[0].mxu0
  %v8267 = vadd.f32 %v8043, %v8266
  %8268 = vmatprep.mubr.bf16.mxu0 %v7975
  %8269 = vmatmul.mubr.bf16.gmra.mrb[0].mxu0 %v7974
  %v8270 = vpop.f32.mrb[0].mxu0
  %v8271 = vadd.f32 %v8039, %v8270
  %v8272 = vpop.f32.mrb[0].mxu0
  %v8273 = vadd.f32 %v8043, %v8272
  %v8274 = vpop.f32.mrb[0].mxu0
  %v8275 = vadd.f32 %v8039, %v8274
  %v8276 = vpop.f32.mrb[0].mxu0
  %v8277 = vadd.f32 %v8043, %v8276
  %8278 = vmatprep.mubr.bf16.mxu0 %v7977
  %8279 = vmatmul.mubr.bf16.gmra.mrb[0].mxu0 %v7976
  %v8280 = vpop.f32.mrb[0].mxu0
  %v8281 = vadd.f32 %v8039, %v8280
  %v8282 = vpop.f32.mrb[0].mxu0
  %v8283 = vadd.f32 %v8043, %v8282
  %v8284 = vpop.f32.mrb[0].mxu0
  %v8285 = vadd.f32 %v8039, %v8284
  %v8286 = vpop.f32.mrb[0].mxu0
  %v8287 = vadd.f32 %v8043, %v8286
  %8288 = vmatprep.mubr.bf16.mxu0 %v7979
  %8289 = vmatmul.mubr.bf16.gmra.mrb[0].mxu0 %v7978
  %v8290 = vpop.f32.mrb[0].mxu0
  %v8291 = vadd.f32 %v8039, %v8290
  %v8292 = vpop.f32.mrb[0].mxu0
  %v8293 = vadd.f32 %v8043, %v8292
  %v8294 = vpop.f32.mrb[0].mxu0
  %v8295 = vadd.f32 %v8039, %v8294
  %v8296 = vpop.f32.mrb[0].mxu0
  %v8297 = vadd.f32 %v8043, %v8296
  %8298 = vmatprep.mubr.bf16.mxu0 %v7981
  %8299 = vmatmul.mubr.bf16.gmra.mrb[0].mxu0 %v7980
  %v8300 = vpop.f32.mrb[0].mxu0
  %v8301 = vadd.f32 %v8039, %v8300
  %v8302 = vpop.f32.mrb[0].mxu0
  %v8303 = vadd.f32 %v8043, %v8302
  %v8304 = vpop.f32.mrb[0].mxu0
  %v8305 = vadd.f32 %v8039, %v8304
  %v8306 = vpop.f32.mrb[0].mxu0
  %v8307 = vadd.f32 %v8043, %v8306
  %8308 = vmatprep.mubr.bf16.mxu0 %v7983
  %8309 = vmatmul.mubr.bf16.gmra.mrb[0].mxu0 %v7982
  %v8310 = vpop.f32.mrb[0].mxu0
  %v8311 = vadd.f32 %v8039, %v8310
  %v8312 = vpop.f32.mrb[0].mxu0
  %v8313 = vadd.f32 %v8043, %v8312
  %v8314 = vpop.f32.mrb[0].mxu0
  %v8315 = vadd.f32 %v8039, %v8314
  %v8316 = vpop.f32.mrb[0].mxu0
  %v8317 = vadd.f32 %v8043, %v8316
  %8318 = vmatprep.mubr.bf16.mxu0 %v7985
  %8319 = vmatmul.mubr.bf16.gmra.mrb[0].mxu0 %v7984
  %v8320 = vpop.f32.mrb[0].mxu0
  %v8321 = vadd.f32 %v8039, %v8320
  %v8322 = vpop.f32.mrb[0].mxu0
  %v8323 = vadd.f32 %v8043, %v8322
  %v8324 = vpop.f32.mrb[0].mxu0
  %v8325 = vadd.f32 %v8039, %v8324
  %v8326 = vpop.f32.mrb[0].mxu0
  %v8327 = vadd.f32 %v8043, %v8326
  %8328 = vmatprep.mubr.bf16.mxu0 %v7987
  %8329 = vmatmul.mubr.bf16.gmra.mrb[0].mxu0 %v7986
  %v8330 = vpop.f32.mrb[0].mxu0
  %v8331 = vadd.f32 %v8039, %v8330
  %v8332 = vpop.f32.mrb[0].mxu0
  %v8333 = vadd.f32 %v8043, %v8332
  %v8334 = vpop.f32.mrb[0].mxu0
  %v8335 = vadd.f32 %v8039, %v8334
  %v8336 = vpop.f32.mrb[0].mxu0
  %v8337 = vadd.f32 %v8043, %v8336
  %8338 = vmatprep.mubr.bf16.mxu0 %v7989
  %8339 = vmatmul.mubr.bf16.gmra.mrb[0].mxu0 %v7988
  %v8340 = vpop.f32.mrb[0].mxu0
  %v8341 = vadd.f32 %v8039, %v8340
  %v8342 = vpop.f32.mrb[0].mxu0
  %v8343 = vadd.f32 %v8043, %v8342
  %v8344 = vpop.f32.mrb[0].mxu0
  %v8345 = vadd.f32 %v8039, %v8344
  %v8346 = vpop.f32.mrb[0].mxu0
  %v8347 = vadd.f32 %v8043, %v8346
  %8348 = vmatprep.mubr.bf16.mxu0 %v7991
  %8349 = vmatmul.mubr.bf16.gmra.mrb[0].mxu0 %v7990
  %v8350 = vpop.f32.mrb[0].mxu0
  %v8351 = vadd.f32 %v8039, %v8350
  %v8352 = vpop.f32.mrb[0].mxu0
  %v8353 = vadd.f32 %v8043, %v8352
  %v8354 = vpop.f32.mrb[0].mxu0
  %v8355 = vadd.f32 %v8039, %v8354
  %v8356 = vpop.f32.mrb[0].mxu0
  %v8357 = vadd.f32 %v8043, %v8356
  %8358 = vmatprep.mubr.bf16.mxu0 %v7993
  %8359 = vmatmul.mubr.bf16.gmra.mrb[0].mxu0 %v7992
  %v8360 = vpop.f32.mrb[0].mxu0
  %v8361 = vadd.f32 %v8039, %v8360
  %v8362 = vpop.f32.mrb[0].mxu0
  %v8363 = vadd.f32 %v8043, %v8362
  %v8364 = vpop.f32.mrb[0].mxu0
  %v8365 = vadd.f32 %v8039, %v8364
  %v8366 = vpop.f32.mrb[0].mxu0
  %v8367 = vadd.f32 %v8043, %v8366
  %8368 = vmatprep.mubr.bf16.mxu0 %v7995
  %8369 = vmatmul.mubr.bf16.gmra.mrb[0].mxu0 %v7994
  %v8370 = vpop.f32.mrb[0].mxu0
  %v8371 = vadd.f32 %v8039, %v8370
  %v8372 = vpop.f32.mrb[0].mxu0
  %v8373 = vadd.f32 %v8043, %v8372
  %v8374 = vpop.f32.mrb[0].mxu0
  %v8375 = vadd.f32 %v8039, %v8374
  %v8376 = vpop.f32.mrb[0].mxu0
  %v8377 = vadd.f32 %v8043, %v8376
  %8378 = vmatprep.mubr.bf16.mxu0 %v7997
  %8379 = vmatmul.mubr.bf16.gmra.mrb[0].mxu0 %v7996
  %v8380 = vpop.f32.mrb[0].mxu0
  %v8381 = vadd.f32 %v8039, %v8380
  %v8382 = vpop.f32.mrb[0].mxu0
  %v8383 = vadd.f32 %v8043, %v8382
  %v8384 = vpop.f32.mrb[0].mxu0
  %v8385 = vadd.f32 %v8039, %v8384
  %v8386 = vpop.f32.mrb[0].mxu0
  %v8387 = vadd.f32 %v8043, %v8386
  %8388 = vmatprep.mubr.bf16.mxu0 %v7999
  %8389 = vmatmul.mubr.bf16.gmra.mrb[0].mxu0 %v7998
  %v8390 = vpop.f32.mrb[0].mxu0
  %v8391 = vadd.f32 %v8039, %v8390
  %v8392 = vpop.f32.mrb[0].mxu0
  %v8393 = vadd.f32 %v8043, %v8392
  %v8394 = vpop.f32.mrb[0].mxu0
  %v8395 = vadd.f32 %v8039, %v8394
  %v8396 = vpop.f32.mrb[0].mxu0
  %v8397 = vadd.f32 %v8043, %v8396
  %8398 = vdwg.mxu0
  %v8399 = vmax.f32 %v8241, 0.0
  %v8400 = vmax.f32 %v8243, 0.0
  %v8401 = vmax.f32 %v8245, 0.0
  %v8402 = vmax.f32 %v8247, 0.0
  %v8403 = vmax.f32 %v8251, 0.0
  %v8404 = vmax.f32 %v8253, 0.0
  %v8405 = vmax.f32 %v8255, 0.0
  %v8406 = vmax.f32 %v8257, 0.0
  %v8407 = vmax.f32 %v8261, 0.0
  %v8408 = vmax.f32 %v8263, 0.0
  %v8409 = vmax.f32 %v8265, 0.0
  %v8410 = vmax.f32 %v8267, 0.0
  %v8411 = vmax.f32 %v8271, 0.0
  %v8412 = vmax.f32 %v8273, 0.0
  %v8413 = vmax.f32 %v8275, 0.0
  %v8414 = vmax.f32 %v8277, 0.0
  %v8415 = vmax.f32 %v8281, 0.0
  %v8416 = vmax.f32 %v8283, 0.0
  %v8417 = vmax.f32 %v8285, 0.0
  %v8418 = vmax.f32 %v8287, 0.0
  %v8419 = vmax.f32 %v8291, 0.0
  %v8420 = vmax.f32 %v8293, 0.0
  %v8421 = vmax.f32 %v8295, 0.0
  %v8422 = vmax.f32 %v8297, 0.0
  %v8423 = vmax.f32 %v8301, 0.0
  %v8424 = vmax.f32 %v8303, 0.0
  %v8425 = vmax.f32 %v8305, 0.0
  %v8426 = vmax.f32 %v8307, 0.0
  %v8427 = vmax.f32 %v8311, 0.0
  %v8428 = vmax.f32 %v8313, 0.0
  %v8429 = vmax.f32 %v8315, 0.0
  %v8430 = vmax.f32 %v8317, 0.0
  %v8431 = vmax.f32 %v8321, 0.0
  %v8432 = vmax.f32 %v8323, 0.0
  %v8433 = vmax.f32 %v8325, 0.0
  %v8434 = vmax.f32 %v8327, 0.0
  %v8435 = vmax.f32 %v8331, 0.0
  %v8436 = vmax.f32 %v8333, 0.0
  %v8437 = vmax.f32 %v8335, 0.0
  %v8438 = vmax.f32 %v8337, 0.0
  %v8439 = vmax.f32 %v8341, 0.0
  %v8440 = vmax.f32 %v8343, 0.0
  %v8441 = vmax.f32 %v8345, 0.0
  %v8442 = vmax.f32 %v8347, 0.0
  %v8443 = vmax.f32 %v8351, 0.0
  %v8444 = vmax.f32 %v8353, 0.0
  %v8445 = vmax.f32 %v8355, 0.0
  %v8446 = vmax.f32 %v8357, 0.0
  %v8447 = vmax.f32 %v8361, 0.0
  %v8448 = vmax.f32 %v8363, 0.0
  %v8449 = vmax.f32 %v8365, 0.0
  %v8450 = vmax.f32 %v8367, 0.0
  %v8451 = vmax.f32 %v8371, 0.0
  %v8452 = vmax.f32 %v8373, 0.0
  %v8453 = vmax.f32 %v8375, 0.0
  %v8454 = vmax.f32 %v8377, 0.0
  %v8455 = vmax.f32 %v8381, 0.0
  %v8456 = vmax.f32 %v8383, 0.0
  %v8457 = vmax.f32 %v8385, 0.0
  %v8458 = vmax.f32 %v8387, 0.0
  %v8459 = vmax.f32 %v8391, 0.0
  %v8460 = vmax.f32 %v8393, 0.0
  %v8461 = vmax.f32 %v8395, 0.0
  %v8462 = vmax.f32 %v8397, 0.0
  %v8463 = vpack.c.bf16 %v8401, %v8399
  %v8464 = vpack.c.bf16 %v8402, %v8400
  %v8465 = vpack.c.bf16 %v8405, %v8403
  %v8466 = vpack.c.bf16 %v8406, %v8404
  %v8467 = vpack.c.bf16 %v8409, %v8407
  %v8468 = vpack.c.bf16 %v8410, %v8408
  %v8469 = vpack.c.bf16 %v8413, %v8411
  %v8470 = vpack.c.bf16 %v8414, %v8412
  %v8471 = vpack.c.bf16 %v8417, %v8415
  %v8472 = vpack.c.bf16 %v8418, %v8416
  %v8473 = vpack.c.bf16 %v8421, %v8419
  %v8474 = vpack.c.bf16 %v8422, %v8420
  %v8475 = vpack.c.bf16 %v8425, %v8423
  %v8476 = vpack.c.bf16 %v8426, %v8424
  %v8477 = vpack.c.bf16 %v8429, %v8427
  %v8478 = vpack.c.bf16 %v8430, %v8428
  %v8479 = vpack.c.bf16 %v8433, %v8431
  %v8480 = vpack.c.bf16 %v8434, %v8432
  %v8481 = vpack.c.bf16 %v8437, %v8435
  %v8482 = vpack.c.bf16 %v8438, %v8436
  %v8483 = vpack.c.bf16 %v8441, %v8439
  %v8484 = vpack.c.bf16 %v8442, %v8440
  %v8485 = vpack.c.bf16 %v8445, %v8443
  %v8486 = vpack.c.bf16 %v8446, %v8444
  %v8487 = vpack.c.bf16 %v8449, %v8447
  %v8488 = vpack.c.bf16 %v8450, %v8448
  %v8489 = vpack.c.bf16 %v8453, %v8451
  %v8490 = vpack.c.bf16 %v8454, %v8452
  %v8491 = vpack.c.bf16 %v8457, %v8455
  %v8492 = vpack.c.bf16 %v8458, %v8456
  %v8493 = vpack.c.bf16 %v8461, %v8459
  %v8494 = vpack.c.bf16 %v8462, %v8460
  %s8495 = scalar_lea.vmem %s8, 1024
  %v8496 = vld [vmem:[%s8495] sm:$0xff]
  %v8497 = vld [vmem:[%s8495 + $0x8] sm:$0xff]
  %v8498 = vld [vmem:[%s8495 + $0x10] sm:$0xff]
  %v8499 = vld [vmem:[%s8495 + $0x18] sm:$0xff]
  %v8500 = vld [vmem:[%s8495 + $0x20] sm:$0xff]
  %v8501 = vld [vmem:[%s8495 + $0x28] sm:$0xff]
  %v8502 = vld [vmem:[%s8495 + $0x30] sm:$0xff]
  %v8503 = vld [vmem:[%s8495 + $0x38] sm:$0xff]
  %v8504 = vld [vmem:[%s8495 + $0x40] sm:$0xff]
  %v8505 = vld [vmem:[%s8495 + $0x48] sm:$0xff]
  %v8506 = vld [vmem:[%s8495 + $0x50] sm:$0xff]
  %v8507 = vld [vmem:[%s8495 + $0x58] sm:$0xff]
  %v8508 = vld [vmem:[%s8495 + $0x60] sm:$0xff]
  %v8509 = vld [vmem:[%s8495 + $0x68] sm:$0xff]
  %v8510 = vld [vmem:[%s8495 + $0x70] sm:$0xff]
  %v8511 = vld [vmem:[%s8495 + $0x78] sm:$0xff]
  %v8512 = vld [vmem:[%s8495 + $0x80] sm:$0xff]
  %v8513 = vld [vmem:[%s8495 + $0x88] sm:$0xff]
  %v8514 = vld [vmem:[%s8495 + $0x90] sm:$0xff]
  %v8515 = vld [vmem:[%s8495 + $0x98] sm:$0xff]
  %v8516 = vld [vmem:[%s8495 + $0xa0] sm:$0xff]
  %v8517 = vld [vmem:[%s8495 + $0xa8] sm:$0xff]
  %v8518 = vld [vmem:[%s8495 + $0xb0] sm:$0xff]
  %v8519 = vld [vmem:[%s8495 + $0xb8] sm:$0xff]
  %v8520 = vld [vmem:[%s8495 + $0xc0] sm:$0xff]
  %v8521 = vld [vmem:[%s8495 + $0xc8] sm:$0xff]
  %v8522 = vld [vmem:[%s8495 + $0xd0] sm:$0xff]
  %v8523 = vld [vmem:[%s8495 + $0xd8] sm:$0xff]
  %v8524 = vld [vmem:[%s8495 + $0xe0] sm:$0xff]
  %v8525 = vld [vmem:[%s8495 + $0xe8] sm:$0xff]
  %v8526 = vld [vmem:[%s8495 + $0xf0] sm:$0xff]
  %v8527 = vld [vmem:[%s8495 + $0xf8] sm:$0xff]
  %s8528 = scalar_lea.vmem %s9, 8
  %v8529 = vld [vmem:[%s8528] sm:$0x3]
  %v8531 = vlaneseq
  %v8532 = vshrl.u32 %v8531, 7
  %v8533 = vsub.s32 0, %v8532
  %v8534 = vrot.slane %v8529, %v8533
  %v8535 = vlaneseq
  %v8536 = vshrl.u32 %v8535, 7
  %v8537 = vsub.s32 1, %v8536
  %v8538 = vrot.slane %v8529, %v8537
  %v8573 = vunpack.c.l.b16 %v8496
  %v8574 = vunpack.c.h.b16 %v8496
  %v8575 = vunpack.c.l.b16 %v8497
  %v8576 = vunpack.c.h.b16 %v8497
  %v8577 = vunpack.c.l.b16 %v8498
  %v8578 = vunpack.c.h.b16 %v8498
  %v8579 = vunpack.c.l.b16 %v8499
  %v8580 = vunpack.c.h.b16 %v8499
  %v8581 = vunpack.c.l.b16 %v8500
  %v8582 = vunpack.c.h.b16 %v8500
  %v8583 = vunpack.c.l.b16 %v8501
  %v8584 = vunpack.c.h.b16 %v8501
  %v8585 = vunpack.c.l.b16 %v8502
  %v8586 = vunpack.c.h.b16 %v8502
  %v8587 = vunpack.c.l.b16 %v8503
  %v8588 = vunpack.c.h.b16 %v8503
  %v8589 = vunpack.c.l.b16 %v8504
  %v8590 = vunpack.c.h.b16 %v8504
  %v8591 = vunpack.c.l.b16 %v8505
  %v8592 = vunpack.c.h.b16 %v8505
  %v8593 = vunpack.c.l.b16 %v8506
  %v8594 = vunpack.c.h.b16 %v8506
  %v8595 = vunpack.c.l.b16 %v8507
  %v8596 = vunpack.c.h.b16 %v8507
  %v8597 = vunpack.c.l.b16 %v8508
  %v8598 = vunpack.c.h.b16 %v8508
  %v8599 = vunpack.c.l.b16 %v8509
  %v8600 = vunpack.c.h.b16 %v8509
  %v8601 = vunpack.c.l.b16 %v8510
  %v8602 = vunpack.c.h.b16 %v8510
  %v8603 = vunpack.c.l.b16 %v8511
  %v8604 = vunpack.c.h.b16 %v8511
  %v8605 = vunpack.c.l.b16 %v8512
  %v8606 = vunpack.c.h.b16 %v8512
  %v8607 = vunpack.c.l.b16 %v8513
  %v8608 = vunpack.c.h.b16 %v8513
  %v8609 = vunpack.c.l.b16 %v8514
  %v8610 = vunpack.c.h.b16 %v8514
  %v8611 = vunpack.c.l.b16 %v8515
  %v8612 = vunpack.c.h.b16 %v8515
  %v8613 = vunpack.c.l.b16 %v8516
  %v8614 = vunpack.c.h.b16 %v8516
  %v8615 = vunpack.c.l.b16 %v8517
  %v8616 = vunpack.c.h.b16 %v8517
  %v8617 = vunpack.c.l.b16 %v8518
  %v8618 = vunpack.c.h.b16 %v8518
  %v8619 = vunpack.c.l.b16 %v8519
  %v8620 = vunpack.c.h.b16 %v8519
  %v8621 = vunpack.c.l.b16 %v8520
  %v8622 = vunpack.c.h.b16 %v8520
  %v8623 = vunpack.c.l.b16 %v8521
  %v8624 = vunpack.c.h.b16 %v8521
  %v8625 = vunpack.c.l.b16 %v8522
  %v8626 = vunpack.c.h.b16 %v8522
  %v8627 = vunpack.c.l.b16 %v8523
  %v8628 = vunpack.c.h.b16 %v8523
  %v8629 = vunpack.c.l.b16 %v8524
  %v8630 = vunpack.c.h.b16 %v8524
  %v8631 = vunpack.c.l.b16 %v8525
  %v8632 = vunpack.c.h.b16 %v8525
  %v8633 = vunpack.c.l.b16 %v8526
  %v8634 = vunpack.c.h.b16 %v8526
  %v8635 = vunpack.c.l.b16 %v8527
  %v8636 = vunpack.c.h.b16 %v8527
  %v8637 = vpack.c.b16 %v8575, %v8573
  %v8638 = vpack.c.b16 %v8576, %v8574
  %v8639 = vpack.c.b16 %v8579, %v8577
  %v8640 = vpack.c.b16 %v8580, %v8578
  %v8641 = vpack.c.b16 %v8583, %v8581
  %v8642 = vpack.c.b16 %v8584, %v8582
  %v8643 = vpack.c.b16 %v8587, %v8585
  %v8644 = vpack.c.b16 %v8588, %v8586
  %v8645 = vpack.c.b16 %v8591, %v8589
  %v8646 = vpack.c.b16 %v8592, %v8590
  %v8647 = vpack.c.b16 %v8595, %v8593
  %v8648 = vpack.c.b16 %v8596, %v8594
  %v8649 = vpack.c.b16 %v8599, %v8597
  %v8650 = vpack.c.b16 %v8600, %v8598
  %v8651 = vpack.c.b16 %v8603, %v8601
  %v8652 = vpack.c.b16 %v8604, %v8602
  %v8653 = vpack.c.b16 %v8607, %v8605
  %v8654 = vpack.c.b16 %v8608, %v8606
  %v8655 = vpack.c.b16 %v8611, %v8609
  %v8656 = vpack.c.b16 %v8612, %v8610
  %v8657 = vpack.c.b16 %v8615, %v8613
  %v8658 = vpack.c.b16 %v8616, %v8614
  %v8659 = vpack.c.b16 %v8619, %v8617
  %v8660 = vpack.c.b16 %v8620, %v8618
  %v8661 = vpack.c.b16 %v8623, %v8621
  %v8662 = vpack.c.b16 %v8624, %v8622
  %v8663 = vpack.c.b16 %v8627, %v8625
  %v8664 = vpack.c.b16 %v8628, %v8626
  %v8665 = vpack.c.b16 %v8631, %v8629
  %v8666 = vpack.c.b16 %v8632, %v8630
  %v8667 = vpack.c.b16 %v8635, %v8633
  %v8668 = vpack.c.b16 %v8636, %v8634
  %8701 = vmatprep.subr.bf16.mxu0 %v8638
  %8702 = vmatpush1.bf16.msra.mxu0 %v8637
  %8703 = vmatprep.subr.bf16.mxu0 %v8640
  %8704 = vmatpush1.bf16.msra.mxu0 %v8639
  %8705 = vmatprep.subr.bf16.mxu0 %v8642
  %8706 = vmatpush1.bf16.msra.mxu0 %v8641
  %8707 = vmatprep.subr.bf16.mxu0 %v8644
  %8708 = vmatpush1.bf16.msra.mxu0 %v8643
  %8709 = vmatprep.subr.bf16.mxu0 %v8646
  %8710 = vmatpush1.bf16.msra.mxu0 %v8645
  %8711 = vmatprep.subr.bf16.mxu0 %v8648
  %8712 = vmatpush1.bf16.msra.mxu0 %v8647
  %8713 = vmatprep.subr.bf16.mxu0 %v8650
  %8714 = vmatpush1.bf16.msra.mxu0 %v8649
  %8715 = vmatprep.subr.bf16.mxu0 %v8652
  %8716 = vmatpush1.bf16.msra.mxu0 %v8651
  %8717 = vmatprep.subr.bf16.mxu0 %v8654
  %8718 = vmatpush1.bf16.msra.mxu0 %v8653
  %8719 = vmatprep.subr.bf16.mxu0 %v8656
  %8720 = vmatpush1.bf16.msra.mxu0 %v8655
  %8721 = vmatprep.subr.bf16.mxu0 %v8658
  %8722 = vmatpush1.bf16.msra.mxu0 %v8657
  %8723 = vmatprep.subr.bf16.mxu0 %v8660
  %8724 = vmatpush1.bf16.msra.mxu0 %v8659
  %8725 = vmatprep.subr.bf16.mxu0 %v8662
  %8726 = vmatpush1.bf16.msra.mxu0 %v8661
  %8727 = vmatprep.subr.bf16.mxu0 %v8664
  %8728 = vmatpush1.bf16.msra.mxu0 %v8663
  %8729 = vmatprep.subr.bf16.mxu0 %v8666
  %8730 = vmatpush1.bf16.msra.mxu0 %v8665
  %8731 = vmatprep.subr.bf16.mxu0 %v8668
  %8732 = vmatpush1.bf16.msra.mxu0 %v8667
  %8733 = vmatprep.mubr.bf16.mxu0 %v8464
  %8734 = vmatmul.mubr.bf16.gmra.mrb[0].mxu0 %v8463
  %v8735 = vpop.f32.mrb[0].mxu0
  %v8736 = vadd.f32 %v8534, %v8735
  %v8737 = vpop.f32.mrb[0].mxu0
  %v8738 = vadd.f32 %v8538, %v8737
  %v8739 = vpop.f32.mrb[0].mxu0
  %v8740 = vadd.f32 %v8534, %v8739
  %v8741 = vpop.f32.mrb[0].mxu0
  %v8742 = vadd.f32 %v8538, %v8741
  %8743 = vmatprep.mubr.bf16.mxu0 %v8466
  %8744 = vmatmul.mubr.bf16.gmra.mrb[0].mxu0 %v8465
  %v8745 = vpop.f32.mrb[0].mxu0
  %v8746 = vadd.f32 %v8534, %v8745
  %v8747 = vpop.f32.mrb[0].mxu0
  %v8748 = vadd.f32 %v8538, %v8747
  %v8749 = vpop.f32.mrb[0].mxu0
  %v8750 = vadd.f32 %v8534, %v8749
  %v8751 = vpop.f32.mrb[0].mxu0
  %v8752 = vadd.f32 %v8538, %v8751
  %8753 = vmatprep.mubr.bf16.mxu0 %v8468
  %8754 = vmatmul.mubr.bf16.gmra.mrb[0].mxu0 %v8467
  %v8755 = vpop.f32.mrb[0].mxu0
  %v8756 = vadd.f32 %v8534, %v8755
  %v8757 = vpop.f32.mrb[0].mxu0
  %v8758 = vadd.f32 %v8538, %v8757
  %v8759 = vpop.f32.mrb[0].mxu0
  %v8760 = vadd.f32 %v8534, %v8759
  %v8761 = vpop.f32.mrb[0].mxu0
  %v8762 = vadd.f32 %v8538, %v8761
  %8763 = vmatprep.mubr.bf16.mxu0 %v8470
  %8764 = vmatmul.mubr.bf16.gmra.mrb[0].mxu0 %v8469
  %v8765 = vpop.f32.mrb[0].mxu0
  %v8766 = vadd.f32 %v8534, %v8765
  %v8767 = vpop.f32.mrb[0].mxu0
  %v8768 = vadd.f32 %v8538, %v8767
  %v8769 = vpop.f32.mrb[0].mxu0
  %v8770 = vadd.f32 %v8534, %v8769
  %v8771 = vpop.f32.mrb[0].mxu0
  %v8772 = vadd.f32 %v8538, %v8771
  %8773 = vmatprep.mubr.bf16.mxu0 %v8472
  %8774 = vmatmul.mubr.bf16.gmra.mrb[0].mxu0 %v8471
  %v8775 = vpop.f32.mrb[0].mxu0
  %v8776 = vadd.f32 %v8534, %v8775
  %v8777 = vpop.f32.mrb[0].mxu0
  %v8778 = vadd.f32 %v8538, %v8777
  %v8779 = vpop.f32.mrb[0].mxu0
  %v8780 = vadd.f32 %v8534, %v8779
  %v8781 = vpop.f32.mrb[0].mxu0
  %v8782 = vadd.f32 %v8538, %v8781
  %8783 = vmatprep.mubr.bf16.mxu0 %v8474
  %8784 = vmatmul.mubr.bf16.gmra.mrb[0].mxu0 %v8473
  %v8785 = vpop.f32.mrb[0].mxu0
  %v8786 = vadd.f32 %v8534, %v8785
  %v8787 = vpop.f32.mrb[0].mxu0
  %v8788 = vadd.f32 %v8538, %v8787
  %v8789 = vpop.f32.mrb[0].mxu0
  %v8790 = vadd.f32 %v8534, %v8789
  %v8791 = vpop.f32.mrb[0].mxu0
  %v8792 = vadd.f32 %v8538, %v8791
  %8793 = vmatprep.mubr.bf16.mxu0 %v8476
  %8794 = vmatmul.mubr.bf16.gmra.mrb[0].mxu0 %v8475
  %v8795 = vpop.f32.mrb[0].mxu0
  %v8796 = vadd.f32 %v8534, %v8795
  %v8797 = vpop.f32.mrb[0].mxu0
  %v8798 = vadd.f32 %v8538, %v8797
  %v8799 = vpop.f32.mrb[0].mxu0
  %v8800 = vadd.f32 %v8534, %v8799
  %v8801 = vpop.f32.mrb[0].mxu0
  %v8802 = vadd.f32 %v8538, %v8801
  %8803 = vmatprep.mubr.bf16.mxu0 %v8478
  %8804 = vmatmul.mubr.bf16.gmra.mrb[0].mxu0 %v8477
  %v8805 = vpop.f32.mrb[0].mxu0
  %v8806 = vadd.f32 %v8534, %v8805
  %v8807 = vpop.f32.mrb[0].mxu0
  %v8808 = vadd.f32 %v8538, %v8807
  %v8809 = vpop.f32.mrb[0].mxu0
  %v8810 = vadd.f32 %v8534, %v8809
  %v8811 = vpop.f32.mrb[0].mxu0
  %v8812 = vadd.f32 %v8538, %v8811
  %8813 = vmatprep.mubr.bf16.mxu0 %v8480
  %8814 = vmatmul.mubr.bf16.gmra.mrb[0].mxu0 %v8479
  %v8815 = vpop.f32.mrb[0].mxu0
  %v8816 = vadd.f32 %v8534, %v8815
  %v8817 = vpop.f32.mrb[0].mxu0
  %v8818 = vadd.f32 %v8538, %v8817
  %v8819 = vpop.f32.mrb[0].mxu0
  %v8820 = vadd.f32 %v8534, %v8819
  %v8821 = vpop.f32.mrb[0].mxu0
  %v8822 = vadd.f32 %v8538, %v8821
  %8823 = vmatprep.mubr.bf16.mxu0 %v8482
  %8824 = vmatmul.mubr.bf16.gmra.mrb[0].mxu0 %v8481
  %v8825 = vpop.f32.mrb[0].mxu0
  %v8826 = vadd.f32 %v8534, %v8825
  %v8827 = vpop.f32.mrb[0].mxu0
  %v8828 = vadd.f32 %v8538, %v8827
  %v8829 = vpop.f32.mrb[0].mxu0
  %v8830 = vadd.f32 %v8534, %v8829
  %v8831 = vpop.f32.mrb[0].mxu0
  %v8832 = vadd.f32 %v8538, %v8831
  %8833 = vmatprep.mubr.bf16.mxu0 %v8484
  %8834 = vmatmul.mubr.bf16.gmra.mrb[0].mxu0 %v8483
  %v8835 = vpop.f32.mrb[0].mxu0
  %v8836 = vadd.f32 %v8534, %v8835
  %v8837 = vpop.f32.mrb[0].mxu0
  %v8838 = vadd.f32 %v8538, %v8837
  %v8839 = vpop.f32.mrb[0].mxu0
  %v8840 = vadd.f32 %v8534, %v8839
  %v8841 = vpop.f32.mrb[0].mxu0
  %v8842 = vadd.f32 %v8538, %v8841
  %8843 = vmatprep.mubr.bf16.mxu0 %v8486
  %8844 = vmatmul.mubr.bf16.gmra.mrb[0].mxu0 %v8485
  %v8845 = vpop.f32.mrb[0].mxu0
  %v8846 = vadd.f32 %v8534, %v8845
  %v8847 = vpop.f32.mrb[0].mxu0
  %v8848 = vadd.f32 %v8538, %v8847
  %v8849 = vpop.f32.mrb[0].mxu0
  %v8850 = vadd.f32 %v8534, %v8849
  %v8851 = vpop.f32.mrb[0].mxu0
  %v8852 = vadd.f32 %v8538, %v8851
  %8853 = vmatprep.mubr.bf16.mxu0 %v8488
  %8854 = vmatmul.mubr.bf16.gmra.mrb[0].mxu0 %v8487
  %v8855 = vpop.f32.mrb[0].mxu0
  %v8856 = vadd.f32 %v8534, %v8855
  %v8857 = vpop.f32.mrb[0].mxu0
  %v8858 = vadd.f32 %v8538, %v8857
  %v8859 = vpop.f32.mrb[0].mxu0
  %v8860 = vadd.f32 %v8534, %v8859
  %v8861 = vpop.f32.mrb[0].mxu0
  %v8862 = vadd.f32 %v8538, %v8861
  %8863 = vmatprep.mubr.bf16.mxu0 %v8490
  %8864 = vmatmul.mubr.bf16.gmra.mrb[0].mxu0 %v8489
  %v8865 = vpop.f32.mrb[0].mxu0
  %v8866 = vadd.f32 %v8534, %v8865
  %v8867 = vpop.f32.mrb[0].mxu0
  %v8868 = vadd.f32 %v8538, %v8867
  %v8869 = vpop.f32.mrb[0].mxu0
  %v8870 = vadd.f32 %v8534, %v8869
  %v8871 = vpop.f32.mrb[0].mxu0
  %v8872 = vadd.f32 %v8538, %v8871
  %8873 = vmatprep.mubr.bf16.mxu0 %v8492
  %8874 = vmatmul.mubr.bf16.gmra.mrb[0].mxu0 %v8491
  %v8875 = vpop.f32.mrb[0].mxu0
  %v8876 = vadd.f32 %v8534, %v8875
  %v8877 = vpop.f32.mrb[0].mxu0
  %v8878 = vadd.f32 %v8538, %v8877
  %v8879 = vpop.f32.mrb[0].mxu0
  %v8880 = vadd.f32 %v8534, %v8879
  %v8881 = vpop.f32.mrb[0].mxu0
  %v8882 = vadd.f32 %v8538, %v8881
  %8883 = vmatprep.mubr.bf16.mxu0 %v8494
  %8884 = vmatmul.mubr.bf16.gmra.mrb[0].mxu0 %v8493
  %v8885 = vpop.f32.mrb[0].mxu0
  %v8886 = vadd.f32 %v8534, %v8885
  %v8887 = vpop.f32.mrb[0].mxu0
  %v8888 = vadd.f32 %v8538, %v8887
  %v8889 = vpop.f32.mrb[0].mxu0
  %v8890 = vadd.f32 %v8534, %v8889
  %v8891 = vpop.f32.mrb[0].mxu0
  %v8892 = vadd.f32 %v8538, %v8891
  %8893 = vdwg.mxu0
  %v8894 = vmax.f32 %v8736, 0.0
  %v8895 = vmax.f32 %v8738, 0.0
  %v8896 = vmax.f32 %v8740, 0.0
  %v8897 = vmax.f32 %v8742, 0.0
  %v8898 = vmax.f32 %v8746, 0.0
  %v8899 = vmax.f32 %v8748, 0.0
  %v8900 = vmax.f32 %v8750, 0.0
  %v8901 = vmax.f32 %v8752, 0.0
  %v8902 = vmax.f32 %v8756, 0.0
  %v8903 = vmax.f32 %v8758, 0.0
  %v8904 = vmax.f32 %v8760, 0.0
  %v8905 = vmax.f32 %v8762, 0.0
  %v8906 = vmax.f32 %v8766, 0.0
  %v8907 = vmax.f32 %v8768, 0.0
  %v8908 = vmax.f32 %v8770, 0.0
  %v8909 = vmax.f32 %v8772, 0.0
  %v8910 = vmax.f32 %v8776, 0.0
  %v8911 = vmax.f32 %v8778, 0.0
  %v8912 = vmax.f32 %v8780, 0.0
  %v8913 = vmax.f32 %v8782, 0.0
  %v8914 = vmax.f32 %v8786, 0.0
  %v8915 = vmax.f32 %v8788, 0.0
  %v8916 = vmax.f32 %v8790, 0.0
  %v8917 = vmax.f32 %v8792, 0.0
  %v8918 = vmax.f32 %v8796, 0.0
  %v8919 = vmax.f32 %v8798, 0.0
  %v8920 = vmax.f32 %v8800, 0.0
  %v8921 = vmax.f32 %v8802, 0.0
  %v8922 = vmax.f32 %v8806, 0.0
  %v8923 = vmax.f32 %v8808, 0.0
  %v8924 = vmax.f32 %v8810, 0.0
  %v8925 = vmax.f32 %v8812, 0.0
  %v8926 = vmax.f32 %v8816, 0.0
  %v8927 = vmax.f32 %v8818, 0.0
  %v8928 = vmax.f32 %v8820, 0.0
  %v8929 = vmax.f32 %v8822, 0.0
  %v8930 = vmax.f32 %v8826, 0.0
  %v8931 = vmax.f32 %v8828, 0.0
  %v8932 = vmax.f32 %v8830, 0.0
  %v8933 = vmax.f32 %v8832, 0.0
  %v8934 = vmax.f32 %v8836, 0.0
  %v8935 = vmax.f32 %v8838, 0.0
  %v8936 = vmax.f32 %v8840, 0.0
  %v8937 = vmax.f32 %v8842, 0.0
  %v8938 = vmax.f32 %v8846, 0.0
  %v8939 = vmax.f32 %v8848, 0.0
  %v8940 = vmax.f32 %v8850, 0.0
  %v8941 = vmax.f32 %v8852, 0.0
  %v8942 = vmax.f32 %v8856, 0.0
  %v8943 = vmax.f32 %v8858, 0.0
  %v8944 = vmax.f32 %v8860, 0.0
  %v8945 = vmax.f32 %v8862, 0.0
  %v8946 = vmax.f32 %v8866, 0.0
  %v8947 = vmax.f32 %v8868, 0.0
  %v8948 = vmax.f32 %v8870, 0.0
  %v8949 = vmax.f32 %v8872, 0.0
  %v8950 = vmax.f32 %v8876, 0.0
  %v8951 = vmax.f32 %v8878, 0.0
  %v8952 = vmax.f32 %v8880, 0.0
  %v8953 = vmax.f32 %v8882, 0.0
  %v8954 = vmax.f32 %v8886, 0.0
  %v8955 = vmax.f32 %v8888, 0.0
  %v8956 = vmax.f32 %v8890, 0.0
  %v8957 = vmax.f32 %v8892, 0.0
  %v8958 = vadd.f32 %v8894, %v7904
  %v8959 = vadd.f32 %v8895, %v7905
  %v8960 = vadd.f32 %v8896, %v7906
  %v8961 = vadd.f32 %v8897, %v7907
  %v8962 = vadd.f32 %v8898, %v7908
  %v8963 = vadd.f32 %v8899, %v7909
  %v8964 = vadd.f32 %v8900, %v7910
  %v8965 = vadd.f32 %v8901, %v7911
  %v8966 = vadd.f32 %v8902, %v7912
  %v8967 = vadd.f32 %v8903, %v7913
  %v8968 = vadd.f32 %v8904, %v7914
  %v8969 = vadd.f32 %v8905, %v7915
  %v8970 = vadd.f32 %v8906, %v7916
  %v8971 = vadd.f32 %v8907, %v7917
  %v8972 = vadd.f32 %v8908, %v7918
  %v8973 = vadd.f32 %v8909, %v7919
  %v8974 = vadd.f32 %v8910, %v7920
  %v8975 = vadd.f32 %v8911, %v7921
  %v8976 = vadd.f32 %v8912, %v7922
  %v8977 = vadd.f32 %v8913, %v7923
  %v8978 = vadd.f32 %v8914, %v7924
  %v8979 = vadd.f32 %v8915, %v7925
  %v8980 = vadd.f32 %v8916, %v7926
  %v8981 = vadd.f32 %v8917, %v7927
  %v8982 = vadd.f32 %v8918, %v7928
  %v8983 = vadd.f32 %v8919, %v7929
  %v8984 = vadd.f32 %v8920, %v7930
  %v8985 = vadd.f32 %v8921, %v7931
  %v8986 = vadd.f32 %v8922, %v7932
  %v8987 = vadd.f32 %v8923, %v7933
  %v8988 = vadd.f32 %v8924, %v7934
  %v8989 = vadd.f32 %v8925, %v7935
  %v8990 = vadd.f32 %v8926, %v7936
  %v8991 = vadd.f32 %v8927, %v7937
  %v8992 = vadd.f32 %v8928, %v7938
  %v8993 = vadd.f32 %v8929, %v7939
  %v8994 = vadd.f32 %v8930, %v7940
  %v8995 = vadd.f32 %v8931, %v7941
  %v8996 = vadd.f32 %v8932, %v7942
  %v8997 = vadd.f32 %v8933, %v7943
  %v8998 = vadd.f32 %v8934, %v7944
  %v8999 = vadd.f32 %v8935, %v7945
  %v9000 = vadd.f32 %v8936, %v7946
  %v9001 = vadd.f32 %v8937, %v7947
  %v9002 = vadd.f32 %v8938, %v7948
  %v9003 = vadd.f32 %v8939, %v7949
  %v9004 = vadd.f32 %v8940, %v7950
  %v9005 = vadd.f32 %v8941, %v7951
  %v9006 = vadd.f32 %v8942, %v7952
  %v9007 = vadd.f32 %v8943, %v7953
  %v9008 = vadd.f32 %v8944, %v7954
  %v9009 = vadd.f32 %v8945, %v7955
  %v9010 = vadd.f32 %v8946, %v7956
  %v9011 = vadd.f32 %v8947, %v7957
  %v9012 = vadd.f32 %v8948, %v7958
  %v9013 = vadd.f32 %v8949, %v7959
  %v9014 = vadd.f32 %v8950, %v7960
  %v9015 = vadd.f32 %v8951, %v7961
  %v9016 = vadd.f32 %v8952, %v7962
  %v9017 = vadd.f32 %v8953, %v7963
  %v9018 = vadd.f32 %v8954, %v7964
  %v9019 = vadd.f32 %v8955, %v7965
  %v9020 = vadd.f32 %v8956, %v7966
  %v9021 = vadd.f32 %v8957, %v7967
  %9022 = vst [vmem:[%s10] sm:$0xff] %v8958
  %9023 = vst [vmem:[%s10 + $0x8] sm:$0xff] %v8959
  %9024 = vst [vmem:[%s10 + $0x10] sm:$0xff] %v8960
  %9025 = vst [vmem:[%s10 + $0x18] sm:$0xff] %v8961
  %9026 = vst [vmem:[%s10 + $0x20] sm:$0xff] %v8962
  %9027 = vst [vmem:[%s10 + $0x28] sm:$0xff] %v8963
  %9028 = vst [vmem:[%s10 + $0x30] sm:$0xff] %v8964
  %9029 = vst [vmem:[%s10 + $0x38] sm:$0xff] %v8965
  %9030 = vst [vmem:[%s10 + $0x40] sm:$0xff] %v8966
  %9031 = vst [vmem:[%s10 + $0x48] sm:$0xff] %v8967
  %9032 = vst [vmem:[%s10 + $0x50] sm:$0xff] %v8968
  %9033 = vst [vmem:[%s10 + $0x58] sm:$0xff] %v8969
  %9034 = vst [vmem:[%s10 + $0x60] sm:$0xff] %v8970
  %9035 = vst [vmem:[%s10 + $0x68] sm:$0xff] %v8971
  %9036 = vst [vmem:[%s10 + $0x70] sm:$0xff] %v8972
  %9037 = vst [vmem:[%s10 + $0x78] sm:$0xff] %v8973
  %9038 = vst [vmem:[%s10 + $0x80] sm:$0xff] %v8974
  %9039 = vst [vmem:[%s10 + $0x88] sm:$0xff] %v8975
  %9040 = vst [vmem:[%s10 + $0x90] sm:$0xff] %v8976
  %9041 = vst [vmem:[%s10 + $0x98] sm:$0xff] %v8977
  %9042 = vst [vmem:[%s10 + $0xa0] sm:$0xff] %v8978
  %9043 = vst [vmem:[%s10 + $0xa8] sm:$0xff] %v8979
  %9044 = vst [vmem:[%s10 + $0xb0] sm:$0xff] %v8980
  %9045 = vst [vmem:[%s10 + $0xb8] sm:$0xff] %v8981
  %9046 = vst [vmem:[%s10 + $0xc0] sm:$0xff] %v8982
  %9047 = vst [vmem:[%s10 + $0xc8] sm:$0xff] %v8983
  %9048 = vst [vmem:[%s10 + $0xd0] sm:$0xff] %v8984
  %9049 = vst [vmem:[%s10 + $0xd8] sm:$0xff] %v8985
  %9050 = vst [vmem:[%s10 + $0xe0] sm:$0xff] %v8986
  %9051 = vst [vmem:[%s10 + $0xe8] sm:$0xff] %v8987
  %9052 = vst [vmem:[%s10 + $0xf0] sm:$0xff] %v8988
  %9053 = vst [vmem:[%s10 + $0xf8] sm:$0xff] %v8989
  %9054 = vst [vmem:[%s10 + $0x100] sm:$0xff] %v8990
  %9055 = vst [vmem:[%s10 + $0x108] sm:$0xff] %v8991
  %9056 = vst [vmem:[%s10 + $0x110] sm:$0xff] %v8992
  %9057 = vst [vmem:[%s10 + $0x118] sm:$0xff] %v8993
  %9058 = vst [vmem:[%s10 + $0x120] sm:$0xff] %v8994
  %9059 = vst [vmem:[%s10 + $0x128] sm:$0xff] %v8995
  %9060 = vst [vmem:[%s10 + $0x130] sm:$0xff] %v8996
  %9061 = vst [vmem:[%s10 + $0x138] sm:$0xff] %v8997
  %9062 = vst [vmem:[%s10 + $0x140] sm:$0xff] %v8998
  %9063 = vst [vmem:[%s10 + $0x148] sm:$0xff] %v8999
  %9064 = vst [vmem:[%s10 + $0x150] sm:$0xff] %v9000
  %9065 = vst [vmem:[%s10 + $0x158] sm:$0xff] %v9001
  %9066 = vst [vmem:[%s10 + $0x160] sm:$0xff] %v9002
  %9067 = vst [vmem:[%s10 + $0x168] sm:$0xff] %v9003
  %9068 = vst [vmem:[%s10 + $0x170] sm:$0xff] %v9004
  %9069 = vst [vmem:[%s10 + $0x178] sm:$0xff] %v9005
  %9070 = vst [vmem:[%s10 + $0x180] sm:$0xff] %v9006
  %9071 = vst [vmem:[%s10 + $0x188] sm:$0xff] %v9007
  %9072 = vst [vmem:[%s10 + $0x190] sm:$0xff] %v9008
  %9073 = vst [vmem:[%s10 + $0x198] sm:$0xff] %v9009
  %9074 = vst [vmem:[%s10 + $0x1a0] sm:$0xff] %v9010
  %9075 = vst [vmem:[%s10 + $0x1a8] sm:$0xff] %v9011
  %9076 = vst [vmem:[%s10 + $0x1b0] sm:$0xff] %v9012
  %9077 = vst [vmem:[%s10 + $0x1b8] sm:$0xff] %v9013
  %9078 = vst [vmem:[%s10 + $0x1c0] sm:$0xff] %v9014
  %9079 = vst [vmem:[%s10 + $0x1c8] sm:$0xff] %v9015
  %9080 = vst [vmem:[%s10 + $0x1d0] sm:$0xff] %v9016
  %9081 = vst [vmem:[%s10 + $0x1d8] sm:$0xff] %v9017
  %9082 = vst [vmem:[%s10 + $0x1e0] sm:$0xff] %v9018
  %9083 = vst [vmem:[%s10 + $0x1e8] sm:$0xff] %v9019
  %9084 = vst [vmem:[%s10 + $0x1f0] sm:$0xff] %v9020
  %9085 = vst [vmem:[%s10 + $0x1f8] sm:$0xff] %v9021
  // Predicated region
  $region42: #{cond_mlp_pallas.1} parent=0 // pred_check
    _
  $region43: #{cond_mlp_pallas.1} parent=0 // pred_check_branch
    %9087 = sbr.rel (0) target = $region45
  $region44: #{cond_mlp_pallas.1} parent=0 // pred_region
    _
  $region45: #{cond_mlp_pallas.1} parent=0 // pred_fallthru
    _
  // Predicated region
  $region46: #{cond_mlp_pallas.1} parent=0 // pred_check
    _
  $region47: #{cond_mlp_pallas.1} parent=0 // pred_check_branch
    %9089 = sbr.rel (0) target = $region49
  $region48: #{cond_mlp_pallas.1} parent=0 // pred_region
    _
  $region49: #{cond_mlp_pallas.1} parent=0 // pred_fallthru
    _

</llo_original>
